<compile_context>
chip_gen: v7x
topology: tpu7x:2x2x1
jax: 0.10.0
libtpu: 0.0.40
codegen_flags: <defaults>
</compile_context>

<pallas_src>
import functools

import jax
import jax.numpy as jnp
from jax.experimental import pallas as pl
from jax.experimental.pallas import tpu as pltpu

EPS = 1e-5


def _fused_conv_bn_add_kernel(x_ref, w_ref, skip_ref, gamma_ref, beta_ref,
                              out_ref, acc_ref,
                              *, n, h, w_out, wp, cin, cout, eps):
    """x_ref:    (n*(h+2), wp, cin)  bf16   zero-padded input rows (1-row halo/img)
       w_ref:    (3, cin, 3*cout)    bf16   w3[kh, ci, kw*cout+co] = w[co,ci,kh,kw]
       skip_ref: (n*h, wp, cout)     f32    residual, padded to wp columns
       gamma/beta: (1, cout)         f32
       out_ref:  (n*h, wp, cout)     f32    (columns >= w_out are garbage, cropped)
       acc_ref:  (n*h, wp, cout)     f32    conv accumulator (VMEM scratch)
    """
    m = h * wp
    hp = h + 2

    # ---------------- 3x3 conv: one MXU matmul per (image, kh) ----------------
    for i in range(n):
        r0 = i * hp          # first padded input row of image i
        o0 = i * h           # first output row of image i
        for kh in range(3):
            xk = x_ref[r0 + kh:r0 + kh + h].reshape(m, cin)            # bf16
            y = jnp.dot(xk, w_ref[kh], preferred_element_type=jnp.float32)
            part = y[:, 0:cout]
            part = part + pltpu.roll(y[:, cout:2 * cout], m - 1, axis=0)      # q <- q+1
            part = part + pltpu.roll(y[:, 2 * cout:3 * cout], m - 2, axis=0)  # q <- q+2
            part = part.reshape(h, wp, cout)
            if kh == 0:
                acc_ref[o0:o0 + h] = part
            else:
                acc_ref[o0:o0 + h] = acc_ref[o0:o0 + h] + part

    # ------------- batch statistics over the valid columns only --------------
    conv = acc_ref[...]                                           # (n*h, wp, cout)
    col = jax.lax.broadcasted_iota(jnp.int32, (n * h, wp, cout), 1)
    valid = col < w_out
    cm = jnp.where(valid, conv, 0.0)
    inv_cnt = 1.0 / float(n * h * w_out)
    mean = jnp.sum(cm.reshape(n * m, cout), axis=0, keepdims=True) * inv_cnt   # (1, cout)
    d = jnp.where(valid, conv - mean, 0.0)
    var = jnp.sum((d * d).reshape(n * m, cout), axis=0, keepdims=True) * inv_cnt
    inv = jax.lax.rsqrt(var + eps)
    scale = gamma_ref[...] * inv                                  # (1, cout)
    shift = beta_ref[...] - mean * scale

    # ---------------- BN affine + residual add, dense stores ------------------
    out_ref[...] = conv * scale + shift + skip_ref[...]


@jax.jit
def conv_bn_add(x30_nchw, x27_nchw, w_oihw, gamma, beta):
    """x30, x27: (N, C, H, W) f32; w: (Cout, Cin, 3, 3) f32; gamma/beta: (C,) f32."""
    N, C, H, W = x30_nchw.shape
    Cout, Cin = w_oihw.shape[0], w_oihw.shape[1]

    wp = ((W + 2 + 15) // 16) * 16          # padded width, multiple of 16
    assert wp >= W + 2                      # roll wrap must land in padded cols

    # NCHW -> NHWC; bf16 for the MXU; pad H by (1,1) and W by (1, wp-W-1) with
    # zeros; flatten (N, H+2) so all in-kernel ref accesses are static slices.
    x_nhwc = jnp.transpose(x30_nchw, (0, 2, 3, 1)).astype(jnp.bfloat16)
    x_pad = jnp.pad(x_nhwc, ((0, 0), (1, 1), (1, wp - W - 1), (0, 0)))
    x_pad = x_pad.reshape(N * (H + 2), wp, Cin)

    # residual in NHWC, padded on the right to wp columns, flattened (N, H)
    skip = jnp.transpose(x27_nchw, (0, 2, 3, 1))
    skip = jnp.pad(skip, ((0, 0), (0, 0), (0, wp - W), (0, 0)))
    skip = skip.reshape(N * H, wp, Cout)

    # OIHW -> (kh, Cin, 3*Cout): w3[kh, ci, kw*Cout + co] = w[co, ci, kh, kw]
    w3 = jnp.transpose(w_oihw, (2, 1, 3, 0)).reshape(3, Cin, 3 * Cout)
    w3 = w3.astype(jnp.bfloat16)

    out_flat = pl.pallas_call(
        functools.partial(_fused_conv_bn_add_kernel,
                          n=N, h=H, w_out=W, wp=wp, cin=Cin, cout=Cout, eps=EPS),
        out_shape=jax.ShapeDtypeStruct((N * H, wp, Cout), jnp.float32),
        in_specs=[pl.BlockSpec(memory_space=pltpu.MemorySpace.VMEM)] * 5,
        out_specs=pl.BlockSpec(memory_space=pltpu.MemorySpace.VMEM),
        scratch_shapes=[pltpu.VMEM((N * H, wp, Cout), jnp.float32)],
    )(x_pad, w3, skip,
      gamma.reshape(1, Cout).astype(jnp.float32),
      beta.reshape(1, Cout).astype(jnp.float32))

    # crop the padded columns and go back to PyTorch's NCHW (fused by XLA)
    out = out_flat.reshape(N, H, wp, Cout)[:, :, :W, :]
    return jnp.transpose(out, (0, 3, 1, 2))


def reference(x30_nchw, x27_nchw, w_oihw, gamma, beta):
    # Same bf16 MXU operands as the kernel (f32 accumulation), rest in f32.
    conv = jax.lax.conv_general_dilated(
        x30_nchw.astype(jnp.bfloat16), w_oihw.astype(jnp.bfloat16),
        window_strides=(1, 1), padding=((1, 1), (1, 1)),
        dimension_numbers=("NCHW", "OIHW", "NCHW"),
        preferred_element_type=jnp.float32)
    mean = jnp.mean(conv, axis=(0, 2, 3), keepdims=True)
    var = jnp.mean((conv - mean) ** 2, axis=(0, 2, 3), keepdims=True)
    bn = (conv - mean) * jax.lax.rsqrt(var + EPS)
    bn = bn * gamma.reshape(1, -1, 1, 1) + beta.reshape(1, -1, 1, 1)
    return bn + x27_nchw


if __name__ == "__main__":
    # Shapes from the PyTorch module: (1, 128, 28, 28)
    N, C, H, W = 1, 128, 28, 28

    key = jax.random.PRNGKey(0)
    k1, k2, k3, k4, k5 = jax.random.split(key, 5)
    x30 = jax.random.normal(k1, (N, C, H, W), jnp.float32)
    x27 = jax.random.normal(k2, (N, C, H, W), jnp.float32)
    w = jax.random.normal(k3, (C, C, 3, 3), jnp.float32) * 0.05   # Conv2d weight (no bias)
    gamma = 1.0 + 0.1 * jax.random.normal(k4, (C,), jnp.float32)  # BN weight
    beta = 0.1 * jax.random.normal(k5, (C,), jnp.float32)         # BN bias

    out = jax.block_until_ready(conv_bn_add(x30, x27, w, gamma, beta))
    ref = jax.block_until_ready(reference(x30, x27, w, gamma, beta))

    assert out.shape == (N, C, H, W)
    assert jnp.allclose(out, ref, atol=1e-2, rtol=1e-2), \
        f"max abs err {jnp.max(jnp.abs(out - ref))}"

    print("KERNEL_OK")
</pallas_src>

<mosaic_0001>
module attributes {stable_mosaic.version = 11 : i64} {
  func.func @_fused_conv_bn_add_kernel(%arg0: memref<30x32x128xbf16, #tpu.memory_space<vmem>>, %arg1: memref<3x128x384xbf16, #tpu.memory_space<vmem>>, %arg2: memref<28x32x128xf32, #tpu.memory_space<vmem>>, %arg3: memref<1x128xf32, #tpu.memory_space<vmem>>, %arg4: memref<1x128xf32, #tpu.memory_space<vmem>>, %arg5: memref<28x32x128xf32, #tpu.memory_space<vmem>>, %arg6: memref<28x32x128xf32, #tpu.memory_space<vmem>>) attributes {dimension_semantics = [], scalar_prefetch = 0 : i64, scratch_operands = 1 : i64, tpu.core_type = #tpu.core_type<tc>} {
    %c0 = arith.constant 0 : index
    %c0_0 = arith.constant 0 : index
    %c0_1 = arith.constant 0 : index
    %0 = vector.load %arg0[%c0, %c0_0, %c0_1] : memref<30x32x128xbf16, #tpu.memory_space<vmem>>, vector<28x32x128xbf16>
    %1 = vector.shape_cast %0 : vector<28x32x128xbf16> to vector<896x128xbf16>
    %c0_2 = arith.constant 0 : index
    %c0_3 = arith.constant 0 : index
    %c0_4 = arith.constant 0 : index
    %2 = vector.load %arg1[%c0_2, %c0_3, %c0_4] : memref<3x128x384xbf16, #tpu.memory_space<vmem>>, vector<1x128x384xbf16>
    %3 = vector.shape_cast %2 : vector<1x128x384xbf16> to vector<128x384xbf16>
    %cst = arith.constant dense<0.000000e+00> : vector<896x384xf32>
    %4 = tpu.matmul %1, %3, %cst {dimension_numbers = #tpu.dot_dimension_numbers<[1], [0], [0], [1], [0, 0, 1, 1], [], []>} : vector<896x128xbf16>, vector<128x384xbf16>, vector<896x384xf32> -> vector<896x384xf32>
    %5 = vector.extract_strided_slice %4 {offsets = [0, 0], sizes = [896, 128], strides = [1, 1]} : vector<896x384xf32> to vector<896x128xf32>
    %6 = vector.extract_strided_slice %4 {offsets = [0, 128], sizes = [896, 128], strides = [1, 1]} : vector<896x384xf32> to vector<896x128xf32>
    %c895_i32 = arith.constant 895 : i32
    %7 = tpu.dynamic_rotate %6 by %c895_i32 dim 0 : vector<896x128xf32>, i32 -> vector<896x128xf32>
    %8 = arith.addf %5, %7 : vector<896x128xf32>
    %9 = vector.extract_strided_slice %4 {offsets = [0, 256], sizes = [896, 128], strides = [1, 1]} : vector<896x384xf32> to vector<896x128xf32>
    %c894_i32 = arith.constant 894 : i32
    %10 = tpu.dynamic_rotate %9 by %c894_i32 dim 0 : vector<896x128xf32>, i32 -> vector<896x128xf32>
    %11 = arith.addf %8, %10 : vector<896x128xf32>
    %12 = vector.shape_cast %11 : vector<896x128xf32> to vector<28x32x128xf32>
    %c0_5 = arith.constant 0 : index
    %c0_6 = arith.constant 0 : index
    %c0_7 = arith.constant 0 : index
    %13 = vector.load %arg6[%c0_5, %c0_6, %c0_7] : memref<28x32x128xf32, #tpu.memory_space<vmem>>, vector<28x32x128xf32>
    tpu.vector_store %arg6[%c0_5, %c0_6, %c0_7], %12 {strides = array<i32>} : memref<28x32x128xf32, #tpu.memory_space<vmem>>, vector<28x32x128xf32>,
    %c1 = arith.constant 1 : index
    %c0_8 = arith.constant 0 : index
    %c0_9 = arith.constant 0 : index
    %14 = vector.load %arg0[%c1, %c0_8, %c0_9] : memref<30x32x128xbf16, #tpu.memory_space<vmem>>, vector<28x32x128xbf16>
    %15 = vector.shape_cast %14 : vector<28x32x128xbf16> to vector<896x128xbf16>
    %c1_10 = arith.constant 1 : index
    %c0_11 = arith.constant 0 : index
    %c0_12 = arith.constant 0 : index
    %16 = vector.load %arg1[%c1_10, %c0_11, %c0_12] : memref<3x128x384xbf16, #tpu.memory_space<vmem>>, vector<1x128x384xbf16>
    %17 = vector.shape_cast %16 : vector<1x128x384xbf16> to vector<128x384xbf16>
    %cst_13 = arith.constant dense<0.000000e+00> : vector<896x384xf32>
    %18 = tpu.matmul %15, %17, %cst_13 {dimension_numbers = #tpu.dot_dimension_numbers<[1], [0], [0], [1], [0, 0, 1, 1], [], []>} : vector<896x128xbf16>, vector<128x384xbf16>, vector<896x384xf32> -> vector<896x384xf32>
    %19 = vector.extract_strided_slice %18 {offsets = [0, 0], sizes = [896, 128], strides = [1, 1]} : vector<896x384xf32> to vector<896x128xf32>
    %20 = vector.extract_strided_slice %18 {offsets = [0, 128], sizes = [896, 128], strides = [1, 1]} : vector<896x384xf32> to vector<896x128xf32>
    %c895_i32_14 = arith.constant 895 : i32
    %21 = tpu.dynamic_rotate %20 by %c895_i32_14 dim 0 : vector<896x128xf32>, i32 -> vector<896x128xf32>
    %22 = arith.addf %19, %21 : vector<896x128xf32>
    %23 = vector.extract_strided_slice %18 {offsets = [0, 256], sizes = [896, 128], strides = [1, 1]} : vector<896x384xf32> to vector<896x128xf32>
    %c894_i32_15 = arith.constant 894 : i32
    %24 = tpu.dynamic_rotate %23 by %c894_i32_15 dim 0 : vector<896x128xf32>, i32 -> vector<896x128xf32>
    %25 = arith.addf %22, %24 : vector<896x128xf32>
    %26 = vector.shape_cast %25 : vector<896x128xf32> to vector<28x32x128xf32>
    %c0_16 = arith.constant 0 : index
    %c0_17 = arith.constant 0 : index
    %c0_18 = arith.constant 0 : index
    %27 = vector.load %arg6[%c0_16, %c0_17, %c0_18] : memref<28x32x128xf32, #tpu.memory_space<vmem>>, vector<28x32x128xf32>
    %28 = arith.addf %27, %26 : vector<28x32x128xf32>
    %c0_19 = arith.constant 0 : index
    %c0_20 = arith.constant 0 : index
    %c0_21 = arith.constant 0 : index
    %29 = vector.load %arg6[%c0_19, %c0_20, %c0_21] : memref<28x32x128xf32, #tpu.memory_space<vmem>>, vector<28x32x128xf32>
    tpu.vector_store %arg6[%c0_19, %c0_20, %c0_21], %28 {strides = array<i32>} : memref<28x32x128xf32, #tpu.memory_space<vmem>>, vector<28x32x128xf32>,
    %c2 = arith.constant 2 : index
    %c0_22 = arith.constant 0 : index
    %c0_23 = arith.constant 0 : index
    %30 = vector.load %arg0[%c2, %c0_22, %c0_23] : memref<30x32x128xbf16, #tpu.memory_space<vmem>>, vector<28x32x128xbf16>
    %31 = vector.shape_cast %30 : vector<28x32x128xbf16> to vector<896x128xbf16>
    %c2_24 = arith.constant 2 : index
    %c0_25 = arith.constant 0 : index
    %c0_26 = arith.constant 0 : index
    %32 = vector.load %arg1[%c2_24, %c0_25, %c0_26] : memref<3x128x384xbf16, #tpu.memory_space<vmem>>, vector<1x128x384xbf16>
    %33 = vector.shape_cast %32 : vector<1x128x384xbf16> to vector<128x384xbf16>
    %cst_27 = arith.constant dense<0.000000e+00> : vector<896x384xf32>
    %34 = tpu.matmul %31, %33, %cst_27 {dimension_numbers = #tpu.dot_dimension_numbers<[1], [0], [0], [1], [0, 0, 1, 1], [], []>} : vector<896x128xbf16>, vector<128x384xbf16>, vector<896x384xf32> -> vector<896x384xf32>
    %35 = vector.extract_strided_slice %34 {offsets = [0, 0], sizes = [896, 128], strides = [1, 1]} : vector<896x384xf32> to vector<896x128xf32>
    %36 = vector.extract_strided_slice %34 {offsets = [0, 128], sizes = [896, 128], strides = [1, 1]} : vector<896x384xf32> to vector<896x128xf32>
    %c895_i32_28 = arith.constant 895 : i32
    %37 = tpu.dynamic_rotate %36 by %c895_i32_28 dim 0 : vector<896x128xf32>, i32 -> vector<896x128xf32>
    %38 = arith.addf %35, %37 : vector<896x128xf32>
    %39 = vector.extract_strided_slice %34 {offsets = [0, 256], sizes = [896, 128], strides = [1, 1]} : vector<896x384xf32> to vector<896x128xf32>
    %c894_i32_29 = arith.constant 894 : i32
    %40 = tpu.dynamic_rotate %39 by %c894_i32_29 dim 0 : vector<896x128xf32>, i32 -> vector<896x128xf32>
    %41 = arith.addf %38, %40 : vector<896x128xf32>
    %42 = vector.shape_cast %41 : vector<896x128xf32> to vector<28x32x128xf32>
    %c0_30 = arith.constant 0 : index
    %c0_31 = arith.constant 0 : index
    %c0_32 = arith.constant 0 : index
    %43 = vector.load %arg6[%c0_30, %c0_31, %c0_32] : memref<28x32x128xf32, #tpu.memory_space<vmem>>, vector<28x32x128xf32>
    %44 = arith.addf %43, %42 : vector<28x32x128xf32>
    %c0_33 = arith.constant 0 : index
    %c0_34 = arith.constant 0 : index
    %c0_35 = arith.constant 0 : index
    %45 = vector.load %arg6[%c0_33, %c0_34, %c0_35] : memref<28x32x128xf32, #tpu.memory_space<vmem>>, vector<28x32x128xf32>
    tpu.vector_store %arg6[%c0_33, %c0_34, %c0_35], %44 {strides = array<i32>} : memref<28x32x128xf32, #tpu.memory_space<vmem>>, vector<28x32x128xf32>,
    %c0_36 = arith.constant 0 : index
    %c0_37 = arith.constant 0 : index
    %c0_38 = arith.constant 0 : index
    %46 = vector.load %arg6[%c0_36, %c0_37, %c0_38] : memref<28x32x128xf32, #tpu.memory_space<vmem>>, vector<28x32x128xf32>
    %47 = tpu.iota {dimensions = array<i32: 1>} : vector<28x32x128xi32>
    %c28_i32 = arith.constant 28 : i32
    %48 = vector.broadcast %c28_i32 : i32 to vector<28x32x128xi32>
    %49 = arith.cmpi slt, %47, %48 : vector<28x32x128xi32>
    %cst_39 = arith.constant 0.000000e+00 : f32
    %50 = vector.broadcast %cst_39 : f32 to vector<28x32x128xf32>
    %51 = arith.select %49, %46, %50 : vector<28x32x128xi1>, vector<28x32x128xf32>
    %52 = vector.shape_cast %51 : vector<28x32x128xf32> to vector<896x128xf32>
    %cst_40 = arith.constant dense<0.000000e+00> : vector<128xf32>
    %53 = vector.multi_reduction <add>, %52, %cst_40 [0] : vector<896x128xf32> to vector<128xf32>
    %54 = vector.shape_cast %53 : vector<128xf32> to vector<1x128xf32>
    %cst_41 = arith.constant 0.00127551018 : f32
    %55 = vector.broadcast %cst_41 : f32 to vector<1x128xf32>
    %56 = arith.mulf %54, %55 : vector<1x128xf32>
    %57 = vector.shape_cast %56 : vector<1x128xf32> to vector<1x1x128xf32>
    %58 = vector.broadcast %57 : vector<1x1x128xf32> to vector<28x32x128xf32>
    %59 = arith.subf %46, %58 : vector<28x32x128xf32>
    %cst_42 = arith.constant 0.000000e+00 : f32
    %60 = vector.broadcast %cst_42 : f32 to vector<28x32x128xf32>
    %61 = arith.select %49, %59, %60 : vector<28x32x128xi1>, vector<28x32x128xf32>
    %62 = arith.mulf %61, %61 : vector<28x32x128xf32>
    %63 = vector.shape_cast %62 : vector<28x32x128xf32> to vector<896x128xf32>
    %cst_43 = arith.constant dense<0.000000e+00> : vector<128xf32>
    %64 = vector.multi_reduction <add>, %63, %cst_43 [0] : vector<896x128xf32> to vector<128xf32>
    %65 = vector.shape_cast %64 : vector<128xf32> to vector<1x128xf32>
    %cst_44 = arith.constant 0.00127551018 : f32
    %66 = vector.broadcast %cst_44 : f32 to vector<1x128xf32>
    %67 = arith.mulf %65, %66 : vector<1x128xf32>
    %cst_45 = arith.constant 9.99999974E-6 : f32
    %68 = vector.broadcast %cst_45 : f32 to vector<1x128xf32>
    %69 = arith.addf %67, %68 : vector<1x128xf32>
    %70 = math.rsqrt %69 : vector<1x128xf32>
    %c0_46 = arith.constant 0 : index
    %c0_47 = arith.constant 0 : index
    %71 = vector.load %arg3[%c0_46, %c0_47] : memref<1x128xf32, #tpu.memory_space<vmem>>, vector<1x128xf32>
    %72 = arith.mulf %71, %70 : vector<1x128xf32>
    %c0_48 = arith.constant 0 : index
    %c0_49 = arith.constant 0 : index
    %73 = vector.load %arg4[%c0_48, %c0_49] : memref<1x128xf32, #tpu.memory_space<vmem>>, vector<1x128xf32>
    %74 = arith.mulf %56, %72 : vector<1x128xf32>
    %75 = arith.subf %73, %74 : vector<1x128xf32>
    %76 = vector.shape_cast %72 : vector<1x128xf32> to vector<1x1x128xf32>
    %77 = vector.broadcast %76 : vector<1x1x128xf32> to vector<28x32x128xf32>
    %78 = arith.mulf %46, %77 : vector<28x32x128xf32>
    %79 = vector.shape_cast %75 : vector<1x128xf32> to vector<1x1x128xf32>
    %80 = vector.broadcast %79 : vector<1x1x128xf32> to vector<28x32x128xf32>
    %81 = arith.addf %78, %80 : vector<28x32x128xf32>
    %c0_50 = arith.constant 0 : index
    %c0_51 = arith.constant 0 : index
    %c0_52 = arith.constant 0 : index
    %82 = vector.load %arg2[%c0_50, %c0_51, %c0_52] : memref<28x32x128xf32, #tpu.memory_space<vmem>>, vector<28x32x128xf32>
    %83 = arith.addf %81, %82 : vector<28x32x128xf32>
    %c0_53 = arith.constant 0 : index
    %c0_54 = arith.constant 0 : index
    %c0_55 = arith.constant 0 : index
    %84 = vector.load %arg5[%c0_53, %c0_54, %c0_55] : memref<28x32x128xf32, #tpu.memory_space<vmem>>, vector<28x32x128xf32>
    tpu.vector_store %arg5[%c0_53, %c0_54, %c0_55], %83 {strides = array<i32>} : memref<28x32x128xf32, #tpu.memory_space<vmem>>, vector<28x32x128xf32>,
    return
  }
}

</mosaic_0001>

<llo_original>
// kernel: conv_bn_add.1
$region0: #{conv_bn_add.1}
  #allocation0 [shape = 'u32[]', space=smem, size = 0x4, offset = 0x4, fixed_abs, tag = 'smem constant byte address 0x4 - core index']
  #allocation1 [shape = 'u32[144,128]{1,0:T(1,128)}', space=vmem, size = 0x12000, scoped, tag = 'internal scratch']
  #allocation2 [shape = 'f32[28,32,128]{2,1,0:T(8,128)}', space=vmem, size = 0x70000, scoped, tag = 'scratch operand']
  %s0 = inlined_call_operand.vmem [shape: bf16[30,32,128], index: 0, kind: input, shape index: {}]
  %s1 = inlined_call_operand.vmem [shape: bf16[3,128,384], index: 1, kind: input, shape index: {}]
  %s2 = inlined_call_operand.vmem [shape: f32[28,32,128], index: 2, kind: input, shape index: {}]
  %s3 = inlined_call_operand.vmem [shape: f32[1,128], index: 3, kind: input, shape index: {}]
  %s4 = inlined_call_operand.vmem [shape: f32[1,128], index: 4, kind: input, shape index: {}]
  %s5 = inlined_call_operand.vmem [shape: f32[28,32,128], index: 5, kind: output, shape index: {}]
  %s6 = sld [smem:[#allocation0]]
  $region30: #{conv_bn_add.1} parent=0
    _
  %s8 = ssub.s32 1, %s6
  %s9 = scalar_select 0, %s8, %s6
  // Predicated region
  $region2: #{conv_bn_add.1} parent=0 // pred_check
    _
  $region3: #{conv_bn_add.1} parent=0 // pred_check_branch
    %11 = sbr.rel (0) target = $region5
  $region4: #{conv_bn_add.1} parent=0 // pred_region
    _
  $region5: #{conv_bn_add.1} parent=0 // pred_fallthru
    _
  // Predicated region
  $region6: #{conv_bn_add.1} parent=0 // pred_check
    _
  $region7: #{conv_bn_add.1} parent=0 // pred_check_branch
    %13 = sbr.rel (0) target = $region9
  $region8: #{conv_bn_add.1} parent=0 // pred_region
    _
  $region9: #{conv_bn_add.1} parent=0 // pred_fallthru
    _
  // Predicated region
  $region10: #{conv_bn_add.1} parent=0 // pred_check
    _
  $region11: #{conv_bn_add.1} parent=0 // pred_check_branch
    %15 = sbr.rel (0) target = $region13
  $region12: #{conv_bn_add.1} parent=0 // pred_region
    _
  $region13: #{conv_bn_add.1} parent=0 // pred_fallthru
    _
  // Predicated region
  $region14: #{conv_bn_add.1} parent=0 // pred_check
    _
  $region15: #{conv_bn_add.1} parent=0 // pred_check_branch
    %17 = sbr.rel (0) target = $region17
  $region16: #{conv_bn_add.1} parent=0 // pred_region
    _
  $region17: #{conv_bn_add.1} parent=0 // pred_fallthru
    _
  // Predicated region
  $region18: #{conv_bn_add.1} parent=0 // pred_check
    _
  $region19: #{conv_bn_add.1} parent=0 // pred_check_branch
    %19 = sbr.rel (0) target = $region21
  $region20: #{conv_bn_add.1} parent=0 // pred_region
    _
  $region21: #{conv_bn_add.1} parent=0 // pred_fallthru
    _
  %v21 = vld [vmem:[%s0] sm:$0xf]
  %v22 = vld [vmem:[%s0 + $0x4] sm:$0xf]
  %v23 = vld [vmem:[%s0 + $0x8] sm:$0xf]
  %v24 = vld [vmem:[%s0 + $0xc] sm:$0xf]
  %v25 = vld [vmem:[%s0 + $0x10] sm:$0xf]
  %v26 = vld [vmem:[%s0 + $0x14] sm:$0xf]
  %v27 = vld [vmem:[%s0 + $0x18] sm:$0xf]
  %v28 = vld [vmem:[%s0 + $0x1c] sm:$0xf]
  %v29 = vld [vmem:[%s0 + $0x20] sm:$0xf]
  %v30 = vld [vmem:[%s0 + $0x24] sm:$0xf]
  %v31 = vld [vmem:[%s0 + $0x28] sm:$0xf]
  %v32 = vld [vmem:[%s0 + $0x2c] sm:$0xf]
  %v33 = vld [vmem:[%s0 + $0x30] sm:$0xf]
  %v34 = vld [vmem:[%s0 + $0x34] sm:$0xf]
  %v35 = vld [vmem:[%s0 + $0x38] sm:$0xf]
  %v36 = vld [vmem:[%s0 + $0x3c] sm:$0xf]
  %v37 = vld [vmem:[%s0 + $0x40] sm:$0xf]
  %v38 = vld [vmem:[%s0 + $0x44] sm:$0xf]
  %v39 = vld [vmem:[%s0 + $0x48] sm:$0xf]
  %v40 = vld [vmem:[%s0 + $0x4c] sm:$0xf]
  %v41 = vld [vmem:[%s0 + $0x50] sm:$0xf]
  %v42 = vld [vmem:[%s0 + $0x54] sm:$0xf]
  %v43 = vld [vmem:[%s0 + $0x58] sm:$0xf]
  %v44 = vld [vmem:[%s0 + $0x5c] sm:$0xf]
  %v45 = vld [vmem:[%s0 + $0x60] sm:$0xf]
  %v46 = vld [vmem:[%s0 + $0x64] sm:$0xf]
  %v47 = vld [vmem:[%s0 + $0x68] sm:$0xf]
  %v48 = vld [vmem:[%s0 + $0x6c] sm:$0xf]
  %v49 = vld [vmem:[%s0 + $0x70] sm:$0xf]
  %v50 = vld [vmem:[%s0 + $0x74] sm:$0xf]
  %v51 = vld [vmem:[%s0 + $0x78] sm:$0xf]
  %v52 = vld [vmem:[%s0 + $0x7c] sm:$0xf]
  %v53 = vld [vmem:[%s0 + $0x80] sm:$0xf]
  %v54 = vld [vmem:[%s0 + $0x84] sm:$0xf]
  %v55 = vld [vmem:[%s0 + $0x88] sm:$0xf]
  %v56 = vld [vmem:[%s0 + $0x8c] sm:$0xf]
  %v57 = vld [vmem:[%s0 + $0x90] sm:$0xf]
  %v58 = vld [vmem:[%s0 + $0x94] sm:$0xf]
  %v59 = vld [vmem:[%s0 + $0x98] sm:$0xf]
  %v60 = vld [vmem:[%s0 + $0x9c] sm:$0xf]
  %v61 = vld [vmem:[%s0 + $0xa0] sm:$0xf]
  %v62 = vld [vmem:[%s0 + $0xa4] sm:$0xf]
  %v63 = vld [vmem:[%s0 + $0xa8] sm:$0xf]
  %v64 = vld [vmem:[%s0 + $0xac] sm:$0xf]
  %v65 = vld [vmem:[%s0 + $0xb0] sm:$0xf]
  %v66 = vld [vmem:[%s0 + $0xb4] sm:$0xf]
  %v67 = vld [vmem:[%s0 + $0xb8] sm:$0xf]
  %v68 = vld [vmem:[%s0 + $0xbc] sm:$0xf]
  %v69 = vld [vmem:[%s0 + $0xc0] sm:$0xf]
  %v70 = vld [vmem:[%s0 + $0xc4] sm:$0xf]
  %v71 = vld [vmem:[%s0 + $0xc8] sm:$0xf]
  %v72 = vld [vmem:[%s0 + $0xcc] sm:$0xf]
  %v73 = vld [vmem:[%s0 + $0xd0] sm:$0xf]
  %v74 = vld [vmem:[%s0 + $0xd4] sm:$0xf]
  %v75 = vld [vmem:[%s0 + $0xd8] sm:$0xf]
  %v76 = vld [vmem:[%s0 + $0xdc] sm:$0xf]
  %v77 = vld [vmem:[%s0 + $0xe0] sm:$0xf]
  %v78 = vld [vmem:[%s0 + $0xe4] sm:$0xf]
  %v79 = vld [vmem:[%s0 + $0xe8] sm:$0xf]
  %v80 = vld [vmem:[%s0 + $0xec] sm:$0xf]
  %v81 = vld [vmem:[%s0 + $0xf0] sm:$0xf]
  %v82 = vld [vmem:[%s0 + $0xf4] sm:$0xf]
  %v83 = vld [vmem:[%s0 + $0xf8] sm:$0xf]
  %v84 = vld [vmem:[%s0 + $0xfc] sm:$0xf]
  %v85 = vld [vmem:[%s0 + $0x100] sm:$0xf]
  %v86 = vld [vmem:[%s0 + $0x104] sm:$0xf]
  %v87 = vld [vmem:[%s0 + $0x108] sm:$0xf]
  %v88 = vld [vmem:[%s0 + $0x10c] sm:$0xf]
  %v89 = vld [vmem:[%s0 + $0x110] sm:$0xf]
  %v90 = vld [vmem:[%s0 + $0x114] sm:$0xf]
  %v91 = vld [vmem:[%s0 + $0x118] sm:$0xf]
  %v92 = vld [vmem:[%s0 + $0x11c] sm:$0xf]
  %v93 = vld [vmem:[%s0 + $0x120] sm:$0xf]
  %v94 = vld [vmem:[%s0 + $0x124] sm:$0xf]
  %v95 = vld [vmem:[%s0 + $0x128] sm:$0xf]
  %v96 = vld [vmem:[%s0 + $0x12c] sm:$0xf]
  %v97 = vld [vmem:[%s0 + $0x130] sm:$0xf]
  %v98 = vld [vmem:[%s0 + $0x134] sm:$0xf]
  %v99 = vld [vmem:[%s0 + $0x138] sm:$0xf]
  %v100 = vld [vmem:[%s0 + $0x13c] sm:$0xf]
  %v101 = vld [vmem:[%s0 + $0x140] sm:$0xf]
  %v102 = vld [vmem:[%s0 + $0x144] sm:$0xf]
  %v103 = vld [vmem:[%s0 + $0x148] sm:$0xf]
  %v104 = vld [vmem:[%s0 + $0x14c] sm:$0xf]
  %v105 = vld [vmem:[%s0 + $0x150] sm:$0xf]
  %v106 = vld [vmem:[%s0 + $0x154] sm:$0xf]
  %v107 = vld [vmem:[%s0 + $0x158] sm:$0xf]
  %v108 = vld [vmem:[%s0 + $0x15c] sm:$0xf]
  %v109 = vld [vmem:[%s0 + $0x160] sm:$0xf]
  %v110 = vld [vmem:[%s0 + $0x164] sm:$0xf]
  %v111 = vld [vmem:[%s0 + $0x168] sm:$0xf]
  %v112 = vld [vmem:[%s0 + $0x16c] sm:$0xf]
  %v113 = vld [vmem:[%s0 + $0x170] sm:$0xf]
  %v114 = vld [vmem:[%s0 + $0x174] sm:$0xf]
  %v115 = vld [vmem:[%s0 + $0x178] sm:$0xf]
  %v116 = vld [vmem:[%s0 + $0x17c] sm:$0xf]
  %v117 = vld [vmem:[%s0 + $0x180] sm:$0xf]
  %v118 = vld [vmem:[%s0 + $0x184] sm:$0xf]
  %v119 = vld [vmem:[%s0 + $0x188] sm:$0xf]
  %v120 = vld [vmem:[%s0 + $0x18c] sm:$0xf]
  %v121 = vld [vmem:[%s0 + $0x190] sm:$0xf]
  %v122 = vld [vmem:[%s0 + $0x194] sm:$0xf]
  %v123 = vld [vmem:[%s0 + $0x198] sm:$0xf]
  %v124 = vld [vmem:[%s0 + $0x19c] sm:$0xf]
  %v125 = vld [vmem:[%s0 + $0x1a0] sm:$0xf]
  %v126 = vld [vmem:[%s0 + $0x1a4] sm:$0xf]
  %v127 = vld [vmem:[%s0 + $0x1a8] sm:$0xf]
  %v128 = vld [vmem:[%s0 + $0x1ac] sm:$0xf]
  %v129 = vld [vmem:[%s0 + $0x1b0] sm:$0xf]
  %v130 = vld [vmem:[%s0 + $0x1b4] sm:$0xf]
  %v131 = vld [vmem:[%s0 + $0x1b8] sm:$0xf]
  %v132 = vld [vmem:[%s0 + $0x1bc] sm:$0xf]
  %v133 = vld [vmem:[%s1] sm:$0xff]
  %v134 = vld [vmem:[%s1 + $0x8] sm:$0xf]
  %v135 = vld [vmem:[%s1 + $0xc] sm:$0xff]
  %v136 = vld [vmem:[%s1 + $0x14] sm:$0xf]
  %v137 = vld [vmem:[%s1 + $0x18] sm:$0xff]
  %v138 = vld [vmem:[%s1 + $0x20] sm:$0xf]
  %v139 = vld [vmem:[%s1 + $0x24] sm:$0xff]
  %v140 = vld [vmem:[%s1 + $0x2c] sm:$0xf]
  %v141 = vld [vmem:[%s1 + $0x30] sm:$0xff]
  %v142 = vld [vmem:[%s1 + $0x38] sm:$0xf]
  %v143 = vld [vmem:[%s1 + $0x3c] sm:$0xff]
  %v144 = vld [vmem:[%s1 + $0x44] sm:$0xf]
  %v145 = vld [vmem:[%s1 + $0x48] sm:$0xff]
  %v146 = vld [vmem:[%s1 + $0x50] sm:$0xf]
  %v147 = vld [vmem:[%s1 + $0x54] sm:$0xff]
  %v148 = vld [vmem:[%s1 + $0x5c] sm:$0xf]
  %v149 = vld [vmem:[%s1 + $0x60] sm:$0xff]
  %v150 = vld [vmem:[%s1 + $0x68] sm:$0xf]
  %v151 = vld [vmem:[%s1 + $0x6c] sm:$0xff]
  %v152 = vld [vmem:[%s1 + $0x74] sm:$0xf]
  %v153 = vld [vmem:[%s1 + $0x78] sm:$0xff]
  %v154 = vld [vmem:[%s1 + $0x80] sm:$0xf]
  %v155 = vld [vmem:[%s1 + $0x84] sm:$0xff]
  %v156 = vld [vmem:[%s1 + $0x8c] sm:$0xf]
  %v157 = vld [vmem:[%s1 + $0x90] sm:$0xff]
  %v158 = vld [vmem:[%s1 + $0x98] sm:$0xf]
  %v159 = vld [vmem:[%s1 + $0x9c] sm:$0xff]
  %v160 = vld [vmem:[%s1 + $0xa4] sm:$0xf]
  %v161 = vld [vmem:[%s1 + $0xa8] sm:$0xff]
  %v162 = vld [vmem:[%s1 + $0xb0] sm:$0xf]
  %v163 = vld [vmem:[%s1 + $0xb4] sm:$0xff]
  %v164 = vld [vmem:[%s1 + $0xbc] sm:$0xf]
  %v277 = vunpack.c.l.b16 %v21
  %v278 = vunpack.c.l.b16 %v22
  %v279 = vunpack.c.l.b16 %v23
  %v280 = vunpack.c.l.b16 %v24
  %v281 = vunpack.c.l.b16 %v25
  %v282 = vunpack.c.l.b16 %v26
  %v283 = vunpack.c.l.b16 %v27
  %v284 = vunpack.c.l.b16 %v28
  %v285 = vunpack.c.l.b16 %v29
  %v286 = vunpack.c.l.b16 %v30
  %v287 = vunpack.c.l.b16 %v31
  %v288 = vunpack.c.l.b16 %v32
  %v289 = vunpack.c.l.b16 %v33
  %v290 = vunpack.c.l.b16 %v34
  %v291 = vunpack.c.l.b16 %v35
  %v292 = vunpack.c.l.b16 %v36
  %v293 = vunpack.c.l.b16 %v37
  %v294 = vunpack.c.l.b16 %v38
  %v295 = vunpack.c.l.b16 %v39
  %v296 = vunpack.c.l.b16 %v40
  %v297 = vunpack.c.l.b16 %v41
  %v298 = vunpack.c.l.b16 %v42
  %v299 = vunpack.c.l.b16 %v43
  %v300 = vunpack.c.l.b16 %v44
  %v301 = vunpack.c.l.b16 %v45
  %v302 = vunpack.c.l.b16 %v46
  %v303 = vunpack.c.l.b16 %v47
  %v304 = vunpack.c.l.b16 %v48
  %v305 = vunpack.c.l.b16 %v49
  %v306 = vunpack.c.l.b16 %v50
  %v307 = vunpack.c.l.b16 %v51
  %v308 = vunpack.c.l.b16 %v52
  %v309 = vunpack.c.l.b16 %v53
  %v310 = vunpack.c.l.b16 %v54
  %v311 = vunpack.c.l.b16 %v55
  %v312 = vunpack.c.l.b16 %v56
  %v313 = vunpack.c.l.b16 %v57
  %v314 = vunpack.c.l.b16 %v58
  %v315 = vunpack.c.l.b16 %v59
  %v316 = vunpack.c.l.b16 %v60
  %v317 = vunpack.c.l.b16 %v61
  %v318 = vunpack.c.l.b16 %v62
  %v319 = vunpack.c.l.b16 %v63
  %v320 = vunpack.c.l.b16 %v64
  %v321 = vunpack.c.l.b16 %v65
  %v322 = vunpack.c.l.b16 %v66
  %v323 = vunpack.c.l.b16 %v67
  %v324 = vunpack.c.l.b16 %v68
  %v325 = vunpack.c.l.b16 %v69
  %v326 = vunpack.c.l.b16 %v70
  %v327 = vunpack.c.l.b16 %v71
  %v328 = vunpack.c.l.b16 %v72
  %v329 = vunpack.c.l.b16 %v73
  %v330 = vunpack.c.l.b16 %v74
  %v331 = vunpack.c.l.b16 %v75
  %v332 = vunpack.c.l.b16 %v76
  %v333 = vunpack.c.l.b16 %v77
  %v334 = vunpack.c.l.b16 %v78
  %v335 = vunpack.c.l.b16 %v79
  %v336 = vunpack.c.l.b16 %v80
  %v337 = vunpack.c.l.b16 %v81
  %v338 = vunpack.c.l.b16 %v82
  %v339 = vunpack.c.l.b16 %v83
  %v340 = vunpack.c.l.b16 %v84
  %v341 = vunpack.c.l.b16 %v85
  %v342 = vunpack.c.l.b16 %v86
  %v343 = vunpack.c.l.b16 %v87
  %v344 = vunpack.c.l.b16 %v88
  %v345 = vunpack.c.l.b16 %v89
  %v346 = vunpack.c.l.b16 %v90
  %v347 = vunpack.c.l.b16 %v91
  %v348 = vunpack.c.l.b16 %v92
  %v349 = vunpack.c.l.b16 %v93
  %v350 = vunpack.c.l.b16 %v94
  %v351 = vunpack.c.l.b16 %v95
  %v352 = vunpack.c.l.b16 %v96
  %v353 = vunpack.c.l.b16 %v97
  %v354 = vunpack.c.l.b16 %v98
  %v355 = vunpack.c.l.b16 %v99
  %v356 = vunpack.c.l.b16 %v100
  %v357 = vunpack.c.l.b16 %v101
  %v358 = vunpack.c.l.b16 %v102
  %v359 = vunpack.c.l.b16 %v103
  %v360 = vunpack.c.l.b16 %v104
  %v361 = vunpack.c.l.b16 %v105
  %v362 = vunpack.c.l.b16 %v106
  %v363 = vunpack.c.l.b16 %v107
  %v364 = vunpack.c.l.b16 %v108
  %v365 = vunpack.c.l.b16 %v109
  %v366 = vunpack.c.l.b16 %v110
  %v367 = vunpack.c.l.b16 %v111
  %v368 = vunpack.c.l.b16 %v112
  %v369 = vunpack.c.l.b16 %v113
  %v370 = vunpack.c.l.b16 %v114
  %v371 = vunpack.c.l.b16 %v115
  %v372 = vunpack.c.l.b16 %v116
  %v373 = vunpack.c.l.b16 %v117
  %v374 = vunpack.c.l.b16 %v118
  %v375 = vunpack.c.l.b16 %v119
  %v376 = vunpack.c.l.b16 %v120
  %v377 = vunpack.c.l.b16 %v121
  %v378 = vunpack.c.l.b16 %v122
  %v379 = vunpack.c.l.b16 %v123
  %v380 = vunpack.c.l.b16 %v124
  %v381 = vunpack.c.l.b16 %v125
  %v382 = vunpack.c.l.b16 %v126
  %v383 = vunpack.c.l.b16 %v127
  %v384 = vunpack.c.l.b16 %v128
  %v385 = vunpack.c.l.b16 %v129
  %v386 = vunpack.c.l.b16 %v130
  %v387 = vunpack.c.l.b16 %v131
  %v388 = vunpack.c.l.b16 %v132
  %v389 = vpack.c.b16 %v278, %v277
  %v390 = vpack.c.b16 %v280, %v279
  %v391 = vpack.c.b16 %v282, %v281
  %v392 = vpack.c.b16 %v284, %v283
  %v393 = vpack.c.b16 %v286, %v285
  %v394 = vpack.c.b16 %v288, %v287
  %v395 = vpack.c.b16 %v290, %v289
  %v396 = vpack.c.b16 %v292, %v291
  %v397 = vpack.c.b16 %v294, %v293
  %v398 = vpack.c.b16 %v296, %v295
  %v399 = vpack.c.b16 %v298, %v297
  %v400 = vpack.c.b16 %v300, %v299
  %v401 = vpack.c.b16 %v302, %v301
  %v402 = vpack.c.b16 %v304, %v303
  %v403 = vpack.c.b16 %v306, %v305
  %v404 = vpack.c.b16 %v308, %v307
  %v405 = vpack.c.b16 %v310, %v309
  %v406 = vpack.c.b16 %v312, %v311
  %v407 = vpack.c.b16 %v314, %v313
  %v408 = vpack.c.b16 %v316, %v315
  %v409 = vpack.c.b16 %v318, %v317
  %v410 = vpack.c.b16 %v320, %v319
  %v411 = vpack.c.b16 %v322, %v321
  %v412 = vpack.c.b16 %v324, %v323
  %v413 = vpack.c.b16 %v326, %v325
  %v414 = vpack.c.b16 %v328, %v327
  %v415 = vpack.c.b16 %v330, %v329
  %v416 = vpack.c.b16 %v332, %v331
  %v417 = vpack.c.b16 %v334, %v333
  %v418 = vpack.c.b16 %v336, %v335
  %v419 = vpack.c.b16 %v338, %v337
  %v420 = vpack.c.b16 %v340, %v339
  %v421 = vpack.c.b16 %v342, %v341
  %v422 = vpack.c.b16 %v344, %v343
  %v423 = vpack.c.b16 %v346, %v345
  %v424 = vpack.c.b16 %v348, %v347
  %v425 = vpack.c.b16 %v350, %v349
  %v426 = vpack.c.b16 %v352, %v351
  %v427 = vpack.c.b16 %v354, %v353
  %v428 = vpack.c.b16 %v356, %v355
  %v429 = vpack.c.b16 %v358, %v357
  %v430 = vpack.c.b16 %v360, %v359
  %v431 = vpack.c.b16 %v362, %v361
  %v432 = vpack.c.b16 %v364, %v363
  %v433 = vpack.c.b16 %v366, %v365
  %v434 = vpack.c.b16 %v368, %v367
  %v435 = vpack.c.b16 %v370, %v369
  %v436 = vpack.c.b16 %v372, %v371
  %v437 = vpack.c.b16 %v374, %v373
  %v438 = vpack.c.b16 %v376, %v375
  %v439 = vpack.c.b16 %v378, %v377
  %v440 = vpack.c.b16 %v380, %v379
  %v441 = vpack.c.b16 %v382, %v381
  %v442 = vpack.c.b16 %v384, %v383
  %v443 = vpack.c.b16 %v386, %v385
  %v444 = vpack.c.b16 %v388, %v387
  %v533 = vunpack.c.l.b16 %v133
  %v534 = vunpack.c.h.b16 %v133
  %v535 = vunpack.c.l.b16 %v134
  %v536 = vunpack.c.l.b16 %v135
  %v537 = vunpack.c.h.b16 %v135
  %v538 = vunpack.c.l.b16 %v136
  %v539 = vunpack.c.l.b16 %v137
  %v540 = vunpack.c.h.b16 %v137
  %v541 = vunpack.c.l.b16 %v138
  %v542 = vunpack.c.l.b16 %v139
  %v543 = vunpack.c.h.b16 %v139
  %v544 = vunpack.c.l.b16 %v140
  %v545 = vunpack.c.l.b16 %v141
  %v546 = vunpack.c.h.b16 %v141
  %v547 = vunpack.c.l.b16 %v142
  %v548 = vunpack.c.l.b16 %v143
  %v549 = vunpack.c.h.b16 %v143
  %v550 = vunpack.c.l.b16 %v144
  %v551 = vunpack.c.l.b16 %v145
  %v552 = vunpack.c.h.b16 %v145
  %v553 = vunpack.c.l.b16 %v146
  %v554 = vunpack.c.l.b16 %v147
  %v555 = vunpack.c.h.b16 %v147
  %v556 = vunpack.c.l.b16 %v148
  %v557 = vunpack.c.l.b16 %v149
  %v558 = vunpack.c.h.b16 %v149
  %v559 = vunpack.c.l.b16 %v150
  %v560 = vunpack.c.l.b16 %v151
  %v561 = vunpack.c.h.b16 %v151
  %v562 = vunpack.c.l.b16 %v152
  %v563 = vunpack.c.l.b16 %v153
  %v564 = vunpack.c.h.b16 %v153
  %v565 = vunpack.c.l.b16 %v154
  %v566 = vunpack.c.l.b16 %v155
  %v567 = vunpack.c.h.b16 %v155
  %v568 = vunpack.c.l.b16 %v156
  %v569 = vunpack.c.l.b16 %v157
  %v570 = vunpack.c.h.b16 %v157
  %v571 = vunpack.c.l.b16 %v158
  %v572 = vunpack.c.l.b16 %v159
  %v573 = vunpack.c.h.b16 %v159
  %v574 = vunpack.c.l.b16 %v160
  %v575 = vunpack.c.l.b16 %v161
  %v576 = vunpack.c.h.b16 %v161
  %v577 = vunpack.c.l.b16 %v162
  %v578 = vunpack.c.l.b16 %v163
  %v579 = vunpack.c.h.b16 %v163
  %v580 = vunpack.c.l.b16 %v164
  %v581 = vpack.c.b16 %v536, %v533
  %v582 = vpack.c.b16 %v537, %v534
  %v583 = vpack.c.b16 %v538, %v535
  %v584 = vpack.c.b16 %v542, %v539
  %v585 = vpack.c.b16 %v543, %v540
  %v586 = vpack.c.b16 %v544, %v541
  %v587 = vpack.c.b16 %v548, %v545
  %v588 = vpack.c.b16 %v549, %v546
  %v589 = vpack.c.b16 %v550, %v547
  %v590 = vpack.c.b16 %v554, %v551
  %v591 = vpack.c.b16 %v555, %v552
  %v592 = vpack.c.b16 %v556, %v553
  %v593 = vpack.c.b16 %v560, %v557
  %v594 = vpack.c.b16 %v561, %v558
  %v595 = vpack.c.b16 %v562, %v559
  %v596 = vpack.c.b16 %v566, %v563
  %v597 = vpack.c.b16 %v567, %v564
  %v598 = vpack.c.b16 %v568, %v565
  %v599 = vpack.c.b16 %v572, %v569
  %v600 = vpack.c.b16 %v573, %v570
  %v601 = vpack.c.b16 %v574, %v571
  %v602 = vpack.c.b16 %v578, %v575
  %v603 = vpack.c.b16 %v579, %v576
  %v604 = vpack.c.b16 %v580, %v577
  %629 = vmatprep.subr.bf16.mxu0 %v582
  %630 = vmatpush1.bf16.msra.mxu0 %v581
  %631 = vmatprep.subr.bf16.mxu0 %v585
  %632 = vmatpush1.bf16.msra.mxu0 %v584
  %633 = vmatprep.subr.bf16.mxu0 %v588
  %634 = vmatpush1.bf16.msra.mxu0 %v587
  %635 = vmatprep.subr.bf16.mxu0 %v591
  %636 = vmatpush1.bf16.msra.mxu0 %v590
  %637 = vmatprep.subr.bf16.mxu0 %v594
  %638 = vmatpush1.bf16.msra.mxu0 %v593
  %639 = vmatprep.subr.bf16.mxu0 %v597
  %640 = vmatpush1.bf16.msra.mxu0 %v596
  %641 = vmatprep.subr.bf16.mxu0 %v600
  %642 = vmatpush1.bf16.msra.mxu0 %v599
  %643 = vmatprep.subr.bf16.mxu0 %v603
  %644 = vmatpush1.bf16.msra.mxu0 %v602
  %645 = vmatprep.subr.bf16.mxu0 0
  %646 = vmatpush1.bf16.msra.mxu0 0
  %647 = vmatprep.subr.bf16.mxu0 0
  %648 = vmatpush1.bf16.msra.mxu0 0
  %649 = vmatprep.subr.bf16.mxu0 0
  %650 = vmatpush1.bf16.msra.mxu0 0
  %651 = vmatprep.subr.bf16.mxu0 0
  %652 = vmatpush1.bf16.msra.mxu0 0
  %653 = vmatprep.subr.bf16.mxu0 0
  %654 = vmatpush1.bf16.msra.mxu0 0
  %655 = vmatprep.subr.bf16.mxu0 0
  %656 = vmatpush1.bf16.msra.mxu0 0
  %657 = vmatprep.subr.bf16.mxu0 0
  %658 = vmatpush1.bf16.msra.mxu0 0
  %659 = vmatprep.subr.bf16.mxu0 0
  %660 = vmatpush1.bf16.msra.mxu0 0
  %661 = vmatprep.mubr.bf16.mxu0 0
  %662 = vmatmul.mubr.bf16.gmra.mrb[0].mxu0 %v389
  %v663 = vpop.f32.mrb[0].mxu0
  %v664 = vadd.f32 0.0, %v663
  %v665 = vpop.f32.mrb[0].mxu0
  %v666 = vadd.f32 0.0, %v665
  %v667 = vpop.f32.mrb[0].mxu0
  %v668 = vadd.f32 0.0, %v667
  %v669 = vpop.f32.mrb[0].mxu0
  %v670 = vadd.f32 0.0, %v669
  %671 = vmatprep.mubr.bf16.mxu0 0
  %672 = vmatmul.mubr.bf16.gmra.mrb[0].mxu0 %v390
  %v673 = vpop.f32.mrb[0].mxu0
  %v674 = vadd.f32 0.0, %v673
  %v675 = vpop.f32.mrb[0].mxu0
  %v676 = vadd.f32 0.0, %v675
  %v677 = vpop.f32.mrb[0].mxu0
  %v678 = vadd.f32 0.0, %v677
  %v679 = vpop.f32.mrb[0].mxu0
  %v680 = vadd.f32 0.0, %v679
  %681 = vmatprep.mubr.bf16.mxu0 0
  %682 = vmatmul.mubr.bf16.gmra.mrb[0].mxu0 %v391
  %v683 = vpop.f32.mrb[0].mxu0
  %v684 = vadd.f32 0.0, %v683
  %v685 = vpop.f32.mrb[0].mxu0
  %v686 = vadd.f32 0.0, %v685
  %v687 = vpop.f32.mrb[0].mxu0
  %v688 = vadd.f32 0.0, %v687
  %v689 = vpop.f32.mrb[0].mxu0
  %v690 = vadd.f32 0.0, %v689
  %691 = vmatprep.mubr.bf16.mxu0 0
  %692 = vmatmul.mubr.bf16.gmra.mrb[0].mxu0 %v392
  %v693 = vpop.f32.mrb[0].mxu0
  %v694 = vadd.f32 0.0, %v693
  %v695 = vpop.f32.mrb[0].mxu0
  %v696 = vadd.f32 0.0, %v695
  %v697 = vpop.f32.mrb[0].mxu0
  %v698 = vadd.f32 0.0, %v697
  %v699 = vpop.f32.mrb[0].mxu0
  %v700 = vadd.f32 0.0, %v699
  %701 = vmatprep.mubr.bf16.mxu0 0
  %702 = vmatmul.mubr.bf16.gmra.mrb[0].mxu0 %v393
  %v703 = vpop.f32.mrb[0].mxu0
  %v704 = vadd.f32 0.0, %v703
  %v705 = vpop.f32.mrb[0].mxu0
  %v706 = vadd.f32 0.0, %v705
  %v707 = vpop.f32.mrb[0].mxu0
  %v708 = vadd.f32 0.0, %v707
  %v709 = vpop.f32.mrb[0].mxu0
  %v710 = vadd.f32 0.0, %v709
  %711 = vmatprep.mubr.bf16.mxu0 0
  %712 = vmatmul.mubr.bf16.gmra.mrb[0].mxu0 %v394
  %v713 = vpop.f32.mrb[0].mxu0
  %v714 = vadd.f32 0.0, %v713
  %v715 = vpop.f32.mrb[0].mxu0
  %v716 = vadd.f32 0.0, %v715
  %v717 = vpop.f32.mrb[0].mxu0
  %v718 = vadd.f32 0.0, %v717
  %v719 = vpop.f32.mrb[0].mxu0
  %v720 = vadd.f32 0.0, %v719
  %721 = vmatprep.mubr.bf16.mxu0 0
  %722 = vmatmul.mubr.bf16.gmra.mrb[0].mxu0 %v395
  %v723 = vpop.f32.mrb[0].mxu0
  %v724 = vadd.f32 0.0, %v723
  %v725 = vpop.f32.mrb[0].mxu0
  %v726 = vadd.f32 0.0, %v725
  %v727 = vpop.f32.mrb[0].mxu0
  %v728 = vadd.f32 0.0, %v727
  %v729 = vpop.f32.mrb[0].mxu0
  %v730 = vadd.f32 0.0, %v729
  %731 = vmatprep.mubr.bf16.mxu0 0
  %732 = vmatmul.mubr.bf16.gmra.mrb[0].mxu0 %v396
  %v733 = vpop.f32.mrb[0].mxu0
  %v734 = vadd.f32 0.0, %v733
  %v735 = vpop.f32.mrb[0].mxu0
  %v736 = vadd.f32 0.0, %v735
  %v737 = vpop.f32.mrb[0].mxu0
  %v738 = vadd.f32 0.0, %v737
  %v739 = vpop.f32.mrb[0].mxu0
  %v740 = vadd.f32 0.0, %v739
  %741 = vmatprep.mubr.bf16.mxu0 0
  %742 = vmatmul.mubr.bf16.gmra.mrb[0].mxu0 %v397
  %v743 = vpop.f32.mrb[0].mxu0
  %v744 = vadd.f32 0.0, %v743
  %v745 = vpop.f32.mrb[0].mxu0
  %v746 = vadd.f32 0.0, %v745
  %v747 = vpop.f32.mrb[0].mxu0
  %v748 = vadd.f32 0.0, %v747
  %v749 = vpop.f32.mrb[0].mxu0
  %v750 = vadd.f32 0.0, %v749
  %751 = vmatprep.mubr.bf16.mxu0 0
  %752 = vmatmul.mubr.bf16.gmra.mrb[0].mxu0 %v398
  %v753 = vpop.f32.mrb[0].mxu0
  %v754 = vadd.f32 0.0, %v753
  %v755 = vpop.f32.mrb[0].mxu0
  %v756 = vadd.f32 0.0, %v755
  %v757 = vpop.f32.mrb[0].mxu0
  %v758 = vadd.f32 0.0, %v757
  %v759 = vpop.f32.mrb[0].mxu0
  %v760 = vadd.f32 0.0, %v759
  %761 = vmatprep.mubr.bf16.mxu0 0
  %762 = vmatmul.mubr.bf16.gmra.mrb[0].mxu0 %v399
  %v763 = vpop.f32.mrb[0].mxu0
  %v764 = vadd.f32 0.0, %v763
  %v765 = vpop.f32.mrb[0].mxu0
  %v766 = vadd.f32 0.0, %v765
  %v767 = vpop.f32.mrb[0].mxu0
  %v768 = vadd.f32 0.0, %v767
  %v769 = vpop.f32.mrb[0].mxu0
  %v770 = vadd.f32 0.0, %v769
  %771 = vmatprep.mubr.bf16.mxu0 0
  %772 = vmatmul.mubr.bf16.gmra.mrb[0].mxu0 %v400
  %v773 = vpop.f32.mrb[0].mxu0
  %v774 = vadd.f32 0.0, %v773
  %v775 = vpop.f32.mrb[0].mxu0
  %v776 = vadd.f32 0.0, %v775
  %v777 = vpop.f32.mrb[0].mxu0
  %v778 = vadd.f32 0.0, %v777
  %v779 = vpop.f32.mrb[0].mxu0
  %v780 = vadd.f32 0.0, %v779
  %781 = vmatprep.mubr.bf16.mxu0 0
  %782 = vmatmul.mubr.bf16.gmra.mrb[0].mxu0 %v401
  %v783 = vpop.f32.mrb[0].mxu0
  %v784 = vadd.f32 0.0, %v783
  %v785 = vpop.f32.mrb[0].mxu0
  %v786 = vadd.f32 0.0, %v785
  %v787 = vpop.f32.mrb[0].mxu0
  %v788 = vadd.f32 0.0, %v787
  %v789 = vpop.f32.mrb[0].mxu0
  %v790 = vadd.f32 0.0, %v789
  %791 = vmatprep.mubr.bf16.mxu0 0
  %792 = vmatmul.mubr.bf16.gmra.mrb[0].mxu0 %v402
  %v793 = vpop.f32.mrb[0].mxu0
  %v794 = vadd.f32 0.0, %v793
  %v795 = vpop.f32.mrb[0].mxu0
  %v796 = vadd.f32 0.0, %v795
  %v797 = vpop.f32.mrb[0].mxu0
  %v798 = vadd.f32 0.0, %v797
  %v799 = vpop.f32.mrb[0].mxu0
  %v800 = vadd.f32 0.0, %v799
  %801 = vmatprep.mubr.bf16.mxu0 0
  %802 = vmatmul.mubr.bf16.gmra.mrb[0].mxu0 %v403
  %v803 = vpop.f32.mrb[0].mxu0
  %v804 = vadd.f32 0.0, %v803
  %v805 = vpop.f32.mrb[0].mxu0
  %v806 = vadd.f32 0.0, %v805
  %v807 = vpop.f32.mrb[0].mxu0
  %v808 = vadd.f32 0.0, %v807
  %v809 = vpop.f32.mrb[0].mxu0
  %v810 = vadd.f32 0.0, %v809
  %811 = vmatprep.mubr.bf16.mxu0 0
  %812 = vmatmul.mubr.bf16.gmra.mrb[0].mxu0 %v404
  %v813 = vpop.f32.mrb[0].mxu0
  %v814 = vadd.f32 0.0, %v813
  %v815 = vpop.f32.mrb[0].mxu0
  %v816 = vadd.f32 0.0, %v815
  %v817 = vpop.f32.mrb[0].mxu0
  %v818 = vadd.f32 0.0, %v817
  %v819 = vpop.f32.mrb[0].mxu0
  %v820 = vadd.f32 0.0, %v819
  %821 = vmatprep.mubr.bf16.mxu0 0
  %822 = vmatmul.mubr.bf16.gmra.mrb[0].mxu0 %v405
  %v823 = vpop.f32.mrb[0].mxu0
  %v824 = vadd.f32 0.0, %v823
  %v825 = vpop.f32.mrb[0].mxu0
  %v826 = vadd.f32 0.0, %v825
  %v827 = vpop.f32.mrb[0].mxu0
  %v828 = vadd.f32 0.0, %v827
  %v829 = vpop.f32.mrb[0].mxu0
  %v830 = vadd.f32 0.0, %v829
  %831 = vmatprep.mubr.bf16.mxu0 0
  %832 = vmatmul.mubr.bf16.gmra.mrb[0].mxu0 %v406
  %v833 = vpop.f32.mrb[0].mxu0
  %v834 = vadd.f32 0.0, %v833
  %v835 = vpop.f32.mrb[0].mxu0
  %v836 = vadd.f32 0.0, %v835
  %v837 = vpop.f32.mrb[0].mxu0
  %v838 = vadd.f32 0.0, %v837
  %v839 = vpop.f32.mrb[0].mxu0
  %v840 = vadd.f32 0.0, %v839
  %841 = vmatprep.mubr.bf16.mxu0 0
  %842 = vmatmul.mubr.bf16.gmra.mrb[0].mxu0 %v407
  %v843 = vpop.f32.mrb[0].mxu0
  %v844 = vadd.f32 0.0, %v843
  %v845 = vpop.f32.mrb[0].mxu0
  %v846 = vadd.f32 0.0, %v845
  %v847 = vpop.f32.mrb[0].mxu0
  %v848 = vadd.f32 0.0, %v847
  %v849 = vpop.f32.mrb[0].mxu0
  %v850 = vadd.f32 0.0, %v849
  %851 = vmatprep.mubr.bf16.mxu0 0
  %852 = vmatmul.mubr.bf16.gmra.mrb[0].mxu0 %v408
  %v853 = vpop.f32.mrb[0].mxu0
  %v854 = vadd.f32 0.0, %v853
  %v855 = vpop.f32.mrb[0].mxu0
  %v856 = vadd.f32 0.0, %v855
  %v857 = vpop.f32.mrb[0].mxu0
  %v858 = vadd.f32 0.0, %v857
  %v859 = vpop.f32.mrb[0].mxu0
  %v860 = vadd.f32 0.0, %v859
  %861 = vmatprep.mubr.bf16.mxu0 0
  %862 = vmatmul.mubr.bf16.gmra.mrb[0].mxu0 %v409
  %v863 = vpop.f32.mrb[0].mxu0
  %v864 = vadd.f32 0.0, %v863
  %v865 = vpop.f32.mrb[0].mxu0
  %v866 = vadd.f32 0.0, %v865
  %v867 = vpop.f32.mrb[0].mxu0
  %v868 = vadd.f32 0.0, %v867
  %v869 = vpop.f32.mrb[0].mxu0
  %v870 = vadd.f32 0.0, %v869
  %871 = vmatprep.mubr.bf16.mxu0 0
  %872 = vmatmul.mubr.bf16.gmra.mrb[0].mxu0 %v410
  %v873 = vpop.f32.mrb[0].mxu0
  %v874 = vadd.f32 0.0, %v873
  %v875 = vpop.f32.mrb[0].mxu0
  %v876 = vadd.f32 0.0, %v875
  %v877 = vpop.f32.mrb[0].mxu0
  %v878 = vadd.f32 0.0, %v877
  %v879 = vpop.f32.mrb[0].mxu0
  %v880 = vadd.f32 0.0, %v879
  %881 = vmatprep.mubr.bf16.mxu0 0
  %882 = vmatmul.mubr.bf16.gmra.mrb[0].mxu0 %v411
  %v883 = vpop.f32.mrb[0].mxu0
  %v884 = vadd.f32 0.0, %v883
  %v885 = vpop.f32.mrb[0].mxu0
  %v886 = vadd.f32 0.0, %v885
  %v887 = vpop.f32.mrb[0].mxu0
  %v888 = vadd.f32 0.0, %v887
  %v889 = vpop.f32.mrb[0].mxu0
  %v890 = vadd.f32 0.0, %v889
  %891 = vmatprep.mubr.bf16.mxu0 0
  %892 = vmatmul.mubr.bf16.gmra.mrb[0].mxu0 %v412
  %v893 = vpop.f32.mrb[0].mxu0
  %v894 = vadd.f32 0.0, %v893
  %v895 = vpop.f32.mrb[0].mxu0
  %v896 = vadd.f32 0.0, %v895
  %v897 = vpop.f32.mrb[0].mxu0
  %v898 = vadd.f32 0.0, %v897
  %v899 = vpop.f32.mrb[0].mxu0
  %v900 = vadd.f32 0.0, %v899
  %901 = vmatprep.mubr.bf16.mxu0 0
  %902 = vmatmul.mubr.bf16.gmra.mrb[0].mxu0 %v413
  %v903 = vpop.f32.mrb[0].mxu0
  %v904 = vadd.f32 0.0, %v903
  %v905 = vpop.f32.mrb[0].mxu0
  %v906 = vadd.f32 0.0, %v905
  %v907 = vpop.f32.mrb[0].mxu0
  %v908 = vadd.f32 0.0, %v907
  %v909 = vpop.f32.mrb[0].mxu0
  %v910 = vadd.f32 0.0, %v909
  %911 = vmatprep.mubr.bf16.mxu0 0
  %912 = vmatmul.mubr.bf16.gmra.mrb[0].mxu0 %v414
  %v913 = vpop.f32.mrb[0].mxu0
  %v914 = vadd.f32 0.0, %v913
  %v915 = vpop.f32.mrb[0].mxu0
  %v916 = vadd.f32 0.0, %v915
  %v917 = vpop.f32.mrb[0].mxu0
  %v918 = vadd.f32 0.0, %v917
  %v919 = vpop.f32.mrb[0].mxu0
  %v920 = vadd.f32 0.0, %v919
  %921 = vmatprep.mubr.bf16.mxu0 0
  %922 = vmatmul.mubr.bf16.gmra.mrb[0].mxu0 %v415
  %v923 = vpop.f32.mrb[0].mxu0
  %v924 = vadd.f32 0.0, %v923
  %v925 = vpop.f32.mrb[0].mxu0
  %v926 = vadd.f32 0.0, %v925
  %v927 = vpop.f32.mrb[0].mxu0
  %v928 = vadd.f32 0.0, %v927
  %v929 = vpop.f32.mrb[0].mxu0
  %v930 = vadd.f32 0.0, %v929
  %931 = vmatprep.mubr.bf16.mxu0 0
  %932 = vmatmul.mubr.bf16.gmra.mrb[0].mxu0 %v416
  %v933 = vpop.f32.mrb[0].mxu0
  %v934 = vadd.f32 0.0, %v933
  %v935 = vpop.f32.mrb[0].mxu0
  %v936 = vadd.f32 0.0, %v935
  %v937 = vpop.f32.mrb[0].mxu0
  %v938 = vadd.f32 0.0, %v937
  %v939 = vpop.f32.mrb[0].mxu0
  %v940 = vadd.f32 0.0, %v939
  %941 = vmatprep.mubr.bf16.mxu0 0
  %942 = vmatmul.mubr.bf16.gmra.mrb[0].mxu0 %v417
  %v943 = vpop.f32.mrb[0].mxu0
  %v944 = vadd.f32 0.0, %v943
  %v945 = vpop.f32.mrb[0].mxu0
  %v946 = vadd.f32 0.0, %v945
  %v947 = vpop.f32.mrb[0].mxu0
  %v948 = vadd.f32 0.0, %v947
  %v949 = vpop.f32.mrb[0].mxu0
  %v950 = vadd.f32 0.0, %v949
  %951 = vmatprep.mubr.bf16.mxu0 0
  %952 = vmatmul.mubr.bf16.gmra.mrb[0].mxu0 %v418
  %v953 = vpop.f32.mrb[0].mxu0
  %v954 = vadd.f32 0.0, %v953
  %v955 = vpop.f32.mrb[0].mxu0
  %v956 = vadd.f32 0.0, %v955
  %v957 = vpop.f32.mrb[0].mxu0
  %v958 = vadd.f32 0.0, %v957
  %v959 = vpop.f32.mrb[0].mxu0
  %v960 = vadd.f32 0.0, %v959
  %961 = vmatprep.mubr.bf16.mxu0 0
  %962 = vmatmul.mubr.bf16.gmra.mrb[0].mxu0 %v419
  %v963 = vpop.f32.mrb[0].mxu0
  %v964 = vadd.f32 0.0, %v963
  %v965 = vpop.f32.mrb[0].mxu0
  %v966 = vadd.f32 0.0, %v965
  %v967 = vpop.f32.mrb[0].mxu0
  %v968 = vadd.f32 0.0, %v967
  %v969 = vpop.f32.mrb[0].mxu0
  %v970 = vadd.f32 0.0, %v969
  %971 = vmatprep.mubr.bf16.mxu0 0
  %972 = vmatmul.mubr.bf16.gmra.mrb[0].mxu0 %v420
  %v973 = vpop.f32.mrb[0].mxu0
  %v974 = vadd.f32 0.0, %v973
  %v975 = vpop.f32.mrb[0].mxu0
  %v976 = vadd.f32 0.0, %v975
  %v977 = vpop.f32.mrb[0].mxu0
  %v978 = vadd.f32 0.0, %v977
  %v979 = vpop.f32.mrb[0].mxu0
  %v980 = vadd.f32 0.0, %v979
  %981 = vmatprep.mubr.bf16.mxu0 0
  %982 = vmatmul.mubr.bf16.gmra.mrb[0].mxu0 %v421
  %v983 = vpop.f32.mrb[0].mxu0
  %v984 = vadd.f32 0.0, %v983
  %v985 = vpop.f32.mrb[0].mxu0
  %v986 = vadd.f32 0.0, %v985
  %v987 = vpop.f32.mrb[0].mxu0
  %v988 = vadd.f32 0.0, %v987
  %v989 = vpop.f32.mrb[0].mxu0
  %v990 = vadd.f32 0.0, %v989
  %991 = vmatprep.mubr.bf16.mxu0 0
  %992 = vmatmul.mubr.bf16.gmra.mrb[0].mxu0 %v422
  %v993 = vpop.f32.mrb[0].mxu0
  %v994 = vadd.f32 0.0, %v993
  %v995 = vpop.f32.mrb[0].mxu0
  %v996 = vadd.f32 0.0, %v995
  %v997 = vpop.f32.mrb[0].mxu0
  %v998 = vadd.f32 0.0, %v997
  %v999 = vpop.f32.mrb[0].mxu0
  %v1000 = vadd.f32 0.0, %v999
  %1001 = vmatprep.mubr.bf16.mxu0 0
  %1002 = vmatmul.mubr.bf16.gmra.mrb[0].mxu0 %v423
  %v1003 = vpop.f32.mrb[0].mxu0
  %v1004 = vadd.f32 0.0, %v1003
  %v1005 = vpop.f32.mrb[0].mxu0
  %v1006 = vadd.f32 0.0, %v1005
  %v1007 = vpop.f32.mrb[0].mxu0
  %v1008 = vadd.f32 0.0, %v1007
  %v1009 = vpop.f32.mrb[0].mxu0
  %v1010 = vadd.f32 0.0, %v1009
  %1011 = vmatprep.mubr.bf16.mxu0 0
  %1012 = vmatmul.mubr.bf16.gmra.mrb[0].mxu0 %v424
  %v1013 = vpop.f32.mrb[0].mxu0
  %v1014 = vadd.f32 0.0, %v1013
  %v1015 = vpop.f32.mrb[0].mxu0
  %v1016 = vadd.f32 0.0, %v1015
  %v1017 = vpop.f32.mrb[0].mxu0
  %v1018 = vadd.f32 0.0, %v1017
  %v1019 = vpop.f32.mrb[0].mxu0
  %v1020 = vadd.f32 0.0, %v1019
  %1021 = vmatprep.mubr.bf16.mxu0 0
  %1022 = vmatmul.mubr.bf16.gmra.mrb[0].mxu0 %v425
  %v1023 = vpop.f32.mrb[0].mxu0
  %v1024 = vadd.f32 0.0, %v1023
  %v1025 = vpop.f32.mrb[0].mxu0
  %v1026 = vadd.f32 0.0, %v1025
  %v1027 = vpop.f32.mrb[0].mxu0
  %v1028 = vadd.f32 0.0, %v1027
  %v1029 = vpop.f32.mrb[0].mxu0
  %v1030 = vadd.f32 0.0, %v1029
  %1031 = vmatprep.mubr.bf16.mxu0 0
  %1032 = vmatmul.mubr.bf16.gmra.mrb[0].mxu0 %v426
  %v1033 = vpop.f32.mrb[0].mxu0
  %v1034 = vadd.f32 0.0, %v1033
  %v1035 = vpop.f32.mrb[0].mxu0
  %v1036 = vadd.f32 0.0, %v1035
  %v1037 = vpop.f32.mrb[0].mxu0
  %v1038 = vadd.f32 0.0, %v1037
  %v1039 = vpop.f32.mrb[0].mxu0
  %v1040 = vadd.f32 0.0, %v1039
  %1041 = vmatprep.mubr.bf16.mxu0 0
  %1042 = vmatmul.mubr.bf16.gmra.mrb[0].mxu0 %v427
  %v1043 = vpop.f32.mrb[0].mxu0
  %v1044 = vadd.f32 0.0, %v1043
  %v1045 = vpop.f32.mrb[0].mxu0
  %v1046 = vadd.f32 0.0, %v1045
  %v1047 = vpop.f32.mrb[0].mxu0
  %v1048 = vadd.f32 0.0, %v1047
  %v1049 = vpop.f32.mrb[0].mxu0
  %v1050 = vadd.f32 0.0, %v1049
  %1051 = vmatprep.mubr.bf16.mxu0 0
  %1052 = vmatmul.mubr.bf16.gmra.mrb[0].mxu0 %v428
  %v1053 = vpop.f32.mrb[0].mxu0
  %v1054 = vadd.f32 0.0, %v1053
  %v1055 = vpop.f32.mrb[0].mxu0
  %v1056 = vadd.f32 0.0, %v1055
  %v1057 = vpop.f32.mrb[0].mxu0
  %v1058 = vadd.f32 0.0, %v1057
  %v1059 = vpop.f32.mrb[0].mxu0
  %v1060 = vadd.f32 0.0, %v1059
  %1061 = vmatprep.mubr.bf16.mxu0 0
  %1062 = vmatmul.mubr.bf16.gmra.mrb[0].mxu0 %v429
  %v1063 = vpop.f32.mrb[0].mxu0
  %v1064 = vadd.f32 0.0, %v1063
  %v1065 = vpop.f32.mrb[0].mxu0
  %v1066 = vadd.f32 0.0, %v1065
  %v1067 = vpop.f32.mrb[0].mxu0
  %v1068 = vadd.f32 0.0, %v1067
  %v1069 = vpop.f32.mrb[0].mxu0
  %v1070 = vadd.f32 0.0, %v1069
  %1071 = vmatprep.mubr.bf16.mxu0 0
  %1072 = vmatmul.mubr.bf16.gmra.mrb[0].mxu0 %v430
  %v1073 = vpop.f32.mrb[0].mxu0
  %v1074 = vadd.f32 0.0, %v1073
  %v1075 = vpop.f32.mrb[0].mxu0
  %v1076 = vadd.f32 0.0, %v1075
  %v1077 = vpop.f32.mrb[0].mxu0
  %v1078 = vadd.f32 0.0, %v1077
  %v1079 = vpop.f32.mrb[0].mxu0
  %v1080 = vadd.f32 0.0, %v1079
  %1081 = vmatprep.mubr.bf16.mxu0 0
  %1082 = vmatmul.mubr.bf16.gmra.mrb[0].mxu0 %v431
  %v1083 = vpop.f32.mrb[0].mxu0
  %v1084 = vadd.f32 0.0, %v1083
  %v1085 = vpop.f32.mrb[0].mxu0
  %v1086 = vadd.f32 0.0, %v1085
  %v1087 = vpop.f32.mrb[0].mxu0
  %v1088 = vadd.f32 0.0, %v1087
  %v1089 = vpop.f32.mrb[0].mxu0
  %v1090 = vadd.f32 0.0, %v1089
  %1091 = vmatprep.mubr.bf16.mxu0 0
  %1092 = vmatmul.mubr.bf16.gmra.mrb[0].mxu0 %v432
  %v1093 = vpop.f32.mrb[0].mxu0
  %v1094 = vadd.f32 0.0, %v1093
  %v1095 = vpop.f32.mrb[0].mxu0
  %v1096 = vadd.f32 0.0, %v1095
  %v1097 = vpop.f32.mrb[0].mxu0
  %v1098 = vadd.f32 0.0, %v1097
  %v1099 = vpop.f32.mrb[0].mxu0
  %v1100 = vadd.f32 0.0, %v1099
  %1101 = vmatprep.mubr.bf16.mxu0 0
  %1102 = vmatmul.mubr.bf16.gmra.mrb[0].mxu0 %v433
  %v1103 = vpop.f32.mrb[0].mxu0
  %v1104 = vadd.f32 0.0, %v1103
  %v1105 = vpop.f32.mrb[0].mxu0
  %v1106 = vadd.f32 0.0, %v1105
  %v1107 = vpop.f32.mrb[0].mxu0
  %v1108 = vadd.f32 0.0, %v1107
  %v1109 = vpop.f32.mrb[0].mxu0
  %v1110 = vadd.f32 0.0, %v1109
  %1111 = vmatprep.mubr.bf16.mxu0 0
  %1112 = vmatmul.mubr.bf16.gmra.mrb[0].mxu0 %v434
  %v1113 = vpop.f32.mrb[0].mxu0
  %v1114 = vadd.f32 0.0, %v1113
  %v1115 = vpop.f32.mrb[0].mxu0
  %v1116 = vadd.f32 0.0, %v1115
  %v1117 = vpop.f32.mrb[0].mxu0
  %v1118 = vadd.f32 0.0, %v1117
  %v1119 = vpop.f32.mrb[0].mxu0
  %v1120 = vadd.f32 0.0, %v1119
  %1121 = vmatprep.mubr.bf16.mxu0 0
  %1122 = vmatmul.mubr.bf16.gmra.mrb[0].mxu0 %v435
  %v1123 = vpop.f32.mrb[0].mxu0
  %v1124 = vadd.f32 0.0, %v1123
  %v1125 = vpop.f32.mrb[0].mxu0
  %v1126 = vadd.f32 0.0, %v1125
  %v1127 = vpop.f32.mrb[0].mxu0
  %v1128 = vadd.f32 0.0, %v1127
  %v1129 = vpop.f32.mrb[0].mxu0
  %v1130 = vadd.f32 0.0, %v1129
  %1131 = vmatprep.mubr.bf16.mxu0 0
  %1132 = vmatmul.mubr.bf16.gmra.mrb[0].mxu0 %v436
  %v1133 = vpop.f32.mrb[0].mxu0
  %v1134 = vadd.f32 0.0, %v1133
  %v1135 = vpop.f32.mrb[0].mxu0
  %v1136 = vadd.f32 0.0, %v1135
  %v1137 = vpop.f32.mrb[0].mxu0
  %v1138 = vadd.f32 0.0, %v1137
  %v1139 = vpop.f32.mrb[0].mxu0
  %v1140 = vadd.f32 0.0, %v1139
  %1141 = vmatprep.mubr.bf16.mxu0 0
  %1142 = vmatmul.mubr.bf16.gmra.mrb[0].mxu0 %v437
  %v1143 = vpop.f32.mrb[0].mxu0
  %v1144 = vadd.f32 0.0, %v1143
  %v1145 = vpop.f32.mrb[0].mxu0
  %v1146 = vadd.f32 0.0, %v1145
  %v1147 = vpop.f32.mrb[0].mxu0
  %v1148 = vadd.f32 0.0, %v1147
  %v1149 = vpop.f32.mrb[0].mxu0
  %v1150 = vadd.f32 0.0, %v1149
  %1151 = vmatprep.mubr.bf16.mxu0 0
  %1152 = vmatmul.mubr.bf16.gmra.mrb[0].mxu0 %v438
  %v1153 = vpop.f32.mrb[0].mxu0
  %v1154 = vadd.f32 0.0, %v1153
  %v1155 = vpop.f32.mrb[0].mxu0
  %v1156 = vadd.f32 0.0, %v1155
  %v1157 = vpop.f32.mrb[0].mxu0
  %v1158 = vadd.f32 0.0, %v1157
  %v1159 = vpop.f32.mrb[0].mxu0
  %v1160 = vadd.f32 0.0, %v1159
  %1161 = vmatprep.mubr.bf16.mxu0 0
  %1162 = vmatmul.mubr.bf16.gmra.mrb[0].mxu0 %v439
  %v1163 = vpop.f32.mrb[0].mxu0
  %v1164 = vadd.f32 0.0, %v1163
  %v1165 = vpop.f32.mrb[0].mxu0
  %v1166 = vadd.f32 0.0, %v1165
  %v1167 = vpop.f32.mrb[0].mxu0
  %v1168 = vadd.f32 0.0, %v1167
  %v1169 = vpop.f32.mrb[0].mxu0
  %v1170 = vadd.f32 0.0, %v1169
  %1171 = vmatprep.mubr.bf16.mxu0 0
  %1172 = vmatmul.mubr.bf16.gmra.mrb[0].mxu0 %v440
  %v1173 = vpop.f32.mrb[0].mxu0
  %v1174 = vadd.f32 0.0, %v1173
  %v1175 = vpop.f32.mrb[0].mxu0
  %v1176 = vadd.f32 0.0, %v1175
  %v1177 = vpop.f32.mrb[0].mxu0
  %v1178 = vadd.f32 0.0, %v1177
  %v1179 = vpop.f32.mrb[0].mxu0
  %v1180 = vadd.f32 0.0, %v1179
  %1181 = vmatprep.mubr.bf16.mxu0 0
  %1182 = vmatmul.mubr.bf16.gmra.mrb[0].mxu0 %v441
  %v1183 = vpop.f32.mrb[0].mxu0
  %v1184 = vadd.f32 0.0, %v1183
  %v1185 = vpop.f32.mrb[0].mxu0
  %v1186 = vadd.f32 0.0, %v1185
  %v1187 = vpop.f32.mrb[0].mxu0
  %v1188 = vadd.f32 0.0, %v1187
  %v1189 = vpop.f32.mrb[0].mxu0
  %v1190 = vadd.f32 0.0, %v1189
  %1191 = vmatprep.mubr.bf16.mxu0 0
  %1192 = vmatmul.mubr.bf16.gmra.mrb[0].mxu0 %v442
  %v1193 = vpop.f32.mrb[0].mxu0
  %v1194 = vadd.f32 0.0, %v1193
  %v1195 = vpop.f32.mrb[0].mxu0
  %v1196 = vadd.f32 0.0, %v1195
  %v1197 = vpop.f32.mrb[0].mxu0
  %v1198 = vadd.f32 0.0, %v1197
  %v1199 = vpop.f32.mrb[0].mxu0
  %v1200 = vadd.f32 0.0, %v1199
  %1201 = vmatprep.mubr.bf16.mxu0 0
  %1202 = vmatmul.mubr.bf16.gmra.mrb[0].mxu0 %v443
  %v1203 = vpop.f32.mrb[0].mxu0
  %v1204 = vadd.f32 0.0, %v1203
  %v1205 = vpop.f32.mrb[0].mxu0
  %v1206 = vadd.f32 0.0, %v1205
  %v1207 = vpop.f32.mrb[0].mxu0
  %v1208 = vadd.f32 0.0, %v1207
  %v1209 = vpop.f32.mrb[0].mxu0
  %v1210 = vadd.f32 0.0, %v1209
  %1211 = vmatprep.mubr.bf16.mxu0 0
  %1212 = vmatmul.mubr.bf16.gmra.mrb[0].mxu0 %v444
  %v1213 = vpop.f32.mrb[0].mxu0
  %v1214 = vadd.f32 0.0, %v1213
  %v1215 = vpop.f32.mrb[0].mxu0
  %v1216 = vadd.f32 0.0, %v1215
  %v1217 = vpop.f32.mrb[0].mxu0
  %v1218 = vadd.f32 0.0, %v1217
  %v1219 = vpop.f32.mrb[0].mxu0
  %v1220 = vadd.f32 0.0, %v1219
  %1221 = vdwg.mxu0
  %1222 = vmatprep.subr.bf16.mxu0 0
  %1223 = vmatpush1.bf16.msra.mxu0 %v583
  %1224 = vmatprep.subr.bf16.mxu0 0
  %1225 = vmatpush1.bf16.msra.mxu0 %v586
  %1226 = vmatprep.subr.bf16.mxu0 0
  %1227 = vmatpush1.bf16.msra.mxu0 %v589
  %1228 = vmatprep.subr.bf16.mxu0 0
  %1229 = vmatpush1.bf16.msra.mxu0 %v592
  %1230 = vmatprep.subr.bf16.mxu0 0
  %1231 = vmatpush1.bf16.msra.mxu0 %v595
  %1232 = vmatprep.subr.bf16.mxu0 0
  %1233 = vmatpush1.bf16.msra.mxu0 %v598
  %1234 = vmatprep.subr.bf16.mxu0 0
  %1235 = vmatpush1.bf16.msra.mxu0 %v601
  %1236 = vmatprep.subr.bf16.mxu0 0
  %1237 = vmatpush1.bf16.msra.mxu0 %v604
  %1238 = vmatprep.subr.bf16.mxu0 0
  %1239 = vmatpush1.bf16.msra.mxu0 0
  %1240 = vmatprep.subr.bf16.mxu0 0
  %1241 = vmatpush1.bf16.msra.mxu0 0
  %1242 = vmatprep.subr.bf16.mxu0 0
  %1243 = vmatpush1.bf16.msra.mxu0 0
  %1244 = vmatprep.subr.bf16.mxu0 0
  %1245 = vmatpush1.bf16.msra.mxu0 0
  %1246 = vmatprep.subr.bf16.mxu0 0
  %1247 = vmatpush1.bf16.msra.mxu0 0
  %1248 = vmatprep.subr.bf16.mxu0 0
  %1249 = vmatpush1.bf16.msra.mxu0 0
  %1250 = vmatprep.subr.bf16.mxu0 0
  %1251 = vmatpush1.bf16.msra.mxu0 0
  %1252 = vmatprep.subr.bf16.mxu0 0
  %1253 = vmatpush1.bf16.msra.mxu0 0
  %1254 = vmatprep.mubr.bf16.mxu0 0
  %1255 = vmatmul.mubr.bf16.gmra.mrb[0].mxu0 %v389
  %v1256 = vpop.f32.mrb[0].mxu0
  %v1257 = vadd.f32 0.0, %v1256
  %v1258 = vpop.f32.mrb[0].mxu0
  %v1259 = vpop.f32.mrb[0].mxu0
  %v1260 = vadd.f32 0.0, %v1259
  %v1261 = vpop.f32.mrb[0].mxu0
  %1262 = vmatprep.mubr.bf16.mxu0 0
  %1263 = vmatmul.mubr.bf16.gmra.mrb[0].mxu0 %v390
  %v1264 = vpop.f32.mrb[0].mxu0
  %v1265 = vadd.f32 0.0, %v1264
  %v1266 = vpop.f32.mrb[0].mxu0
  %v1267 = vpop.f32.mrb[0].mxu0
  %v1268 = vadd.f32 0.0, %v1267
  %v1269 = vpop.f32.mrb[0].mxu0
  %1270 = vmatprep.mubr.bf16.mxu0 0
  %1271 = vmatmul.mubr.bf16.gmra.mrb[0].mxu0 %v391
  %v1272 = vpop.f32.mrb[0].mxu0
  %v1273 = vadd.f32 0.0, %v1272
  %v1274 = vpop.f32.mrb[0].mxu0
  %v1275 = vpop.f32.mrb[0].mxu0
  %v1276 = vadd.f32 0.0, %v1275
  %v1277 = vpop.f32.mrb[0].mxu0
  %1278 = vmatprep.mubr.bf16.mxu0 0
  %1279 = vmatmul.mubr.bf16.gmra.mrb[0].mxu0 %v392
  %v1280 = vpop.f32.mrb[0].mxu0
  %v1281 = vadd.f32 0.0, %v1280
  %v1282 = vpop.f32.mrb[0].mxu0
  %v1283 = vpop.f32.mrb[0].mxu0
  %v1284 = vadd.f32 0.0, %v1283
  %v1285 = vpop.f32.mrb[0].mxu0
  %1286 = vmatprep.mubr.bf16.mxu0 0
  %1287 = vmatmul.mubr.bf16.gmra.mrb[0].mxu0 %v393
  %v1288 = vpop.f32.mrb[0].mxu0
  %v1289 = vadd.f32 0.0, %v1288
  %v1290 = vpop.f32.mrb[0].mxu0
  %v1291 = vpop.f32.mrb[0].mxu0
  %v1292 = vadd.f32 0.0, %v1291
  %v1293 = vpop.f32.mrb[0].mxu0
  %1294 = vmatprep.mubr.bf16.mxu0 0
  %1295 = vmatmul.mubr.bf16.gmra.mrb[0].mxu0 %v394
  %v1296 = vpop.f32.mrb[0].mxu0
  %v1297 = vadd.f32 0.0, %v1296
  %v1298 = vpop.f32.mrb[0].mxu0
  %v1299 = vpop.f32.mrb[0].mxu0
  %v1300 = vadd.f32 0.0, %v1299
  %v1301 = vpop.f32.mrb[0].mxu0
  %1302 = vmatprep.mubr.bf16.mxu0 0
  %1303 = vmatmul.mubr.bf16.gmra.mrb[0].mxu0 %v395
  %v1304 = vpop.f32.mrb[0].mxu0
  %v1305 = vadd.f32 0.0, %v1304
  %v1306 = vpop.f32.mrb[0].mxu0
  %v1307 = vpop.f32.mrb[0].mxu0
  %v1308 = vadd.f32 0.0, %v1307
  %v1309 = vpop.f32.mrb[0].mxu0
  %1310 = vmatprep.mubr.bf16.mxu0 0
  %1311 = vmatmul.mubr.bf16.gmra.mrb[0].mxu0 %v396
  %v1312 = vpop.f32.mrb[0].mxu0
  %v1313 = vadd.f32 0.0, %v1312
  %v1314 = vpop.f32.mrb[0].mxu0
  %v1315 = vpop.f32.mrb[0].mxu0
  %v1316 = vadd.f32 0.0, %v1315
  %v1317 = vpop.f32.mrb[0].mxu0
  %1318 = vmatprep.mubr.bf16.mxu0 0
  %1319 = vmatmul.mubr.bf16.gmra.mrb[0].mxu0 %v397
  %v1320 = vpop.f32.mrb[0].mxu0
  %v1321 = vadd.f32 0.0, %v1320
  %v1322 = vpop.f32.mrb[0].mxu0
  %v1323 = vpop.f32.mrb[0].mxu0
  %v1324 = vadd.f32 0.0, %v1323
  %v1325 = vpop.f32.mrb[0].mxu0
  %1326 = vmatprep.mubr.bf16.mxu0 0
  %1327 = vmatmul.mubr.bf16.gmra.mrb[0].mxu0 %v398
  %v1328 = vpop.f32.mrb[0].mxu0
  %v1329 = vadd.f32 0.0, %v1328
  %v1330 = vpop.f32.mrb[0].mxu0
  %v1331 = vpop.f32.mrb[0].mxu0
  %v1332 = vadd.f32 0.0, %v1331
  %v1333 = vpop.f32.mrb[0].mxu0
  %1334 = vmatprep.mubr.bf16.mxu0 0
  %1335 = vmatmul.mubr.bf16.gmra.mrb[0].mxu0 %v399
  %v1336 = vpop.f32.mrb[0].mxu0
  %v1337 = vadd.f32 0.0, %v1336
  %v1338 = vpop.f32.mrb[0].mxu0
  %v1339 = vpop.f32.mrb[0].mxu0
  %v1340 = vadd.f32 0.0, %v1339
  %v1341 = vpop.f32.mrb[0].mxu0
  %1342 = vmatprep.mubr.bf16.mxu0 0
  %1343 = vmatmul.mubr.bf16.gmra.mrb[0].mxu0 %v400
  %v1344 = vpop.f32.mrb[0].mxu0
  %v1345 = vadd.f32 0.0, %v1344
  %v1346 = vpop.f32.mrb[0].mxu0
  %v1347 = vpop.f32.mrb[0].mxu0
  %v1348 = vadd.f32 0.0, %v1347
  %v1349 = vpop.f32.mrb[0].mxu0
  %1350 = vmatprep.mubr.bf16.mxu0 0
  %1351 = vmatmul.mubr.bf16.gmra.mrb[0].mxu0 %v401
  %v1352 = vpop.f32.mrb[0].mxu0
  %v1353 = vadd.f32 0.0, %v1352
  %v1354 = vpop.f32.mrb[0].mxu0
  %v1355 = vpop.f32.mrb[0].mxu0
  %v1356 = vadd.f32 0.0, %v1355
  %v1357 = vpop.f32.mrb[0].mxu0
  %1358 = vmatprep.mubr.bf16.mxu0 0
  %1359 = vmatmul.mubr.bf16.gmra.mrb[0].mxu0 %v402
  %v1360 = vpop.f32.mrb[0].mxu0
  %v1361 = vadd.f32 0.0, %v1360
  %v1362 = vpop.f32.mrb[0].mxu0
  %v1363 = vpop.f32.mrb[0].mxu0
  %v1364 = vadd.f32 0.0, %v1363
  %v1365 = vpop.f32.mrb[0].mxu0
  %1366 = vmatprep.mubr.bf16.mxu0 0
  %1367 = vmatmul.mubr.bf16.gmra.mrb[0].mxu0 %v403
  %v1368 = vpop.f32.mrb[0].mxu0
  %v1369 = vadd.f32 0.0, %v1368
  %v1370 = vpop.f32.mrb[0].mxu0
  %v1371 = vpop.f32.mrb[0].mxu0
  %v1372 = vadd.f32 0.0, %v1371
  %v1373 = vpop.f32.mrb[0].mxu0
  %1374 = vmatprep.mubr.bf16.mxu0 0
  %1375 = vmatmul.mubr.bf16.gmra.mrb[0].mxu0 %v404
  %v1376 = vpop.f32.mrb[0].mxu0
  %v1377 = vadd.f32 0.0, %v1376
  %v1378 = vpop.f32.mrb[0].mxu0
  %v1379 = vpop.f32.mrb[0].mxu0
  %v1380 = vadd.f32 0.0, %v1379
  %v1381 = vpop.f32.mrb[0].mxu0
  %1382 = vmatprep.mubr.bf16.mxu0 0
  %1383 = vmatmul.mubr.bf16.gmra.mrb[0].mxu0 %v405
  %v1384 = vpop.f32.mrb[0].mxu0
  %v1385 = vadd.f32 0.0, %v1384
  %v1386 = vpop.f32.mrb[0].mxu0
  %v1387 = vpop.f32.mrb[0].mxu0
  %v1388 = vadd.f32 0.0, %v1387
  %v1389 = vpop.f32.mrb[0].mxu0
  %1390 = vmatprep.mubr.bf16.mxu0 0
  %1391 = vmatmul.mubr.bf16.gmra.mrb[0].mxu0 %v406
  %v1392 = vpop.f32.mrb[0].mxu0
  %v1393 = vadd.f32 0.0, %v1392
  %v1394 = vpop.f32.mrb[0].mxu0
  %v1395 = vpop.f32.mrb[0].mxu0
  %v1396 = vadd.f32 0.0, %v1395
  %v1397 = vpop.f32.mrb[0].mxu0
  %1398 = vmatprep.mubr.bf16.mxu0 0
  %1399 = vmatmul.mubr.bf16.gmra.mrb[0].mxu0 %v407
  %v1400 = vpop.f32.mrb[0].mxu0
  %v1401 = vadd.f32 0.0, %v1400
  %v1402 = vpop.f32.mrb[0].mxu0
  %v1403 = vpop.f32.mrb[0].mxu0
  %v1404 = vadd.f32 0.0, %v1403
  %v1405 = vpop.f32.mrb[0].mxu0
  %1406 = vmatprep.mubr.bf16.mxu0 0
  %1407 = vmatmul.mubr.bf16.gmra.mrb[0].mxu0 %v408
  %v1408 = vpop.f32.mrb[0].mxu0
  %v1409 = vadd.f32 0.0, %v1408
  %v1410 = vpop.f32.mrb[0].mxu0
  %v1411 = vpop.f32.mrb[0].mxu0
  %v1412 = vadd.f32 0.0, %v1411
  %v1413 = vpop.f32.mrb[0].mxu0
  %1414 = vmatprep.mubr.bf16.mxu0 0
  %1415 = vmatmul.mubr.bf16.gmra.mrb[0].mxu0 %v409
  %v1416 = vpop.f32.mrb[0].mxu0
  %v1417 = vadd.f32 0.0, %v1416
  %v1418 = vpop.f32.mrb[0].mxu0
  %v1419 = vpop.f32.mrb[0].mxu0
  %v1420 = vadd.f32 0.0, %v1419
  %v1421 = vpop.f32.mrb[0].mxu0
  %1422 = vmatprep.mubr.bf16.mxu0 0
  %1423 = vmatmul.mubr.bf16.gmra.mrb[0].mxu0 %v410
  %v1424 = vpop.f32.mrb[0].mxu0
  %v1425 = vadd.f32 0.0, %v1424
  %v1426 = vpop.f32.mrb[0].mxu0
  %v1427 = vpop.f32.mrb[0].mxu0
  %v1428 = vadd.f32 0.0, %v1427
  %v1429 = vpop.f32.mrb[0].mxu0
  %1430 = vmatprep.mubr.bf16.mxu0 0
  %1431 = vmatmul.mubr.bf16.gmra.mrb[0].mxu0 %v411
  %v1432 = vpop.f32.mrb[0].mxu0
  %v1433 = vadd.f32 0.0, %v1432
  %v1434 = vpop.f32.mrb[0].mxu0
  %v1435 = vpop.f32.mrb[0].mxu0
  %v1436 = vadd.f32 0.0, %v1435
  %v1437 = vpop.f32.mrb[0].mxu0
  %1438 = vmatprep.mubr.bf16.mxu0 0
  %1439 = vmatmul.mubr.bf16.gmra.mrb[0].mxu0 %v412
  %v1440 = vpop.f32.mrb[0].mxu0
  %v1441 = vadd.f32 0.0, %v1440
  %v1442 = vpop.f32.mrb[0].mxu0
  %v1443 = vpop.f32.mrb[0].mxu0
  %v1444 = vadd.f32 0.0, %v1443
  %v1445 = vpop.f32.mrb[0].mxu0
  %1446 = vmatprep.mubr.bf16.mxu0 0
  %1447 = vmatmul.mubr.bf16.gmra.mrb[0].mxu0 %v413
  %v1448 = vpop.f32.mrb[0].mxu0
  %v1449 = vadd.f32 0.0, %v1448
  %v1450 = vpop.f32.mrb[0].mxu0
  %v1451 = vpop.f32.mrb[0].mxu0
  %v1452 = vadd.f32 0.0, %v1451
  %v1453 = vpop.f32.mrb[0].mxu0
  %1454 = vmatprep.mubr.bf16.mxu0 0
  %1455 = vmatmul.mubr.bf16.gmra.mrb[0].mxu0 %v414
  %v1456 = vpop.f32.mrb[0].mxu0
  %v1457 = vadd.f32 0.0, %v1456
  %v1458 = vpop.f32.mrb[0].mxu0
  %v1459 = vpop.f32.mrb[0].mxu0
  %v1460 = vadd.f32 0.0, %v1459
  %v1461 = vpop.f32.mrb[0].mxu0
  %1462 = vmatprep.mubr.bf16.mxu0 0
  %1463 = vmatmul.mubr.bf16.gmra.mrb[0].mxu0 %v415
  %v1464 = vpop.f32.mrb[0].mxu0
  %v1465 = vadd.f32 0.0, %v1464
  %v1466 = vpop.f32.mrb[0].mxu0
  %v1467 = vpop.f32.mrb[0].mxu0
  %v1468 = vadd.f32 0.0, %v1467
  %v1469 = vpop.f32.mrb[0].mxu0
  %1470 = vmatprep.mubr.bf16.mxu0 0
  %1471 = vmatmul.mubr.bf16.gmra.mrb[0].mxu0 %v416
  %v1472 = vpop.f32.mrb[0].mxu0
  %v1473 = vadd.f32 0.0, %v1472
  %v1474 = vpop.f32.mrb[0].mxu0
  %v1475 = vpop.f32.mrb[0].mxu0
  %v1476 = vadd.f32 0.0, %v1475
  %v1477 = vpop.f32.mrb[0].mxu0
  %1478 = vmatprep.mubr.bf16.mxu0 0
  %1479 = vmatmul.mubr.bf16.gmra.mrb[0].mxu0 %v417
  %v1480 = vpop.f32.mrb[0].mxu0
  %v1481 = vadd.f32 0.0, %v1480
  %v1482 = vpop.f32.mrb[0].mxu0
  %v1483 = vpop.f32.mrb[0].mxu0
  %v1484 = vadd.f32 0.0, %v1483
  %v1485 = vpop.f32.mrb[0].mxu0
  %1486 = vmatprep.mubr.bf16.mxu0 0
  %1487 = vmatmul.mubr.bf16.gmra.mrb[0].mxu0 %v418
  %v1488 = vpop.f32.mrb[0].mxu0
  %v1489 = vadd.f32 0.0, %v1488
  %v1490 = vpop.f32.mrb[0].mxu0
  %v1491 = vpop.f32.mrb[0].mxu0
  %v1492 = vadd.f32 0.0, %v1491
  %v1493 = vpop.f32.mrb[0].mxu0
  %1494 = vmatprep.mubr.bf16.mxu0 0
  %1495 = vmatmul.mubr.bf16.gmra.mrb[0].mxu0 %v419
  %v1496 = vpop.f32.mrb[0].mxu0
  %v1497 = vadd.f32 0.0, %v1496
  %v1498 = vpop.f32.mrb[0].mxu0
  %v1499 = vpop.f32.mrb[0].mxu0
  %v1500 = vadd.f32 0.0, %v1499
  %v1501 = vpop.f32.mrb[0].mxu0
  %1502 = vmatprep.mubr.bf16.mxu0 0
  %1503 = vmatmul.mubr.bf16.gmra.mrb[0].mxu0 %v420
  %v1504 = vpop.f32.mrb[0].mxu0
  %v1505 = vadd.f32 0.0, %v1504
  %v1506 = vpop.f32.mrb[0].mxu0
  %v1507 = vpop.f32.mrb[0].mxu0
  %v1508 = vadd.f32 0.0, %v1507
  %v1509 = vpop.f32.mrb[0].mxu0
  %1510 = vmatprep.mubr.bf16.mxu0 0
  %1511 = vmatmul.mubr.bf16.gmra.mrb[0].mxu0 %v421
  %v1512 = vpop.f32.mrb[0].mxu0
  %v1513 = vadd.f32 0.0, %v1512
  %v1514 = vpop.f32.mrb[0].mxu0
  %v1515 = vpop.f32.mrb[0].mxu0
  %v1516 = vadd.f32 0.0, %v1515
  %v1517 = vpop.f32.mrb[0].mxu0
  %1518 = vmatprep.mubr.bf16.mxu0 0
  %1519 = vmatmul.mubr.bf16.gmra.mrb[0].mxu0 %v422
  %v1520 = vpop.f32.mrb[0].mxu0
  %v1521 = vadd.f32 0.0, %v1520
  %v1522 = vpop.f32.mrb[0].mxu0
  %v1523 = vpop.f32.mrb[0].mxu0
  %v1524 = vadd.f32 0.0, %v1523
  %v1525 = vpop.f32.mrb[0].mxu0
  %1526 = vmatprep.mubr.bf16.mxu0 0
  %1527 = vmatmul.mubr.bf16.gmra.mrb[0].mxu0 %v423
  %v1528 = vpop.f32.mrb[0].mxu0
  %v1529 = vadd.f32 0.0, %v1528
  %v1530 = vpop.f32.mrb[0].mxu0
  %v1531 = vpop.f32.mrb[0].mxu0
  %v1532 = vadd.f32 0.0, %v1531
  %v1533 = vpop.f32.mrb[0].mxu0
  %1534 = vmatprep.mubr.bf16.mxu0 0
  %1535 = vmatmul.mubr.bf16.gmra.mrb[0].mxu0 %v424
  %v1536 = vpop.f32.mrb[0].mxu0
  %v1537 = vadd.f32 0.0, %v1536
  %v1538 = vpop.f32.mrb[0].mxu0
  %v1539 = vpop.f32.mrb[0].mxu0
  %v1540 = vadd.f32 0.0, %v1539
  %v1541 = vpop.f32.mrb[0].mxu0
  %1542 = vmatprep.mubr.bf16.mxu0 0
  %1543 = vmatmul.mubr.bf16.gmra.mrb[0].mxu0 %v425
  %v1544 = vpop.f32.mrb[0].mxu0
  %v1545 = vadd.f32 0.0, %v1544
  %v1546 = vpop.f32.mrb[0].mxu0
  %v1547 = vpop.f32.mrb[0].mxu0
  %v1548 = vadd.f32 0.0, %v1547
  %v1549 = vpop.f32.mrb[0].mxu0
  %1550 = vmatprep.mubr.bf16.mxu0 0
  %1551 = vmatmul.mubr.bf16.gmra.mrb[0].mxu0 %v426
  %v1552 = vpop.f32.mrb[0].mxu0
  %v1553 = vadd.f32 0.0, %v1552
  %v1554 = vpop.f32.mrb[0].mxu0
  %v1555 = vpop.f32.mrb[0].mxu0
  %v1556 = vadd.f32 0.0, %v1555
  %v1557 = vpop.f32.mrb[0].mxu0
  %1558 = vmatprep.mubr.bf16.mxu0 0
  %1559 = vmatmul.mubr.bf16.gmra.mrb[0].mxu0 %v427
  %v1560 = vpop.f32.mrb[0].mxu0
  %v1561 = vadd.f32 0.0, %v1560
  %v1562 = vpop.f32.mrb[0].mxu0
  %v1563 = vpop.f32.mrb[0].mxu0
  %v1564 = vadd.f32 0.0, %v1563
  %v1565 = vpop.f32.mrb[0].mxu0
  %1566 = vmatprep.mubr.bf16.mxu0 0
  %1567 = vmatmul.mubr.bf16.gmra.mrb[0].mxu0 %v428
  %v1568 = vpop.f32.mrb[0].mxu0
  %v1569 = vadd.f32 0.0, %v1568
  %v1570 = vpop.f32.mrb[0].mxu0
  %v1571 = vpop.f32.mrb[0].mxu0
  %v1572 = vadd.f32 0.0, %v1571
  %v1573 = vpop.f32.mrb[0].mxu0
  %1574 = vmatprep.mubr.bf16.mxu0 0
  %1575 = vmatmul.mubr.bf16.gmra.mrb[0].mxu0 %v429
  %v1576 = vpop.f32.mrb[0].mxu0
  %v1577 = vadd.f32 0.0, %v1576
  %v1578 = vpop.f32.mrb[0].mxu0
  %v1579 = vpop.f32.mrb[0].mxu0
  %v1580 = vadd.f32 0.0, %v1579
  %v1581 = vpop.f32.mrb[0].mxu0
  %1582 = vmatprep.mubr.bf16.mxu0 0
  %1583 = vmatmul.mubr.bf16.gmra.mrb[0].mxu0 %v430
  %v1584 = vpop.f32.mrb[0].mxu0
  %v1585 = vadd.f32 0.0, %v1584
  %v1586 = vpop.f32.mrb[0].mxu0
  %v1587 = vpop.f32.mrb[0].mxu0
  %v1588 = vadd.f32 0.0, %v1587
  %v1589 = vpop.f32.mrb[0].mxu0
  %1590 = vmatprep.mubr.bf16.mxu0 0
  %1591 = vmatmul.mubr.bf16.gmra.mrb[0].mxu0 %v431
  %v1592 = vpop.f32.mrb[0].mxu0
  %v1593 = vadd.f32 0.0, %v1592
  %v1594 = vpop.f32.mrb[0].mxu0
  %v1595 = vpop.f32.mrb[0].mxu0
  %v1596 = vadd.f32 0.0, %v1595
  %v1597 = vpop.f32.mrb[0].mxu0
  %1598 = vmatprep.mubr.bf16.mxu0 0
  %1599 = vmatmul.mubr.bf16.gmra.mrb[0].mxu0 %v432
  %v1600 = vpop.f32.mrb[0].mxu0
  %v1601 = vadd.f32 0.0, %v1600
  %v1602 = vpop.f32.mrb[0].mxu0
  %v1603 = vpop.f32.mrb[0].mxu0
  %v1604 = vadd.f32 0.0, %v1603
  %v1605 = vpop.f32.mrb[0].mxu0
  %1606 = vmatprep.mubr.bf16.mxu0 0
  %1607 = vmatmul.mubr.bf16.gmra.mrb[0].mxu0 %v433
  %v1608 = vpop.f32.mrb[0].mxu0
  %v1609 = vadd.f32 0.0, %v1608
  %v1610 = vpop.f32.mrb[0].mxu0
  %v1611 = vpop.f32.mrb[0].mxu0
  %v1612 = vadd.f32 0.0, %v1611
  %v1613 = vpop.f32.mrb[0].mxu0
  %1614 = vmatprep.mubr.bf16.mxu0 0
  %1615 = vmatmul.mubr.bf16.gmra.mrb[0].mxu0 %v434
  %v1616 = vpop.f32.mrb[0].mxu0
  %v1617 = vadd.f32 0.0, %v1616
  %v1618 = vpop.f32.mrb[0].mxu0
  %v1619 = vpop.f32.mrb[0].mxu0
  %v1620 = vadd.f32 0.0, %v1619
  %v1621 = vpop.f32.mrb[0].mxu0
  %1622 = vmatprep.mubr.bf16.mxu0 0
  %1623 = vmatmul.mubr.bf16.gmra.mrb[0].mxu0 %v435
  %v1624 = vpop.f32.mrb[0].mxu0
  %v1625 = vadd.f32 0.0, %v1624
  %v1626 = vpop.f32.mrb[0].mxu0
  %v1627 = vpop.f32.mrb[0].mxu0
  %v1628 = vadd.f32 0.0, %v1627
  %v1629 = vpop.f32.mrb[0].mxu0
  %1630 = vmatprep.mubr.bf16.mxu0 0
  %1631 = vmatmul.mubr.bf16.gmra.mrb[0].mxu0 %v436
  %v1632 = vpop.f32.mrb[0].mxu0
  %v1633 = vadd.f32 0.0, %v1632
  %v1634 = vpop.f32.mrb[0].mxu0
  %v1635 = vpop.f32.mrb[0].mxu0
  %v1636 = vadd.f32 0.0, %v1635
  %v1637 = vpop.f32.mrb[0].mxu0
  %1638 = vmatprep.mubr.bf16.mxu0 0
  %1639 = vmatmul.mubr.bf16.gmra.mrb[0].mxu0 %v437
  %v1640 = vpop.f32.mrb[0].mxu0
  %v1641 = vadd.f32 0.0, %v1640
  %v1642 = vpop.f32.mrb[0].mxu0
  %v1643 = vpop.f32.mrb[0].mxu0
  %v1644 = vadd.f32 0.0, %v1643
  %v1645 = vpop.f32.mrb[0].mxu0
  %1646 = vmatprep.mubr.bf16.mxu0 0
  %1647 = vmatmul.mubr.bf16.gmra.mrb[0].mxu0 %v438
  %v1648 = vpop.f32.mrb[0].mxu0
  %v1649 = vadd.f32 0.0, %v1648
  %v1650 = vpop.f32.mrb[0].mxu0
  %v1651 = vpop.f32.mrb[0].mxu0
  %v1652 = vadd.f32 0.0, %v1651
  %v1653 = vpop.f32.mrb[0].mxu0
  %1654 = vmatprep.mubr.bf16.mxu0 0
  %1655 = vmatmul.mubr.bf16.gmra.mrb[0].mxu0 %v439
  %v1656 = vpop.f32.mrb[0].mxu0
  %v1657 = vadd.f32 0.0, %v1656
  %v1658 = vpop.f32.mrb[0].mxu0
  %v1659 = vpop.f32.mrb[0].mxu0
  %v1660 = vadd.f32 0.0, %v1659
  %v1661 = vpop.f32.mrb[0].mxu0
  %1662 = vmatprep.mubr.bf16.mxu0 0
  %1663 = vmatmul.mubr.bf16.gmra.mrb[0].mxu0 %v440
  %v1664 = vpop.f32.mrb[0].mxu0
  %v1665 = vadd.f32 0.0, %v1664
  %v1666 = vpop.f32.mrb[0].mxu0
  %v1667 = vpop.f32.mrb[0].mxu0
  %v1668 = vadd.f32 0.0, %v1667
  %v1669 = vpop.f32.mrb[0].mxu0
  %1670 = vmatprep.mubr.bf16.mxu0 0
  %1671 = vmatmul.mubr.bf16.gmra.mrb[0].mxu0 %v441
  %v1672 = vpop.f32.mrb[0].mxu0
  %v1673 = vadd.f32 0.0, %v1672
  %v1674 = vpop.f32.mrb[0].mxu0
  %v1675 = vpop.f32.mrb[0].mxu0
  %v1676 = vadd.f32 0.0, %v1675
  %v1677 = vpop.f32.mrb[0].mxu0
  %1678 = vmatprep.mubr.bf16.mxu0 0
  %1679 = vmatmul.mubr.bf16.gmra.mrb[0].mxu0 %v442
  %v1680 = vpop.f32.mrb[0].mxu0
  %v1681 = vadd.f32 0.0, %v1680
  %v1682 = vpop.f32.mrb[0].mxu0
  %v1683 = vpop.f32.mrb[0].mxu0
  %v1684 = vadd.f32 0.0, %v1683
  %v1685 = vpop.f32.mrb[0].mxu0
  %1686 = vmatprep.mubr.bf16.mxu0 0
  %1687 = vmatmul.mubr.bf16.gmra.mrb[0].mxu0 %v443
  %v1688 = vpop.f32.mrb[0].mxu0
  %v1689 = vadd.f32 0.0, %v1688
  %v1690 = vpop.f32.mrb[0].mxu0
  %v1691 = vpop.f32.mrb[0].mxu0
  %v1692 = vadd.f32 0.0, %v1691
  %v1693 = vpop.f32.mrb[0].mxu0
  %1694 = vmatprep.mubr.bf16.mxu0 0
  %1695 = vmatmul.mubr.bf16.gmra.mrb[0].mxu0 %v444
  %v1696 = vpop.f32.mrb[0].mxu0
  %v1697 = vadd.f32 0.0, %v1696
  %v1698 = vpop.f32.mrb[0].mxu0
  %v1699 = vpop.f32.mrb[0].mxu0
  %v1700 = vadd.f32 0.0, %v1699
  %v1701 = vpop.f32.mrb[0].mxu0
  %1702 = vdwg.mxu0
  %v1703 = vrot.slane %v666, 1
  %v1704 = vrot.slane %v670, 1
  %v1705 = vrot.slane %v676, 1
  %v1706 = vrot.slane %v680, 1
  %v1707 = vrot.slane %v686, 1
  %v1708 = vrot.slane %v690, 1
  %v1709 = vrot.slane %v696, 1
  %v1710 = vrot.slane %v700, 1
  %v1711 = vrot.slane %v706, 1
  %v1712 = vrot.slane %v710, 1
  %v1713 = vrot.slane %v716, 1
  %v1714 = vrot.slane %v720, 1
  %v1715 = vrot.slane %v726, 1
  %v1716 = vrot.slane %v730, 1
  %v1717 = vrot.slane %v736, 1
  %v1718 = vrot.slane %v740, 1
  %v1719 = vrot.slane %v746, 1
  %v1720 = vrot.slane %v750, 1
  %v1721 = vrot.slane %v756, 1
  %v1722 = vrot.slane %v760, 1
  %v1723 = vrot.slane %v766, 1
  %v1724 = vrot.slane %v770, 1
  %v1725 = vrot.slane %v776, 1
  %v1726 = vrot.slane %v780, 1
  %v1727 = vrot.slane %v786, 1
  %v1728 = vrot.slane %v790, 1
  %v1729 = vrot.slane %v796, 1
  %v1730 = vrot.slane %v800, 1
  %v1731 = vrot.slane %v806, 1
  %v1732 = vrot.slane %v810, 1
  %v1733 = vrot.slane %v816, 1
  %v1734 = vrot.slane %v820, 1
  %v1735 = vrot.slane %v826, 1
  %v1736 = vrot.slane %v830, 1
  %v1737 = vrot.slane %v836, 1
  %v1738 = vrot.slane %v840, 1
  %v1739 = vrot.slane %v846, 1
  %v1740 = vrot.slane %v850, 1
  %v1741 = vrot.slane %v856, 1
  %v1742 = vrot.slane %v860, 1
  %v1743 = vrot.slane %v866, 1
  %v1744 = vrot.slane %v870, 1
  %v1745 = vrot.slane %v876, 1
  %v1746 = vrot.slane %v880, 1
  %v1747 = vrot.slane %v886, 1
  %v1748 = vrot.slane %v890, 1
  %v1749 = vrot.slane %v896, 1
  %v1750 = vrot.slane %v900, 1
  %v1751 = vrot.slane %v906, 1
  %v1752 = vrot.slane %v910, 1
  %v1753 = vrot.slane %v916, 1
  %v1754 = vrot.slane %v920, 1
  %v1755 = vrot.slane %v926, 1
  %v1756 = vrot.slane %v930, 1
  %v1757 = vrot.slane %v936, 1
  %v1758 = vrot.slane %v940, 1
  %v1759 = vrot.slane %v946, 1
  %v1760 = vrot.slane %v950, 1
  %v1761 = vrot.slane %v956, 1
  %v1762 = vrot.slane %v960, 1
  %v1763 = vrot.slane %v966, 1
  %v1764 = vrot.slane %v970, 1
  %v1765 = vrot.slane %v976, 1
  %v1766 = vrot.slane %v980, 1
  %v1767 = vrot.slane %v986, 1
  %v1768 = vrot.slane %v990, 1
  %v1769 = vrot.slane %v996, 1
  %v1770 = vrot.slane %v1000, 1
  %v1771 = vrot.slane %v1006, 1
  %v1772 = vrot.slane %v1010, 1
  %v1773 = vrot.slane %v1016, 1
  %v1774 = vrot.slane %v1020, 1
  %v1775 = vrot.slane %v1026, 1
  %v1776 = vrot.slane %v1030, 1
  %v1777 = vrot.slane %v1036, 1
  %v1778 = vrot.slane %v1040, 1
  %v1779 = vrot.slane %v1046, 1
  %v1780 = vrot.slane %v1050, 1
  %v1781 = vrot.slane %v1056, 1
  %v1782 = vrot.slane %v1060, 1
  %v1783 = vrot.slane %v1066, 1
  %v1784 = vrot.slane %v1070, 1
  %v1785 = vrot.slane %v1076, 1
  %v1786 = vrot.slane %v1080, 1
  %v1787 = vrot.slane %v1086, 1
  %v1788 = vrot.slane %v1090, 1
  %v1789 = vrot.slane %v1096, 1
  %v1790 = vrot.slane %v1100, 1
  %v1791 = vrot.slane %v1106, 1
  %v1792 = vrot.slane %v1110, 1
  %v1793 = vrot.slane %v1116, 1
  %v1794 = vrot.slane %v1120, 1
  %v1795 = vrot.slane %v1126, 1
  %v1796 = vrot.slane %v1130, 1
  %v1797 = vrot.slane %v1136, 1
  %v1798 = vrot.slane %v1140, 1
  %v1799 = vrot.slane %v1146, 1
  %v1800 = vrot.slane %v1150, 1
  %v1801 = vrot.slane %v1156, 1
  %v1802 = vrot.slane %v1160, 1
  %v1803 = vrot.slane %v1166, 1
  %v1804 = vrot.slane %v1170, 1
  %v1805 = vrot.slane %v1176, 1
  %v1806 = vrot.slane %v1180, 1
  %v1807 = vrot.slane %v1186, 1
  %v1808 = vrot.slane %v1190, 1
  %v1809 = vrot.slane %v1196, 1
  %v1810 = vrot.slane %v1200, 1
  %v1811 = vrot.slane %v1206, 1
  %v1812 = vrot.slane %v1210, 1
  %v1813 = vrot.slane %v1216, 1
  %v1814 = vrot.slane %v1220, 1
  %v1815 = vlaneseq
  %v1816 = vshrl.u32 %v1815, 7
  %vm1817 = vcmp.lt.s32.totalorder %v1816, 7
  %v1818 = vsel %vm1817, %v1813, %v1814
  %v1819 = vsel %vm1817, %v1812, %v1813
  %v1820 = vsel %vm1817, %v1811, %v1812
  %v1821 = vsel %vm1817, %v1810, %v1811
  %v1822 = vsel %vm1817, %v1809, %v1810
  %v1823 = vsel %vm1817, %v1808, %v1809
  %v1824 = vsel %vm1817, %v1807, %v1808
  %v1825 = vsel %vm1817, %v1806, %v1807
  %v1826 = vsel %vm1817, %v1805, %v1806
  %v1827 = vsel %vm1817, %v1804, %v1805
  %v1828 = vsel %vm1817, %v1803, %v1804
  %v1829 = vsel %vm1817, %v1802, %v1803
  %v1830 = vsel %vm1817, %v1801, %v1802
  %v1831 = vsel %vm1817, %v1800, %v1801
  %v1832 = vsel %vm1817, %v1799, %v1800
  %v1833 = vsel %vm1817, %v1798, %v1799
  %v1834 = vsel %vm1817, %v1797, %v1798
  %v1835 = vsel %vm1817, %v1796, %v1797
  %v1836 = vsel %vm1817, %v1795, %v1796
  %v1837 = vsel %vm1817, %v1794, %v1795
  %v1838 = vsel %vm1817, %v1793, %v1794
  %v1839 = vsel %vm1817, %v1792, %v1793
  %v1840 = vsel %vm1817, %v1791, %v1792
  %v1841 = vsel %vm1817, %v1790, %v1791
  %v1842 = vsel %vm1817, %v1789, %v1790
  %v1843 = vsel %vm1817, %v1788, %v1789
  %v1844 = vsel %vm1817, %v1787, %v1788
  %v1845 = vsel %vm1817, %v1786, %v1787
  %v1846 = vsel %vm1817, %v1785, %v1786
  %v1847 = vsel %vm1817, %v1784, %v1785
  %v1848 = vsel %vm1817, %v1783, %v1784
  %v1849 = vsel %vm1817, %v1782, %v1783
  %v1850 = vsel %vm1817, %v1781, %v1782
  %v1851 = vsel %vm1817, %v1780, %v1781
  %v1852 = vsel %vm1817, %v1779, %v1780
  %v1853 = vsel %vm1817, %v1778, %v1779
  %v1854 = vsel %vm1817, %v1777, %v1778
  %v1855 = vsel %vm1817, %v1776, %v1777
  %v1856 = vsel %vm1817, %v1775, %v1776
  %v1857 = vsel %vm1817, %v1774, %v1775
  %v1858 = vsel %vm1817, %v1773, %v1774
  %v1859 = vsel %vm1817, %v1772, %v1773
  %v1860 = vsel %vm1817, %v1771, %v1772
  %v1861 = vsel %vm1817, %v1770, %v1771
  %v1862 = vsel %vm1817, %v1769, %v1770
  %v1863 = vsel %vm1817, %v1768, %v1769
  %v1864 = vsel %vm1817, %v1767, %v1768
  %v1865 = vsel %vm1817, %v1766, %v1767
  %v1866 = vsel %vm1817, %v1765, %v1766
  %v1867 = vsel %vm1817, %v1764, %v1765
  %v1868 = vsel %vm1817, %v1763, %v1764
  %v1869 = vsel %vm1817, %v1762, %v1763
  %v1870 = vsel %vm1817, %v1761, %v1762
  %v1871 = vsel %vm1817, %v1760, %v1761
  %v1872 = vsel %vm1817, %v1759, %v1760
  %v1873 = vsel %vm1817, %v1758, %v1759
  %v1874 = vsel %vm1817, %v1757, %v1758
  %v1875 = vsel %vm1817, %v1756, %v1757
  %v1876 = vsel %vm1817, %v1755, %v1756
  %v1877 = vsel %vm1817, %v1754, %v1755
  %v1878 = vsel %vm1817, %v1753, %v1754
  %v1879 = vsel %vm1817, %v1752, %v1753
  %v1880 = vsel %vm1817, %v1751, %v1752
  %v1881 = vsel %vm1817, %v1750, %v1751
  %v1882 = vsel %vm1817, %v1749, %v1750
  %v1883 = vsel %vm1817, %v1748, %v1749
  %v1884 = vsel %vm1817, %v1747, %v1748
  %v1885 = vsel %vm1817, %v1746, %v1747
  %v1886 = vsel %vm1817, %v1745, %v1746
  %v1887 = vsel %vm1817, %v1744, %v1745
  %v1888 = vsel %vm1817, %v1743, %v1744
  %v1889 = vsel %vm1817, %v1742, %v1743
  %v1890 = vsel %vm1817, %v1741, %v1742
  %v1891 = vsel %vm1817, %v1740, %v1741
  %v1892 = vsel %vm1817, %v1739, %v1740
  %v1893 = vsel %vm1817, %v1738, %v1739
  %v1894 = vsel %vm1817, %v1737, %v1738
  %v1895 = vsel %vm1817, %v1736, %v1737
  %v1896 = vsel %vm1817, %v1735, %v1736
  %v1897 = vsel %vm1817, %v1734, %v1735
  %v1898 = vsel %vm1817, %v1733, %v1734
  %v1899 = vsel %vm1817, %v1732, %v1733
  %v1900 = vsel %vm1817, %v1731, %v1732
  %v1901 = vsel %vm1817, %v1730, %v1731
  %v1902 = vsel %vm1817, %v1729, %v1730
  %v1903 = vsel %vm1817, %v1728, %v1729
  %v1904 = vsel %vm1817, %v1727, %v1728
  %v1905 = vsel %vm1817, %v1726, %v1727
  %v1906 = vsel %vm1817, %v1725, %v1726
  %v1907 = vsel %vm1817, %v1724, %v1725
  %v1908 = vsel %vm1817, %v1723, %v1724
  %v1909 = vsel %vm1817, %v1722, %v1723
  %v1910 = vsel %vm1817, %v1721, %v1722
  %v1911 = vsel %vm1817, %v1720, %v1721
  %v1912 = vsel %vm1817, %v1719, %v1720
  %v1913 = vsel %vm1817, %v1718, %v1719
  %v1914 = vsel %vm1817, %v1717, %v1718
  %v1915 = vsel %vm1817, %v1716, %v1717
  %v1916 = vsel %vm1817, %v1715, %v1716
  %v1917 = vsel %vm1817, %v1714, %v1715
  %v1918 = vsel %vm1817, %v1713, %v1714
  %v1919 = vsel %vm1817, %v1712, %v1713
  %v1920 = vsel %vm1817, %v1711, %v1712
  %v1921 = vsel %vm1817, %v1710, %v1711
  %v1922 = vsel %vm1817, %v1709, %v1710
  %v1923 = vsel %vm1817, %v1708, %v1709
  %v1924 = vsel %vm1817, %v1707, %v1708
  %v1925 = vsel %vm1817, %v1706, %v1707
  %v1926 = vsel %vm1817, %v1705, %v1706
  %v1927 = vsel %vm1817, %v1704, %v1705
  %v1928 = vsel %vm1817, %v1703, %v1704
  %v1929 = vsel %vm1817, %v1814, %v1703
  %v1930 = vadd.f32 %v664, %v1928
  %v1931 = vadd.f32 %v668, %v1927
  %v1932 = vadd.f32 %v674, %v1926
  %v1933 = vadd.f32 %v678, %v1925
  %v1934 = vadd.f32 %v684, %v1924
  %v1935 = vadd.f32 %v688, %v1923
  %v1936 = vadd.f32 %v694, %v1922
  %v1937 = vadd.f32 %v698, %v1921
  %v1938 = vadd.f32 %v704, %v1920
  %v1939 = vadd.f32 %v708, %v1919
  %v1940 = vadd.f32 %v714, %v1918
  %v1941 = vadd.f32 %v718, %v1917
  %v1942 = vadd.f32 %v724, %v1916
  %v1943 = vadd.f32 %v728, %v1915
  %v1944 = vadd.f32 %v734, %v1914
  %v1945 = vadd.f32 %v738, %v1913
  %v1946 = vadd.f32 %v744, %v1912
  %v1947 = vadd.f32 %v748, %v1911
  %v1948 = vadd.f32 %v754, %v1910
  %v1949 = vadd.f32 %v758, %v1909
  %v1950 = vadd.f32 %v764, %v1908
  %v1951 = vadd.f32 %v768, %v1907
  %v1952 = vadd.f32 %v774, %v1906
  %v1953 = vadd.f32 %v778, %v1905
  %v1954 = vadd.f32 %v784, %v1904
  %v1955 = vadd.f32 %v788, %v1903
  %v1956 = vadd.f32 %v794, %v1902
  %v1957 = vadd.f32 %v798, %v1901
  %v1958 = vadd.f32 %v804, %v1900
  %v1959 = vadd.f32 %v808, %v1899
  %v1960 = vadd.f32 %v814, %v1898
  %v1961 = vadd.f32 %v818, %v1897
  %v1962 = vadd.f32 %v824, %v1896
  %v1963 = vadd.f32 %v828, %v1895
  %v1964 = vadd.f32 %v834, %v1894
  %v1965 = vadd.f32 %v838, %v1893
  %v1966 = vadd.f32 %v844, %v1892
  %v1967 = vadd.f32 %v848, %v1891
  %v1968 = vadd.f32 %v854, %v1890
  %v1969 = vadd.f32 %v858, %v1889
  %v1970 = vadd.f32 %v864, %v1888
  %v1971 = vadd.f32 %v868, %v1887
  %v1972 = vadd.f32 %v874, %v1886
  %v1973 = vadd.f32 %v878, %v1885
  %v1974 = vadd.f32 %v884, %v1884
  %v1975 = vadd.f32 %v888, %v1883
  %v1976 = vadd.f32 %v894, %v1882
  %v1977 = vadd.f32 %v898, %v1881
  %v1978 = vadd.f32 %v904, %v1880
  %v1979 = vadd.f32 %v908, %v1879
  %v1980 = vadd.f32 %v914, %v1878
  %v1981 = vadd.f32 %v918, %v1877
  %v1982 = vadd.f32 %v924, %v1876
  %v1983 = vadd.f32 %v928, %v1875
  %v1984 = vadd.f32 %v934, %v1874
  %v1985 = vadd.f32 %v938, %v1873
  %v1986 = vadd.f32 %v944, %v1872
  %v1987 = vadd.f32 %v948, %v1871
  %v1988 = vadd.f32 %v954, %v1870
  %v1989 = vadd.f32 %v958, %v1869
  %v1990 = vadd.f32 %v964, %v1868
  %v1991 = vadd.f32 %v968, %v1867
  %v1992 = vadd.f32 %v974, %v1866
  %v1993 = vadd.f32 %v978, %v1865
  %v1994 = vadd.f32 %v984, %v1864
  %v1995 = vadd.f32 %v988, %v1863
  %v1996 = vadd.f32 %v994, %v1862
  %v1997 = vadd.f32 %v998, %v1861
  %v1998 = vadd.f32 %v1004, %v1860
  %v1999 = vadd.f32 %v1008, %v1859
  %v2000 = vadd.f32 %v1014, %v1858
  %v2001 = vadd.f32 %v1018, %v1857
  %v2002 = vadd.f32 %v1024, %v1856
  %v2003 = vadd.f32 %v1028, %v1855
  %v2004 = vadd.f32 %v1034, %v1854
  %v2005 = vadd.f32 %v1038, %v1853
  %v2006 = vadd.f32 %v1044, %v1852
  %v2007 = vadd.f32 %v1048, %v1851
  %v2008 = vadd.f32 %v1054, %v1850
  %v2009 = vadd.f32 %v1058, %v1849
  %v2010 = vadd.f32 %v1064, %v1848
  %v2011 = vadd.f32 %v1068, %v1847
  %v2012 = vadd.f32 %v1074, %v1846
  %v2013 = vadd.f32 %v1078, %v1845
  %v2014 = vadd.f32 %v1084, %v1844
  %v2015 = vadd.f32 %v1088, %v1843
  %v2016 = vadd.f32 %v1094, %v1842
  %v2017 = vadd.f32 %v1098, %v1841
  %v2018 = vadd.f32 %v1104, %v1840
  %v2019 = vadd.f32 %v1108, %v1839
  %v2020 = vadd.f32 %v1114, %v1838
  %v2021 = vadd.f32 %v1118, %v1837
  %v2022 = vadd.f32 %v1124, %v1836
  %v2023 = vadd.f32 %v1128, %v1835
  %v2024 = vadd.f32 %v1134, %v1834
  %v2025 = vadd.f32 %v1138, %v1833
  %v2026 = vadd.f32 %v1144, %v1832
  %v2027 = vadd.f32 %v1148, %v1831
  %v2028 = vadd.f32 %v1154, %v1830
  %v2029 = vadd.f32 %v1158, %v1829
  %v2030 = vadd.f32 %v1164, %v1828
  %v2031 = vadd.f32 %v1168, %v1827
  %v2032 = vadd.f32 %v1174, %v1826
  %v2033 = vadd.f32 %v1178, %v1825
  %v2034 = vadd.f32 %v1184, %v1824
  %v2035 = vadd.f32 %v1188, %v1823
  %v2036 = vadd.f32 %v1194, %v1822
  %v2037 = vadd.f32 %v1198, %v1821
  %v2038 = vadd.f32 %v1204, %v1820
  %v2039 = vadd.f32 %v1208, %v1819
  %v2040 = vadd.f32 %v1214, %v1818
  %v2041 = vadd.f32 %v1218, %v1929
  %v2042 = vrot.slane %v1257, 2
  %v2043 = vrot.slane %v1260, 2
  %v2044 = vrot.slane %v1265, 2
  %v2045 = vrot.slane %v1268, 2
  %v2046 = vrot.slane %v1273, 2
  %v2047 = vrot.slane %v1276, 2
  %v2048 = vrot.slane %v1281, 2
  %v2049 = vrot.slane %v1284, 2
  %v2050 = vrot.slane %v1289, 2
  %v2051 = vrot.slane %v1292, 2
  %v2052 = vrot.slane %v1297, 2
  %v2053 = vrot.slane %v1300, 2
  %v2054 = vrot.slane %v1305, 2
  %v2055 = vrot.slane %v1308, 2
  %v2056 = vrot.slane %v1313, 2
  %v2057 = vrot.slane %v1316, 2
  %v2058 = vrot.slane %v1321, 2
  %v2059 = vrot.slane %v1324, 2
  %v2060 = vrot.slane %v1329, 2
  %v2061 = vrot.slane %v1332, 2
  %v2062 = vrot.slane %v1337, 2
  %v2063 = vrot.slane %v1340, 2
  %v2064 = vrot.slane %v1345, 2
  %v2065 = vrot.slane %v1348, 2
  %v2066 = vrot.slane %v1353, 2
  %v2067 = vrot.slane %v1356, 2
  %v2068 = vrot.slane %v1361, 2
  %v2069 = vrot.slane %v1364, 2
  %v2070 = vrot.slane %v1369, 2
  %v2071 = vrot.slane %v1372, 2
  %v2072 = vrot.slane %v1377, 2
  %v2073 = vrot.slane %v1380, 2
  %v2074 = vrot.slane %v1385, 2
  %v2075 = vrot.slane %v1388, 2
  %v2076 = vrot.slane %v1393, 2
  %v2077 = vrot.slane %v1396, 2
  %v2078 = vrot.slane %v1401, 2
  %v2079 = vrot.slane %v1404, 2
  %v2080 = vrot.slane %v1409, 2
  %v2081 = vrot.slane %v1412, 2
  %v2082 = vrot.slane %v1417, 2
  %v2083 = vrot.slane %v1420, 2
  %v2084 = vrot.slane %v1425, 2
  %v2085 = vrot.slane %v1428, 2
  %v2086 = vrot.slane %v1433, 2
  %v2087 = vrot.slane %v1436, 2
  %v2088 = vrot.slane %v1441, 2
  %v2089 = vrot.slane %v1444, 2
  %v2090 = vrot.slane %v1449, 2
  %v2091 = vrot.slane %v1452, 2
  %v2092 = vrot.slane %v1457, 2
  %v2093 = vrot.slane %v1460, 2
  %v2094 = vrot.slane %v1465, 2
  %v2095 = vrot.slane %v1468, 2
  %v2096 = vrot.slane %v1473, 2
  %v2097 = vrot.slane %v1476, 2
  %v2098 = vrot.slane %v1481, 2
  %v2099 = vrot.slane %v1484, 2
  %v2100 = vrot.slane %v1489, 2
  %v2101 = vrot.slane %v1492, 2
  %v2102 = vrot.slane %v1497, 2
  %v2103 = vrot.slane %v1500, 2
  %v2104 = vrot.slane %v1505, 2
  %v2105 = vrot.slane %v1508, 2
  %v2106 = vrot.slane %v1513, 2
  %v2107 = vrot.slane %v1516, 2
  %v2108 = vrot.slane %v1521, 2
  %v2109 = vrot.slane %v1524, 2
  %v2110 = vrot.slane %v1529, 2
  %v2111 = vrot.slane %v1532, 2
  %v2112 = vrot.slane %v1537, 2
  %v2113 = vrot.slane %v1540, 2
  %v2114 = vrot.slane %v1545, 2
  %v2115 = vrot.slane %v1548, 2
  %v2116 = vrot.slane %v1553, 2
  %v2117 = vrot.slane %v1556, 2
  %v2118 = vrot.slane %v1561, 2
  %v2119 = vrot.slane %v1564, 2
  %v2120 = vrot.slane %v1569, 2
  %v2121 = vrot.slane %v1572, 2
  %v2122 = vrot.slane %v1577, 2
  %v2123 = vrot.slane %v1580, 2
  %v2124 = vrot.slane %v1585, 2
  %v2125 = vrot.slane %v1588, 2
  %v2126 = vrot.slane %v1593, 2
  %v2127 = vrot.slane %v1596, 2
  %v2128 = vrot.slane %v1601, 2
  %v2129 = vrot.slane %v1604, 2
  %v2130 = vrot.slane %v1609, 2
  %v2131 = vrot.slane %v1612, 2
  %v2132 = vrot.slane %v1617, 2
  %v2133 = vrot.slane %v1620, 2
  %v2134 = vrot.slane %v1625, 2
  %v2135 = vrot.slane %v1628, 2
  %v2136 = vrot.slane %v1633, 2
  %v2137 = vrot.slane %v1636, 2
  %v2138 = vrot.slane %v1641, 2
  %v2139 = vrot.slane %v1644, 2
  %v2140 = vrot.slane %v1649, 2
  %v2141 = vrot.slane %v1652, 2
  %v2142 = vrot.slane %v1657, 2
  %v2143 = vrot.slane %v1660, 2
  %v2144 = vrot.slane %v1665, 2
  %v2145 = vrot.slane %v1668, 2
  %v2146 = vrot.slane %v1673, 2
  %v2147 = vrot.slane %v1676, 2
  %v2148 = vrot.slane %v1681, 2
  %v2149 = vrot.slane %v1684, 2
  %v2150 = vrot.slane %v1689, 2
  %v2151 = vrot.slane %v1692, 2
  %v2152 = vrot.slane %v1697, 2
  %v2153 = vrot.slane %v1700, 2
  %vm2154 = vcmp.lt.s32.totalorder %v1816, 6
  %v2155 = vsel %vm2154, %v2152, %v2153
  %v2156 = vsel %vm2154, %v2151, %v2152
  %v2157 = vsel %vm2154, %v2150, %v2151
  %v2158 = vsel %vm2154, %v2149, %v2150
  %v2159 = vsel %vm2154, %v2148, %v2149
  %v2160 = vsel %vm2154, %v2147, %v2148
  %v2161 = vsel %vm2154, %v2146, %v2147
  %v2162 = vsel %vm2154, %v2145, %v2146
  %v2163 = vsel %vm2154, %v2144, %v2145
  %v2164 = vsel %vm2154, %v2143, %v2144
  %v2165 = vsel %vm2154, %v2142, %v2143
  %v2166 = vsel %vm2154, %v2141, %v2142
  %v2167 = vsel %vm2154, %v2140, %v2141
  %v2168 = vsel %vm2154, %v2139, %v2140
  %v2169 = vsel %vm2154, %v2138, %v2139
  %v2170 = vsel %vm2154, %v2137, %v2138
  %v2171 = vsel %vm2154, %v2136, %v2137
  %v2172 = vsel %vm2154, %v2135, %v2136
  %v2173 = vsel %vm2154, %v2134, %v2135
  %v2174 = vsel %vm2154, %v2133, %v2134
  %v2175 = vsel %vm2154, %v2132, %v2133
  %v2176 = vsel %vm2154, %v2131, %v2132
  %v2177 = vsel %vm2154, %v2130, %v2131
  %v2178 = vsel %vm2154, %v2129, %v2130
  %v2179 = vsel %vm2154, %v2128, %v2129
  %v2180 = vsel %vm2154, %v2127, %v2128
  %v2181 = vsel %vm2154, %v2126, %v2127
  %v2182 = vsel %vm2154, %v2125, %v2126
  %v2183 = vsel %vm2154, %v2124, %v2125
  %v2184 = vsel %vm2154, %v2123, %v2124
  %v2185 = vsel %vm2154, %v2122, %v2123
  %v2186 = vsel %vm2154, %v2121, %v2122
  %v2187 = vsel %vm2154, %v2120, %v2121
  %v2188 = vsel %vm2154, %v2119, %v2120
  %v2189 = vsel %vm2154, %v2118, %v2119
  %v2190 = vsel %vm2154, %v2117, %v2118
  %v2191 = vsel %vm2154, %v2116, %v2117
  %v2192 = vsel %vm2154, %v2115, %v2116
  %v2193 = vsel %vm2154, %v2114, %v2115
  %v2194 = vsel %vm2154, %v2113, %v2114
  %v2195 = vsel %vm2154, %v2112, %v2113
  %v2196 = vsel %vm2154, %v2111, %v2112
  %v2197 = vsel %vm2154, %v2110, %v2111
  %v2198 = vsel %vm2154, %v2109, %v2110
  %v2199 = vsel %vm2154, %v2108, %v2109
  %v2200 = vsel %vm2154, %v2107, %v2108
  %v2201 = vsel %vm2154, %v2106, %v2107
  %v2202 = vsel %vm2154, %v2105, %v2106
  %v2203 = vsel %vm2154, %v2104, %v2105
  %v2204 = vsel %vm2154, %v2103, %v2104
  %v2205 = vsel %vm2154, %v2102, %v2103
  %v2206 = vsel %vm2154, %v2101, %v2102
  %v2207 = vsel %vm2154, %v2100, %v2101
  %v2208 = vsel %vm2154, %v2099, %v2100
  %v2209 = vsel %vm2154, %v2098, %v2099
  %v2210 = vsel %vm2154, %v2097, %v2098
  %v2211 = vsel %vm2154, %v2096, %v2097
  %v2212 = vsel %vm2154, %v2095, %v2096
  %v2213 = vsel %vm2154, %v2094, %v2095
  %v2214 = vsel %vm2154, %v2093, %v2094
  %v2215 = vsel %vm2154, %v2092, %v2093
  %v2216 = vsel %vm2154, %v2091, %v2092
  %v2217 = vsel %vm2154, %v2090, %v2091
  %v2218 = vsel %vm2154, %v2089, %v2090
  %v2219 = vsel %vm2154, %v2088, %v2089
  %v2220 = vsel %vm2154, %v2087, %v2088
  %v2221 = vsel %vm2154, %v2086, %v2087
  %v2222 = vsel %vm2154, %v2085, %v2086
  %v2223 = vsel %vm2154, %v2084, %v2085
  %v2224 = vsel %vm2154, %v2083, %v2084
  %v2225 = vsel %vm2154, %v2082, %v2083
  %v2226 = vsel %vm2154, %v2081, %v2082
  %v2227 = vsel %vm2154, %v2080, %v2081
  %v2228 = vsel %vm2154, %v2079, %v2080
  %v2229 = vsel %vm2154, %v2078, %v2079
  %v2230 = vsel %vm2154, %v2077, %v2078
  %v2231 = vsel %vm2154, %v2076, %v2077
  %v2232 = vsel %vm2154, %v2075, %v2076
  %v2233 = vsel %vm2154, %v2074, %v2075
  %v2234 = vsel %vm2154, %v2073, %v2074
  %v2235 = vsel %vm2154, %v2072, %v2073
  %v2236 = vsel %vm2154, %v2071, %v2072
  %v2237 = vsel %vm2154, %v2070, %v2071
  %v2238 = vsel %vm2154, %v2069, %v2070
  %v2239 = vsel %vm2154, %v2068, %v2069
  %v2240 = vsel %vm2154, %v2067, %v2068
  %v2241 = vsel %vm2154, %v2066, %v2067
  %v2242 = vsel %vm2154, %v2065, %v2066
  %v2243 = vsel %vm2154, %v2064, %v2065
  %v2244 = vsel %vm2154, %v2063, %v2064
  %v2245 = vsel %vm2154, %v2062, %v2063
  %v2246 = vsel %vm2154, %v2061, %v2062
  %v2247 = vsel %vm2154, %v2060, %v2061
  %v2248 = vsel %vm2154, %v2059, %v2060
  %v2249 = vsel %vm2154, %v2058, %v2059
  %v2250 = vsel %vm2154, %v2057, %v2058
  %v2251 = vsel %vm2154, %v2056, %v2057
  %v2252 = vsel %vm2154, %v2055, %v2056
  %v2253 = vsel %vm2154, %v2054, %v2055
  %v2254 = vsel %vm2154, %v2053, %v2054
  %v2255 = vsel %vm2154, %v2052, %v2053
  %v2256 = vsel %vm2154, %v2051, %v2052
  %v2257 = vsel %vm2154, %v2050, %v2051
  %v2258 = vsel %vm2154, %v2049, %v2050
  %v2259 = vsel %vm2154, %v2048, %v2049
  %v2260 = vsel %vm2154, %v2047, %v2048
  %v2261 = vsel %vm2154, %v2046, %v2047
  %v2262 = vsel %vm2154, %v2045, %v2046
  %v2263 = vsel %vm2154, %v2044, %v2045
  %v2264 = vsel %vm2154, %v2043, %v2044
  %v2265 = vsel %vm2154, %v2042, %v2043
  %v2266 = vsel %vm2154, %v2153, %v2042
  %v2267 = vadd.f32 %v1930, %v2265
  %v2268 = vadd.f32 %v1931, %v2264
  %v2269 = vadd.f32 %v1932, %v2263
  %v2270 = vadd.f32 %v1933, %v2262
  %v2271 = vadd.f32 %v1934, %v2261
  %v2272 = vadd.f32 %v1935, %v2260
  %v2273 = vadd.f32 %v1936, %v2259
  %v2274 = vadd.f32 %v1937, %v2258
  %v2275 = vadd.f32 %v1938, %v2257
  %v2276 = vadd.f32 %v1939, %v2256
  %v2277 = vadd.f32 %v1940, %v2255
  %v2278 = vadd.f32 %v1941, %v2254
  %v2279 = vadd.f32 %v1942, %v2253
  %v2280 = vadd.f32 %v1943, %v2252
  %v2281 = vadd.f32 %v1944, %v2251
  %v2282 = vadd.f32 %v1945, %v2250
  %v2283 = vadd.f32 %v1946, %v2249
  %v2284 = vadd.f32 %v1947, %v2248
  %v2285 = vadd.f32 %v1948, %v2247
  %v2286 = vadd.f32 %v1949, %v2246
  %v2287 = vadd.f32 %v1950, %v2245
  %v2288 = vadd.f32 %v1951, %v2244
  %v2289 = vadd.f32 %v1952, %v2243
  %v2290 = vadd.f32 %v1953, %v2242
  %v2291 = vadd.f32 %v1954, %v2241
  %v2292 = vadd.f32 %v1955, %v2240
  %v2293 = vadd.f32 %v1956, %v2239
  %v2294 = vadd.f32 %v1957, %v2238
  %v2295 = vadd.f32 %v1958, %v2237
  %v2296 = vadd.f32 %v1959, %v2236
  %v2297 = vadd.f32 %v1960, %v2235
  %v2298 = vadd.f32 %v1961, %v2234
  %v2299 = vadd.f32 %v1962, %v2233
  %v2300 = vadd.f32 %v1963, %v2232
  %v2301 = vadd.f32 %v1964, %v2231
  %v2302 = vadd.f32 %v1965, %v2230
  %v2303 = vadd.f32 %v1966, %v2229
  %v2304 = vadd.f32 %v1967, %v2228
  %v2305 = vadd.f32 %v1968, %v2227
  %v2306 = vadd.f32 %v1969, %v2226
  %v2307 = vadd.f32 %v1970, %v2225
  %v2308 = vadd.f32 %v1971, %v2224
  %v2309 = vadd.f32 %v1972, %v2223
  %v2310 = vadd.f32 %v1973, %v2222
  %v2311 = vadd.f32 %v1974, %v2221
  %v2312 = vadd.f32 %v1975, %v2220
  %v2313 = vadd.f32 %v1976, %v2219
  %v2314 = vadd.f32 %v1977, %v2218
  %v2315 = vadd.f32 %v1978, %v2217
  %v2316 = vadd.f32 %v1979, %v2216
  %v2317 = vadd.f32 %v1980, %v2215
  %v2318 = vadd.f32 %v1981, %v2214
  %v2319 = vadd.f32 %v1982, %v2213
  %v2320 = vadd.f32 %v1983, %v2212
  %v2321 = vadd.f32 %v1984, %v2211
  %v2322 = vadd.f32 %v1985, %v2210
  %v2323 = vadd.f32 %v1986, %v2209
  %v2324 = vadd.f32 %v1987, %v2208
  %v2325 = vadd.f32 %v1988, %v2207
  %v2326 = vadd.f32 %v1989, %v2206
  %v2327 = vadd.f32 %v1990, %v2205
  %v2328 = vadd.f32 %v1991, %v2204
  %v2329 = vadd.f32 %v1992, %v2203
  %v2330 = vadd.f32 %v1993, %v2202
  %v2331 = vadd.f32 %v1994, %v2201
  %v2332 = vadd.f32 %v1995, %v2200
  %v2333 = vadd.f32 %v1996, %v2199
  %v2334 = vadd.f32 %v1997, %v2198
  %v2335 = vadd.f32 %v1998, %v2197
  %v2336 = vadd.f32 %v1999, %v2196
  %v2337 = vadd.f32 %v2000, %v2195
  %v2338 = vadd.f32 %v2001, %v2194
  %v2339 = vadd.f32 %v2002, %v2193
  %v2340 = vadd.f32 %v2003, %v2192
  %v2341 = vadd.f32 %v2004, %v2191
  %v2342 = vadd.f32 %v2005, %v2190
  %v2343 = vadd.f32 %v2006, %v2189
  %v2344 = vadd.f32 %v2007, %v2188
  %v2345 = vadd.f32 %v2008, %v2187
  %v2346 = vadd.f32 %v2009, %v2186
  %v2347 = vadd.f32 %v2010, %v2185
  %v2348 = vadd.f32 %v2011, %v2184
  %v2349 = vadd.f32 %v2012, %v2183
  %v2350 = vadd.f32 %v2013, %v2182
  %v2351 = vadd.f32 %v2014, %v2181
  %v2352 = vadd.f32 %v2015, %v2180
  %v2353 = vadd.f32 %v2016, %v2179
  %v2354 = vadd.f32 %v2017, %v2178
  %v2355 = vadd.f32 %v2018, %v2177
  %v2356 = vadd.f32 %v2019, %v2176
  %v2357 = vadd.f32 %v2020, %v2175
  %v2358 = vadd.f32 %v2021, %v2174
  %v2359 = vadd.f32 %v2022, %v2173
  %v2360 = vadd.f32 %v2023, %v2172
  %v2361 = vadd.f32 %v2024, %v2171
  %v2362 = vadd.f32 %v2025, %v2170
  %v2363 = vadd.f32 %v2026, %v2169
  %v2364 = vadd.f32 %v2027, %v2168
  %v2365 = vadd.f32 %v2028, %v2167
  %v2366 = vadd.f32 %v2029, %v2166
  %v2367 = vadd.f32 %v2030, %v2165
  %v2368 = vadd.f32 %v2031, %v2164
  %v2369 = vadd.f32 %v2032, %v2163
  %v2370 = vadd.f32 %v2033, %v2162
  %v2371 = vadd.f32 %v2034, %v2161
  %v2372 = vadd.f32 %v2035, %v2160
  %v2373 = vadd.f32 %v2036, %v2159
  %v2374 = vadd.f32 %v2037, %v2158
  %v2375 = vadd.f32 %v2038, %v2157
  %v2376 = vadd.f32 %v2039, %v2156
  %v2377 = vadd.f32 %v2040, %v2155
  %v2378 = vadd.f32 %v2041, %v2266
  %2379 = vst [vmem:[#allocation2] sm:$0xff] %v2267
  %2380 = vst [vmem:[#allocation2 + $0x8] sm:$0xff] %v2268
  %2381 = vst [vmem:[#allocation2 + $0x10] sm:$0xff] %v2269
  %2382 = vst [vmem:[#allocation2 + $0x18] sm:$0xff] %v2270
  %2383 = vst [vmem:[#allocation2 + $0x20] sm:$0xff] %v2271
  %2384 = vst [vmem:[#allocation2 + $0x28] sm:$0xff] %v2272
  %2385 = vst [vmem:[#allocation2 + $0x30] sm:$0xff] %v2273
  %2386 = vst [vmem:[#allocation2 + $0x38] sm:$0xff] %v2274
  %2387 = vst [vmem:[#allocation2 + $0x40] sm:$0xff] %v2275
  %2388 = vst [vmem:[#allocation2 + $0x48] sm:$0xff] %v2276
  %2389 = vst [vmem:[#allocation2 + $0x50] sm:$0xff] %v2277
  %2390 = vst [vmem:[#allocation2 + $0x58] sm:$0xff] %v2278
  %2391 = vst [vmem:[#allocation2 + $0x60] sm:$0xff] %v2279
  %2392 = vst [vmem:[#allocation2 + $0x68] sm:$0xff] %v2280
  %2393 = vst [vmem:[#allocation2 + $0x70] sm:$0xff] %v2281
  %2394 = vst [vmem:[#allocation2 + $0x78] sm:$0xff] %v2282
  %2395 = vst [vmem:[#allocation2 + $0x80] sm:$0xff] %v2283
  %2396 = vst [vmem:[#allocation2 + $0x88] sm:$0xff] %v2284
  %2397 = vst [vmem:[#allocation2 + $0x90] sm:$0xff] %v2285
  %2398 = vst [vmem:[#allocation2 + $0x98] sm:$0xff] %v2286
  %2399 = vst [vmem:[#allocation2 + $0xa0] sm:$0xff] %v2287
  %2400 = vst [vmem:[#allocation2 + $0xa8] sm:$0xff] %v2288
  %2401 = vst [vmem:[#allocation2 + $0xb0] sm:$0xff] %v2289
  %2402 = vst [vmem:[#allocation2 + $0xb8] sm:$0xff] %v2290
  %2403 = vst [vmem:[#allocation2 + $0xc0] sm:$0xff] %v2291
  %2404 = vst [vmem:[#allocation2 + $0xc8] sm:$0xff] %v2292
  %2405 = vst [vmem:[#allocation2 + $0xd0] sm:$0xff] %v2293
  %2406 = vst [vmem:[#allocation2 + $0xd8] sm:$0xff] %v2294
  %2407 = vst [vmem:[#allocation2 + $0xe0] sm:$0xff] %v2295
  %2408 = vst [vmem:[#allocation2 + $0xe8] sm:$0xff] %v2296
  %2409 = vst [vmem:[#allocation2 + $0xf0] sm:$0xff] %v2297
  %2410 = vst [vmem:[#allocation2 + $0xf8] sm:$0xff] %v2298
  %2411 = vst [vmem:[#allocation2 + $0x100] sm:$0xff] %v2299
  %2412 = vst [vmem:[#allocation2 + $0x108] sm:$0xff] %v2300
  %2413 = vst [vmem:[#allocation2 + $0x110] sm:$0xff] %v2301
  %2414 = vst [vmem:[#allocation2 + $0x118] sm:$0xff] %v2302
  %2415 = vst [vmem:[#allocation2 + $0x120] sm:$0xff] %v2303
  %2416 = vst [vmem:[#allocation2 + $0x128] sm:$0xff] %v2304
  %2417 = vst [vmem:[#allocation2 + $0x130] sm:$0xff] %v2305
  %2418 = vst [vmem:[#allocation2 + $0x138] sm:$0xff] %v2306
  %2419 = vst [vmem:[#allocation2 + $0x140] sm:$0xff] %v2307
  %2420 = vst [vmem:[#allocation2 + $0x148] sm:$0xff] %v2308
  %2421 = vst [vmem:[#allocation2 + $0x150] sm:$0xff] %v2309
  %2422 = vst [vmem:[#allocation2 + $0x158] sm:$0xff] %v2310
  %2423 = vst [vmem:[#allocation2 + $0x160] sm:$0xff] %v2311
  %2424 = vst [vmem:[#allocation2 + $0x168] sm:$0xff] %v2312
  %2425 = vst [vmem:[#allocation2 + $0x170] sm:$0xff] %v2313
  %2426 = vst [vmem:[#allocation2 + $0x178] sm:$0xff] %v2314
  %2427 = vst [vmem:[#allocation2 + $0x180] sm:$0xff] %v2315
  %2428 = vst [vmem:[#allocation2 + $0x188] sm:$0xff] %v2316
  %2429 = vst [vmem:[#allocation2 + $0x190] sm:$0xff] %v2317
  %2430 = vst [vmem:[#allocation2 + $0x198] sm:$0xff] %v2318
  %2431 = vst [vmem:[#allocation2 + $0x1a0] sm:$0xff] %v2319
  %2432 = vst [vmem:[#allocation2 + $0x1a8] sm:$0xff] %v2320
  %2433 = vst [vmem:[#allocation2 + $0x1b0] sm:$0xff] %v2321
  %2434 = vst [vmem:[#allocation2 + $0x1b8] sm:$0xff] %v2322
  %2435 = vst [vmem:[#allocation2 + $0x1c0] sm:$0xff] %v2323
  %2436 = vst [vmem:[#allocation2 + $0x1c8] sm:$0xff] %v2324
  %2437 = vst [vmem:[#allocation2 + $0x1d0] sm:$0xff] %v2325
  %2438 = vst [vmem:[#allocation2 + $0x1d8] sm:$0xff] %v2326
  %2439 = vst [vmem:[#allocation2 + $0x1e0] sm:$0xff] %v2327
  %2440 = vst [vmem:[#allocation2 + $0x1e8] sm:$0xff] %v2328
  %2441 = vst [vmem:[#allocation2 + $0x1f0] sm:$0xff] %v2329
  %2442 = vst [vmem:[#allocation2 + $0x1f8] sm:$0xff] %v2330
  %2443 = vst [vmem:[#allocation2 + $0x200] sm:$0xff] %v2331
  %2444 = vst [vmem:[#allocation2 + $0x208] sm:$0xff] %v2332
  %2445 = vst [vmem:[#allocation2 + $0x210] sm:$0xff] %v2333
  %2446 = vst [vmem:[#allocation2 + $0x218] sm:$0xff] %v2334
  %2447 = vst [vmem:[#allocation2 + $0x220] sm:$0xff] %v2335
  %2448 = vst [vmem:[#allocation2 + $0x228] sm:$0xff] %v2336
  %2449 = vst [vmem:[#allocation2 + $0x230] sm:$0xff] %v2337
  %2450 = vst [vmem:[#allocation2 + $0x238] sm:$0xff] %v2338
  %2451 = vst [vmem:[#allocation2 + $0x240] sm:$0xff] %v2339
  %2452 = vst [vmem:[#allocation2 + $0x248] sm:$0xff] %v2340
  %2453 = vst [vmem:[#allocation2 + $0x250] sm:$0xff] %v2341
  %2454 = vst [vmem:[#allocation2 + $0x258] sm:$0xff] %v2342
  %2455 = vst [vmem:[#allocation2 + $0x260] sm:$0xff] %v2343
  %2456 = vst [vmem:[#allocation2 + $0x268] sm:$0xff] %v2344
  %2457 = vst [vmem:[#allocation2 + $0x270] sm:$0xff] %v2345
  %2458 = vst [vmem:[#allocation2 + $0x278] sm:$0xff] %v2346
  %2459 = vst [vmem:[#allocation2 + $0x280] sm:$0xff] %v2347
  %2460 = vst [vmem:[#allocation2 + $0x288] sm:$0xff] %v2348
  %2461 = vst [vmem:[#allocation2 + $0x290] sm:$0xff] %v2349
  %2462 = vst [vmem:[#allocation2 + $0x298] sm:$0xff] %v2350
  %2463 = vst [vmem:[#allocation2 + $0x2a0] sm:$0xff] %v2351
  %2464 = vst [vmem:[#allocation2 + $0x2a8] sm:$0xff] %v2352
  %2465 = vst [vmem:[#allocation2 + $0x2b0] sm:$0xff] %v2353
  %2466 = vst [vmem:[#allocation2 + $0x2b8] sm:$0xff] %v2354
  %2467 = vst [vmem:[#allocation2 + $0x2c0] sm:$0xff] %v2355
  %2468 = vst [vmem:[#allocation2 + $0x2c8] sm:$0xff] %v2356
  %2469 = vst [vmem:[#allocation2 + $0x2d0] sm:$0xff] %v2357
  %2470 = vst [vmem:[#allocation2 + $0x2d8] sm:$0xff] %v2358
  %2471 = vst [vmem:[#allocation2 + $0x2e0] sm:$0xff] %v2359
  %2472 = vst [vmem:[#allocation2 + $0x2e8] sm:$0xff] %v2360
  %2473 = vst [vmem:[#allocation2 + $0x2f0] sm:$0xff] %v2361
  %2474 = vst [vmem:[#allocation2 + $0x2f8] sm:$0xff] %v2362
  %2475 = vst [vmem:[#allocation2 + $0x300] sm:$0xff] %v2363
  %2476 = vst [vmem:[#allocation2 + $0x308] sm:$0xff] %v2364
  %2477 = vst [vmem:[#allocation2 + $0x310] sm:$0xff] %v2365
  %2478 = vst [vmem:[#allocation2 + $0x318] sm:$0xff] %v2366
  %2479 = vst [vmem:[#allocation2 + $0x320] sm:$0xff] %v2367
  %2480 = vst [vmem:[#allocation2 + $0x328] sm:$0xff] %v2368
  %2481 = vst [vmem:[#allocation2 + $0x330] sm:$0xff] %v2369
  %2482 = vst [vmem:[#allocation2 + $0x338] sm:$0xff] %v2370
  %2483 = vst [vmem:[#allocation2 + $0x340] sm:$0xff] %v2371
  %2484 = vst [vmem:[#allocation2 + $0x348] sm:$0xff] %v2372
  %2485 = vst [vmem:[#allocation2 + $0x350] sm:$0xff] %v2373
  %2486 = vst [vmem:[#allocation2 + $0x358] sm:$0xff] %v2374
  %2487 = vst [vmem:[#allocation2 + $0x360] sm:$0xff] %v2375
  %2488 = vst [vmem:[#allocation2 + $0x368] sm:$0xff] %v2376
  %2489 = vst [vmem:[#allocation2 + $0x370] sm:$0xff] %v2377
  %2490 = vst [vmem:[#allocation2 + $0x378] sm:$0xff] %v2378
  %s2491 = scalar_lea.vmem %s0, 16
  %v2492 = vld [vmem:[%s2491] sm:$0xf]
  %v2493 = vld [vmem:[%s2491 + $0x4] sm:$0xf]
  %v2494 = vld [vmem:[%s2491 + $0x8] sm:$0xf]
  %v2495 = vld [vmem:[%s2491 + $0xc] sm:$0xf]
  %v2496 = vld [vmem:[%s2491 + $0x10] sm:$0xf]
  %v2497 = vld [vmem:[%s2491 + $0x14] sm:$0xf]
  %v2498 = vld [vmem:[%s2491 + $0x18] sm:$0xf]
  %v2499 = vld [vmem:[%s2491 + $0x1c] sm:$0xf]
  %v2500 = vld [vmem:[%s2491 + $0x20] sm:$0xf]
  %v2501 = vld [vmem:[%s2491 + $0x24] sm:$0xf]
  %v2502 = vld [vmem:[%s2491 + $0x28] sm:$0xf]
  %v2503 = vld [vmem:[%s2491 + $0x2c] sm:$0xf]
  %v2504 = vld [vmem:[%s2491 + $0x30] sm:$0xf]
  %v2505 = vld [vmem:[%s2491 + $0x34] sm:$0xf]
  %v2506 = vld [vmem:[%s2491 + $0x38] sm:$0xf]
  %v2507 = vld [vmem:[%s2491 + $0x3c] sm:$0xf]
  %v2508 = vld [vmem:[%s2491 + $0x40] sm:$0xf]
  %v2509 = vld [vmem:[%s2491 + $0x44] sm:$0xf]
  %v2510 = vld [vmem:[%s2491 + $0x48] sm:$0xf]
  %v2511 = vld [vmem:[%s2491 + $0x4c] sm:$0xf]
  %v2512 = vld [vmem:[%s2491 + $0x50] sm:$0xf]
  %v2513 = vld [vmem:[%s2491 + $0x54] sm:$0xf]
  %v2514 = vld [vmem:[%s2491 + $0x58] sm:$0xf]
  %v2515 = vld [vmem:[%s2491 + $0x5c] sm:$0xf]
  %v2516 = vld [vmem:[%s2491 + $0x60] sm:$0xf]
  %v2517 = vld [vmem:[%s2491 + $0x64] sm:$0xf]
  %v2518 = vld [vmem:[%s2491 + $0x68] sm:$0xf]
  %v2519 = vld [vmem:[%s2491 + $0x6c] sm:$0xf]
  %v2520 = vld [vmem:[%s2491 + $0x70] sm:$0xf]
  %v2521 = vld [vmem:[%s2491 + $0x74] sm:$0xf]
  %v2522 = vld [vmem:[%s2491 + $0x78] sm:$0xf]
  %v2523 = vld [vmem:[%s2491 + $0x7c] sm:$0xf]
  %v2524 = vld [vmem:[%s2491 + $0x80] sm:$0xf]
  %v2525 = vld [vmem:[%s2491 + $0x84] sm:$0xf]
  %v2526 = vld [vmem:[%s2491 + $0x88] sm:$0xf]
  %v2527 = vld [vmem:[%s2491 + $0x8c] sm:$0xf]
  %v2528 = vld [vmem:[%s2491 + $0x90] sm:$0xf]
  %v2529 = vld [vmem:[%s2491 + $0x94] sm:$0xf]
  %v2530 = vld [vmem:[%s2491 + $0x98] sm:$0xf]
  %v2531 = vld [vmem:[%s2491 + $0x9c] sm:$0xf]
  %v2532 = vld [vmem:[%s2491 + $0xa0] sm:$0xf]
  %v2533 = vld [vmem:[%s2491 + $0xa4] sm:$0xf]
  %v2534 = vld [vmem:[%s2491 + $0xa8] sm:$0xf]
  %v2535 = vld [vmem:[%s2491 + $0xac] sm:$0xf]
  %v2536 = vld [vmem:[%s2491 + $0xb0] sm:$0xf]
  %v2537 = vld [vmem:[%s2491 + $0xb4] sm:$0xf]
  %v2538 = vld [vmem:[%s2491 + $0xb8] sm:$0xf]
  %v2539 = vld [vmem:[%s2491 + $0xbc] sm:$0xf]
  %v2540 = vld [vmem:[%s2491 + $0xc0] sm:$0xf]
  %v2541 = vld [vmem:[%s2491 + $0xc4] sm:$0xf]
  %v2542 = vld [vmem:[%s2491 + $0xc8] sm:$0xf]
  %v2543 = vld [vmem:[%s2491 + $0xcc] sm:$0xf]
  %v2544 = vld [vmem:[%s2491 + $0xd0] sm:$0xf]
  %v2545 = vld [vmem:[%s2491 + $0xd4] sm:$0xf]
  %v2546 = vld [vmem:[%s2491 + $0xd8] sm:$0xf]
  %v2547 = vld [vmem:[%s2491 + $0xdc] sm:$0xf]
  %v2548 = vld [vmem:[%s2491 + $0xe0] sm:$0xf]
  %v2549 = vld [vmem:[%s2491 + $0xe4] sm:$0xf]
  %v2550 = vld [vmem:[%s2491 + $0xe8] sm:$0xf]
  %v2551 = vld [vmem:[%s2491 + $0xec] sm:$0xf]
  %v2552 = vld [vmem:[%s2491 + $0xf0] sm:$0xf]
  %v2553 = vld [vmem:[%s2491 + $0xf4] sm:$0xf]
  %v2554 = vld [vmem:[%s2491 + $0xf8] sm:$0xf]
  %v2555 = vld [vmem:[%s2491 + $0xfc] sm:$0xf]
  %v2556 = vld [vmem:[%s2491 + $0x100] sm:$0xf]
  %v2557 = vld [vmem:[%s2491 + $0x104] sm:$0xf]
  %v2558 = vld [vmem:[%s2491 + $0x108] sm:$0xf]
  %v2559 = vld [vmem:[%s2491 + $0x10c] sm:$0xf]
  %v2560 = vld [vmem:[%s2491 + $0x110] sm:$0xf]
  %v2561 = vld [vmem:[%s2491 + $0x114] sm:$0xf]
  %v2562 = vld [vmem:[%s2491 + $0x118] sm:$0xf]
  %v2563 = vld [vmem:[%s2491 + $0x11c] sm:$0xf]
  %v2564 = vld [vmem:[%s2491 + $0x120] sm:$0xf]
  %v2565 = vld [vmem:[%s2491 + $0x124] sm:$0xf]
  %v2566 = vld [vmem:[%s2491 + $0x128] sm:$0xf]
  %v2567 = vld [vmem:[%s2491 + $0x12c] sm:$0xf]
  %v2568 = vld [vmem:[%s2491 + $0x130] sm:$0xf]
  %v2569 = vld [vmem:[%s2491 + $0x134] sm:$0xf]
  %v2570 = vld [vmem:[%s2491 + $0x138] sm:$0xf]
  %v2571 = vld [vmem:[%s2491 + $0x13c] sm:$0xf]
  %v2572 = vld [vmem:[%s2491 + $0x140] sm:$0xf]
  %v2573 = vld [vmem:[%s2491 + $0x144] sm:$0xf]
  %v2574 = vld [vmem:[%s2491 + $0x148] sm:$0xf]
  %v2575 = vld [vmem:[%s2491 + $0x14c] sm:$0xf]
  %v2576 = vld [vmem:[%s2491 + $0x150] sm:$0xf]
  %v2577 = vld [vmem:[%s2491 + $0x154] sm:$0xf]
  %v2578 = vld [vmem:[%s2491 + $0x158] sm:$0xf]
  %v2579 = vld [vmem:[%s2491 + $0x15c] sm:$0xf]
  %v2580 = vld [vmem:[%s2491 + $0x160] sm:$0xf]
  %v2581 = vld [vmem:[%s2491 + $0x164] sm:$0xf]
  %v2582 = vld [vmem:[%s2491 + $0x168] sm:$0xf]
  %v2583 = vld [vmem:[%s2491 + $0x16c] sm:$0xf]
  %v2584 = vld [vmem:[%s2491 + $0x170] sm:$0xf]
  %v2585 = vld [vmem:[%s2491 + $0x174] sm:$0xf]
  %v2586 = vld [vmem:[%s2491 + $0x178] sm:$0xf]
  %v2587 = vld [vmem:[%s2491 + $0x17c] sm:$0xf]
  %v2588 = vld [vmem:[%s2491 + $0x180] sm:$0xf]
  %v2589 = vld [vmem:[%s2491 + $0x184] sm:$0xf]
  %v2590 = vld [vmem:[%s2491 + $0x188] sm:$0xf]
  %v2591 = vld [vmem:[%s2491 + $0x18c] sm:$0xf]
  %v2592 = vld [vmem:[%s2491 + $0x190] sm:$0xf]
  %v2593 = vld [vmem:[%s2491 + $0x194] sm:$0xf]
  %v2594 = vld [vmem:[%s2491 + $0x198] sm:$0xf]
  %v2595 = vld [vmem:[%s2491 + $0x19c] sm:$0xf]
  %v2596 = vld [vmem:[%s2491 + $0x1a0] sm:$0xf]
  %v2597 = vld [vmem:[%s2491 + $0x1a4] sm:$0xf]
  %v2598 = vld [vmem:[%s2491 + $0x1a8] sm:$0xf]
  %v2599 = vld [vmem:[%s2491 + $0x1ac] sm:$0xf]
  %v2600 = vld [vmem:[%s2491 + $0x1b0] sm:$0xf]
  %v2601 = vld [vmem:[%s2491 + $0x1b4] sm:$0xf]
  %v2602 = vld [vmem:[%s2491 + $0x1b8] sm:$0xf]
  %v2603 = vld [vmem:[%s2491 + $0x1bc] sm:$0xf]
  %s2604 = scalar_lea.vmem %s1, 192
  %v2605 = vld [vmem:[%s2604] sm:$0xff]
  %v2606 = vld [vmem:[%s2604 + $0x8] sm:$0xf]
  %v2607 = vld [vmem:[%s2604 + $0xc] sm:$0xff]
  %v2608 = vld [vmem:[%s2604 + $0x14] sm:$0xf]
  %v2609 = vld [vmem:[%s2604 + $0x18] sm:$0xff]
  %v2610 = vld [vmem:[%s2604 + $0x20] sm:$0xf]
  %v2611 = vld [vmem:[%s2604 + $0x24] sm:$0xff]
  %v2612 = vld [vmem:[%s2604 + $0x2c] sm:$0xf]
  %v2613 = vld [vmem:[%s2604 + $0x30] sm:$0xff]
  %v2614 = vld [vmem:[%s2604 + $0x38] sm:$0xf]
  %v2615 = vld [vmem:[%s2604 + $0x3c] sm:$0xff]
  %v2616 = vld [vmem:[%s2604 + $0x44] sm:$0xf]
  %v2617 = vld [vmem:[%s2604 + $0x48] sm:$0xff]
  %v2618 = vld [vmem:[%s2604 + $0x50] sm:$0xf]
  %v2619 = vld [vmem:[%s2604 + $0x54] sm:$0xff]
  %v2620 = vld [vmem:[%s2604 + $0x5c] sm:$0xf]
  %v2621 = vld [vmem:[%s2604 + $0x60] sm:$0xff]
  %v2622 = vld [vmem:[%s2604 + $0x68] sm:$0xf]
  %v2623 = vld [vmem:[%s2604 + $0x6c] sm:$0xff]
  %v2624 = vld [vmem:[%s2604 + $0x74] sm:$0xf]
  %v2625 = vld [vmem:[%s2604 + $0x78] sm:$0xff]
  %v2626 = vld [vmem:[%s2604 + $0x80] sm:$0xf]
  %v2627 = vld [vmem:[%s2604 + $0x84] sm:$0xff]
  %v2628 = vld [vmem:[%s2604 + $0x8c] sm:$0xf]
  %v2629 = vld [vmem:[%s2604 + $0x90] sm:$0xff]
  %v2630 = vld [vmem:[%s2604 + $0x98] sm:$0xf]
  %v2631 = vld [vmem:[%s2604 + $0x9c] sm:$0xff]
  %v2632 = vld [vmem:[%s2604 + $0xa4] sm:$0xf]
  %v2633 = vld [vmem:[%s2604 + $0xa8] sm:$0xff]
  %v2634 = vld [vmem:[%s2604 + $0xb0] sm:$0xf]
  %v2635 = vld [vmem:[%s2604 + $0xb4] sm:$0xff]
  %v2636 = vld [vmem:[%s2604 + $0xbc] sm:$0xf]
  %v2749 = vunpack.c.l.b16 %v2492
  %v2750 = vunpack.c.l.b16 %v2493
  %v2751 = vunpack.c.l.b16 %v2494
  %v2752 = vunpack.c.l.b16 %v2495
  %v2753 = vunpack.c.l.b16 %v2496
  %v2754 = vunpack.c.l.b16 %v2497
  %v2755 = vunpack.c.l.b16 %v2498
  %v2756 = vunpack.c.l.b16 %v2499
  %v2757 = vunpack.c.l.b16 %v2500
  %v2758 = vunpack.c.l.b16 %v2501
  %v2759 = vunpack.c.l.b16 %v2502
  %v2760 = vunpack.c.l.b16 %v2503
  %v2761 = vunpack.c.l.b16 %v2504
  %v2762 = vunpack.c.l.b16 %v2505
  %v2763 = vunpack.c.l.b16 %v2506
  %v2764 = vunpack.c.l.b16 %v2507
  %v2765 = vunpack.c.l.b16 %v2508
  %v2766 = vunpack.c.l.b16 %v2509
  %v2767 = vunpack.c.l.b16 %v2510
  %v2768 = vunpack.c.l.b16 %v2511
  %v2769 = vunpack.c.l.b16 %v2512
  %v2770 = vunpack.c.l.b16 %v2513
  %v2771 = vunpack.c.l.b16 %v2514
  %v2772 = vunpack.c.l.b16 %v2515
  %v2773 = vunpack.c.l.b16 %v2516
  %v2774 = vunpack.c.l.b16 %v2517
  %v2775 = vunpack.c.l.b16 %v2518
  %v2776 = vunpack.c.l.b16 %v2519
  %v2777 = vunpack.c.l.b16 %v2520
  %v2778 = vunpack.c.l.b16 %v2521
  %v2779 = vunpack.c.l.b16 %v2522
  %v2780 = vunpack.c.l.b16 %v2523
  %v2781 = vunpack.c.l.b16 %v2524
  %v2782 = vunpack.c.l.b16 %v2525
  %v2783 = vunpack.c.l.b16 %v2526
  %v2784 = vunpack.c.l.b16 %v2527
  %v2785 = vunpack.c.l.b16 %v2528
  %v2786 = vunpack.c.l.b16 %v2529
  %v2787 = vunpack.c.l.b16 %v2530
  %v2788 = vunpack.c.l.b16 %v2531
  %v2789 = vunpack.c.l.b16 %v2532
  %v2790 = vunpack.c.l.b16 %v2533
  %v2791 = vunpack.c.l.b16 %v2534
  %v2792 = vunpack.c.l.b16 %v2535
  %v2793 = vunpack.c.l.b16 %v2536
  %v2794 = vunpack.c.l.b16 %v2537
  %v2795 = vunpack.c.l.b16 %v2538
  %v2796 = vunpack.c.l.b16 %v2539
  %v2797 = vunpack.c.l.b16 %v2540
  %v2798 = vunpack.c.l.b16 %v2541
  %v2799 = vunpack.c.l.b16 %v2542
  %v2800 = vunpack.c.l.b16 %v2543
  %v2801 = vunpack.c.l.b16 %v2544
  %v2802 = vunpack.c.l.b16 %v2545
  %v2803 = vunpack.c.l.b16 %v2546
  %v2804 = vunpack.c.l.b16 %v2547
  %v2805 = vunpack.c.l.b16 %v2548
  %v2806 = vunpack.c.l.b16 %v2549
  %v2807 = vunpack.c.l.b16 %v2550
  %v2808 = vunpack.c.l.b16 %v2551
  %v2809 = vunpack.c.l.b16 %v2552
  %v2810 = vunpack.c.l.b16 %v2553
  %v2811 = vunpack.c.l.b16 %v2554
  %v2812 = vunpack.c.l.b16 %v2555
  %v2813 = vunpack.c.l.b16 %v2556
  %v2814 = vunpack.c.l.b16 %v2557
  %v2815 = vunpack.c.l.b16 %v2558
  %v2816 = vunpack.c.l.b16 %v2559
  %v2817 = vunpack.c.l.b16 %v2560
  %v2818 = vunpack.c.l.b16 %v2561
  %v2819 = vunpack.c.l.b16 %v2562
  %v2820 = vunpack.c.l.b16 %v2563
  %v2821 = vunpack.c.l.b16 %v2564
  %v2822 = vunpack.c.l.b16 %v2565
  %v2823 = vunpack.c.l.b16 %v2566
  %v2824 = vunpack.c.l.b16 %v2567
  %v2825 = vunpack.c.l.b16 %v2568
  %v2826 = vunpack.c.l.b16 %v2569
  %v2827 = vunpack.c.l.b16 %v2570
  %v2828 = vunpack.c.l.b16 %v2571
  %v2829 = vunpack.c.l.b16 %v2572
  %v2830 = vunpack.c.l.b16 %v2573
  %v2831 = vunpack.c.l.b16 %v2574
  %v2832 = vunpack.c.l.b16 %v2575
  %v2833 = vunpack.c.l.b16 %v2576
  %v2834 = vunpack.c.l.b16 %v2577
  %v2835 = vunpack.c.l.b16 %v2578
  %v2836 = vunpack.c.l.b16 %v2579
  %v2837 = vunpack.c.l.b16 %v2580
  %v2838 = vunpack.c.l.b16 %v2581
  %v2839 = vunpack.c.l.b16 %v2582
  %v2840 = vunpack.c.l.b16 %v2583
  %v2841 = vunpack.c.l.b16 %v2584
  %v2842 = vunpack.c.l.b16 %v2585
  %v2843 = vunpack.c.l.b16 %v2586
  %v2844 = vunpack.c.l.b16 %v2587
  %v2845 = vunpack.c.l.b16 %v2588
  %v2846 = vunpack.c.l.b16 %v2589
  %v2847 = vunpack.c.l.b16 %v2590
  %v2848 = vunpack.c.l.b16 %v2591
  %v2849 = vunpack.c.l.b16 %v2592
  %v2850 = vunpack.c.l.b16 %v2593
  %v2851 = vunpack.c.l.b16 %v2594
  %v2852 = vunpack.c.l.b16 %v2595
  %v2853 = vunpack.c.l.b16 %v2596
  %v2854 = vunpack.c.l.b16 %v2597
  %v2855 = vunpack.c.l.b16 %v2598
  %v2856 = vunpack.c.l.b16 %v2599
  %v2857 = vunpack.c.l.b16 %v2600
  %v2858 = vunpack.c.l.b16 %v2601
  %v2859 = vunpack.c.l.b16 %v2602
  %v2860 = vunpack.c.l.b16 %v2603
  %v2861 = vpack.c.b16 %v2750, %v2749
  %v2862 = vpack.c.b16 %v2752, %v2751
  %v2863 = vpack.c.b16 %v2754, %v2753
  %v2864 = vpack.c.b16 %v2756, %v2755
  %v2865 = vpack.c.b16 %v2758, %v2757
  %v2866 = vpack.c.b16 %v2760, %v2759
  %v2867 = vpack.c.b16 %v2762, %v2761
  %v2868 = vpack.c.b16 %v2764, %v2763
  %v2869 = vpack.c.b16 %v2766, %v2765
  %v2870 = vpack.c.b16 %v2768, %v2767
  %v2871 = vpack.c.b16 %v2770, %v2769
  %v2872 = vpack.c.b16 %v2772, %v2771
  %v2873 = vpack.c.b16 %v2774, %v2773
  %v2874 = vpack.c.b16 %v2776, %v2775
  %v2875 = vpack.c.b16 %v2778, %v2777
  %v2876 = vpack.c.b16 %v2780, %v2779
  %v2877 = vpack.c.b16 %v2782, %v2781
  %v2878 = vpack.c.b16 %v2784, %v2783
  %v2879 = vpack.c.b16 %v2786, %v2785
  %v2880 = vpack.c.b16 %v2788, %v2787
  %v2881 = vpack.c.b16 %v2790, %v2789
  %v2882 = vpack.c.b16 %v2792, %v2791
  %v2883 = vpack.c.b16 %v2794, %v2793
  %v2884 = vpack.c.b16 %v2796, %v2795
  %v2885 = vpack.c.b16 %v2798, %v2797
  %v2886 = vpack.c.b16 %v2800, %v2799
  %v2887 = vpack.c.b16 %v2802, %v2801
  %v2888 = vpack.c.b16 %v2804, %v2803
  %v2889 = vpack.c.b16 %v2806, %v2805
  %v2890 = vpack.c.b16 %v2808, %v2807
  %v2891 = vpack.c.b16 %v2810, %v2809
  %v2892 = vpack.c.b16 %v2812, %v2811
  %v2893 = vpack.c.b16 %v2814, %v2813
  %v2894 = vpack.c.b16 %v2816, %v2815
  %v2895 = vpack.c.b16 %v2818, %v2817
  %v2896 = vpack.c.b16 %v2820, %v2819
  %v2897 = vpack.c.b16 %v2822, %v2821
  %v2898 = vpack.c.b16 %v2824, %v2823
  %v2899 = vpack.c.b16 %v2826, %v2825
  %v2900 = vpack.c.b16 %v2828, %v2827
  %v2901 = vpack.c.b16 %v2830, %v2829
  %v2902 = vpack.c.b16 %v2832, %v2831
  %v2903 = vpack.c.b16 %v2834, %v2833
  %v2904 = vpack.c.b16 %v2836, %v2835
  %v2905 = vpack.c.b16 %v2838, %v2837
  %v2906 = vpack.c.b16 %v2840, %v2839
  %v2907 = vpack.c.b16 %v2842, %v2841
  %v2908 = vpack.c.b16 %v2844, %v2843
  %v2909 = vpack.c.b16 %v2846, %v2845
  %v2910 = vpack.c.b16 %v2848, %v2847
  %v2911 = vpack.c.b16 %v2850, %v2849
  %v2912 = vpack.c.b16 %v2852, %v2851
  %v2913 = vpack.c.b16 %v2854, %v2853
  %v2914 = vpack.c.b16 %v2856, %v2855
  %v2915 = vpack.c.b16 %v2858, %v2857
  %v2916 = vpack.c.b16 %v2860, %v2859
  %v3005 = vunpack.c.l.b16 %v2605
  %v3006 = vunpack.c.h.b16 %v2605
  %v3007 = vunpack.c.l.b16 %v2606
  %v3008 = vunpack.c.l.b16 %v2607
  %v3009 = vunpack.c.h.b16 %v2607
  %v3010 = vunpack.c.l.b16 %v2608
  %v3011 = vunpack.c.l.b16 %v2609
  %v3012 = vunpack.c.h.b16 %v2609
  %v3013 = vunpack.c.l.b16 %v2610
  %v3014 = vunpack.c.l.b16 %v2611
  %v3015 = vunpack.c.h.b16 %v2611
  %v3016 = vunpack.c.l.b16 %v2612
  %v3017 = vunpack.c.l.b16 %v2613
  %v3018 = vunpack.c.h.b16 %v2613
  %v3019 = vunpack.c.l.b16 %v2614
  %v3020 = vunpack.c.l.b16 %v2615
  %v3021 = vunpack.c.h.b16 %v2615
  %v3022 = vunpack.c.l.b16 %v2616
  %v3023 = vunpack.c.l.b16 %v2617
  %v3024 = vunpack.c.h.b16 %v2617
  %v3025 = vunpack.c.l.b16 %v2618
  %v3026 = vunpack.c.l.b16 %v2619
  %v3027 = vunpack.c.h.b16 %v2619
  %v3028 = vunpack.c.l.b16 %v2620
  %v3029 = vunpack.c.l.b16 %v2621
  %v3030 = vunpack.c.h.b16 %v2621
  %v3031 = vunpack.c.l.b16 %v2622
  %v3032 = vunpack.c.l.b16 %v2623
  %v3033 = vunpack.c.h.b16 %v2623
  %v3034 = vunpack.c.l.b16 %v2624
  %v3035 = vunpack.c.l.b16 %v2625
  %v3036 = vunpack.c.h.b16 %v2625
  %v3037 = vunpack.c.l.b16 %v2626
  %v3038 = vunpack.c.l.b16 %v2627
  %v3039 = vunpack.c.h.b16 %v2627
  %v3040 = vunpack.c.l.b16 %v2628
  %v3041 = vunpack.c.l.b16 %v2629
  %v3042 = vunpack.c.h.b16 %v2629
  %v3043 = vunpack.c.l.b16 %v2630
  %v3044 = vunpack.c.l.b16 %v2631
  %v3045 = vunpack.c.h.b16 %v2631
  %v3046 = vunpack.c.l.b16 %v2632
  %v3047 = vunpack.c.l.b16 %v2633
  %v3048 = vunpack.c.h.b16 %v2633
  %v3049 = vunpack.c.l.b16 %v2634
  %v3050 = vunpack.c.l.b16 %v2635
  %v3051 = vunpack.c.h.b16 %v2635
  %v3052 = vunpack.c.l.b16 %v2636
  %v3053 = vpack.c.b16 %v3008, %v3005
  %v3054 = vpack.c.b16 %v3009, %v3006
  %v3055 = vpack.c.b16 %v3010, %v3007
  %v3056 = vpack.c.b16 %v3014, %v3011
  %v3057 = vpack.c.b16 %v3015, %v3012
  %v3058 = vpack.c.b16 %v3016, %v3013
  %v3059 = vpack.c.b16 %v3020, %v3017
  %v3060 = vpack.c.b16 %v3021, %v3018
  %v3061 = vpack.c.b16 %v3022, %v3019
  %v3062 = vpack.c.b16 %v3026, %v3023
  %v3063 = vpack.c.b16 %v3027, %v3024
  %v3064 = vpack.c.b16 %v3028, %v3025
  %v3065 = vpack.c.b16 %v3032, %v3029
  %v3066 = vpack.c.b16 %v3033, %v3030
  %v3067 = vpack.c.b16 %v3034, %v3031
  %v3068 = vpack.c.b16 %v3038, %v3035
  %v3069 = vpack.c.b16 %v3039, %v3036
  %v3070 = vpack.c.b16 %v3040, %v3037
  %v3071 = vpack.c.b16 %v3044, %v3041
  %v3072 = vpack.c.b16 %v3045, %v3042
  %v3073 = vpack.c.b16 %v3046, %v3043
  %v3074 = vpack.c.b16 %v3050, %v3047
  %v3075 = vpack.c.b16 %v3051, %v3048
  %v3076 = vpack.c.b16 %v3052, %v3049
  %3101 = vmatprep.subr.bf16.mxu0 %v3054
  %3102 = vmatpush1.bf16.msra.mxu0 %v3053
  %3103 = vmatprep.subr.bf16.mxu0 %v3057
  %3104 = vmatpush1.bf16.msra.mxu0 %v3056
  %3105 = vmatprep.subr.bf16.mxu0 %v3060
  %3106 = vmatpush1.bf16.msra.mxu0 %v3059
  %3107 = vmatprep.subr.bf16.mxu0 %v3063
  %3108 = vmatpush1.bf16.msra.mxu0 %v3062
  %3109 = vmatprep.subr.bf16.mxu0 %v3066
  %3110 = vmatpush1.bf16.msra.mxu0 %v3065
  %3111 = vmatprep.subr.bf16.mxu0 %v3069
  %3112 = vmatpush1.bf16.msra.mxu0 %v3068
  %3113 = vmatprep.subr.bf16.mxu0 %v3072
  %3114 = vmatpush1.bf16.msra.mxu0 %v3071
  %3115 = vmatprep.subr.bf16.mxu0 %v3075
  %3116 = vmatpush1.bf16.msra.mxu0 %v3074
  %3117 = vmatprep.subr.bf16.mxu0 0
  %3118 = vmatpush1.bf16.msra.mxu0 0
  %3119 = vmatprep.subr.bf16.mxu0 0
  %3120 = vmatpush1.bf16.msra.mxu0 0
  %3121 = vmatprep.subr.bf16.mxu0 0
  %3122 = vmatpush1.bf16.msra.mxu0 0
  %3123 = vmatprep.subr.bf16.mxu0 0
  %3124 = vmatpush1.bf16.msra.mxu0 0
  %3125 = vmatprep.subr.bf16.mxu0 0
  %3126 = vmatpush1.bf16.msra.mxu0 0
  %3127 = vmatprep.subr.bf16.mxu0 0
  %3128 = vmatpush1.bf16.msra.mxu0 0
  %3129 = vmatprep.subr.bf16.mxu0 0
  %3130 = vmatpush1.bf16.msra.mxu0 0
  %3131 = vmatprep.subr.bf16.mxu0 0
  %3132 = vmatpush1.bf16.msra.mxu0 0
  %3133 = vmatprep.mubr.bf16.mxu0 0
  %3134 = vmatmul.mubr.bf16.gmra.mrb[0].mxu0 %v2861
  %v3135 = vpop.f32.mrb[0].mxu0
  %v3136 = vadd.f32 0.0, %v3135
  %v3137 = vpop.f32.mrb[0].mxu0
  %v3138 = vadd.f32 0.0, %v3137
  %v3139 = vpop.f32.mrb[0].mxu0
  %v3140 = vadd.f32 0.0, %v3139
  %v3141 = vpop.f32.mrb[0].mxu0
  %v3142 = vadd.f32 0.0, %v3141
  %3143 = vmatprep.mubr.bf16.mxu0 0
  %3144 = vmatmul.mubr.bf16.gmra.mrb[0].mxu0 %v2862
  %v3145 = vpop.f32.mrb[0].mxu0
  %v3146 = vadd.f32 0.0, %v3145
  %v3147 = vpop.f32.mrb[0].mxu0
  %v3148 = vadd.f32 0.0, %v3147
  %v3149 = vpop.f32.mrb[0].mxu0
  %v3150 = vadd.f32 0.0, %v3149
  %v3151 = vpop.f32.mrb[0].mxu0
  %v3152 = vadd.f32 0.0, %v3151
  %3153 = vmatprep.mubr.bf16.mxu0 0
  %3154 = vmatmul.mubr.bf16.gmra.mrb[0].mxu0 %v2863
  %v3155 = vpop.f32.mrb[0].mxu0
  %v3156 = vadd.f32 0.0, %v3155
  %v3157 = vpop.f32.mrb[0].mxu0
  %v3158 = vadd.f32 0.0, %v3157
  %v3159 = vpop.f32.mrb[0].mxu0
  %v3160 = vadd.f32 0.0, %v3159
  %v3161 = vpop.f32.mrb[0].mxu0
  %v3162 = vadd.f32 0.0, %v3161
  %3163 = vmatprep.mubr.bf16.mxu0 0
  %3164 = vmatmul.mubr.bf16.gmra.mrb[0].mxu0 %v2864
  %v3165 = vpop.f32.mrb[0].mxu0
  %v3166 = vadd.f32 0.0, %v3165
  %v3167 = vpop.f32.mrb[0].mxu0
  %v3168 = vadd.f32 0.0, %v3167
  %v3169 = vpop.f32.mrb[0].mxu0
  %v3170 = vadd.f32 0.0, %v3169
  %v3171 = vpop.f32.mrb[0].mxu0
  %v3172 = vadd.f32 0.0, %v3171
  %3173 = vmatprep.mubr.bf16.mxu0 0
  %3174 = vmatmul.mubr.bf16.gmra.mrb[0].mxu0 %v2865
  %v3175 = vpop.f32.mrb[0].mxu0
  %v3176 = vadd.f32 0.0, %v3175
  %v3177 = vpop.f32.mrb[0].mxu0
  %v3178 = vadd.f32 0.0, %v3177
  %v3179 = vpop.f32.mrb[0].mxu0
  %v3180 = vadd.f32 0.0, %v3179
  %v3181 = vpop.f32.mrb[0].mxu0
  %v3182 = vadd.f32 0.0, %v3181
  %3183 = vmatprep.mubr.bf16.mxu0 0
  %3184 = vmatmul.mubr.bf16.gmra.mrb[0].mxu0 %v2866
  %v3185 = vpop.f32.mrb[0].mxu0
  %v3186 = vadd.f32 0.0, %v3185
  %v3187 = vpop.f32.mrb[0].mxu0
  %v3188 = vadd.f32 0.0, %v3187
  %v3189 = vpop.f32.mrb[0].mxu0
  %v3190 = vadd.f32 0.0, %v3189
  %v3191 = vpop.f32.mrb[0].mxu0
  %v3192 = vadd.f32 0.0, %v3191
  %3193 = vmatprep.mubr.bf16.mxu0 0
  %3194 = vmatmul.mubr.bf16.gmra.mrb[0].mxu0 %v2867
  %v3195 = vpop.f32.mrb[0].mxu0
  %v3196 = vadd.f32 0.0, %v3195
  %v3197 = vpop.f32.mrb[0].mxu0
  %v3198 = vadd.f32 0.0, %v3197
  %v3199 = vpop.f32.mrb[0].mxu0
  %v3200 = vadd.f32 0.0, %v3199
  %v3201 = vpop.f32.mrb[0].mxu0
  %v3202 = vadd.f32 0.0, %v3201
  %3203 = vmatprep.mubr.bf16.mxu0 0
  %3204 = vmatmul.mubr.bf16.gmra.mrb[0].mxu0 %v2868
  %v3205 = vpop.f32.mrb[0].mxu0
  %v3206 = vadd.f32 0.0, %v3205
  %v3207 = vpop.f32.mrb[0].mxu0
  %v3208 = vadd.f32 0.0, %v3207
  %v3209 = vpop.f32.mrb[0].mxu0
  %v3210 = vadd.f32 0.0, %v3209
  %v3211 = vpop.f32.mrb[0].mxu0
  %v3212 = vadd.f32 0.0, %v3211
  %3213 = vmatprep.mubr.bf16.mxu0 0
  %3214 = vmatmul.mubr.bf16.gmra.mrb[0].mxu0 %v2869
  %v3215 = vpop.f32.mrb[0].mxu0
  %v3216 = vadd.f32 0.0, %v3215
  %v3217 = vpop.f32.mrb[0].mxu0
  %v3218 = vadd.f32 0.0, %v3217
  %v3219 = vpop.f32.mrb[0].mxu0
  %v3220 = vadd.f32 0.0, %v3219
  %v3221 = vpop.f32.mrb[0].mxu0
  %v3222 = vadd.f32 0.0, %v3221
  %3223 = vmatprep.mubr.bf16.mxu0 0
  %3224 = vmatmul.mubr.bf16.gmra.mrb[0].mxu0 %v2870
  %v3225 = vpop.f32.mrb[0].mxu0
  %v3226 = vadd.f32 0.0, %v3225
  %v3227 = vpop.f32.mrb[0].mxu0
  %v3228 = vadd.f32 0.0, %v3227
  %v3229 = vpop.f32.mrb[0].mxu0
  %v3230 = vadd.f32 0.0, %v3229
  %v3231 = vpop.f32.mrb[0].mxu0
  %v3232 = vadd.f32 0.0, %v3231
  %3233 = vmatprep.mubr.bf16.mxu0 0
  %3234 = vmatmul.mubr.bf16.gmra.mrb[0].mxu0 %v2871
  %v3235 = vpop.f32.mrb[0].mxu0
  %v3236 = vadd.f32 0.0, %v3235
  %v3237 = vpop.f32.mrb[0].mxu0
  %v3238 = vadd.f32 0.0, %v3237
  %v3239 = vpop.f32.mrb[0].mxu0
  %v3240 = vadd.f32 0.0, %v3239
  %v3241 = vpop.f32.mrb[0].mxu0
  %v3242 = vadd.f32 0.0, %v3241
  %3243 = vmatprep.mubr.bf16.mxu0 0
  %3244 = vmatmul.mubr.bf16.gmra.mrb[0].mxu0 %v2872
  %v3245 = vpop.f32.mrb[0].mxu0
  %v3246 = vadd.f32 0.0, %v3245
  %v3247 = vpop.f32.mrb[0].mxu0
  %v3248 = vadd.f32 0.0, %v3247
  %v3249 = vpop.f32.mrb[0].mxu0
  %v3250 = vadd.f32 0.0, %v3249
  %v3251 = vpop.f32.mrb[0].mxu0
  %v3252 = vadd.f32 0.0, %v3251
  %3253 = vmatprep.mubr.bf16.mxu0 0
  %3254 = vmatmul.mubr.bf16.gmra.mrb[0].mxu0 %v2873
  %v3255 = vpop.f32.mrb[0].mxu0
  %v3256 = vadd.f32 0.0, %v3255
  %v3257 = vpop.f32.mrb[0].mxu0
  %v3258 = vadd.f32 0.0, %v3257
  %v3259 = vpop.f32.mrb[0].mxu0
  %v3260 = vadd.f32 0.0, %v3259
  %v3261 = vpop.f32.mrb[0].mxu0
  %v3262 = vadd.f32 0.0, %v3261
  %3263 = vmatprep.mubr.bf16.mxu0 0
  %3264 = vmatmul.mubr.bf16.gmra.mrb[0].mxu0 %v2874
  %v3265 = vpop.f32.mrb[0].mxu0
  %v3266 = vadd.f32 0.0, %v3265
  %v3267 = vpop.f32.mrb[0].mxu0
  %v3268 = vadd.f32 0.0, %v3267
  %v3269 = vpop.f32.mrb[0].mxu0
  %v3270 = vadd.f32 0.0, %v3269
  %v3271 = vpop.f32.mrb[0].mxu0
  %v3272 = vadd.f32 0.0, %v3271
  %3273 = vmatprep.mubr.bf16.mxu0 0
  %3274 = vmatmul.mubr.bf16.gmra.mrb[0].mxu0 %v2875
  %v3275 = vpop.f32.mrb[0].mxu0
  %v3276 = vadd.f32 0.0, %v3275
  %v3277 = vpop.f32.mrb[0].mxu0
  %v3278 = vadd.f32 0.0, %v3277
  %v3279 = vpop.f32.mrb[0].mxu0
  %v3280 = vadd.f32 0.0, %v3279
  %v3281 = vpop.f32.mrb[0].mxu0
  %v3282 = vadd.f32 0.0, %v3281
  %3283 = vmatprep.mubr.bf16.mxu0 0
  %3284 = vmatmul.mubr.bf16.gmra.mrb[0].mxu0 %v2876
  %v3285 = vpop.f32.mrb[0].mxu0
  %v3286 = vadd.f32 0.0, %v3285
  %v3287 = vpop.f32.mrb[0].mxu0
  %v3288 = vadd.f32 0.0, %v3287
  %v3289 = vpop.f32.mrb[0].mxu0
  %v3290 = vadd.f32 0.0, %v3289
  %v3291 = vpop.f32.mrb[0].mxu0
  %v3292 = vadd.f32 0.0, %v3291
  %3293 = vmatprep.mubr.bf16.mxu0 0
  %3294 = vmatmul.mubr.bf16.gmra.mrb[0].mxu0 %v2877
  %v3295 = vpop.f32.mrb[0].mxu0
  %v3296 = vadd.f32 0.0, %v3295
  %v3297 = vpop.f32.mrb[0].mxu0
  %v3298 = vadd.f32 0.0, %v3297
  %v3299 = vpop.f32.mrb[0].mxu0
  %v3300 = vadd.f32 0.0, %v3299
  %v3301 = vpop.f32.mrb[0].mxu0
  %v3302 = vadd.f32 0.0, %v3301
  %3303 = vmatprep.mubr.bf16.mxu0 0
  %3304 = vmatmul.mubr.bf16.gmra.mrb[0].mxu0 %v2878
  %v3305 = vpop.f32.mrb[0].mxu0
  %v3306 = vadd.f32 0.0, %v3305
  %v3307 = vpop.f32.mrb[0].mxu0
  %v3308 = vadd.f32 0.0, %v3307
  %v3309 = vpop.f32.mrb[0].mxu0
  %v3310 = vadd.f32 0.0, %v3309
  %v3311 = vpop.f32.mrb[0].mxu0
  %v3312 = vadd.f32 0.0, %v3311
  %3313 = vmatprep.mubr.bf16.mxu0 0
  %3314 = vmatmul.mubr.bf16.gmra.mrb[0].mxu0 %v2879
  %v3315 = vpop.f32.mrb[0].mxu0
  %v3316 = vadd.f32 0.0, %v3315
  %v3317 = vpop.f32.mrb[0].mxu0
  %v3318 = vadd.f32 0.0, %v3317
  %v3319 = vpop.f32.mrb[0].mxu0
  %v3320 = vadd.f32 0.0, %v3319
  %v3321 = vpop.f32.mrb[0].mxu0
  %v3322 = vadd.f32 0.0, %v3321
  %3323 = vmatprep.mubr.bf16.mxu0 0
  %3324 = vmatmul.mubr.bf16.gmra.mrb[0].mxu0 %v2880
  %v3325 = vpop.f32.mrb[0].mxu0
  %v3326 = vadd.f32 0.0, %v3325
  %v3327 = vpop.f32.mrb[0].mxu0
  %v3328 = vadd.f32 0.0, %v3327
  %v3329 = vpop.f32.mrb[0].mxu0
  %v3330 = vadd.f32 0.0, %v3329
  %v3331 = vpop.f32.mrb[0].mxu0
  %v3332 = vadd.f32 0.0, %v3331
  %3333 = vmatprep.mubr.bf16.mxu0 0
  %3334 = vmatmul.mubr.bf16.gmra.mrb[0].mxu0 %v2881
  %v3335 = vpop.f32.mrb[0].mxu0
  %v3336 = vadd.f32 0.0, %v3335
  %v3337 = vpop.f32.mrb[0].mxu0
  %v3338 = vadd.f32 0.0, %v3337
  %v3339 = vpop.f32.mrb[0].mxu0
  %v3340 = vadd.f32 0.0, %v3339
  %v3341 = vpop.f32.mrb[0].mxu0
  %v3342 = vadd.f32 0.0, %v3341
  %3343 = vmatprep.mubr.bf16.mxu0 0
  %3344 = vmatmul.mubr.bf16.gmra.mrb[0].mxu0 %v2882
  %v3345 = vpop.f32.mrb[0].mxu0
  %v3346 = vadd.f32 0.0, %v3345
  %v3347 = vpop.f32.mrb[0].mxu0
  %v3348 = vadd.f32 0.0, %v3347
  %v3349 = vpop.f32.mrb[0].mxu0
  %v3350 = vadd.f32 0.0, %v3349
  %v3351 = vpop.f32.mrb[0].mxu0
  %v3352 = vadd.f32 0.0, %v3351
  %3353 = vmatprep.mubr.bf16.mxu0 0
  %3354 = vmatmul.mubr.bf16.gmra.mrb[0].mxu0 %v2883
  %v3355 = vpop.f32.mrb[0].mxu0
  %v3356 = vadd.f32 0.0, %v3355
  %v3357 = vpop.f32.mrb[0].mxu0
  %v3358 = vadd.f32 0.0, %v3357
  %v3359 = vpop.f32.mrb[0].mxu0
  %v3360 = vadd.f32 0.0, %v3359
  %v3361 = vpop.f32.mrb[0].mxu0
  %v3362 = vadd.f32 0.0, %v3361
  %3363 = vmatprep.mubr.bf16.mxu0 0
  %3364 = vmatmul.mubr.bf16.gmra.mrb[0].mxu0 %v2884
  %v3365 = vpop.f32.mrb[0].mxu0
  %v3366 = vadd.f32 0.0, %v3365
  %v3367 = vpop.f32.mrb[0].mxu0
  %v3368 = vadd.f32 0.0, %v3367
  %v3369 = vpop.f32.mrb[0].mxu0
  %v3370 = vadd.f32 0.0, %v3369
  %v3371 = vpop.f32.mrb[0].mxu0
  %v3372 = vadd.f32 0.0, %v3371
  %3373 = vmatprep.mubr.bf16.mxu0 0
  %3374 = vmatmul.mubr.bf16.gmra.mrb[0].mxu0 %v2885
  %v3375 = vpop.f32.mrb[0].mxu0
  %v3376 = vadd.f32 0.0, %v3375
  %v3377 = vpop.f32.mrb[0].mxu0
  %v3378 = vadd.f32 0.0, %v3377
  %v3379 = vpop.f32.mrb[0].mxu0
  %v3380 = vadd.f32 0.0, %v3379
  %v3381 = vpop.f32.mrb[0].mxu0
  %v3382 = vadd.f32 0.0, %v3381
  %3383 = vmatprep.mubr.bf16.mxu0 0
  %3384 = vmatmul.mubr.bf16.gmra.mrb[0].mxu0 %v2886
  %v3385 = vpop.f32.mrb[0].mxu0
  %v3386 = vadd.f32 0.0, %v3385
  %v3387 = vpop.f32.mrb[0].mxu0
  %v3388 = vadd.f32 0.0, %v3387
  %v3389 = vpop.f32.mrb[0].mxu0
  %v3390 = vadd.f32 0.0, %v3389
  %v3391 = vpop.f32.mrb[0].mxu0
  %v3392 = vadd.f32 0.0, %v3391
  %3393 = vmatprep.mubr.bf16.mxu0 0
  %3394 = vmatmul.mubr.bf16.gmra.mrb[0].mxu0 %v2887
  %v3395 = vpop.f32.mrb[0].mxu0
  %v3396 = vadd.f32 0.0, %v3395
  %v3397 = vpop.f32.mrb[0].mxu0
  %v3398 = vadd.f32 0.0, %v3397
  %v3399 = vpop.f32.mrb[0].mxu0
  %v3400 = vadd.f32 0.0, %v3399
  %v3401 = vpop.f32.mrb[0].mxu0
  %v3402 = vadd.f32 0.0, %v3401
  %3403 = vmatprep.mubr.bf16.mxu0 0
  %3404 = vmatmul.mubr.bf16.gmra.mrb[0].mxu0 %v2888
  %v3405 = vpop.f32.mrb[0].mxu0
  %v3406 = vadd.f32 0.0, %v3405
  %v3407 = vpop.f32.mrb[0].mxu0
  %v3408 = vadd.f32 0.0, %v3407
  %v3409 = vpop.f32.mrb[0].mxu0
  %v3410 = vadd.f32 0.0, %v3409
  %v3411 = vpop.f32.mrb[0].mxu0
  %v3412 = vadd.f32 0.0, %v3411
  %3413 = vmatprep.mubr.bf16.mxu0 0
  %3414 = vmatmul.mubr.bf16.gmra.mrb[0].mxu0 %v2889
  %v3415 = vpop.f32.mrb[0].mxu0
  %v3416 = vadd.f32 0.0, %v3415
  %v3417 = vpop.f32.mrb[0].mxu0
  %v3418 = vadd.f32 0.0, %v3417
  %v3419 = vpop.f32.mrb[0].mxu0
  %v3420 = vadd.f32 0.0, %v3419
  %v3421 = vpop.f32.mrb[0].mxu0
  %v3422 = vadd.f32 0.0, %v3421
  %3423 = vmatprep.mubr.bf16.mxu0 0
  %3424 = vmatmul.mubr.bf16.gmra.mrb[0].mxu0 %v2890
  %v3425 = vpop.f32.mrb[0].mxu0
  %v3426 = vadd.f32 0.0, %v3425
  %v3427 = vpop.f32.mrb[0].mxu0
  %v3428 = vadd.f32 0.0, %v3427
  %v3429 = vpop.f32.mrb[0].mxu0
  %v3430 = vadd.f32 0.0, %v3429
  %v3431 = vpop.f32.mrb[0].mxu0
  %v3432 = vadd.f32 0.0, %v3431
  %3433 = vmatprep.mubr.bf16.mxu0 0
  %3434 = vmatmul.mubr.bf16.gmra.mrb[0].mxu0 %v2891
  %v3435 = vpop.f32.mrb[0].mxu0
  %v3436 = vadd.f32 0.0, %v3435
  %v3437 = vpop.f32.mrb[0].mxu0
  %v3438 = vadd.f32 0.0, %v3437
  %v3439 = vpop.f32.mrb[0].mxu0
  %v3440 = vadd.f32 0.0, %v3439
  %v3441 = vpop.f32.mrb[0].mxu0
  %v3442 = vadd.f32 0.0, %v3441
  %3443 = vmatprep.mubr.bf16.mxu0 0
  %3444 = vmatmul.mubr.bf16.gmra.mrb[0].mxu0 %v2892
  %v3445 = vpop.f32.mrb[0].mxu0
  %v3446 = vadd.f32 0.0, %v3445
  %v3447 = vpop.f32.mrb[0].mxu0
  %v3448 = vadd.f32 0.0, %v3447
  %v3449 = vpop.f32.mrb[0].mxu0
  %v3450 = vadd.f32 0.0, %v3449
  %v3451 = vpop.f32.mrb[0].mxu0
  %v3452 = vadd.f32 0.0, %v3451
  %3453 = vmatprep.mubr.bf16.mxu0 0
  %3454 = vmatmul.mubr.bf16.gmra.mrb[0].mxu0 %v2893
  %v3455 = vpop.f32.mrb[0].mxu0
  %v3456 = vadd.f32 0.0, %v3455
  %v3457 = vpop.f32.mrb[0].mxu0
  %v3458 = vadd.f32 0.0, %v3457
  %v3459 = vpop.f32.mrb[0].mxu0
  %v3460 = vadd.f32 0.0, %v3459
  %v3461 = vpop.f32.mrb[0].mxu0
  %v3462 = vadd.f32 0.0, %v3461
  %3463 = vmatprep.mubr.bf16.mxu0 0
  %3464 = vmatmul.mubr.bf16.gmra.mrb[0].mxu0 %v2894
  %v3465 = vpop.f32.mrb[0].mxu0
  %v3466 = vadd.f32 0.0, %v3465
  %v3467 = vpop.f32.mrb[0].mxu0
  %v3468 = vadd.f32 0.0, %v3467
  %v3469 = vpop.f32.mrb[0].mxu0
  %v3470 = vadd.f32 0.0, %v3469
  %v3471 = vpop.f32.mrb[0].mxu0
  %v3472 = vadd.f32 0.0, %v3471
  %3473 = vmatprep.mubr.bf16.mxu0 0
  %3474 = vmatmul.mubr.bf16.gmra.mrb[0].mxu0 %v2895
  %v3475 = vpop.f32.mrb[0].mxu0
  %v3476 = vadd.f32 0.0, %v3475
  %v3477 = vpop.f32.mrb[0].mxu0
  %v3478 = vadd.f32 0.0, %v3477
  %v3479 = vpop.f32.mrb[0].mxu0
  %v3480 = vadd.f32 0.0, %v3479
  %v3481 = vpop.f32.mrb[0].mxu0
  %v3482 = vadd.f32 0.0, %v3481
  %3483 = vmatprep.mubr.bf16.mxu0 0
  %3484 = vmatmul.mubr.bf16.gmra.mrb[0].mxu0 %v2896
  %v3485 = vpop.f32.mrb[0].mxu0
  %v3486 = vadd.f32 0.0, %v3485
  %v3487 = vpop.f32.mrb[0].mxu0
  %v3488 = vadd.f32 0.0, %v3487
  %v3489 = vpop.f32.mrb[0].mxu0
  %v3490 = vadd.f32 0.0, %v3489
  %v3491 = vpop.f32.mrb[0].mxu0
  %v3492 = vadd.f32 0.0, %v3491
  %3493 = vmatprep.mubr.bf16.mxu0 0
  %3494 = vmatmul.mubr.bf16.gmra.mrb[0].mxu0 %v2897
  %v3495 = vpop.f32.mrb[0].mxu0
  %v3496 = vadd.f32 0.0, %v3495
  %v3497 = vpop.f32.mrb[0].mxu0
  %v3498 = vadd.f32 0.0, %v3497
  %v3499 = vpop.f32.mrb[0].mxu0
  %v3500 = vadd.f32 0.0, %v3499
  %v3501 = vpop.f32.mrb[0].mxu0
  %v3502 = vadd.f32 0.0, %v3501
  %3503 = vmatprep.mubr.bf16.mxu0 0
  %3504 = vmatmul.mubr.bf16.gmra.mrb[0].mxu0 %v2898
  %v3505 = vpop.f32.mrb[0].mxu0
  %v3506 = vadd.f32 0.0, %v3505
  %v3507 = vpop.f32.mrb[0].mxu0
  %v3508 = vadd.f32 0.0, %v3507
  %v3509 = vpop.f32.mrb[0].mxu0
  %v3510 = vadd.f32 0.0, %v3509
  %v3511 = vpop.f32.mrb[0].mxu0
  %v3512 = vadd.f32 0.0, %v3511
  %3513 = vmatprep.mubr.bf16.mxu0 0
  %3514 = vmatmul.mubr.bf16.gmra.mrb[0].mxu0 %v2899
  %v3515 = vpop.f32.mrb[0].mxu0
  %v3516 = vadd.f32 0.0, %v3515
  %v3517 = vpop.f32.mrb[0].mxu0
  %v3518 = vadd.f32 0.0, %v3517
  %v3519 = vpop.f32.mrb[0].mxu0
  %v3520 = vadd.f32 0.0, %v3519
  %v3521 = vpop.f32.mrb[0].mxu0
  %v3522 = vadd.f32 0.0, %v3521
  %3523 = vmatprep.mubr.bf16.mxu0 0
  %3524 = vmatmul.mubr.bf16.gmra.mrb[0].mxu0 %v2900
  %v3525 = vpop.f32.mrb[0].mxu0
  %v3526 = vadd.f32 0.0, %v3525
  %v3527 = vpop.f32.mrb[0].mxu0
  %v3528 = vadd.f32 0.0, %v3527
  %v3529 = vpop.f32.mrb[0].mxu0
  %v3530 = vadd.f32 0.0, %v3529
  %v3531 = vpop.f32.mrb[0].mxu0
  %v3532 = vadd.f32 0.0, %v3531
  %3533 = vmatprep.mubr.bf16.mxu0 0
  %3534 = vmatmul.mubr.bf16.gmra.mrb[0].mxu0 %v2901
  %v3535 = vpop.f32.mrb[0].mxu0
  %v3536 = vadd.f32 0.0, %v3535
  %v3537 = vpop.f32.mrb[0].mxu0
  %v3538 = vadd.f32 0.0, %v3537
  %v3539 = vpop.f32.mrb[0].mxu0
  %v3540 = vadd.f32 0.0, %v3539
  %v3541 = vpop.f32.mrb[0].mxu0
  %v3542 = vadd.f32 0.0, %v3541
  %3543 = vmatprep.mubr.bf16.mxu0 0
  %3544 = vmatmul.mubr.bf16.gmra.mrb[0].mxu0 %v2902
  %v3545 = vpop.f32.mrb[0].mxu0
  %v3546 = vadd.f32 0.0, %v3545
  %v3547 = vpop.f32.mrb[0].mxu0
  %v3548 = vadd.f32 0.0, %v3547
  %v3549 = vpop.f32.mrb[0].mxu0
  %v3550 = vadd.f32 0.0, %v3549
  %v3551 = vpop.f32.mrb[0].mxu0
  %v3552 = vadd.f32 0.0, %v3551
  %3553 = vmatprep.mubr.bf16.mxu0 0
  %3554 = vmatmul.mubr.bf16.gmra.mrb[0].mxu0 %v2903
  %v3555 = vpop.f32.mrb[0].mxu0
  %v3556 = vadd.f32 0.0, %v3555
  %v3557 = vpop.f32.mrb[0].mxu0
  %v3558 = vadd.f32 0.0, %v3557
  %v3559 = vpop.f32.mrb[0].mxu0
  %v3560 = vadd.f32 0.0, %v3559
  %v3561 = vpop.f32.mrb[0].mxu0
  %v3562 = vadd.f32 0.0, %v3561
  %3563 = vmatprep.mubr.bf16.mxu0 0
  %3564 = vmatmul.mubr.bf16.gmra.mrb[0].mxu0 %v2904
  %v3565 = vpop.f32.mrb[0].mxu0
  %v3566 = vadd.f32 0.0, %v3565
  %v3567 = vpop.f32.mrb[0].mxu0
  %v3568 = vadd.f32 0.0, %v3567
  %v3569 = vpop.f32.mrb[0].mxu0
  %v3570 = vadd.f32 0.0, %v3569
  %v3571 = vpop.f32.mrb[0].mxu0
  %v3572 = vadd.f32 0.0, %v3571
  %3573 = vmatprep.mubr.bf16.mxu0 0
  %3574 = vmatmul.mubr.bf16.gmra.mrb[0].mxu0 %v2905
  %v3575 = vpop.f32.mrb[0].mxu0
  %v3576 = vadd.f32 0.0, %v3575
  %v3577 = vpop.f32.mrb[0].mxu0
  %v3578 = vadd.f32 0.0, %v3577
  %v3579 = vpop.f32.mrb[0].mxu0
  %v3580 = vadd.f32 0.0, %v3579
  %v3581 = vpop.f32.mrb[0].mxu0
  %v3582 = vadd.f32 0.0, %v3581
  %3583 = vmatprep.mubr.bf16.mxu0 0
  %3584 = vmatmul.mubr.bf16.gmra.mrb[0].mxu0 %v2906
  %v3585 = vpop.f32.mrb[0].mxu0
  %v3586 = vadd.f32 0.0, %v3585
  %v3587 = vpop.f32.mrb[0].mxu0
  %v3588 = vadd.f32 0.0, %v3587
  %v3589 = vpop.f32.mrb[0].mxu0
  %v3590 = vadd.f32 0.0, %v3589
  %v3591 = vpop.f32.mrb[0].mxu0
  %v3592 = vadd.f32 0.0, %v3591
  %3593 = vmatprep.mubr.bf16.mxu0 0
  %3594 = vmatmul.mubr.bf16.gmra.mrb[0].mxu0 %v2907
  %v3595 = vpop.f32.mrb[0].mxu0
  %v3596 = vadd.f32 0.0, %v3595
  %v3597 = vpop.f32.mrb[0].mxu0
  %v3598 = vadd.f32 0.0, %v3597
  %v3599 = vpop.f32.mrb[0].mxu0
  %v3600 = vadd.f32 0.0, %v3599
  %v3601 = vpop.f32.mrb[0].mxu0
  %v3602 = vadd.f32 0.0, %v3601
  %3603 = vmatprep.mubr.bf16.mxu0 0
  %3604 = vmatmul.mubr.bf16.gmra.mrb[0].mxu0 %v2908
  %v3605 = vpop.f32.mrb[0].mxu0
  %v3606 = vadd.f32 0.0, %v3605
  %v3607 = vpop.f32.mrb[0].mxu0
  %v3608 = vadd.f32 0.0, %v3607
  %v3609 = vpop.f32.mrb[0].mxu0
  %v3610 = vadd.f32 0.0, %v3609
  %v3611 = vpop.f32.mrb[0].mxu0
  %v3612 = vadd.f32 0.0, %v3611
  %3613 = vmatprep.mubr.bf16.mxu0 0
  %3614 = vmatmul.mubr.bf16.gmra.mrb[0].mxu0 %v2909
  %v3615 = vpop.f32.mrb[0].mxu0
  %v3616 = vadd.f32 0.0, %v3615
  %v3617 = vpop.f32.mrb[0].mxu0
  %v3618 = vadd.f32 0.0, %v3617
  %v3619 = vpop.f32.mrb[0].mxu0
  %v3620 = vadd.f32 0.0, %v3619
  %v3621 = vpop.f32.mrb[0].mxu0
  %v3622 = vadd.f32 0.0, %v3621
  %3623 = vmatprep.mubr.bf16.mxu0 0
  %3624 = vmatmul.mubr.bf16.gmra.mrb[0].mxu0 %v2910
  %v3625 = vpop.f32.mrb[0].mxu0
  %v3626 = vadd.f32 0.0, %v3625
  %v3627 = vpop.f32.mrb[0].mxu0
  %v3628 = vadd.f32 0.0, %v3627
  %v3629 = vpop.f32.mrb[0].mxu0
  %v3630 = vadd.f32 0.0, %v3629
  %v3631 = vpop.f32.mrb[0].mxu0
  %v3632 = vadd.f32 0.0, %v3631
  %3633 = vmatprep.mubr.bf16.mxu0 0
  %3634 = vmatmul.mubr.bf16.gmra.mrb[0].mxu0 %v2911
  %v3635 = vpop.f32.mrb[0].mxu0
  %v3636 = vadd.f32 0.0, %v3635
  %v3637 = vpop.f32.mrb[0].mxu0
  %v3638 = vadd.f32 0.0, %v3637
  %v3639 = vpop.f32.mrb[0].mxu0
  %v3640 = vadd.f32 0.0, %v3639
  %v3641 = vpop.f32.mrb[0].mxu0
  %v3642 = vadd.f32 0.0, %v3641
  %3643 = vmatprep.mubr.bf16.mxu0 0
  %3644 = vmatmul.mubr.bf16.gmra.mrb[0].mxu0 %v2912
  %v3645 = vpop.f32.mrb[0].mxu0
  %v3646 = vadd.f32 0.0, %v3645
  %v3647 = vpop.f32.mrb[0].mxu0
  %v3648 = vadd.f32 0.0, %v3647
  %v3649 = vpop.f32.mrb[0].mxu0
  %v3650 = vadd.f32 0.0, %v3649
  %v3651 = vpop.f32.mrb[0].mxu0
  %v3652 = vadd.f32 0.0, %v3651
  %3653 = vmatprep.mubr.bf16.mxu0 0
  %3654 = vmatmul.mubr.bf16.gmra.mrb[0].mxu0 %v2913
  %v3655 = vpop.f32.mrb[0].mxu0
  %v3656 = vadd.f32 0.0, %v3655
  %v3657 = vpop.f32.mrb[0].mxu0
  %v3658 = vadd.f32 0.0, %v3657
  %v3659 = vpop.f32.mrb[0].mxu0
  %v3660 = vadd.f32 0.0, %v3659
  %v3661 = vpop.f32.mrb[0].mxu0
  %v3662 = vadd.f32 0.0, %v3661
  %3663 = vmatprep.mubr.bf16.mxu0 0
  %3664 = vmatmul.mubr.bf16.gmra.mrb[0].mxu0 %v2914
  %v3665 = vpop.f32.mrb[0].mxu0
  %v3666 = vadd.f32 0.0, %v3665
  %v3667 = vpop.f32.mrb[0].mxu0
  %v3668 = vadd.f32 0.0, %v3667
  %v3669 = vpop.f32.mrb[0].mxu0
  %v3670 = vadd.f32 0.0, %v3669
  %v3671 = vpop.f32.mrb[0].mxu0
  %v3672 = vadd.f32 0.0, %v3671
  %3673 = vmatprep.mubr.bf16.mxu0 0
  %3674 = vmatmul.mubr.bf16.gmra.mrb[0].mxu0 %v2915
  %v3675 = vpop.f32.mrb[0].mxu0
  %v3676 = vadd.f32 0.0, %v3675
  %v3677 = vpop.f32.mrb[0].mxu0
  %v3678 = vadd.f32 0.0, %v3677
  %v3679 = vpop.f32.mrb[0].mxu0
  %v3680 = vadd.f32 0.0, %v3679
  %v3681 = vpop.f32.mrb[0].mxu0
  %v3682 = vadd.f32 0.0, %v3681
  %3683 = vmatprep.mubr.bf16.mxu0 0
  %3684 = vmatmul.mubr.bf16.gmra.mrb[0].mxu0 %v2916
  %v3685 = vpop.f32.mrb[0].mxu0
  %v3686 = vadd.f32 0.0, %v3685
  %v3687 = vpop.f32.mrb[0].mxu0
  %v3688 = vadd.f32 0.0, %v3687
  %v3689 = vpop.f32.mrb[0].mxu0
  %v3690 = vadd.f32 0.0, %v3689
  %v3691 = vpop.f32.mrb[0].mxu0
  %v3692 = vadd.f32 0.0, %v3691
  %3693 = vdwg.mxu0
  %3694 = vmatprep.subr.bf16.mxu0 0
  %3695 = vmatpush1.bf16.msra.mxu0 %v3055
  %3696 = vmatprep.subr.bf16.mxu0 0
  %3697 = vmatpush1.bf16.msra.mxu0 %v3058
  %3698 = vmatprep.subr.bf16.mxu0 0
  %3699 = vmatpush1.bf16.msra.mxu0 %v3061
  %3700 = vmatprep.subr.bf16.mxu0 0
  %3701 = vmatpush1.bf16.msra.mxu0 %v3064
  %3702 = vmatprep.subr.bf16.mxu0 0
  %3703 = vmatpush1.bf16.msra.mxu0 %v3067
  %3704 = vmatprep.subr.bf16.mxu0 0
  %3705 = vmatpush1.bf16.msra.mxu0 %v3070
  %3706 = vmatprep.subr.bf16.mxu0 0
  %3707 = vmatpush1.bf16.msra.mxu0 %v3073
  %3708 = vmatprep.subr.bf16.mxu0 0
  %3709 = vmatpush1.bf16.msra.mxu0 %v3076
  %3710 = vmatprep.subr.bf16.mxu0 0
  %3711 = vmatpush1.bf16.msra.mxu0 0
  %3712 = vmatprep.subr.bf16.mxu0 0
  %3713 = vmatpush1.bf16.msra.mxu0 0
  %3714 = vmatprep.subr.bf16.mxu0 0
  %3715 = vmatpush1.bf16.msra.mxu0 0
  %3716 = vmatprep.subr.bf16.mxu0 0
  %3717 = vmatpush1.bf16.msra.mxu0 0
  %3718 = vmatprep.subr.bf16.mxu0 0
  %3719 = vmatpush1.bf16.msra.mxu0 0
  %3720 = vmatprep.subr.bf16.mxu0 0
  %3721 = vmatpush1.bf16.msra.mxu0 0
  %3722 = vmatprep.subr.bf16.mxu0 0
  %3723 = vmatpush1.bf16.msra.mxu0 0
  %3724 = vmatprep.subr.bf16.mxu0 0
  %3725 = vmatpush1.bf16.msra.mxu0 0
  %3726 = vmatprep.mubr.bf16.mxu0 0
  %3727 = vmatmul.mubr.bf16.gmra.mrb[0].mxu0 %v2861
  %v3728 = vpop.f32.mrb[0].mxu0
  %v3729 = vadd.f32 0.0, %v3728
  %v3730 = vpop.f32.mrb[0].mxu0
  %v3731 = vpop.f32.mrb[0].mxu0
  %v3732 = vadd.f32 0.0, %v3731
  %v3733 = vpop.f32.mrb[0].mxu0
  %3734 = vmatprep.mubr.bf16.mxu0 0
  %3735 = vmatmul.mubr.bf16.gmra.mrb[0].mxu0 %v2862
  %v3736 = vpop.f32.mrb[0].mxu0
  %v3737 = vadd.f32 0.0, %v3736
  %v3738 = vpop.f32.mrb[0].mxu0
  %v3739 = vpop.f32.mrb[0].mxu0
  %v3740 = vadd.f32 0.0, %v3739
  %v3741 = vpop.f32.mrb[0].mxu0
  %3742 = vmatprep.mubr.bf16.mxu0 0
  %3743 = vmatmul.mubr.bf16.gmra.mrb[0].mxu0 %v2863
  %v3744 = vpop.f32.mrb[0].mxu0
  %v3745 = vadd.f32 0.0, %v3744
  %v3746 = vpop.f32.mrb[0].mxu0
  %v3747 = vpop.f32.mrb[0].mxu0
  %v3748 = vadd.f32 0.0, %v3747
  %v3749 = vpop.f32.mrb[0].mxu0
  %3750 = vmatprep.mubr.bf16.mxu0 0
  %3751 = vmatmul.mubr.bf16.gmra.mrb[0].mxu0 %v2864
  %v3752 = vpop.f32.mrb[0].mxu0
  %v3753 = vadd.f32 0.0, %v3752
  %v3754 = vpop.f32.mrb[0].mxu0
  %v3755 = vpop.f32.mrb[0].mxu0
  %v3756 = vadd.f32 0.0, %v3755
  %v3757 = vpop.f32.mrb[0].mxu0
  %3758 = vmatprep.mubr.bf16.mxu0 0
  %3759 = vmatmul.mubr.bf16.gmra.mrb[0].mxu0 %v2865
  %v3760 = vpop.f32.mrb[0].mxu0
  %v3761 = vadd.f32 0.0, %v3760
  %v3762 = vpop.f32.mrb[0].mxu0
  %v3763 = vpop.f32.mrb[0].mxu0
  %v3764 = vadd.f32 0.0, %v3763
  %v3765 = vpop.f32.mrb[0].mxu0
  %3766 = vmatprep.mubr.bf16.mxu0 0
  %3767 = vmatmul.mubr.bf16.gmra.mrb[0].mxu0 %v2866
  %v3768 = vpop.f32.mrb[0].mxu0
  %v3769 = vadd.f32 0.0, %v3768
  %v3770 = vpop.f32.mrb[0].mxu0
  %v3771 = vpop.f32.mrb[0].mxu0
  %v3772 = vadd.f32 0.0, %v3771
  %v3773 = vpop.f32.mrb[0].mxu0
  %3774 = vmatprep.mubr.bf16.mxu0 0
  %3775 = vmatmul.mubr.bf16.gmra.mrb[0].mxu0 %v2867
  %v3776 = vpop.f32.mrb[0].mxu0
  %v3777 = vadd.f32 0.0, %v3776
  %v3778 = vpop.f32.mrb[0].mxu0
  %v3779 = vpop.f32.mrb[0].mxu0
  %v3780 = vadd.f32 0.0, %v3779
  %v3781 = vpop.f32.mrb[0].mxu0
  %3782 = vmatprep.mubr.bf16.mxu0 0
  %3783 = vmatmul.mubr.bf16.gmra.mrb[0].mxu0 %v2868
  %v3784 = vpop.f32.mrb[0].mxu0
  %v3785 = vadd.f32 0.0, %v3784
  %v3786 = vpop.f32.mrb[0].mxu0
  %v3787 = vpop.f32.mrb[0].mxu0
  %v3788 = vadd.f32 0.0, %v3787
  %v3789 = vpop.f32.mrb[0].mxu0
  %3790 = vmatprep.mubr.bf16.mxu0 0
  %3791 = vmatmul.mubr.bf16.gmra.mrb[0].mxu0 %v2869
  %v3792 = vpop.f32.mrb[0].mxu0
  %v3793 = vadd.f32 0.0, %v3792
  %v3794 = vpop.f32.mrb[0].mxu0
  %v3795 = vpop.f32.mrb[0].mxu0
  %v3796 = vadd.f32 0.0, %v3795
  %v3797 = vpop.f32.mrb[0].mxu0
  %3798 = vmatprep.mubr.bf16.mxu0 0
  %3799 = vmatmul.mubr.bf16.gmra.mrb[0].mxu0 %v2870
  %v3800 = vpop.f32.mrb[0].mxu0
  %v3801 = vadd.f32 0.0, %v3800
  %v3802 = vpop.f32.mrb[0].mxu0
  %v3803 = vpop.f32.mrb[0].mxu0
  %v3804 = vadd.f32 0.0, %v3803
  %v3805 = vpop.f32.mrb[0].mxu0
  %3806 = vmatprep.mubr.bf16.mxu0 0
  %3807 = vmatmul.mubr.bf16.gmra.mrb[0].mxu0 %v2871
  %v3808 = vpop.f32.mrb[0].mxu0
  %v3809 = vadd.f32 0.0, %v3808
  %v3810 = vpop.f32.mrb[0].mxu0
  %v3811 = vpop.f32.mrb[0].mxu0
  %v3812 = vadd.f32 0.0, %v3811
  %v3813 = vpop.f32.mrb[0].mxu0
  %3814 = vmatprep.mubr.bf16.mxu0 0
  %3815 = vmatmul.mubr.bf16.gmra.mrb[0].mxu0 %v2872
  %v3816 = vpop.f32.mrb[0].mxu0
  %v3817 = vadd.f32 0.0, %v3816
  %v3818 = vpop.f32.mrb[0].mxu0
  %v3819 = vpop.f32.mrb[0].mxu0
  %v3820 = vadd.f32 0.0, %v3819
  %v3821 = vpop.f32.mrb[0].mxu0
  %3822 = vmatprep.mubr.bf16.mxu0 0
  %3823 = vmatmul.mubr.bf16.gmra.mrb[0].mxu0 %v2873
  %v3824 = vpop.f32.mrb[0].mxu0
  %v3825 = vadd.f32 0.0, %v3824
  %v3826 = vpop.f32.mrb[0].mxu0
  %v3827 = vpop.f32.mrb[0].mxu0
  %v3828 = vadd.f32 0.0, %v3827
  %v3829 = vpop.f32.mrb[0].mxu0
  %3830 = vmatprep.mubr.bf16.mxu0 0
  %3831 = vmatmul.mubr.bf16.gmra.mrb[0].mxu0 %v2874
  %v3832 = vpop.f32.mrb[0].mxu0
  %v3833 = vadd.f32 0.0, %v3832
  %v3834 = vpop.f32.mrb[0].mxu0
  %v3835 = vpop.f32.mrb[0].mxu0
  %v3836 = vadd.f32 0.0, %v3835
  %v3837 = vpop.f32.mrb[0].mxu0
  %3838 = vmatprep.mubr.bf16.mxu0 0
  %3839 = vmatmul.mubr.bf16.gmra.mrb[0].mxu0 %v2875
  %v3840 = vpop.f32.mrb[0].mxu0
  %v3841 = vadd.f32 0.0, %v3840
  %v3842 = vpop.f32.mrb[0].mxu0
  %v3843 = vpop.f32.mrb[0].mxu0
  %v3844 = vadd.f32 0.0, %v3843
  %v3845 = vpop.f32.mrb[0].mxu0
  %3846 = vmatprep.mubr.bf16.mxu0 0
  %3847 = vmatmul.mubr.bf16.gmra.mrb[0].mxu0 %v2876
  %v3848 = vpop.f32.mrb[0].mxu0
  %v3849 = vadd.f32 0.0, %v3848
  %v3850 = vpop.f32.mrb[0].mxu0
  %v3851 = vpop.f32.mrb[0].mxu0
  %v3852 = vadd.f32 0.0, %v3851
  %v3853 = vpop.f32.mrb[0].mxu0
  %3854 = vmatprep.mubr.bf16.mxu0 0
  %3855 = vmatmul.mubr.bf16.gmra.mrb[0].mxu0 %v2877
  %v3856 = vpop.f32.mrb[0].mxu0
  %v3857 = vadd.f32 0.0, %v3856
  %v3858 = vpop.f32.mrb[0].mxu0
  %v3859 = vpop.f32.mrb[0].mxu0
  %v3860 = vadd.f32 0.0, %v3859
  %v3861 = vpop.f32.mrb[0].mxu0
  %3862 = vmatprep.mubr.bf16.mxu0 0
  %3863 = vmatmul.mubr.bf16.gmra.mrb[0].mxu0 %v2878
  %v3864 = vpop.f32.mrb[0].mxu0
  %v3865 = vadd.f32 0.0, %v3864
  %v3866 = vpop.f32.mrb[0].mxu0
  %v3867 = vpop.f32.mrb[0].mxu0
  %v3868 = vadd.f32 0.0, %v3867
  %v3869 = vpop.f32.mrb[0].mxu0
  %3870 = vmatprep.mubr.bf16.mxu0 0
  %3871 = vmatmul.mubr.bf16.gmra.mrb[0].mxu0 %v2879
  %v3872 = vpop.f32.mrb[0].mxu0
  %v3873 = vadd.f32 0.0, %v3872
  %v3874 = vpop.f32.mrb[0].mxu0
  %v3875 = vpop.f32.mrb[0].mxu0
  %v3876 = vadd.f32 0.0, %v3875
  %v3877 = vpop.f32.mrb[0].mxu0
  %3878 = vmatprep.mubr.bf16.mxu0 0
  %3879 = vmatmul.mubr.bf16.gmra.mrb[0].mxu0 %v2880
  %v3880 = vpop.f32.mrb[0].mxu0
  %v3881 = vadd.f32 0.0, %v3880
  %v3882 = vpop.f32.mrb[0].mxu0
  %v3883 = vpop.f32.mrb[0].mxu0
  %v3884 = vadd.f32 0.0, %v3883
  %v3885 = vpop.f32.mrb[0].mxu0
  %3886 = vmatprep.mubr.bf16.mxu0 0
  %3887 = vmatmul.mubr.bf16.gmra.mrb[0].mxu0 %v2881
  %v3888 = vpop.f32.mrb[0].mxu0
  %v3889 = vadd.f32 0.0, %v3888
  %v3890 = vpop.f32.mrb[0].mxu0
  %v3891 = vpop.f32.mrb[0].mxu0
  %v3892 = vadd.f32 0.0, %v3891
  %v3893 = vpop.f32.mrb[0].mxu0
  %3894 = vmatprep.mubr.bf16.mxu0 0
  %3895 = vmatmul.mubr.bf16.gmra.mrb[0].mxu0 %v2882
  %v3896 = vpop.f32.mrb[0].mxu0
  %v3897 = vadd.f32 0.0, %v3896
  %v3898 = vpop.f32.mrb[0].mxu0
  %v3899 = vpop.f32.mrb[0].mxu0
  %v3900 = vadd.f32 0.0, %v3899
  %v3901 = vpop.f32.mrb[0].mxu0
  %3902 = vmatprep.mubr.bf16.mxu0 0
  %3903 = vmatmul.mubr.bf16.gmra.mrb[0].mxu0 %v2883
  %v3904 = vpop.f32.mrb[0].mxu0
  %v3905 = vadd.f32 0.0, %v3904
  %v3906 = vpop.f32.mrb[0].mxu0
  %v3907 = vpop.f32.mrb[0].mxu0
  %v3908 = vadd.f32 0.0, %v3907
  %v3909 = vpop.f32.mrb[0].mxu0
  %3910 = vmatprep.mubr.bf16.mxu0 0
  %3911 = vmatmul.mubr.bf16.gmra.mrb[0].mxu0 %v2884
  %v3912 = vpop.f32.mrb[0].mxu0
  %v3913 = vadd.f32 0.0, %v3912
  %v3914 = vpop.f32.mrb[0].mxu0
  %v3915 = vpop.f32.mrb[0].mxu0
  %v3916 = vadd.f32 0.0, %v3915
  %v3917 = vpop.f32.mrb[0].mxu0
  %3918 = vmatprep.mubr.bf16.mxu0 0
  %3919 = vmatmul.mubr.bf16.gmra.mrb[0].mxu0 %v2885
  %v3920 = vpop.f32.mrb[0].mxu0
  %v3921 = vadd.f32 0.0, %v3920
  %v3922 = vpop.f32.mrb[0].mxu0
  %v3923 = vpop.f32.mrb[0].mxu0
  %v3924 = vadd.f32 0.0, %v3923
  %v3925 = vpop.f32.mrb[0].mxu0
  %3926 = vmatprep.mubr.bf16.mxu0 0
  %3927 = vmatmul.mubr.bf16.gmra.mrb[0].mxu0 %v2886
  %v3928 = vpop.f32.mrb[0].mxu0
  %v3929 = vadd.f32 0.0, %v3928
  %v3930 = vpop.f32.mrb[0].mxu0
  %v3931 = vpop.f32.mrb[0].mxu0
  %v3932 = vadd.f32 0.0, %v3931
  %v3933 = vpop.f32.mrb[0].mxu0
  %3934 = vmatprep.mubr.bf16.mxu0 0
  %3935 = vmatmul.mubr.bf16.gmra.mrb[0].mxu0 %v2887
  %v3936 = vpop.f32.mrb[0].mxu0
  %v3937 = vadd.f32 0.0, %v3936
  %v3938 = vpop.f32.mrb[0].mxu0
  %v3939 = vpop.f32.mrb[0].mxu0
  %v3940 = vadd.f32 0.0, %v3939
  %v3941 = vpop.f32.mrb[0].mxu0
  %3942 = vmatprep.mubr.bf16.mxu0 0
  %3943 = vmatmul.mubr.bf16.gmra.mrb[0].mxu0 %v2888
  %v3944 = vpop.f32.mrb[0].mxu0
  %v3945 = vadd.f32 0.0, %v3944
  %v3946 = vpop.f32.mrb[0].mxu0
  %v3947 = vpop.f32.mrb[0].mxu0
  %v3948 = vadd.f32 0.0, %v3947
  %v3949 = vpop.f32.mrb[0].mxu0
  %3950 = vmatprep.mubr.bf16.mxu0 0
  %3951 = vmatmul.mubr.bf16.gmra.mrb[0].mxu0 %v2889
  %v3952 = vpop.f32.mrb[0].mxu0
  %v3953 = vadd.f32 0.0, %v3952
  %v3954 = vpop.f32.mrb[0].mxu0
  %v3955 = vpop.f32.mrb[0].mxu0
  %v3956 = vadd.f32 0.0, %v3955
  %v3957 = vpop.f32.mrb[0].mxu0
  %3958 = vmatprep.mubr.bf16.mxu0 0
  %3959 = vmatmul.mubr.bf16.gmra.mrb[0].mxu0 %v2890
  %v3960 = vpop.f32.mrb[0].mxu0
  %v3961 = vadd.f32 0.0, %v3960
  %v3962 = vpop.f32.mrb[0].mxu0
  %v3963 = vpop.f32.mrb[0].mxu0
  %v3964 = vadd.f32 0.0, %v3963
  %v3965 = vpop.f32.mrb[0].mxu0
  %3966 = vmatprep.mubr.bf16.mxu0 0
  %3967 = vmatmul.mubr.bf16.gmra.mrb[0].mxu0 %v2891
  %v3968 = vpop.f32.mrb[0].mxu0
  %v3969 = vadd.f32 0.0, %v3968
  %v3970 = vpop.f32.mrb[0].mxu0
  %v3971 = vpop.f32.mrb[0].mxu0
  %v3972 = vadd.f32 0.0, %v3971
  %v3973 = vpop.f32.mrb[0].mxu0
  %3974 = vmatprep.mubr.bf16.mxu0 0
  %3975 = vmatmul.mubr.bf16.gmra.mrb[0].mxu0 %v2892
  %v3976 = vpop.f32.mrb[0].mxu0
  %v3977 = vadd.f32 0.0, %v3976
  %v3978 = vpop.f32.mrb[0].mxu0
  %v3979 = vpop.f32.mrb[0].mxu0
  %v3980 = vadd.f32 0.0, %v3979
  %v3981 = vpop.f32.mrb[0].mxu0
  %3982 = vmatprep.mubr.bf16.mxu0 0
  %3983 = vmatmul.mubr.bf16.gmra.mrb[0].mxu0 %v2893
  %v3984 = vpop.f32.mrb[0].mxu0
  %v3985 = vadd.f32 0.0, %v3984
  %v3986 = vpop.f32.mrb[0].mxu0
  %v3987 = vpop.f32.mrb[0].mxu0
  %v3988 = vadd.f32 0.0, %v3987
  %v3989 = vpop.f32.mrb[0].mxu0
  %3990 = vmatprep.mubr.bf16.mxu0 0
  %3991 = vmatmul.mubr.bf16.gmra.mrb[0].mxu0 %v2894
  %v3992 = vpop.f32.mrb[0].mxu0
  %v3993 = vadd.f32 0.0, %v3992
  %v3994 = vpop.f32.mrb[0].mxu0
  %v3995 = vpop.f32.mrb[0].mxu0
  %v3996 = vadd.f32 0.0, %v3995
  %v3997 = vpop.f32.mrb[0].mxu0
  %3998 = vmatprep.mubr.bf16.mxu0 0
  %3999 = vmatmul.mubr.bf16.gmra.mrb[0].mxu0 %v2895
  %v4000 = vpop.f32.mrb[0].mxu0
  %v4001 = vadd.f32 0.0, %v4000
  %v4002 = vpop.f32.mrb[0].mxu0
  %v4003 = vpop.f32.mrb[0].mxu0
  %v4004 = vadd.f32 0.0, %v4003
  %v4005 = vpop.f32.mrb[0].mxu0
  %4006 = vmatprep.mubr.bf16.mxu0 0
  %4007 = vmatmul.mubr.bf16.gmra.mrb[0].mxu0 %v2896
  %v4008 = vpop.f32.mrb[0].mxu0
  %v4009 = vadd.f32 0.0, %v4008
  %v4010 = vpop.f32.mrb[0].mxu0
  %v4011 = vpop.f32.mrb[0].mxu0
  %v4012 = vadd.f32 0.0, %v4011
  %v4013 = vpop.f32.mrb[0].mxu0
  %4014 = vmatprep.mubr.bf16.mxu0 0
  %4015 = vmatmul.mubr.bf16.gmra.mrb[0].mxu0 %v2897
  %v4016 = vpop.f32.mrb[0].mxu0
  %v4017 = vadd.f32 0.0, %v4016
  %v4018 = vpop.f32.mrb[0].mxu0
  %v4019 = vpop.f32.mrb[0].mxu0
  %v4020 = vadd.f32 0.0, %v4019
  %v4021 = vpop.f32.mrb[0].mxu0
  %4022 = vmatprep.mubr.bf16.mxu0 0
  %4023 = vmatmul.mubr.bf16.gmra.mrb[0].mxu0 %v2898
  %v4024 = vpop.f32.mrb[0].mxu0
  %v4025 = vadd.f32 0.0, %v4024
  %v4026 = vpop.f32.mrb[0].mxu0
  %v4027 = vpop.f32.mrb[0].mxu0
  %v4028 = vadd.f32 0.0, %v4027
  %v4029 = vpop.f32.mrb[0].mxu0
  %4030 = vmatprep.mubr.bf16.mxu0 0
  %4031 = vmatmul.mubr.bf16.gmra.mrb[0].mxu0 %v2899
  %v4032 = vpop.f32.mrb[0].mxu0
  %v4033 = vadd.f32 0.0, %v4032
  %v4034 = vpop.f32.mrb[0].mxu0
  %v4035 = vpop.f32.mrb[0].mxu0
  %v4036 = vadd.f32 0.0, %v4035
  %v4037 = vpop.f32.mrb[0].mxu0
  %4038 = vmatprep.mubr.bf16.mxu0 0
  %4039 = vmatmul.mubr.bf16.gmra.mrb[0].mxu0 %v2900
  %v4040 = vpop.f32.mrb[0].mxu0
  %v4041 = vadd.f32 0.0, %v4040
  %v4042 = vpop.f32.mrb[0].mxu0
  %v4043 = vpop.f32.mrb[0].mxu0
  %v4044 = vadd.f32 0.0, %v4043
  %v4045 = vpop.f32.mrb[0].mxu0
  %4046 = vmatprep.mubr.bf16.mxu0 0
  %4047 = vmatmul.mubr.bf16.gmra.mrb[0].mxu0 %v2901
  %v4048 = vpop.f32.mrb[0].mxu0
  %v4049 = vadd.f32 0.0, %v4048
  %v4050 = vpop.f32.mrb[0].mxu0
  %v4051 = vpop.f32.mrb[0].mxu0
  %v4052 = vadd.f32 0.0, %v4051
  %v4053 = vpop.f32.mrb[0].mxu0
  %4054 = vmatprep.mubr.bf16.mxu0 0
  %4055 = vmatmul.mubr.bf16.gmra.mrb[0].mxu0 %v2902
  %v4056 = vpop.f32.mrb[0].mxu0
  %v4057 = vadd.f32 0.0, %v4056
  %v4058 = vpop.f32.mrb[0].mxu0
  %v4059 = vpop.f32.mrb[0].mxu0
  %v4060 = vadd.f32 0.0, %v4059
  %v4061 = vpop.f32.mrb[0].mxu0
  %4062 = vmatprep.mubr.bf16.mxu0 0
  %4063 = vmatmul.mubr.bf16.gmra.mrb[0].mxu0 %v2903
  %v4064 = vpop.f32.mrb[0].mxu0
  %v4065 = vadd.f32 0.0, %v4064
  %v4066 = vpop.f32.mrb[0].mxu0
  %v4067 = vpop.f32.mrb[0].mxu0
  %v4068 = vadd.f32 0.0, %v4067
  %v4069 = vpop.f32.mrb[0].mxu0
  %4070 = vmatprep.mubr.bf16.mxu0 0
  %4071 = vmatmul.mubr.bf16.gmra.mrb[0].mxu0 %v2904
  %v4072 = vpop.f32.mrb[0].mxu0
  %v4073 = vadd.f32 0.0, %v4072
  %v4074 = vpop.f32.mrb[0].mxu0
  %v4075 = vpop.f32.mrb[0].mxu0
  %v4076 = vadd.f32 0.0, %v4075
  %v4077 = vpop.f32.mrb[0].mxu0
  %4078 = vmatprep.mubr.bf16.mxu0 0
  %4079 = vmatmul.mubr.bf16.gmra.mrb[0].mxu0 %v2905
  %v4080 = vpop.f32.mrb[0].mxu0
  %v4081 = vadd.f32 0.0, %v4080
  %v4082 = vpop.f32.mrb[0].mxu0
  %v4083 = vpop.f32.mrb[0].mxu0
  %v4084 = vadd.f32 0.0, %v4083
  %v4085 = vpop.f32.mrb[0].mxu0
  %4086 = vmatprep.mubr.bf16.mxu0 0
  %4087 = vmatmul.mubr.bf16.gmra.mrb[0].mxu0 %v2906
  %v4088 = vpop.f32.mrb[0].mxu0
  %v4089 = vadd.f32 0.0, %v4088
  %v4090 = vpop.f32.mrb[0].mxu0
  %v4091 = vpop.f32.mrb[0].mxu0
  %v4092 = vadd.f32 0.0, %v4091
  %v4093 = vpop.f32.mrb[0].mxu0
  %4094 = vmatprep.mubr.bf16.mxu0 0
  %4095 = vmatmul.mubr.bf16.gmra.mrb[0].mxu0 %v2907
  %v4096 = vpop.f32.mrb[0].mxu0
  %v4097 = vadd.f32 0.0, %v4096
  %v4098 = vpop.f32.mrb[0].mxu0
  %v4099 = vpop.f32.mrb[0].mxu0
  %v4100 = vadd.f32 0.0, %v4099
  %v4101 = vpop.f32.mrb[0].mxu0
  %4102 = vmatprep.mubr.bf16.mxu0 0
  %4103 = vmatmul.mubr.bf16.gmra.mrb[0].mxu0 %v2908
  %v4104 = vpop.f32.mrb[0].mxu0
  %v4105 = vadd.f32 0.0, %v4104
  %v4106 = vpop.f32.mrb[0].mxu0
  %v4107 = vpop.f32.mrb[0].mxu0
  %v4108 = vadd.f32 0.0, %v4107
  %v4109 = vpop.f32.mrb[0].mxu0
  %4110 = vmatprep.mubr.bf16.mxu0 0
  %4111 = vmatmul.mubr.bf16.gmra.mrb[0].mxu0 %v2909
  %v4112 = vpop.f32.mrb[0].mxu0
  %v4113 = vadd.f32 0.0, %v4112
  %v4114 = vpop.f32.mrb[0].mxu0
  %v4115 = vpop.f32.mrb[0].mxu0
  %v4116 = vadd.f32 0.0, %v4115
  %v4117 = vpop.f32.mrb[0].mxu0
  %4118 = vmatprep.mubr.bf16.mxu0 0
  %4119 = vmatmul.mubr.bf16.gmra.mrb[0].mxu0 %v2910
  %v4120 = vpop.f32.mrb[0].mxu0
  %v4121 = vadd.f32 0.0, %v4120
  %v4122 = vpop.f32.mrb[0].mxu0
  %v4123 = vpop.f32.mrb[0].mxu0
  %v4124 = vadd.f32 0.0, %v4123
  %v4125 = vpop.f32.mrb[0].mxu0
  %4126 = vmatprep.mubr.bf16.mxu0 0
  %4127 = vmatmul.mubr.bf16.gmra.mrb[0].mxu0 %v2911
  %v4128 = vpop.f32.mrb[0].mxu0
  %v4129 = vadd.f32 0.0, %v4128
  %v4130 = vpop.f32.mrb[0].mxu0
  %v4131 = vpop.f32.mrb[0].mxu0
  %v4132 = vadd.f32 0.0, %v4131
  %v4133 = vpop.f32.mrb[0].mxu0
  %4134 = vmatprep.mubr.bf16.mxu0 0
  %4135 = vmatmul.mubr.bf16.gmra.mrb[0].mxu0 %v2912
  %v4136 = vpop.f32.mrb[0].mxu0
  %v4137 = vadd.f32 0.0, %v4136
  %v4138 = vpop.f32.mrb[0].mxu0
  %v4139 = vpop.f32.mrb[0].mxu0
  %v4140 = vadd.f32 0.0, %v4139
  %v4141 = vpop.f32.mrb[0].mxu0
  %4142 = vmatprep.mubr.bf16.mxu0 0
  %4143 = vmatmul.mubr.bf16.gmra.mrb[0].mxu0 %v2913
  %v4144 = vpop.f32.mrb[0].mxu0
  %v4145 = vadd.f32 0.0, %v4144
  %v4146 = vpop.f32.mrb[0].mxu0
  %v4147 = vpop.f32.mrb[0].mxu0
  %v4148 = vadd.f32 0.0, %v4147
  %v4149 = vpop.f32.mrb[0].mxu0
  %4150 = vmatprep.mubr.bf16.mxu0 0
  %4151 = vmatmul.mubr.bf16.gmra.mrb[0].mxu0 %v2914
  %v4152 = vpop.f32.mrb[0].mxu0
  %v4153 = vadd.f32 0.0, %v4152
  %v4154 = vpop.f32.mrb[0].mxu0
  %v4155 = vpop.f32.mrb[0].mxu0
  %v4156 = vadd.f32 0.0, %v4155
  %v4157 = vpop.f32.mrb[0].mxu0
  %4158 = vmatprep.mubr.bf16.mxu0 0
  %4159 = vmatmul.mubr.bf16.gmra.mrb[0].mxu0 %v2915
  %v4160 = vpop.f32.mrb[0].mxu0
  %v4161 = vadd.f32 0.0, %v4160
  %v4162 = vpop.f32.mrb[0].mxu0
  %v4163 = vpop.f32.mrb[0].mxu0
  %v4164 = vadd.f32 0.0, %v4163
  %v4165 = vpop.f32.mrb[0].mxu0
  %4166 = vmatprep.mubr.bf16.mxu0 0
  %4167 = vmatmul.mubr.bf16.gmra.mrb[0].mxu0 %v2916
  %v4168 = vpop.f32.mrb[0].mxu0
  %v4169 = vadd.f32 0.0, %v4168
  %v4170 = vpop.f32.mrb[0].mxu0
  %v4171 = vpop.f32.mrb[0].mxu0
  %v4172 = vadd.f32 0.0, %v4171
  %v4173 = vpop.f32.mrb[0].mxu0
  %4174 = vdwg.mxu0
  %v4175 = vrot.slane %v3138, 1
  %v4176 = vrot.slane %v3142, 1
  %v4177 = vrot.slane %v3148, 1
  %v4178 = vrot.slane %v3152, 1
  %v4179 = vrot.slane %v3158, 1
  %v4180 = vrot.slane %v3162, 1
  %v4181 = vrot.slane %v3168, 1
  %v4182 = vrot.slane %v3172, 1
  %v4183 = vrot.slane %v3178, 1
  %v4184 = vrot.slane %v3182, 1
  %v4185 = vrot.slane %v3188, 1
  %v4186 = vrot.slane %v3192, 1
  %v4187 = vrot.slane %v3198, 1
  %v4188 = vrot.slane %v3202, 1
  %v4189 = vrot.slane %v3208, 1
  %v4190 = vrot.slane %v3212, 1
  %v4191 = vrot.slane %v3218, 1
  %v4192 = vrot.slane %v3222, 1
  %v4193 = vrot.slane %v3228, 1
  %v4194 = vrot.slane %v3232, 1
  %v4195 = vrot.slane %v3238, 1
  %v4196 = vrot.slane %v3242, 1
  %v4197 = vrot.slane %v3248, 1
  %v4198 = vrot.slane %v3252, 1
  %v4199 = vrot.slane %v3258, 1
  %v4200 = vrot.slane %v3262, 1
  %v4201 = vrot.slane %v3268, 1
  %v4202 = vrot.slane %v3272, 1
  %v4203 = vrot.slane %v3278, 1
  %v4204 = vrot.slane %v3282, 1
  %v4205 = vrot.slane %v3288, 1
  %v4206 = vrot.slane %v3292, 1
  %v4207 = vrot.slane %v3298, 1
  %v4208 = vrot.slane %v3302, 1
  %v4209 = vrot.slane %v3308, 1
  %v4210 = vrot.slane %v3312, 1
  %v4211 = vrot.slane %v3318, 1
  %v4212 = vrot.slane %v3322, 1
  %v4213 = vrot.slane %v3328, 1
  %v4214 = vrot.slane %v3332, 1
  %v4215 = vrot.slane %v3338, 1
  %v4216 = vrot.slane %v3342, 1
  %v4217 = vrot.slane %v3348, 1
  %v4218 = vrot.slane %v3352, 1
  %v4219 = vrot.slane %v3358, 1
  %v4220 = vrot.slane %v3362, 1
  %v4221 = vrot.slane %v3368, 1
  %v4222 = vrot.slane %v3372, 1
  %v4223 = vrot.slane %v3378, 1
  %v4224 = vrot.slane %v3382, 1
  %v4225 = vrot.slane %v3388, 1
  %v4226 = vrot.slane %v3392, 1
  %v4227 = vrot.slane %v3398, 1
  %v4228 = vrot.slane %v3402, 1
  %v4229 = vrot.slane %v3408, 1
  %v4230 = vrot.slane %v3412, 1
  %v4231 = vrot.slane %v3418, 1
  %v4232 = vrot.slane %v3422, 1
  %v4233 = vrot.slane %v3428, 1
  %v4234 = vrot.slane %v3432, 1
  %v4235 = vrot.slane %v3438, 1
  %v4236 = vrot.slane %v3442, 1
  %v4237 = vrot.slane %v3448, 1
  %v4238 = vrot.slane %v3452, 1
  %v4239 = vrot.slane %v3458, 1
  %v4240 = vrot.slane %v3462, 1
  %v4241 = vrot.slane %v3468, 1
  %v4242 = vrot.slane %v3472, 1
  %v4243 = vrot.slane %v3478, 1
  %v4244 = vrot.slane %v3482, 1
  %v4245 = vrot.slane %v3488, 1
  %v4246 = vrot.slane %v3492, 1
  %v4247 = vrot.slane %v3498, 1
  %v4248 = vrot.slane %v3502, 1
  %v4249 = vrot.slane %v3508, 1
  %v4250 = vrot.slane %v3512, 1
  %v4251 = vrot.slane %v3518, 1
  %v4252 = vrot.slane %v3522, 1
  %v4253 = vrot.slane %v3528, 1
  %v4254 = vrot.slane %v3532, 1
  %v4255 = vrot.slane %v3538, 1
  %v4256 = vrot.slane %v3542, 1
  %v4257 = vrot.slane %v3548, 1
  %v4258 = vrot.slane %v3552, 1
  %v4259 = vrot.slane %v3558, 1
  %v4260 = vrot.slane %v3562, 1
  %v4261 = vrot.slane %v3568, 1
  %v4262 = vrot.slane %v3572, 1
  %v4263 = vrot.slane %v3578, 1
  %v4264 = vrot.slane %v3582, 1
  %v4265 = vrot.slane %v3588, 1
  %v4266 = vrot.slane %v3592, 1
  %v4267 = vrot.slane %v3598, 1
  %v4268 = vrot.slane %v3602, 1
  %v4269 = vrot.slane %v3608, 1
  %v4270 = vrot.slane %v3612, 1
  %v4271 = vrot.slane %v3618, 1
  %v4272 = vrot.slane %v3622, 1
  %v4273 = vrot.slane %v3628, 1
  %v4274 = vrot.slane %v3632, 1
  %v4275 = vrot.slane %v3638, 1
  %v4276 = vrot.slane %v3642, 1
  %v4277 = vrot.slane %v3648, 1
  %v4278 = vrot.slane %v3652, 1
  %v4279 = vrot.slane %v3658, 1
  %v4280 = vrot.slane %v3662, 1
  %v4281 = vrot.slane %v3668, 1
  %v4282 = vrot.slane %v3672, 1
  %v4283 = vrot.slane %v3678, 1
  %v4284 = vrot.slane %v3682, 1
  %v4285 = vrot.slane %v3688, 1
  %v4286 = vrot.slane %v3692, 1
  %v4287 = vsel %vm1817, %v4285, %v4286
  %v4288 = vsel %vm1817, %v4284, %v4285
  %v4289 = vsel %vm1817, %v4283, %v4284
  %v4290 = vsel %vm1817, %v4282, %v4283
  %v4291 = vsel %vm1817, %v4281, %v4282
  %v4292 = vsel %vm1817, %v4280, %v4281
  %v4293 = vsel %vm1817, %v4279, %v4280
  %v4294 = vsel %vm1817, %v4278, %v4279
  %v4295 = vsel %vm1817, %v4277, %v4278
  %v4296 = vsel %vm1817, %v4276, %v4277
  %v4297 = vsel %vm1817, %v4275, %v4276
  %v4298 = vsel %vm1817, %v4274, %v4275
  %v4299 = vsel %vm1817, %v4273, %v4274
  %v4300 = vsel %vm1817, %v4272, %v4273
  %v4301 = vsel %vm1817, %v4271, %v4272
  %v4302 = vsel %vm1817, %v4270, %v4271
  %v4303 = vsel %vm1817, %v4269, %v4270
  %v4304 = vsel %vm1817, %v4268, %v4269
  %v4305 = vsel %vm1817, %v4267, %v4268
  %v4306 = vsel %vm1817, %v4266, %v4267
  %v4307 = vsel %vm1817, %v4265, %v4266
  %v4308 = vsel %vm1817, %v4264, %v4265
  %v4309 = vsel %vm1817, %v4263, %v4264
  %v4310 = vsel %vm1817, %v4262, %v4263
  %v4311 = vsel %vm1817, %v4261, %v4262
  %v4312 = vsel %vm1817, %v4260, %v4261
  %v4313 = vsel %vm1817, %v4259, %v4260
  %v4314 = vsel %vm1817, %v4258, %v4259
  %v4315 = vsel %vm1817, %v4257, %v4258
  %v4316 = vsel %vm1817, %v4256, %v4257
  %v4317 = vsel %vm1817, %v4255, %v4256
  %v4318 = vsel %vm1817, %v4254, %v4255
  %v4319 = vsel %vm1817, %v4253, %v4254
  %v4320 = vsel %vm1817, %v4252, %v4253
  %v4321 = vsel %vm1817, %v4251, %v4252
  %v4322 = vsel %vm1817, %v4250, %v4251
  %v4323 = vsel %vm1817, %v4249, %v4250
  %v4324 = vsel %vm1817, %v4248, %v4249
  %v4325 = vsel %vm1817, %v4247, %v4248
  %v4326 = vsel %vm1817, %v4246, %v4247
  %v4327 = vsel %vm1817, %v4245, %v4246
  %v4328 = vsel %vm1817, %v4244, %v4245
  %v4329 = vsel %vm1817, %v4243, %v4244
  %v4330 = vsel %vm1817, %v4242, %v4243
  %v4331 = vsel %vm1817, %v4241, %v4242
  %v4332 = vsel %vm1817, %v4240, %v4241
  %v4333 = vsel %vm1817, %v4239, %v4240
  %v4334 = vsel %vm1817, %v4238, %v4239
  %v4335 = vsel %vm1817, %v4237, %v4238
  %v4336 = vsel %vm1817, %v4236, %v4237
  %v4337 = vsel %vm1817, %v4235, %v4236
  %v4338 = vsel %vm1817, %v4234, %v4235
  %v4339 = vsel %vm1817, %v4233, %v4234
  %v4340 = vsel %vm1817, %v4232, %v4233
  %v4341 = vsel %vm1817, %v4231, %v4232
  %v4342 = vsel %vm1817, %v4230, %v4231
  %v4343 = vsel %vm1817, %v4229, %v4230
  %v4344 = vsel %vm1817, %v4228, %v4229
  %v4345 = vsel %vm1817, %v4227, %v4228
  %v4346 = vsel %vm1817, %v4226, %v4227
  %v4347 = vsel %vm1817, %v4225, %v4226
  %v4348 = vsel %vm1817, %v4224, %v4225
  %v4349 = vsel %vm1817, %v4223, %v4224
  %v4350 = vsel %vm1817, %v4222, %v4223
  %v4351 = vsel %vm1817, %v4221, %v4222
  %v4352 = vsel %vm1817, %v4220, %v4221
  %v4353 = vsel %vm1817, %v4219, %v4220
  %v4354 = vsel %vm1817, %v4218, %v4219
  %v4355 = vsel %vm1817, %v4217, %v4218
  %v4356 = vsel %vm1817, %v4216, %v4217
  %v4357 = vsel %vm1817, %v4215, %v4216
  %v4358 = vsel %vm1817, %v4214, %v4215
  %v4359 = vsel %vm1817, %v4213, %v4214
  %v4360 = vsel %vm1817, %v4212, %v4213
  %v4361 = vsel %vm1817, %v4211, %v4212
  %v4362 = vsel %vm1817, %v4210, %v4211
  %v4363 = vsel %vm1817, %v4209, %v4210
  %v4364 = vsel %vm1817, %v4208, %v4209
  %v4365 = vsel %vm1817, %v4207, %v4208
  %v4366 = vsel %vm1817, %v4206, %v4207
  %v4367 = vsel %vm1817, %v4205, %v4206
  %v4368 = vsel %vm1817, %v4204, %v4205
  %v4369 = vsel %vm1817, %v4203, %v4204
  %v4370 = vsel %vm1817, %v4202, %v4203
  %v4371 = vsel %vm1817, %v4201, %v4202
  %v4372 = vsel %vm1817, %v4200, %v4201
  %v4373 = vsel %vm1817, %v4199, %v4200
  %v4374 = vsel %vm1817, %v4198, %v4199
  %v4375 = vsel %vm1817, %v4197, %v4198
  %v4376 = vsel %vm1817, %v4196, %v4197
  %v4377 = vsel %vm1817, %v4195, %v4196
  %v4378 = vsel %vm1817, %v4194, %v4195
  %v4379 = vsel %vm1817, %v4193, %v4194
  %v4380 = vsel %vm1817, %v4192, %v4193
  %v4381 = vsel %vm1817, %v4191, %v4192
  %v4382 = vsel %vm1817, %v4190, %v4191
  %v4383 = vsel %vm1817, %v4189, %v4190
  %v4384 = vsel %vm1817, %v4188, %v4189
  %v4385 = vsel %vm1817, %v4187, %v4188
  %v4386 = vsel %vm1817, %v4186, %v4187
  %v4387 = vsel %vm1817, %v4185, %v4186
  %v4388 = vsel %vm1817, %v4184, %v4185
  %v4389 = vsel %vm1817, %v4183, %v4184
  %v4390 = vsel %vm1817, %v4182, %v4183
  %v4391 = vsel %vm1817, %v4181, %v4182
  %v4392 = vsel %vm1817, %v4180, %v4181
  %v4393 = vsel %vm1817, %v4179, %v4180
  %v4394 = vsel %vm1817, %v4178, %v4179
  %v4395 = vsel %vm1817, %v4177, %v4178
  %v4396 = vsel %vm1817, %v4176, %v4177
  %v4397 = vsel %vm1817, %v4175, %v4176
  %v4398 = vsel %vm1817, %v4286, %v4175
  %v4399 = vadd.f32 %v3136, %v4397
  %v4400 = vadd.f32 %v3140, %v4396
  %v4401 = vadd.f32 %v3146, %v4395
  %v4402 = vadd.f32 %v3150, %v4394
  %v4403 = vadd.f32 %v3156, %v4393
  %v4404 = vadd.f32 %v3160, %v4392
  %v4405 = vadd.f32 %v3166, %v4391
  %v4406 = vadd.f32 %v3170, %v4390
  %v4407 = vadd.f32 %v3176, %v4389
  %v4408 = vadd.f32 %v3180, %v4388
  %v4409 = vadd.f32 %v3186, %v4387
  %v4410 = vadd.f32 %v3190, %v4386
  %v4411 = vadd.f32 %v3196, %v4385
  %v4412 = vadd.f32 %v3200, %v4384
  %v4413 = vadd.f32 %v3206, %v4383
  %v4414 = vadd.f32 %v3210, %v4382
  %v4415 = vadd.f32 %v3216, %v4381
  %v4416 = vadd.f32 %v3220, %v4380
  %v4417 = vadd.f32 %v3226, %v4379
  %v4418 = vadd.f32 %v3230, %v4378
  %v4419 = vadd.f32 %v3236, %v4377
  %v4420 = vadd.f32 %v3240, %v4376
  %v4421 = vadd.f32 %v3246, %v4375
  %v4422 = vadd.f32 %v3250, %v4374
  %v4423 = vadd.f32 %v3256, %v4373
  %v4424 = vadd.f32 %v3260, %v4372
  %v4425 = vadd.f32 %v3266, %v4371
  %v4426 = vadd.f32 %v3270, %v4370
  %v4427 = vadd.f32 %v3276, %v4369
  %v4428 = vadd.f32 %v3280, %v4368
  %v4429 = vadd.f32 %v3286, %v4367
  %v4430 = vadd.f32 %v3290, %v4366
  %v4431 = vadd.f32 %v3296, %v4365
  %v4432 = vadd.f32 %v3300, %v4364
  %v4433 = vadd.f32 %v3306, %v4363
  %v4434 = vadd.f32 %v3310, %v4362
  %v4435 = vadd.f32 %v3316, %v4361
  %v4436 = vadd.f32 %v3320, %v4360
  %v4437 = vadd.f32 %v3326, %v4359
  %v4438 = vadd.f32 %v3330, %v4358
  %v4439 = vadd.f32 %v3336, %v4357
  %v4440 = vadd.f32 %v3340, %v4356
  %v4441 = vadd.f32 %v3346, %v4355
  %v4442 = vadd.f32 %v3350, %v4354
  %v4443 = vadd.f32 %v3356, %v4353
  %v4444 = vadd.f32 %v3360, %v4352
  %v4445 = vadd.f32 %v3366, %v4351
  %v4446 = vadd.f32 %v3370, %v4350
  %v4447 = vadd.f32 %v3376, %v4349
  %v4448 = vadd.f32 %v3380, %v4348
  %v4449 = vadd.f32 %v3386, %v4347
  %v4450 = vadd.f32 %v3390, %v4346
  %v4451 = vadd.f32 %v3396, %v4345
  %v4452 = vadd.f32 %v3400, %v4344
  %v4453 = vadd.f32 %v3406, %v4343
  %v4454 = vadd.f32 %v3410, %v4342
  %v4455 = vadd.f32 %v3416, %v4341
  %v4456 = vadd.f32 %v3420, %v4340
  %v4457 = vadd.f32 %v3426, %v4339
  %v4458 = vadd.f32 %v3430, %v4338
  %v4459 = vadd.f32 %v3436, %v4337
  %v4460 = vadd.f32 %v3440, %v4336
  %v4461 = vadd.f32 %v3446, %v4335
  %v4462 = vadd.f32 %v3450, %v4334
  %v4463 = vadd.f32 %v3456, %v4333
  %v4464 = vadd.f32 %v3460, %v4332
  %v4465 = vadd.f32 %v3466, %v4331
  %v4466 = vadd.f32 %v3470, %v4330
  %v4467 = vadd.f32 %v3476, %v4329
  %v4468 = vadd.f32 %v3480, %v4328
  %v4469 = vadd.f32 %v3486, %v4327
  %v4470 = vadd.f32 %v3490, %v4326
  %v4471 = vadd.f32 %v3496, %v4325
  %v4472 = vadd.f32 %v3500, %v4324
  %v4473 = vadd.f32 %v3506, %v4323
  %v4474 = vadd.f32 %v3510, %v4322
  %v4475 = vadd.f32 %v3516, %v4321
  %v4476 = vadd.f32 %v3520, %v4320
  %v4477 = vadd.f32 %v3526, %v4319
  %v4478 = vadd.f32 %v3530, %v4318
  %v4479 = vadd.f32 %v3536, %v4317
  %v4480 = vadd.f32 %v3540, %v4316
  %v4481 = vadd.f32 %v3546, %v4315
  %v4482 = vadd.f32 %v3550, %v4314
  %v4483 = vadd.f32 %v3556, %v4313
  %v4484 = vadd.f32 %v3560, %v4312
  %v4485 = vadd.f32 %v3566, %v4311
  %v4486 = vadd.f32 %v3570, %v4310
  %v4487 = vadd.f32 %v3576, %v4309
  %v4488 = vadd.f32 %v3580, %v4308
  %v4489 = vadd.f32 %v3586, %v4307
  %v4490 = vadd.f32 %v3590, %v4306
  %v4491 = vadd.f32 %v3596, %v4305
  %v4492 = vadd.f32 %v3600, %v4304
  %v4493 = vadd.f32 %v3606, %v4303
  %v4494 = vadd.f32 %v3610, %v4302
  %v4495 = vadd.f32 %v3616, %v4301
  %v4496 = vadd.f32 %v3620, %v4300
  %v4497 = vadd.f32 %v3626, %v4299
  %v4498 = vadd.f32 %v3630, %v4298
  %v4499 = vadd.f32 %v3636, %v4297
  %v4500 = vadd.f32 %v3640, %v4296
  %v4501 = vadd.f32 %v3646, %v4295
  %v4502 = vadd.f32 %v3650, %v4294
  %v4503 = vadd.f32 %v3656, %v4293
  %v4504 = vadd.f32 %v3660, %v4292
  %v4505 = vadd.f32 %v3666, %v4291
  %v4506 = vadd.f32 %v3670, %v4290
  %v4507 = vadd.f32 %v3676, %v4289
  %v4508 = vadd.f32 %v3680, %v4288
  %v4509 = vadd.f32 %v3686, %v4287
  %v4510 = vadd.f32 %v3690, %v4398
  %v4511 = vrot.slane %v3729, 2
  %v4512 = vrot.slane %v3732, 2
  %v4513 = vrot.slane %v3737, 2
  %v4514 = vrot.slane %v3740, 2
  %v4515 = vrot.slane %v3745, 2
  %v4516 = vrot.slane %v3748, 2
  %v4517 = vrot.slane %v3753, 2
  %v4518 = vrot.slane %v3756, 2
  %v4519 = vrot.slane %v3761, 2
  %v4520 = vrot.slane %v3764, 2
  %v4521 = vrot.slane %v3769, 2
  %v4522 = vrot.slane %v3772, 2
  %v4523 = vrot.slane %v3777, 2
  %v4524 = vrot.slane %v3780, 2
  %v4525 = vrot.slane %v3785, 2
  %v4526 = vrot.slane %v3788, 2
  %v4527 = vrot.slane %v3793, 2
  %v4528 = vrot.slane %v3796, 2
  %v4529 = vrot.slane %v3801, 2
  %v4530 = vrot.slane %v3804, 2
  %v4531 = vrot.slane %v3809, 2
  %v4532 = vrot.slane %v3812, 2
  %v4533 = vrot.slane %v3817, 2
  %v4534 = vrot.slane %v3820, 2
  %v4535 = vrot.slane %v3825, 2
  %v4536 = vrot.slane %v3828, 2
  %v4537 = vrot.slane %v3833, 2
  %v4538 = vrot.slane %v3836, 2
  %v4539 = vrot.slane %v3841, 2
  %v4540 = vrot.slane %v3844, 2
  %v4541 = vrot.slane %v3849, 2
  %v4542 = vrot.slane %v3852, 2
  %v4543 = vrot.slane %v3857, 2
  %v4544 = vrot.slane %v3860, 2
  %v4545 = vrot.slane %v3865, 2
  %v4546 = vrot.slane %v3868, 2
  %v4547 = vrot.slane %v3873, 2
  %v4548 = vrot.slane %v3876, 2
  %v4549 = vrot.slane %v3881, 2
  %v4550 = vrot.slane %v3884, 2
  %v4551 = vrot.slane %v3889, 2
  %v4552 = vrot.slane %v3892, 2
  %v4553 = vrot.slane %v3897, 2
  %v4554 = vrot.slane %v3900, 2
  %v4555 = vrot.slane %v3905, 2
  %v4556 = vrot.slane %v3908, 2
  %v4557 = vrot.slane %v3913, 2
  %v4558 = vrot.slane %v3916, 2
  %v4559 = vrot.slane %v3921, 2
  %v4560 = vrot.slane %v3924, 2
  %v4561 = vrot.slane %v3929, 2
  %v4562 = vrot.slane %v3932, 2
  %v4563 = vrot.slane %v3937, 2
  %v4564 = vrot.slane %v3940, 2
  %v4565 = vrot.slane %v3945, 2
  %v4566 = vrot.slane %v3948, 2
  %v4567 = vrot.slane %v3953, 2
  %v4568 = vrot.slane %v3956, 2
  %v4569 = vrot.slane %v3961, 2
  %v4570 = vrot.slane %v3964, 2
  %v4571 = vrot.slane %v3969, 2
  %v4572 = vrot.slane %v3972, 2
  %v4573 = vrot.slane %v3977, 2
  %v4574 = vrot.slane %v3980, 2
  %v4575 = vrot.slane %v3985, 2
  %v4576 = vrot.slane %v3988, 2
  %v4577 = vrot.slane %v3993, 2
  %v4578 = vrot.slane %v3996, 2
  %v4579 = vrot.slane %v4001, 2
  %v4580 = vrot.slane %v4004, 2
  %v4581 = vrot.slane %v4009, 2
  %v4582 = vrot.slane %v4012, 2
  %v4583 = vrot.slane %v4017, 2
  %v4584 = vrot.slane %v4020, 2
  %v4585 = vrot.slane %v4025, 2
  %v4586 = vrot.slane %v4028, 2
  %v4587 = vrot.slane %v4033, 2
  %v4588 = vrot.slane %v4036, 2
  %v4589 = vrot.slane %v4041, 2
  %v4590 = vrot.slane %v4044, 2
  %v4591 = vrot.slane %v4049, 2
  %v4592 = vrot.slane %v4052, 2
  %v4593 = vrot.slane %v4057, 2
  %v4594 = vrot.slane %v4060, 2
  %v4595 = vrot.slane %v4065, 2
  %v4596 = vrot.slane %v4068, 2
  %v4597 = vrot.slane %v4073, 2
  %v4598 = vrot.slane %v4076, 2
  %v4599 = vrot.slane %v4081, 2
  %v4600 = vrot.slane %v4084, 2
  %v4601 = vrot.slane %v4089, 2
  %v4602 = vrot.slane %v4092, 2
  %v4603 = vrot.slane %v4097, 2
  %v4604 = vrot.slane %v4100, 2
  %v4605 = vrot.slane %v4105, 2
  %v4606 = vrot.slane %v4108, 2
  %v4607 = vrot.slane %v4113, 2
  %v4608 = vrot.slane %v4116, 2
  %v4609 = vrot.slane %v4121, 2
  %v4610 = vrot.slane %v4124, 2
  %v4611 = vrot.slane %v4129, 2
  %v4612 = vrot.slane %v4132, 2
  %v4613 = vrot.slane %v4137, 2
  %v4614 = vrot.slane %v4140, 2
  %v4615 = vrot.slane %v4145, 2
  %v4616 = vrot.slane %v4148, 2
  %v4617 = vrot.slane %v4153, 2
  %v4618 = vrot.slane %v4156, 2
  %v4619 = vrot.slane %v4161, 2
  %v4620 = vrot.slane %v4164, 2
  %v4621 = vrot.slane %v4169, 2
  %v4622 = vrot.slane %v4172, 2
  %v4623 = vsel %vm2154, %v4621, %v4622
  %v4624 = vsel %vm2154, %v4620, %v4621
  %v4625 = vsel %vm2154, %v4619, %v4620
  %v4626 = vsel %vm2154, %v4618, %v4619
  %v4627 = vsel %vm2154, %v4617, %v4618
  %v4628 = vsel %vm2154, %v4616, %v4617
  %v4629 = vsel %vm2154, %v4615, %v4616
  %v4630 = vsel %vm2154, %v4614, %v4615
  %v4631 = vsel %vm2154, %v4613, %v4614
  %v4632 = vsel %vm2154, %v4612, %v4613
  %v4633 = vsel %vm2154, %v4611, %v4612
  %v4634 = vsel %vm2154, %v4610, %v4611
  %v4635 = vsel %vm2154, %v4609, %v4610
  %v4636 = vsel %vm2154, %v4608, %v4609
  %v4637 = vsel %vm2154, %v4607, %v4608
  %v4638 = vsel %vm2154, %v4606, %v4607
  %v4639 = vsel %vm2154, %v4605, %v4606
  %v4640 = vsel %vm2154, %v4604, %v4605
  %v4641 = vsel %vm2154, %v4603, %v4604
  %v4642 = vsel %vm2154, %v4602, %v4603
  %v4643 = vsel %vm2154, %v4601, %v4602
  %v4644 = vsel %vm2154, %v4600, %v4601
  %v4645 = vsel %vm2154, %v4599, %v4600
  %v4646 = vsel %vm2154, %v4598, %v4599
  %v4647 = vsel %vm2154, %v4597, %v4598
  %v4648 = vsel %vm2154, %v4596, %v4597
  %v4649 = vsel %vm2154, %v4595, %v4596
  %v4650 = vsel %vm2154, %v4594, %v4595
  %v4651 = vsel %vm2154, %v4593, %v4594
  %v4652 = vsel %vm2154, %v4592, %v4593
  %v4653 = vsel %vm2154, %v4591, %v4592
  %v4654 = vsel %vm2154, %v4590, %v4591
  %v4655 = vsel %vm2154, %v4589, %v4590
  %v4656 = vsel %vm2154, %v4588, %v4589
  %v4657 = vsel %vm2154, %v4587, %v4588
  %v4658 = vsel %vm2154, %v4586, %v4587
  %v4659 = vsel %vm2154, %v4585, %v4586
  %v4660 = vsel %vm2154, %v4584, %v4585
  %v4661 = vsel %vm2154, %v4583, %v4584
  %v4662 = vsel %vm2154, %v4582, %v4583
  %v4663 = vsel %vm2154, %v4581, %v4582
  %v4664 = vsel %vm2154, %v4580, %v4581
  %v4665 = vsel %vm2154, %v4579, %v4580
  %v4666 = vsel %vm2154, %v4578, %v4579
  %v4667 = vsel %vm2154, %v4577, %v4578
  %v4668 = vsel %vm2154, %v4576, %v4577
  %v4669 = vsel %vm2154, %v4575, %v4576
  %v4670 = vsel %vm2154, %v4574, %v4575
  %v4671 = vsel %vm2154, %v4573, %v4574
  %v4672 = vsel %vm2154, %v4572, %v4573
  %v4673 = vsel %vm2154, %v4571, %v4572
  %v4674 = vsel %vm2154, %v4570, %v4571
  %v4675 = vsel %vm2154, %v4569, %v4570
  %v4676 = vsel %vm2154, %v4568, %v4569
  %v4677 = vsel %vm2154, %v4567, %v4568
  %v4678 = vsel %vm2154, %v4566, %v4567
  %v4679 = vsel %vm2154, %v4565, %v4566
  %v4680 = vsel %vm2154, %v4564, %v4565
  %v4681 = vsel %vm2154, %v4563, %v4564
  %v4682 = vsel %vm2154, %v4562, %v4563
  %v4683 = vsel %vm2154, %v4561, %v4562
  %v4684 = vsel %vm2154, %v4560, %v4561
  %v4685 = vsel %vm2154, %v4559, %v4560
  %v4686 = vsel %vm2154, %v4558, %v4559
  %v4687 = vsel %vm2154, %v4557, %v4558
  %v4688 = vsel %vm2154, %v4556, %v4557
  %v4689 = vsel %vm2154, %v4555, %v4556
  %v4690 = vsel %vm2154, %v4554, %v4555
  %v4691 = vsel %vm2154, %v4553, %v4554
  %v4692 = vsel %vm2154, %v4552, %v4553
  %v4693 = vsel %vm2154, %v4551, %v4552
  %v4694 = vsel %vm2154, %v4550, %v4551
  %v4695 = vsel %vm2154, %v4549, %v4550
  %v4696 = vsel %vm2154, %v4548, %v4549
  %v4697 = vsel %vm2154, %v4547, %v4548
  %v4698 = vsel %vm2154, %v4546, %v4547
  %v4699 = vsel %vm2154, %v4545, %v4546
  %v4700 = vsel %vm2154, %v4544, %v4545
  %v4701 = vsel %vm2154, %v4543, %v4544
  %v4702 = vsel %vm2154, %v4542, %v4543
  %v4703 = vsel %vm2154, %v4541, %v4542
  %v4704 = vsel %vm2154, %v4540, %v4541
  %v4705 = vsel %vm2154, %v4539, %v4540
  %v4706 = vsel %vm2154, %v4538, %v4539
  %v4707 = vsel %vm2154, %v4537, %v4538
  %v4708 = vsel %vm2154, %v4536, %v4537
  %v4709 = vsel %vm2154, %v4535, %v4536
  %v4710 = vsel %vm2154, %v4534, %v4535
  %v4711 = vsel %vm2154, %v4533, %v4534
  %v4712 = vsel %vm2154, %v4532, %v4533
  %v4713 = vsel %vm2154, %v4531, %v4532
  %v4714 = vsel %vm2154, %v4530, %v4531
  %v4715 = vsel %vm2154, %v4529, %v4530
  %v4716 = vsel %vm2154, %v4528, %v4529
  %v4717 = vsel %vm2154, %v4527, %v4528
  %v4718 = vsel %vm2154, %v4526, %v4527
  %v4719 = vsel %vm2154, %v4525, %v4526
  %v4720 = vsel %vm2154, %v4524, %v4525
  %v4721 = vsel %vm2154, %v4523, %v4524
  %v4722 = vsel %vm2154, %v4522, %v4523
  %v4723 = vsel %vm2154, %v4521, %v4522
  %v4724 = vsel %vm2154, %v4520, %v4521
  %v4725 = vsel %vm2154, %v4519, %v4520
  %v4726 = vsel %vm2154, %v4518, %v4519
  %v4727 = vsel %vm2154, %v4517, %v4518
  %v4728 = vsel %vm2154, %v4516, %v4517
  %v4729 = vsel %vm2154, %v4515, %v4516
  %v4730 = vsel %vm2154, %v4514, %v4515
  %v4731 = vsel %vm2154, %v4513, %v4514
  %v4732 = vsel %vm2154, %v4512, %v4513
  %v4733 = vsel %vm2154, %v4511, %v4512
  %v4734 = vsel %vm2154, %v4622, %v4511
  %v4735 = vadd.f32 %v4399, %v4733
  %v4736 = vadd.f32 %v4400, %v4732
  %v4737 = vadd.f32 %v4401, %v4731
  %v4738 = vadd.f32 %v4402, %v4730
  %v4739 = vadd.f32 %v4403, %v4729
  %v4740 = vadd.f32 %v4404, %v4728
  %v4741 = vadd.f32 %v4405, %v4727
  %v4742 = vadd.f32 %v4406, %v4726
  %v4743 = vadd.f32 %v4407, %v4725
  %v4744 = vadd.f32 %v4408, %v4724
  %v4745 = vadd.f32 %v4409, %v4723
  %v4746 = vadd.f32 %v4410, %v4722
  %v4747 = vadd.f32 %v4411, %v4721
  %v4748 = vadd.f32 %v4412, %v4720
  %v4749 = vadd.f32 %v4413, %v4719
  %v4750 = vadd.f32 %v4414, %v4718
  %v4751 = vadd.f32 %v4415, %v4717
  %v4752 = vadd.f32 %v4416, %v4716
  %v4753 = vadd.f32 %v4417, %v4715
  %v4754 = vadd.f32 %v4418, %v4714
  %v4755 = vadd.f32 %v4419, %v4713
  %v4756 = vadd.f32 %v4420, %v4712
  %v4757 = vadd.f32 %v4421, %v4711
  %v4758 = vadd.f32 %v4422, %v4710
  %v4759 = vadd.f32 %v4423, %v4709
  %v4760 = vadd.f32 %v4424, %v4708
  %v4761 = vadd.f32 %v4425, %v4707
  %v4762 = vadd.f32 %v4426, %v4706
  %v4763 = vadd.f32 %v4427, %v4705
  %v4764 = vadd.f32 %v4428, %v4704
  %v4765 = vadd.f32 %v4429, %v4703
  %v4766 = vadd.f32 %v4430, %v4702
  %v4767 = vadd.f32 %v4431, %v4701
  %v4768 = vadd.f32 %v4432, %v4700
  %v4769 = vadd.f32 %v4433, %v4699
  %v4770 = vadd.f32 %v4434, %v4698
  %v4771 = vadd.f32 %v4435, %v4697
  %v4772 = vadd.f32 %v4436, %v4696
  %v4773 = vadd.f32 %v4437, %v4695
  %v4774 = vadd.f32 %v4438, %v4694
  %v4775 = vadd.f32 %v4439, %v4693
  %v4776 = vadd.f32 %v4440, %v4692
  %v4777 = vadd.f32 %v4441, %v4691
  %v4778 = vadd.f32 %v4442, %v4690
  %v4779 = vadd.f32 %v4443, %v4689
  %v4780 = vadd.f32 %v4444, %v4688
  %v4781 = vadd.f32 %v4445, %v4687
  %v4782 = vadd.f32 %v4446, %v4686
  %v4783 = vadd.f32 %v4447, %v4685
  %v4784 = vadd.f32 %v4448, %v4684
  %v4785 = vadd.f32 %v4449, %v4683
  %v4786 = vadd.f32 %v4450, %v4682
  %v4787 = vadd.f32 %v4451, %v4681
  %v4788 = vadd.f32 %v4452, %v4680
  %v4789 = vadd.f32 %v4453, %v4679
  %v4790 = vadd.f32 %v4454, %v4678
  %v4791 = vadd.f32 %v4455, %v4677
  %v4792 = vadd.f32 %v4456, %v4676
  %v4793 = vadd.f32 %v4457, %v4675
  %v4794 = vadd.f32 %v4458, %v4674
  %v4795 = vadd.f32 %v4459, %v4673
  %v4796 = vadd.f32 %v4460, %v4672
  %v4797 = vadd.f32 %v4461, %v4671
  %v4798 = vadd.f32 %v4462, %v4670
  %v4799 = vadd.f32 %v4463, %v4669
  %v4800 = vadd.f32 %v4464, %v4668
  %v4801 = vadd.f32 %v4465, %v4667
  %v4802 = vadd.f32 %v4466, %v4666
  %v4803 = vadd.f32 %v4467, %v4665
  %v4804 = vadd.f32 %v4468, %v4664
  %v4805 = vadd.f32 %v4469, %v4663
  %v4806 = vadd.f32 %v4470, %v4662
  %v4807 = vadd.f32 %v4471, %v4661
  %v4808 = vadd.f32 %v4472, %v4660
  %v4809 = vadd.f32 %v4473, %v4659
  %v4810 = vadd.f32 %v4474, %v4658
  %v4811 = vadd.f32 %v4475, %v4657
  %v4812 = vadd.f32 %v4476, %v4656
  %v4813 = vadd.f32 %v4477, %v4655
  %v4814 = vadd.f32 %v4478, %v4654
  %v4815 = vadd.f32 %v4479, %v4653
  %v4816 = vadd.f32 %v4480, %v4652
  %v4817 = vadd.f32 %v4481, %v4651
  %v4818 = vadd.f32 %v4482, %v4650
  %v4819 = vadd.f32 %v4483, %v4649
  %v4820 = vadd.f32 %v4484, %v4648
  %v4821 = vadd.f32 %v4485, %v4647
  %v4822 = vadd.f32 %v4486, %v4646
  %v4823 = vadd.f32 %v4487, %v4645
  %v4824 = vadd.f32 %v4488, %v4644
  %v4825 = vadd.f32 %v4489, %v4643
  %v4826 = vadd.f32 %v4490, %v4642
  %v4827 = vadd.f32 %v4491, %v4641
  %v4828 = vadd.f32 %v4492, %v4640
  %v4829 = vadd.f32 %v4493, %v4639
  %v4830 = vadd.f32 %v4494, %v4638
  %v4831 = vadd.f32 %v4495, %v4637
  %v4832 = vadd.f32 %v4496, %v4636
  %v4833 = vadd.f32 %v4497, %v4635
  %v4834 = vadd.f32 %v4498, %v4634
  %v4835 = vadd.f32 %v4499, %v4633
  %v4836 = vadd.f32 %v4500, %v4632
  %v4837 = vadd.f32 %v4501, %v4631
  %v4838 = vadd.f32 %v4502, %v4630
  %v4839 = vadd.f32 %v4503, %v4629
  %v4840 = vadd.f32 %v4504, %v4628
  %v4841 = vadd.f32 %v4505, %v4627
  %v4842 = vadd.f32 %v4506, %v4626
  %v4843 = vadd.f32 %v4507, %v4625
  %v4844 = vadd.f32 %v4508, %v4624
  %v4845 = vadd.f32 %v4509, %v4623
  %v4846 = vadd.f32 %v4510, %v4734
  %v4847 = vld [vmem:[#allocation2] sm:$0xff]
  %v4848 = vld [vmem:[#allocation2 + $0x8] sm:$0xff]
  %v4849 = vld [vmem:[#allocation2 + $0x10] sm:$0xff]
  %v4850 = vld [vmem:[#allocation2 + $0x18] sm:$0xff]
  %v4851 = vld [vmem:[#allocation2 + $0x20] sm:$0xff]
  %v4852 = vld [vmem:[#allocation2 + $0x28] sm:$0xff]
  %v4853 = vld [vmem:[#allocation2 + $0x30] sm:$0xff]
  %v4854 = vld [vmem:[#allocation2 + $0x38] sm:$0xff]
  %v4855 = vld [vmem:[#allocation2 + $0x40] sm:$0xff]
  %v4856 = vld [vmem:[#allocation2 + $0x48] sm:$0xff]
  %v4857 = vld [vmem:[#allocation2 + $0x50] sm:$0xff]
  %v4858 = vld [vmem:[#allocation2 + $0x58] sm:$0xff]
  %v4859 = vld [vmem:[#allocation2 + $0x60] sm:$0xff]
  %v4860 = vld [vmem:[#allocation2 + $0x68] sm:$0xff]
  %v4861 = vld [vmem:[#allocation2 + $0x70] sm:$0xff]
  %v4862 = vld [vmem:[#allocation2 + $0x78] sm:$0xff]
  %v4863 = vld [vmem:[#allocation2 + $0x80] sm:$0xff]
  %v4864 = vld [vmem:[#allocation2 + $0x88] sm:$0xff]
  %v4865 = vld [vmem:[#allocation2 + $0x90] sm:$0xff]
  %v4866 = vld [vmem:[#allocation2 + $0x98] sm:$0xff]
  %v4867 = vld [vmem:[#allocation2 + $0xa0] sm:$0xff]
  %v4868 = vld [vmem:[#allocation2 + $0xa8] sm:$0xff]
  %v4869 = vld [vmem:[#allocation2 + $0xb0] sm:$0xff]
  %v4870 = vld [vmem:[#allocation2 + $0xb8] sm:$0xff]
  %v4871 = vld [vmem:[#allocation2 + $0xc0] sm:$0xff]
  %v4872 = vld [vmem:[#allocation2 + $0xc8] sm:$0xff]
  %v4873 = vld [vmem:[#allocation2 + $0xd0] sm:$0xff]
  %v4874 = vld [vmem:[#allocation2 + $0xd8] sm:$0xff]
  %v4875 = vld [vmem:[#allocation2 + $0xe0] sm:$0xff]
  %v4876 = vld [vmem:[#allocation2 + $0xe8] sm:$0xff]
  %v4877 = vld [vmem:[#allocation2 + $0xf0] sm:$0xff]
  %v4878 = vld [vmem:[#allocation2 + $0xf8] sm:$0xff]
  %v4879 = vld [vmem:[#allocation2 + $0x100] sm:$0xff]
  %v4880 = vld [vmem:[#allocation2 + $0x108] sm:$0xff]
  %v4881 = vld [vmem:[#allocation2 + $0x110] sm:$0xff]
  %v4882 = vld [vmem:[#allocation2 + $0x118] sm:$0xff]
  %v4883 = vld [vmem:[#allocation2 + $0x120] sm:$0xff]
  %v4884 = vld [vmem:[#allocation2 + $0x128] sm:$0xff]
  %v4885 = vld [vmem:[#allocation2 + $0x130] sm:$0xff]
  %v4886 = vld [vmem:[#allocation2 + $0x138] sm:$0xff]
  %v4887 = vld [vmem:[#allocation2 + $0x140] sm:$0xff]
  %v4888 = vld [vmem:[#allocation2 + $0x148] sm:$0xff]
  %v4889 = vld [vmem:[#allocation2 + $0x150] sm:$0xff]
  %v4890 = vld [vmem:[#allocation2 + $0x158] sm:$0xff]
  %v4891 = vld [vmem:[#allocation2 + $0x160] sm:$0xff]
  %v4892 = vld [vmem:[#allocation2 + $0x168] sm:$0xff]
  %v4893 = vld [vmem:[#allocation2 + $0x170] sm:$0xff]
  %v4894 = vld [vmem:[#allocation2 + $0x178] sm:$0xff]
  %v4895 = vld [vmem:[#allocation2 + $0x180] sm:$0xff]
  %v4896 = vld [vmem:[#allocation2 + $0x188] sm:$0xff]
  %v4897 = vld [vmem:[#allocation2 + $0x190] sm:$0xff]
  %v4898 = vld [vmem:[#allocation2 + $0x198] sm:$0xff]
  %v4899 = vld [vmem:[#allocation2 + $0x1a0] sm:$0xff]
  %v4900 = vld [vmem:[#allocation2 + $0x1a8] sm:$0xff]
  %v4901 = vld [vmem:[#allocation2 + $0x1b0] sm:$0xff]
  %v4902 = vld [vmem:[#allocation2 + $0x1b8] sm:$0xff]
  %v4903 = vld [vmem:[#allocation2 + $0x1c0] sm:$0xff]
  %v4904 = vld [vmem:[#allocation2 + $0x1c8] sm:$0xff]
  %v4905 = vld [vmem:[#allocation2 + $0x1d0] sm:$0xff]
  %v4906 = vld [vmem:[#allocation2 + $0x1d8] sm:$0xff]
  %v4907 = vld [vmem:[#allocation2 + $0x1e0] sm:$0xff]
  %v4908 = vld [vmem:[#allocation2 + $0x1e8] sm:$0xff]
  %v4909 = vld [vmem:[#allocation2 + $0x1f0] sm:$0xff]
  %v4910 = vld [vmem:[#allocation2 + $0x1f8] sm:$0xff]
  %v4911 = vld [vmem:[#allocation2 + $0x200] sm:$0xff]
  %v4912 = vld [vmem:[#allocation2 + $0x208] sm:$0xff]
  %v4913 = vld [vmem:[#allocation2 + $0x210] sm:$0xff]
  %v4914 = vld [vmem:[#allocation2 + $0x218] sm:$0xff]
  %v4915 = vld [vmem:[#allocation2 + $0x220] sm:$0xff]
  %v4916 = vld [vmem:[#allocation2 + $0x228] sm:$0xff]
  %v4917 = vld [vmem:[#allocation2 + $0x230] sm:$0xff]
  %v4918 = vld [vmem:[#allocation2 + $0x238] sm:$0xff]
  %v4919 = vld [vmem:[#allocation2 + $0x240] sm:$0xff]
  %v4920 = vld [vmem:[#allocation2 + $0x248] sm:$0xff]
  %v4921 = vld [vmem:[#allocation2 + $0x250] sm:$0xff]
  %v4922 = vld [vmem:[#allocation2 + $0x258] sm:$0xff]
  %v4923 = vld [vmem:[#allocation2 + $0x260] sm:$0xff]
  %v4924 = vld [vmem:[#allocation2 + $0x268] sm:$0xff]
  %v4925 = vld [vmem:[#allocation2 + $0x270] sm:$0xff]
  %v4926 = vld [vmem:[#allocation2 + $0x278] sm:$0xff]
  %v4927 = vld [vmem:[#allocation2 + $0x280] sm:$0xff]
  %v4928 = vld [vmem:[#allocation2 + $0x288] sm:$0xff]
  %v4929 = vld [vmem:[#allocation2 + $0x290] sm:$0xff]
  %v4930 = vld [vmem:[#allocation2 + $0x298] sm:$0xff]
  %v4931 = vld [vmem:[#allocation2 + $0x2a0] sm:$0xff]
  %v4932 = vld [vmem:[#allocation2 + $0x2a8] sm:$0xff]
  %v4933 = vld [vmem:[#allocation2 + $0x2b0] sm:$0xff]
  %v4934 = vld [vmem:[#allocation2 + $0x2b8] sm:$0xff]
  %v4935 = vld [vmem:[#allocation2 + $0x2c0] sm:$0xff]
  %v4936 = vld [vmem:[#allocation2 + $0x2c8] sm:$0xff]
  %v4937 = vld [vmem:[#allocation2 + $0x2d0] sm:$0xff]
  %v4938 = vld [vmem:[#allocation2 + $0x2d8] sm:$0xff]
  %v4939 = vld [vmem:[#allocation2 + $0x2e0] sm:$0xff]
  %v4940 = vld [vmem:[#allocation2 + $0x2e8] sm:$0xff]
  %v4941 = vld [vmem:[#allocation2 + $0x2f0] sm:$0xff]
  %v4942 = vld [vmem:[#allocation2 + $0x2f8] sm:$0xff]
  %v4943 = vld [vmem:[#allocation2 + $0x300] sm:$0xff]
  %v4944 = vld [vmem:[#allocation2 + $0x308] sm:$0xff]
  %v4945 = vld [vmem:[#allocation2 + $0x310] sm:$0xff]
  %v4946 = vld [vmem:[#allocation2 + $0x318] sm:$0xff]
  %v4947 = vld [vmem:[#allocation2 + $0x320] sm:$0xff]
  %v4948 = vld [vmem:[#allocation2 + $0x328] sm:$0xff]
  %v4949 = vld [vmem:[#allocation2 + $0x330] sm:$0xff]
  %v4950 = vld [vmem:[#allocation2 + $0x338] sm:$0xff]
  %v4951 = vld [vmem:[#allocation2 + $0x340] sm:$0xff]
  %v4952 = vld [vmem:[#allocation2 + $0x348] sm:$0xff]
  %v4953 = vld [vmem:[#allocation2 + $0x350] sm:$0xff]
  %v4954 = vld [vmem:[#allocation2 + $0x358] sm:$0xff]
  %v4955 = vld [vmem:[#allocation2 + $0x360] sm:$0xff]
  %v4956 = vld [vmem:[#allocation2 + $0x368] sm:$0xff]
  %v4957 = vld [vmem:[#allocation2 + $0x370] sm:$0xff]
  %v4958 = vld [vmem:[#allocation2 + $0x378] sm:$0xff]
  %v4959 = vadd.f32 %v4847, %v4735
  %v4960 = vadd.f32 %v4848, %v4736
  %v4961 = vadd.f32 %v4849, %v4737
  %v4962 = vadd.f32 %v4850, %v4738
  %v4963 = vadd.f32 %v4851, %v4739
  %v4964 = vadd.f32 %v4852, %v4740
  %v4965 = vadd.f32 %v4853, %v4741
  %v4966 = vadd.f32 %v4854, %v4742
  %v4967 = vadd.f32 %v4855, %v4743
  %v4968 = vadd.f32 %v4856, %v4744
  %v4969 = vadd.f32 %v4857, %v4745
  %v4970 = vadd.f32 %v4858, %v4746
  %v4971 = vadd.f32 %v4859, %v4747
  %v4972 = vadd.f32 %v4860, %v4748
  %v4973 = vadd.f32 %v4861, %v4749
  %v4974 = vadd.f32 %v4862, %v4750
  %v4975 = vadd.f32 %v4863, %v4751
  %v4976 = vadd.f32 %v4864, %v4752
  %v4977 = vadd.f32 %v4865, %v4753
  %v4978 = vadd.f32 %v4866, %v4754
  %v4979 = vadd.f32 %v4867, %v4755
  %v4980 = vadd.f32 %v4868, %v4756
  %v4981 = vadd.f32 %v4869, %v4757
  %v4982 = vadd.f32 %v4870, %v4758
  %v4983 = vadd.f32 %v4871, %v4759
  %v4984 = vadd.f32 %v4872, %v4760
  %v4985 = vadd.f32 %v4873, %v4761
  %v4986 = vadd.f32 %v4874, %v4762
  %v4987 = vadd.f32 %v4875, %v4763
  %v4988 = vadd.f32 %v4876, %v4764
  %v4989 = vadd.f32 %v4877, %v4765
  %v4990 = vadd.f32 %v4878, %v4766
  %v4991 = vadd.f32 %v4879, %v4767
  %v4992 = vadd.f32 %v4880, %v4768
  %v4993 = vadd.f32 %v4881, %v4769
  %v4994 = vadd.f32 %v4882, %v4770
  %v4995 = vadd.f32 %v4883, %v4771
  %v4996 = vadd.f32 %v4884, %v4772
  %v4997 = vadd.f32 %v4885, %v4773
  %v4998 = vadd.f32 %v4886, %v4774
  %v4999 = vadd.f32 %v4887, %v4775
  %v5000 = vadd.f32 %v4888, %v4776
  %v5001 = vadd.f32 %v4889, %v4777
  %v5002 = vadd.f32 %v4890, %v4778
  %v5003 = vadd.f32 %v4891, %v4779
  %v5004 = vadd.f32 %v4892, %v4780
  %v5005 = vadd.f32 %v4893, %v4781
  %v5006 = vadd.f32 %v4894, %v4782
  %v5007 = vadd.f32 %v4895, %v4783
  %v5008 = vadd.f32 %v4896, %v4784
  %v5009 = vadd.f32 %v4897, %v4785
  %v5010 = vadd.f32 %v4898, %v4786
  %v5011 = vadd.f32 %v4899, %v4787
  %v5012 = vadd.f32 %v4900, %v4788
  %v5013 = vadd.f32 %v4901, %v4789
  %v5014 = vadd.f32 %v4902, %v4790
  %v5015 = vadd.f32 %v4903, %v4791
  %v5016 = vadd.f32 %v4904, %v4792
  %v5017 = vadd.f32 %v4905, %v4793
  %v5018 = vadd.f32 %v4906, %v4794
  %v5019 = vadd.f32 %v4907, %v4795
  %v5020 = vadd.f32 %v4908, %v4796
  %v5021 = vadd.f32 %v4909, %v4797
  %v5022 = vadd.f32 %v4910, %v4798
  %v5023 = vadd.f32 %v4911, %v4799
  %v5024 = vadd.f32 %v4912, %v4800
  %v5025 = vadd.f32 %v4913, %v4801
  %v5026 = vadd.f32 %v4914, %v4802
  %v5027 = vadd.f32 %v4915, %v4803
  %v5028 = vadd.f32 %v4916, %v4804
  %v5029 = vadd.f32 %v4917, %v4805
  %v5030 = vadd.f32 %v4918, %v4806
  %v5031 = vadd.f32 %v4919, %v4807
  %v5032 = vadd.f32 %v4920, %v4808
  %v5033 = vadd.f32 %v4921, %v4809
  %v5034 = vadd.f32 %v4922, %v4810
  %v5035 = vadd.f32 %v4923, %v4811
  %v5036 = vadd.f32 %v4924, %v4812
  %v5037 = vadd.f32 %v4925, %v4813
  %v5038 = vadd.f32 %v4926, %v4814
  %v5039 = vadd.f32 %v4927, %v4815
  %v5040 = vadd.f32 %v4928, %v4816
  %v5041 = vadd.f32 %v4929, %v4817
  %v5042 = vadd.f32 %v4930, %v4818
  %v5043 = vadd.f32 %v4931, %v4819
  %v5044 = vadd.f32 %v4932, %v4820
  %v5045 = vadd.f32 %v4933, %v4821
  %v5046 = vadd.f32 %v4934, %v4822
  %v5047 = vadd.f32 %v4935, %v4823
  %v5048 = vadd.f32 %v4936, %v4824
  %v5049 = vadd.f32 %v4937, %v4825
  %v5050 = vadd.f32 %v4938, %v4826
  %v5051 = vadd.f32 %v4939, %v4827
  %v5052 = vadd.f32 %v4940, %v4828
  %v5053 = vadd.f32 %v4941, %v4829
  %v5054 = vadd.f32 %v4942, %v4830
  %v5055 = vadd.f32 %v4943, %v4831
  %v5056 = vadd.f32 %v4944, %v4832
  %v5057 = vadd.f32 %v4945, %v4833
  %v5058 = vadd.f32 %v4946, %v4834
  %v5059 = vadd.f32 %v4947, %v4835
  %v5060 = vadd.f32 %v4948, %v4836
  %v5061 = vadd.f32 %v4949, %v4837
  %v5062 = vadd.f32 %v4950, %v4838
  %v5063 = vadd.f32 %v4951, %v4839
  %v5064 = vadd.f32 %v4952, %v4840
  %v5065 = vadd.f32 %v4953, %v4841
  %v5066 = vadd.f32 %v4954, %v4842
  %v5067 = vadd.f32 %v4955, %v4843
  %v5068 = vadd.f32 %v4956, %v4844
  %v5069 = vadd.f32 %v4957, %v4845
  %v5070 = vadd.f32 %v4958, %v4846
  %5071 = vst [vmem:[#allocation2] sm:$0xff] %v4959
  %5072 = vst [vmem:[#allocation2 + $0x8] sm:$0xff] %v4960
  %5073 = vst [vmem:[#allocation2 + $0x10] sm:$0xff] %v4961
  %5074 = vst [vmem:[#allocation2 + $0x18] sm:$0xff] %v4962
  %5075 = vst [vmem:[#allocation2 + $0x20] sm:$0xff] %v4963
  %5076 = vst [vmem:[#allocation2 + $0x28] sm:$0xff] %v4964
  %5077 = vst [vmem:[#allocation2 + $0x30] sm:$0xff] %v4965
  %5078 = vst [vmem:[#allocation2 + $0x38] sm:$0xff] %v4966
  %5079 = vst [vmem:[#allocation2 + $0x40] sm:$0xff] %v4967
  %5080 = vst [vmem:[#allocation2 + $0x48] sm:$0xff] %v4968
  %5081 = vst [vmem:[#allocation2 + $0x50] sm:$0xff] %v4969
  %5082 = vst [vmem:[#allocation2 + $0x58] sm:$0xff] %v4970
  %5083 = vst [vmem:[#allocation2 + $0x60] sm:$0xff] %v4971
  %5084 = vst [vmem:[#allocation2 + $0x68] sm:$0xff] %v4972
  %5085 = vst [vmem:[#allocation2 + $0x70] sm:$0xff] %v4973
  %5086 = vst [vmem:[#allocation2 + $0x78] sm:$0xff] %v4974
  %5087 = vst [vmem:[#allocation2 + $0x80] sm:$0xff] %v4975
  %5088 = vst [vmem:[#allocation2 + $0x88] sm:$0xff] %v4976
  %5089 = vst [vmem:[#allocation2 + $0x90] sm:$0xff] %v4977
  %5090 = vst [vmem:[#allocation2 + $0x98] sm:$0xff] %v4978
  %5091 = vst [vmem:[#allocation2 + $0xa0] sm:$0xff] %v4979
  %5092 = vst [vmem:[#allocation2 + $0xa8] sm:$0xff] %v4980
  %5093 = vst [vmem:[#allocation2 + $0xb0] sm:$0xff] %v4981
  %5094 = vst [vmem:[#allocation2 + $0xb8] sm:$0xff] %v4982
  %5095 = vst [vmem:[#allocation2 + $0xc0] sm:$0xff] %v4983
  %5096 = vst [vmem:[#allocation2 + $0xc8] sm:$0xff] %v4984
  %5097 = vst [vmem:[#allocation2 + $0xd0] sm:$0xff] %v4985
  %5098 = vst [vmem:[#allocation2 + $0xd8] sm:$0xff] %v4986
  %5099 = vst [vmem:[#allocation2 + $0xe0] sm:$0xff] %v4987
  %5100 = vst [vmem:[#allocation2 + $0xe8] sm:$0xff] %v4988
  %5101 = vst [vmem:[#allocation2 + $0xf0] sm:$0xff] %v4989
  %5102 = vst [vmem:[#allocation2 + $0xf8] sm:$0xff] %v4990
  %5103 = vst [vmem:[#allocation2 + $0x100] sm:$0xff] %v4991
  %5104 = vst [vmem:[#allocation2 + $0x108] sm:$0xff] %v4992
  %5105 = vst [vmem:[#allocation2 + $0x110] sm:$0xff] %v4993
  %5106 = vst [vmem:[#allocation2 + $0x118] sm:$0xff] %v4994
  %5107 = vst [vmem:[#allocation2 + $0x120] sm:$0xff] %v4995
  %5108 = vst [vmem:[#allocation2 + $0x128] sm:$0xff] %v4996
  %5109 = vst [vmem:[#allocation2 + $0x130] sm:$0xff] %v4997
  %5110 = vst [vmem:[#allocation2 + $0x138] sm:$0xff] %v4998
  %5111 = vst [vmem:[#allocation2 + $0x140] sm:$0xff] %v4999
  %5112 = vst [vmem:[#allocation2 + $0x148] sm:$0xff] %v5000
  %5113 = vst [vmem:[#allocation2 + $0x150] sm:$0xff] %v5001
  %5114 = vst [vmem:[#allocation2 + $0x158] sm:$0xff] %v5002
  %5115 = vst [vmem:[#allocation2 + $0x160] sm:$0xff] %v5003
  %5116 = vst [vmem:[#allocation2 + $0x168] sm:$0xff] %v5004
  %5117 = vst [vmem:[#allocation2 + $0x170] sm:$0xff] %v5005
  %5118 = vst [vmem:[#allocation2 + $0x178] sm:$0xff] %v5006
  %5119 = vst [vmem:[#allocation2 + $0x180] sm:$0xff] %v5007
  %5120 = vst [vmem:[#allocation2 + $0x188] sm:$0xff] %v5008
  %5121 = vst [vmem:[#allocation2 + $0x190] sm:$0xff] %v5009
  %5122 = vst [vmem:[#allocation2 + $0x198] sm:$0xff] %v5010
  %5123 = vst [vmem:[#allocation2 + $0x1a0] sm:$0xff] %v5011
  %5124 = vst [vmem:[#allocation2 + $0x1a8] sm:$0xff] %v5012
  %5125 = vst [vmem:[#allocation2 + $0x1b0] sm:$0xff] %v5013
  %5126 = vst [vmem:[#allocation2 + $0x1b8] sm:$0xff] %v5014
  %5127 = vst [vmem:[#allocation2 + $0x1c0] sm:$0xff] %v5015
  %5128 = vst [vmem:[#allocation2 + $0x1c8] sm:$0xff] %v5016
  %5129 = vst [vmem:[#allocation2 + $0x1d0] sm:$0xff] %v5017
  %5130 = vst [vmem:[#allocation2 + $0x1d8] sm:$0xff] %v5018
  %5131 = vst [vmem:[#allocation2 + $0x1e0] sm:$0xff] %v5019
  %5132 = vst [vmem:[#allocation2 + $0x1e8] sm:$0xff] %v5020
  %5133 = vst [vmem:[#allocation2 + $0x1f0] sm:$0xff] %v5021
  %5134 = vst [vmem:[#allocation2 + $0x1f8] sm:$0xff] %v5022
  %5135 = vst [vmem:[#allocation2 + $0x200] sm:$0xff] %v5023
  %5136 = vst [vmem:[#allocation2 + $0x208] sm:$0xff] %v5024
  %5137 = vst [vmem:[#allocation2 + $0x210] sm:$0xff] %v5025
  %5138 = vst [vmem:[#allocation2 + $0x218] sm:$0xff] %v5026
  %5139 = vst [vmem:[#allocation2 + $0x220] sm:$0xff] %v5027
  %5140 = vst [vmem:[#allocation2 + $0x228] sm:$0xff] %v5028
  %5141 = vst [vmem:[#allocation2 + $0x230] sm:$0xff] %v5029
  %5142 = vst [vmem:[#allocation2 + $0x238] sm:$0xff] %v5030
  %5143 = vst [vmem:[#allocation2 + $0x240] sm:$0xff] %v5031
  %5144 = vst [vmem:[#allocation2 + $0x248] sm:$0xff] %v5032
  %5145 = vst [vmem:[#allocation2 + $0x250] sm:$0xff] %v5033
  %5146 = vst [vmem:[#allocation2 + $0x258] sm:$0xff] %v5034
  %5147 = vst [vmem:[#allocation2 + $0x260] sm:$0xff] %v5035
  %5148 = vst [vmem:[#allocation2 + $0x268] sm:$0xff] %v5036
  %5149 = vst [vmem:[#allocation2 + $0x270] sm:$0xff] %v5037
  %5150 = vst [vmem:[#allocation2 + $0x278] sm:$0xff] %v5038
  %5151 = vst [vmem:[#allocation2 + $0x280] sm:$0xff] %v5039
  %5152 = vst [vmem:[#allocation2 + $0x288] sm:$0xff] %v5040
  %5153 = vst [vmem:[#allocation2 + $0x290] sm:$0xff] %v5041
  %5154 = vst [vmem:[#allocation2 + $0x298] sm:$0xff] %v5042
  %5155 = vst [vmem:[#allocation2 + $0x2a0] sm:$0xff] %v5043
  %5156 = vst [vmem:[#allocation2 + $0x2a8] sm:$0xff] %v5044
  %5157 = vst [vmem:[#allocation2 + $0x2b0] sm:$0xff] %v5045
  %5158 = vst [vmem:[#allocation2 + $0x2b8] sm:$0xff] %v5046
  %5159 = vst [vmem:[#allocation2 + $0x2c0] sm:$0xff] %v5047
  %5160 = vst [vmem:[#allocation2 + $0x2c8] sm:$0xff] %v5048
  %5161 = vst [vmem:[#allocation2 + $0x2d0] sm:$0xff] %v5049
  %5162 = vst [vmem:[#allocation2 + $0x2d8] sm:$0xff] %v5050
  %5163 = vst [vmem:[#allocation2 + $0x2e0] sm:$0xff] %v5051
  %5164 = vst [vmem:[#allocation2 + $0x2e8] sm:$0xff] %v5052
  %5165 = vst [vmem:[#allocation2 + $0x2f0] sm:$0xff] %v5053
  %5166 = vst [vmem:[#allocation2 + $0x2f8] sm:$0xff] %v5054
  %5167 = vst [vmem:[#allocation2 + $0x300] sm:$0xff] %v5055
  %5168 = vst [vmem:[#allocation2 + $0x308] sm:$0xff] %v5056
  %5169 = vst [vmem:[#allocation2 + $0x310] sm:$0xff] %v5057
  %5170 = vst [vmem:[#allocation2 + $0x318] sm:$0xff] %v5058
  %5171 = vst [vmem:[#allocation2 + $0x320] sm:$0xff] %v5059
  %5172 = vst [vmem:[#allocation2 + $0x328] sm:$0xff] %v5060
  %5173 = vst [vmem:[#allocation2 + $0x330] sm:$0xff] %v5061
  %5174 = vst [vmem:[#allocation2 + $0x338] sm:$0xff] %v5062
  %5175 = vst [vmem:[#allocation2 + $0x340] sm:$0xff] %v5063
  %5176 = vst [vmem:[#allocation2 + $0x348] sm:$0xff] %v5064
  %5177 = vst [vmem:[#allocation2 + $0x350] sm:$0xff] %v5065
  %5178 = vst [vmem:[#allocation2 + $0x358] sm:$0xff] %v5066
  %5179 = vst [vmem:[#allocation2 + $0x360] sm:$0xff] %v5067
  %5180 = vst [vmem:[#allocation2 + $0x368] sm:$0xff] %v5068
  %5181 = vst [vmem:[#allocation2 + $0x370] sm:$0xff] %v5069
  %5182 = vst [vmem:[#allocation2 + $0x378] sm:$0xff] %v5070
  %s5183 = scalar_lea.vmem %s0, 32
  %v5184 = vld [vmem:[%s5183] sm:$0xf]
  %v5185 = vld [vmem:[%s5183 + $0x4] sm:$0xf]
  %v5186 = vld [vmem:[%s5183 + $0x8] sm:$0xf]
  %v5187 = vld [vmem:[%s5183 + $0xc] sm:$0xf]
  %v5188 = vld [vmem:[%s5183 + $0x10] sm:$0xf]
  %v5189 = vld [vmem:[%s5183 + $0x14] sm:$0xf]
  %v5190 = vld [vmem:[%s5183 + $0x18] sm:$0xf]
  %v5191 = vld [vmem:[%s5183 + $0x1c] sm:$0xf]
  %v5192 = vld [vmem:[%s5183 + $0x20] sm:$0xf]
  %v5193 = vld [vmem:[%s5183 + $0x24] sm:$0xf]
  %v5194 = vld [vmem:[%s5183 + $0x28] sm:$0xf]
  %v5195 = vld [vmem:[%s5183 + $0x2c] sm:$0xf]
  %v5196 = vld [vmem:[%s5183 + $0x30] sm:$0xf]
  %v5197 = vld [vmem:[%s5183 + $0x34] sm:$0xf]
  %v5198 = vld [vmem:[%s5183 + $0x38] sm:$0xf]
  %v5199 = vld [vmem:[%s5183 + $0x3c] sm:$0xf]
  %v5200 = vld [vmem:[%s5183 + $0x40] sm:$0xf]
  %v5201 = vld [vmem:[%s5183 + $0x44] sm:$0xf]
  %v5202 = vld [vmem:[%s5183 + $0x48] sm:$0xf]
  %v5203 = vld [vmem:[%s5183 + $0x4c] sm:$0xf]
  %v5204 = vld [vmem:[%s5183 + $0x50] sm:$0xf]
  %v5205 = vld [vmem:[%s5183 + $0x54] sm:$0xf]
  %v5206 = vld [vmem:[%s5183 + $0x58] sm:$0xf]
  %v5207 = vld [vmem:[%s5183 + $0x5c] sm:$0xf]
  %v5208 = vld [vmem:[%s5183 + $0x60] sm:$0xf]
  %v5209 = vld [vmem:[%s5183 + $0x64] sm:$0xf]
  %v5210 = vld [vmem:[%s5183 + $0x68] sm:$0xf]
  %v5211 = vld [vmem:[%s5183 + $0x6c] sm:$0xf]
  %v5212 = vld [vmem:[%s5183 + $0x70] sm:$0xf]
  %v5213 = vld [vmem:[%s5183 + $0x74] sm:$0xf]
  %v5214 = vld [vmem:[%s5183 + $0x78] sm:$0xf]
  %v5215 = vld [vmem:[%s5183 + $0x7c] sm:$0xf]
  %v5216 = vld [vmem:[%s5183 + $0x80] sm:$0xf]
  %v5217 = vld [vmem:[%s5183 + $0x84] sm:$0xf]
  %v5218 = vld [vmem:[%s5183 + $0x88] sm:$0xf]
  %v5219 = vld [vmem:[%s5183 + $0x8c] sm:$0xf]
  %v5220 = vld [vmem:[%s5183 + $0x90] sm:$0xf]
  %v5221 = vld [vmem:[%s5183 + $0x94] sm:$0xf]
  %v5222 = vld [vmem:[%s5183 + $0x98] sm:$0xf]
  %v5223 = vld [vmem:[%s5183 + $0x9c] sm:$0xf]
  %v5224 = vld [vmem:[%s5183 + $0xa0] sm:$0xf]
  %v5225 = vld [vmem:[%s5183 + $0xa4] sm:$0xf]
  %v5226 = vld [vmem:[%s5183 + $0xa8] sm:$0xf]
  %v5227 = vld [vmem:[%s5183 + $0xac] sm:$0xf]
  %v5228 = vld [vmem:[%s5183 + $0xb0] sm:$0xf]
  %v5229 = vld [vmem:[%s5183 + $0xb4] sm:$0xf]
  %v5230 = vld [vmem:[%s5183 + $0xb8] sm:$0xf]
  %v5231 = vld [vmem:[%s5183 + $0xbc] sm:$0xf]
  %v5232 = vld [vmem:[%s5183 + $0xc0] sm:$0xf]
  %v5233 = vld [vmem:[%s5183 + $0xc4] sm:$0xf]
  %v5234 = vld [vmem:[%s5183 + $0xc8] sm:$0xf]
  %v5235 = vld [vmem:[%s5183 + $0xcc] sm:$0xf]
  %v5236 = vld [vmem:[%s5183 + $0xd0] sm:$0xf]
  %v5237 = vld [vmem:[%s5183 + $0xd4] sm:$0xf]
  %v5238 = vld [vmem:[%s5183 + $0xd8] sm:$0xf]
  %v5239 = vld [vmem:[%s5183 + $0xdc] sm:$0xf]
  %v5240 = vld [vmem:[%s5183 + $0xe0] sm:$0xf]
  %v5241 = vld [vmem:[%s5183 + $0xe4] sm:$0xf]
  %v5242 = vld [vmem:[%s5183 + $0xe8] sm:$0xf]
  %v5243 = vld [vmem:[%s5183 + $0xec] sm:$0xf]
  %v5244 = vld [vmem:[%s5183 + $0xf0] sm:$0xf]
  %v5245 = vld [vmem:[%s5183 + $0xf4] sm:$0xf]
  %v5246 = vld [vmem:[%s5183 + $0xf8] sm:$0xf]
  %v5247 = vld [vmem:[%s5183 + $0xfc] sm:$0xf]
  %v5248 = vld [vmem:[%s5183 + $0x100] sm:$0xf]
  %v5249 = vld [vmem:[%s5183 + $0x104] sm:$0xf]
  %v5250 = vld [vmem:[%s5183 + $0x108] sm:$0xf]
  %v5251 = vld [vmem:[%s5183 + $0x10c] sm:$0xf]
  %v5252 = vld [vmem:[%s5183 + $0x110] sm:$0xf]
  %v5253 = vld [vmem:[%s5183 + $0x114] sm:$0xf]
  %v5254 = vld [vmem:[%s5183 + $0x118] sm:$0xf]
  %v5255 = vld [vmem:[%s5183 + $0x11c] sm:$0xf]
  %v5256 = vld [vmem:[%s5183 + $0x120] sm:$0xf]
  %v5257 = vld [vmem:[%s5183 + $0x124] sm:$0xf]
  %v5258 = vld [vmem:[%s5183 + $0x128] sm:$0xf]
  %v5259 = vld [vmem:[%s5183 + $0x12c] sm:$0xf]
  %v5260 = vld [vmem:[%s5183 + $0x130] sm:$0xf]
  %v5261 = vld [vmem:[%s5183 + $0x134] sm:$0xf]
  %v5262 = vld [vmem:[%s5183 + $0x138] sm:$0xf]
  %v5263 = vld [vmem:[%s5183 + $0x13c] sm:$0xf]
  %v5264 = vld [vmem:[%s5183 + $0x140] sm:$0xf]
  %v5265 = vld [vmem:[%s5183 + $0x144] sm:$0xf]
  %v5266 = vld [vmem:[%s5183 + $0x148] sm:$0xf]
  %v5267 = vld [vmem:[%s5183 + $0x14c] sm:$0xf]
  %v5268 = vld [vmem:[%s5183 + $0x150] sm:$0xf]
  %v5269 = vld [vmem:[%s5183 + $0x154] sm:$0xf]
  %v5270 = vld [vmem:[%s5183 + $0x158] sm:$0xf]
  %v5271 = vld [vmem:[%s5183 + $0x15c] sm:$0xf]
  %v5272 = vld [vmem:[%s5183 + $0x160] sm:$0xf]
  %v5273 = vld [vmem:[%s5183 + $0x164] sm:$0xf]
  %v5274 = vld [vmem:[%s5183 + $0x168] sm:$0xf]
  %v5275 = vld [vmem:[%s5183 + $0x16c] sm:$0xf]
  %v5276 = vld [vmem:[%s5183 + $0x170] sm:$0xf]
  %v5277 = vld [vmem:[%s5183 + $0x174] sm:$0xf]
  %v5278 = vld [vmem:[%s5183 + $0x178] sm:$0xf]
  %v5279 = vld [vmem:[%s5183 + $0x17c] sm:$0xf]
  %v5280 = vld [vmem:[%s5183 + $0x180] sm:$0xf]
  %v5281 = vld [vmem:[%s5183 + $0x184] sm:$0xf]
  %v5282 = vld [vmem:[%s5183 + $0x188] sm:$0xf]
  %v5283 = vld [vmem:[%s5183 + $0x18c] sm:$0xf]
  %v5284 = vld [vmem:[%s5183 + $0x190] sm:$0xf]
  %v5285 = vld [vmem:[%s5183 + $0x194] sm:$0xf]
  %v5286 = vld [vmem:[%s5183 + $0x198] sm:$0xf]
  %v5287 = vld [vmem:[%s5183 + $0x19c] sm:$0xf]
  %v5288 = vld [vmem:[%s5183 + $0x1a0] sm:$0xf]
  %v5289 = vld [vmem:[%s5183 + $0x1a4] sm:$0xf]
  %v5290 = vld [vmem:[%s5183 + $0x1a8] sm:$0xf]
  %v5291 = vld [vmem:[%s5183 + $0x1ac] sm:$0xf]
  %v5292 = vld [vmem:[%s5183 + $0x1b0] sm:$0xf]
  %v5293 = vld [vmem:[%s5183 + $0x1b4] sm:$0xf]
  %v5294 = vld [vmem:[%s5183 + $0x1b8] sm:$0xf]
  %v5295 = vld [vmem:[%s5183 + $0x1bc] sm:$0xf]
  %s5296 = scalar_lea.vmem %s1, 384
  %v5297 = vld [vmem:[%s5296] sm:$0xff]
  %v5298 = vld [vmem:[%s5296 + $0x8] sm:$0xf]
  %v5299 = vld [vmem:[%s5296 + $0xc] sm:$0xff]
  %v5300 = vld [vmem:[%s5296 + $0x14] sm:$0xf]
  %v5301 = vld [vmem:[%s5296 + $0x18] sm:$0xff]
  %v5302 = vld [vmem:[%s5296 + $0x20] sm:$0xf]
  %v5303 = vld [vmem:[%s5296 + $0x24] sm:$0xff]
  %v5304 = vld [vmem:[%s5296 + $0x2c] sm:$0xf]
  %v5305 = vld [vmem:[%s5296 + $0x30] sm:$0xff]
  %v5306 = vld [vmem:[%s5296 + $0x38] sm:$0xf]
  %v5307 = vld [vmem:[%s5296 + $0x3c] sm:$0xff]
  %v5308 = vld [vmem:[%s5296 + $0x44] sm:$0xf]
  %v5309 = vld [vmem:[%s5296 + $0x48] sm:$0xff]
  %v5310 = vld [vmem:[%s5296 + $0x50] sm:$0xf]
  %v5311 = vld [vmem:[%s5296 + $0x54] sm:$0xff]
  %v5312 = vld [vmem:[%s5296 + $0x5c] sm:$0xf]
  %v5313 = vld [vmem:[%s5296 + $0x60] sm:$0xff]
  %v5314 = vld [vmem:[%s5296 + $0x68] sm:$0xf]
  %v5315 = vld [vmem:[%s5296 + $0x6c] sm:$0xff]
  %v5316 = vld [vmem:[%s5296 + $0x74] sm:$0xf]
  %v5317 = vld [vmem:[%s5296 + $0x78] sm:$0xff]
  %v5318 = vld [vmem:[%s5296 + $0x80] sm:$0xf]
  %v5319 = vld [vmem:[%s5296 + $0x84] sm:$0xff]
  %v5320 = vld [vmem:[%s5296 + $0x8c] sm:$0xf]
  %v5321 = vld [vmem:[%s5296 + $0x90] sm:$0xff]
  %v5322 = vld [vmem:[%s5296 + $0x98] sm:$0xf]
  %v5323 = vld [vmem:[%s5296 + $0x9c] sm:$0xff]
  %v5324 = vld [vmem:[%s5296 + $0xa4] sm:$0xf]
  %v5325 = vld [vmem:[%s5296 + $0xa8] sm:$0xff]
  %v5326 = vld [vmem:[%s5296 + $0xb0] sm:$0xf]
  %v5327 = vld [vmem:[%s5296 + $0xb4] sm:$0xff]
  %v5328 = vld [vmem:[%s5296 + $0xbc] sm:$0xf]
  %v5441 = vunpack.c.l.b16 %v5184
  %v5442 = vunpack.c.l.b16 %v5185
  %v5443 = vunpack.c.l.b16 %v5186
  %v5444 = vunpack.c.l.b16 %v5187
  %v5445 = vunpack.c.l.b16 %v5188
  %v5446 = vunpack.c.l.b16 %v5189
  %v5447 = vunpack.c.l.b16 %v5190
  %v5448 = vunpack.c.l.b16 %v5191
  %v5449 = vunpack.c.l.b16 %v5192
  %v5450 = vunpack.c.l.b16 %v5193
  %v5451 = vunpack.c.l.b16 %v5194
  %v5452 = vunpack.c.l.b16 %v5195
  %v5453 = vunpack.c.l.b16 %v5196
  %v5454 = vunpack.c.l.b16 %v5197
  %v5455 = vunpack.c.l.b16 %v5198
  %v5456 = vunpack.c.l.b16 %v5199
  %v5457 = vunpack.c.l.b16 %v5200
  %v5458 = vunpack.c.l.b16 %v5201
  %v5459 = vunpack.c.l.b16 %v5202
  %v5460 = vunpack.c.l.b16 %v5203
  %v5461 = vunpack.c.l.b16 %v5204
  %v5462 = vunpack.c.l.b16 %v5205
  %v5463 = vunpack.c.l.b16 %v5206
  %v5464 = vunpack.c.l.b16 %v5207
  %v5465 = vunpack.c.l.b16 %v5208
  %v5466 = vunpack.c.l.b16 %v5209
  %v5467 = vunpack.c.l.b16 %v5210
  %v5468 = vunpack.c.l.b16 %v5211
  %v5469 = vunpack.c.l.b16 %v5212
  %v5470 = vunpack.c.l.b16 %v5213
  %v5471 = vunpack.c.l.b16 %v5214
  %v5472 = vunpack.c.l.b16 %v5215
  %v5473 = vunpack.c.l.b16 %v5216
  %v5474 = vunpack.c.l.b16 %v5217
  %v5475 = vunpack.c.l.b16 %v5218
  %v5476 = vunpack.c.l.b16 %v5219
  %v5477 = vunpack.c.l.b16 %v5220
  %v5478 = vunpack.c.l.b16 %v5221
  %v5479 = vunpack.c.l.b16 %v5222
  %v5480 = vunpack.c.l.b16 %v5223
  %v5481 = vunpack.c.l.b16 %v5224
  %v5482 = vunpack.c.l.b16 %v5225
  %v5483 = vunpack.c.l.b16 %v5226
  %v5484 = vunpack.c.l.b16 %v5227
  %v5485 = vunpack.c.l.b16 %v5228
  %v5486 = vunpack.c.l.b16 %v5229
  %v5487 = vunpack.c.l.b16 %v5230
  %v5488 = vunpack.c.l.b16 %v5231
  %v5489 = vunpack.c.l.b16 %v5232
  %v5490 = vunpack.c.l.b16 %v5233
  %v5491 = vunpack.c.l.b16 %v5234
  %v5492 = vunpack.c.l.b16 %v5235
  %v5493 = vunpack.c.l.b16 %v5236
  %v5494 = vunpack.c.l.b16 %v5237
  %v5495 = vunpack.c.l.b16 %v5238
  %v5496 = vunpack.c.l.b16 %v5239
  %v5497 = vunpack.c.l.b16 %v5240
  %v5498 = vunpack.c.l.b16 %v5241
  %v5499 = vunpack.c.l.b16 %v5242
  %v5500 = vunpack.c.l.b16 %v5243
  %v5501 = vunpack.c.l.b16 %v5244
  %v5502 = vunpack.c.l.b16 %v5245
  %v5503 = vunpack.c.l.b16 %v5246
  %v5504 = vunpack.c.l.b16 %v5247
  %v5505 = vunpack.c.l.b16 %v5248
  %v5506 = vunpack.c.l.b16 %v5249
  %v5507 = vunpack.c.l.b16 %v5250
  %v5508 = vunpack.c.l.b16 %v5251
  %v5509 = vunpack.c.l.b16 %v5252
  %v5510 = vunpack.c.l.b16 %v5253
  %v5511 = vunpack.c.l.b16 %v5254
  %v5512 = vunpack.c.l.b16 %v5255
  %v5513 = vunpack.c.l.b16 %v5256
  %v5514 = vunpack.c.l.b16 %v5257
  %v5515 = vunpack.c.l.b16 %v5258
  %v5516 = vunpack.c.l.b16 %v5259
  %v5517 = vunpack.c.l.b16 %v5260
  %v5518 = vunpack.c.l.b16 %v5261
  %v5519 = vunpack.c.l.b16 %v5262
  %v5520 = vunpack.c.l.b16 %v5263
  %v5521 = vunpack.c.l.b16 %v5264
  %v5522 = vunpack.c.l.b16 %v5265
  %v5523 = vunpack.c.l.b16 %v5266
  %v5524 = vunpack.c.l.b16 %v5267
  %v5525 = vunpack.c.l.b16 %v5268
  %v5526 = vunpack.c.l.b16 %v5269
  %v5527 = vunpack.c.l.b16 %v5270
  %v5528 = vunpack.c.l.b16 %v5271
  %v5529 = vunpack.c.l.b16 %v5272
  %v5530 = vunpack.c.l.b16 %v5273
  %v5531 = vunpack.c.l.b16 %v5274
  %v5532 = vunpack.c.l.b16 %v5275
  %v5533 = vunpack.c.l.b16 %v5276
  %v5534 = vunpack.c.l.b16 %v5277
  %v5535 = vunpack.c.l.b16 %v5278
  %v5536 = vunpack.c.l.b16 %v5279
  %v5537 = vunpack.c.l.b16 %v5280
  %v5538 = vunpack.c.l.b16 %v5281
  %v5539 = vunpack.c.l.b16 %v5282
  %v5540 = vunpack.c.l.b16 %v5283
  %v5541 = vunpack.c.l.b16 %v5284
  %v5542 = vunpack.c.l.b16 %v5285
  %v5543 = vunpack.c.l.b16 %v5286
  %v5544 = vunpack.c.l.b16 %v5287
  %v5545 = vunpack.c.l.b16 %v5288
  %v5546 = vunpack.c.l.b16 %v5289
  %v5547 = vunpack.c.l.b16 %v5290
  %v5548 = vunpack.c.l.b16 %v5291
  %v5549 = vunpack.c.l.b16 %v5292
  %v5550 = vunpack.c.l.b16 %v5293
  %v5551 = vunpack.c.l.b16 %v5294
  %v5552 = vunpack.c.l.b16 %v5295
  %v5553 = vpack.c.b16 %v5442, %v5441
  %v5554 = vpack.c.b16 %v5444, %v5443
  %v5555 = vpack.c.b16 %v5446, %v5445
  %v5556 = vpack.c.b16 %v5448, %v5447
  %v5557 = vpack.c.b16 %v5450, %v5449
  %v5558 = vpack.c.b16 %v5452, %v5451
  %v5559 = vpack.c.b16 %v5454, %v5453
  %v5560 = vpack.c.b16 %v5456, %v5455
  %v5561 = vpack.c.b16 %v5458, %v5457
  %v5562 = vpack.c.b16 %v5460, %v5459
  %v5563 = vpack.c.b16 %v5462, %v5461
  %v5564 = vpack.c.b16 %v5464, %v5463
  %v5565 = vpack.c.b16 %v5466, %v5465
  %v5566 = vpack.c.b16 %v5468, %v5467
  %v5567 = vpack.c.b16 %v5470, %v5469
  %v5568 = vpack.c.b16 %v5472, %v5471
  %v5569 = vpack.c.b16 %v5474, %v5473
  %v5570 = vpack.c.b16 %v5476, %v5475
  %v5571 = vpack.c.b16 %v5478, %v5477
  %v5572 = vpack.c.b16 %v5480, %v5479
  %v5573 = vpack.c.b16 %v5482, %v5481
  %v5574 = vpack.c.b16 %v5484, %v5483
  %v5575 = vpack.c.b16 %v5486, %v5485
  %v5576 = vpack.c.b16 %v5488, %v5487
  %v5577 = vpack.c.b16 %v5490, %v5489
  %v5578 = vpack.c.b16 %v5492, %v5491
  %v5579 = vpack.c.b16 %v5494, %v5493
  %v5580 = vpack.c.b16 %v5496, %v5495
  %v5581 = vpack.c.b16 %v5498, %v5497
  %v5582 = vpack.c.b16 %v5500, %v5499
  %v5583 = vpack.c.b16 %v5502, %v5501
  %v5584 = vpack.c.b16 %v5504, %v5503
  %v5585 = vpack.c.b16 %v5506, %v5505
  %v5586 = vpack.c.b16 %v5508, %v5507
  %v5587 = vpack.c.b16 %v5510, %v5509
  %v5588 = vpack.c.b16 %v5512, %v5511
  %v5589 = vpack.c.b16 %v5514, %v5513
  %v5590 = vpack.c.b16 %v5516, %v5515
  %v5591 = vpack.c.b16 %v5518, %v5517
  %v5592 = vpack.c.b16 %v5520, %v5519
  %v5593 = vpack.c.b16 %v5522, %v5521
  %v5594 = vpack.c.b16 %v5524, %v5523
  %v5595 = vpack.c.b16 %v5526, %v5525
  %v5596 = vpack.c.b16 %v5528, %v5527
  %v5597 = vpack.c.b16 %v5530, %v5529
  %v5598 = vpack.c.b16 %v5532, %v5531
  %v5599 = vpack.c.b16 %v5534, %v5533
  %v5600 = vpack.c.b16 %v5536, %v5535
  %v5601 = vpack.c.b16 %v5538, %v5537
  %v5602 = vpack.c.b16 %v5540, %v5539
  %v5603 = vpack.c.b16 %v5542, %v5541
  %v5604 = vpack.c.b16 %v5544, %v5543
  %v5605 = vpack.c.b16 %v5546, %v5545
  %v5606 = vpack.c.b16 %v5548, %v5547
  %v5607 = vpack.c.b16 %v5550, %v5549
  %v5608 = vpack.c.b16 %v5552, %v5551
  %v5697 = vunpack.c.l.b16 %v5297
  %v5698 = vunpack.c.h.b16 %v5297
  %v5699 = vunpack.c.l.b16 %v5298
  %v5700 = vunpack.c.l.b16 %v5299
  %v5701 = vunpack.c.h.b16 %v5299
  %v5702 = vunpack.c.l.b16 %v5300
  %v5703 = vunpack.c.l.b16 %v5301
  %v5704 = vunpack.c.h.b16 %v5301
  %v5705 = vunpack.c.l.b16 %v5302
  %v5706 = vunpack.c.l.b16 %v5303
  %v5707 = vunpack.c.h.b16 %v5303
  %v5708 = vunpack.c.l.b16 %v5304
  %v5709 = vunpack.c.l.b16 %v5305
  %v5710 = vunpack.c.h.b16 %v5305
  %v5711 = vunpack.c.l.b16 %v5306
  %v5712 = vunpack.c.l.b16 %v5307
  %v5713 = vunpack.c.h.b16 %v5307
  %v5714 = vunpack.c.l.b16 %v5308
  %v5715 = vunpack.c.l.b16 %v5309
  %v5716 = vunpack.c.h.b16 %v5309
  %v5717 = vunpack.c.l.b16 %v5310
  %v5718 = vunpack.c.l.b16 %v5311
  %v5719 = vunpack.c.h.b16 %v5311
  %v5720 = vunpack.c.l.b16 %v5312
  %v5721 = vunpack.c.l.b16 %v5313
  %v5722 = vunpack.c.h.b16 %v5313
  %v5723 = vunpack.c.l.b16 %v5314
  %v5724 = vunpack.c.l.b16 %v5315
  %v5725 = vunpack.c.h.b16 %v5315
  %v5726 = vunpack.c.l.b16 %v5316
  %v5727 = vunpack.c.l.b16 %v5317
  %v5728 = vunpack.c.h.b16 %v5317
  %v5729 = vunpack.c.l.b16 %v5318
  %v5730 = vunpack.c.l.b16 %v5319
  %v5731 = vunpack.c.h.b16 %v5319
  %v5732 = vunpack.c.l.b16 %v5320
  %v5733 = vunpack.c.l.b16 %v5321
  %v5734 = vunpack.c.h.b16 %v5321
  %v5735 = vunpack.c.l.b16 %v5322
  %v5736 = vunpack.c.l.b16 %v5323
  %v5737 = vunpack.c.h.b16 %v5323
  %v5738 = vunpack.c.l.b16 %v5324
  %v5739 = vunpack.c.l.b16 %v5325
  %v5740 = vunpack.c.h.b16 %v5325
  %v5741 = vunpack.c.l.b16 %v5326
  %v5742 = vunpack.c.l.b16 %v5327
  %v5743 = vunpack.c.h.b16 %v5327
  %v5744 = vunpack.c.l.b16 %v5328
  %v5745 = vpack.c.b16 %v5700, %v5697
  %v5746 = vpack.c.b16 %v5701, %v5698
  %v5747 = vpack.c.b16 %v5702, %v5699
  %v5748 = vpack.c.b16 %v5706, %v5703
  %v5749 = vpack.c.b16 %v5707, %v5704
  %v5750 = vpack.c.b16 %v5708, %v5705
  %v5751 = vpack.c.b16 %v5712, %v5709
  %v5752 = vpack.c.b16 %v5713, %v5710
  %v5753 = vpack.c.b16 %v5714, %v5711
  %v5754 = vpack.c.b16 %v5718, %v5715
  %v5755 = vpack.c.b16 %v5719, %v5716
  %v5756 = vpack.c.b16 %v5720, %v5717
  %v5757 = vpack.c.b16 %v5724, %v5721
  %v5758 = vpack.c.b16 %v5725, %v5722
  %v5759 = vpack.c.b16 %v5726, %v5723
  %v5760 = vpack.c.b16 %v5730, %v5727
  %v5761 = vpack.c.b16 %v5731, %v5728
  %v5762 = vpack.c.b16 %v5732, %v5729
  %v5763 = vpack.c.b16 %v5736, %v5733
  %v5764 = vpack.c.b16 %v5737, %v5734
  %v5765 = vpack.c.b16 %v5738, %v5735
  %v5766 = vpack.c.b16 %v5742, %v5739
  %v5767 = vpack.c.b16 %v5743, %v5740
  %v5768 = vpack.c.b16 %v5744, %v5741
  %5793 = vmatprep.subr.bf16.mxu0 %v5746
  %5794 = vmatpush1.bf16.msra.mxu0 %v5745
  %5795 = vmatprep.subr.bf16.mxu0 %v5749
  %5796 = vmatpush1.bf16.msra.mxu0 %v5748
  %5797 = vmatprep.subr.bf16.mxu0 %v5752
  %5798 = vmatpush1.bf16.msra.mxu0 %v5751
  %5799 = vmatprep.subr.bf16.mxu0 %v5755
  %5800 = vmatpush1.bf16.msra.mxu0 %v5754
  %5801 = vmatprep.subr.bf16.mxu0 %v5758
  %5802 = vmatpush1.bf16.msra.mxu0 %v5757
  %5803 = vmatprep.subr.bf16.mxu0 %v5761
  %5804 = vmatpush1.bf16.msra.mxu0 %v5760
  %5805 = vmatprep.subr.bf16.mxu0 %v5764
  %5806 = vmatpush1.bf16.msra.mxu0 %v5763
  %5807 = vmatprep.subr.bf16.mxu0 %v5767
  %5808 = vmatpush1.bf16.msra.mxu0 %v5766
  %5809 = vmatprep.subr.bf16.mxu0 0
  %5810 = vmatpush1.bf16.msra.mxu0 0
  %5811 = vmatprep.subr.bf16.mxu0 0
  %5812 = vmatpush1.bf16.msra.mxu0 0
  %5813 = vmatprep.subr.bf16.mxu0 0
  %5814 = vmatpush1.bf16.msra.mxu0 0
  %5815 = vmatprep.subr.bf16.mxu0 0
  %5816 = vmatpush1.bf16.msra.mxu0 0
  %5817 = vmatprep.subr.bf16.mxu0 0
  %5818 = vmatpush1.bf16.msra.mxu0 0
  %5819 = vmatprep.subr.bf16.mxu0 0
  %5820 = vmatpush1.bf16.msra.mxu0 0
  %5821 = vmatprep.subr.bf16.mxu0 0
  %5822 = vmatpush1.bf16.msra.mxu0 0
  %5823 = vmatprep.subr.bf16.mxu0 0
  %5824 = vmatpush1.bf16.msra.mxu0 0
  %5825 = vmatprep.mubr.bf16.mxu0 0
  %5826 = vmatmul.mubr.bf16.gmra.mrb[0].mxu0 %v5553
  %v5827 = vpop.f32.mrb[0].mxu0
  %v5828 = vadd.f32 0.0, %v5827
  %v5829 = vpop.f32.mrb[0].mxu0
  %v5830 = vadd.f32 0.0, %v5829
  %v5831 = vpop.f32.mrb[0].mxu0
  %v5832 = vadd.f32 0.0, %v5831
  %v5833 = vpop.f32.mrb[0].mxu0
  %v5834 = vadd.f32 0.0, %v5833
  %5835 = vmatprep.mubr.bf16.mxu0 0
  %5836 = vmatmul.mubr.bf16.gmra.mrb[0].mxu0 %v5554
  %v5837 = vpop.f32.mrb[0].mxu0
  %v5838 = vadd.f32 0.0, %v5837
  %v5839 = vpop.f32.mrb[0].mxu0
  %v5840 = vadd.f32 0.0, %v5839
  %v5841 = vpop.f32.mrb[0].mxu0
  %v5842 = vadd.f32 0.0, %v5841
  %v5843 = vpop.f32.mrb[0].mxu0
  %v5844 = vadd.f32 0.0, %v5843
  %5845 = vmatprep.mubr.bf16.mxu0 0
  %5846 = vmatmul.mubr.bf16.gmra.mrb[0].mxu0 %v5555
  %v5847 = vpop.f32.mrb[0].mxu0
  %v5848 = vadd.f32 0.0, %v5847
  %v5849 = vpop.f32.mrb[0].mxu0
  %v5850 = vadd.f32 0.0, %v5849
  %v5851 = vpop.f32.mrb[0].mxu0
  %v5852 = vadd.f32 0.0, %v5851
  %v5853 = vpop.f32.mrb[0].mxu0
  %v5854 = vadd.f32 0.0, %v5853
  %5855 = vmatprep.mubr.bf16.mxu0 0
  %5856 = vmatmul.mubr.bf16.gmra.mrb[0].mxu0 %v5556
  %v5857 = vpop.f32.mrb[0].mxu0
  %v5858 = vadd.f32 0.0, %v5857
  %v5859 = vpop.f32.mrb[0].mxu0
  %v5860 = vadd.f32 0.0, %v5859
  %v5861 = vpop.f32.mrb[0].mxu0
  %v5862 = vadd.f32 0.0, %v5861
  %v5863 = vpop.f32.mrb[0].mxu0
  %v5864 = vadd.f32 0.0, %v5863
  %5865 = vmatprep.mubr.bf16.mxu0 0
  %5866 = vmatmul.mubr.bf16.gmra.mrb[0].mxu0 %v5557
  %v5867 = vpop.f32.mrb[0].mxu0
  %v5868 = vadd.f32 0.0, %v5867
  %v5869 = vpop.f32.mrb[0].mxu0
  %v5870 = vadd.f32 0.0, %v5869
  %v5871 = vpop.f32.mrb[0].mxu0
  %v5872 = vadd.f32 0.0, %v5871
  %v5873 = vpop.f32.mrb[0].mxu0
  %v5874 = vadd.f32 0.0, %v5873
  %5875 = vmatprep.mubr.bf16.mxu0 0
  %5876 = vmatmul.mubr.bf16.gmra.mrb[0].mxu0 %v5558
  %v5877 = vpop.f32.mrb[0].mxu0
  %v5878 = vadd.f32 0.0, %v5877
  %v5879 = vpop.f32.mrb[0].mxu0
  %v5880 = vadd.f32 0.0, %v5879
  %v5881 = vpop.f32.mrb[0].mxu0
  %v5882 = vadd.f32 0.0, %v5881
  %v5883 = vpop.f32.mrb[0].mxu0
  %v5884 = vadd.f32 0.0, %v5883
  %5885 = vmatprep.mubr.bf16.mxu0 0
  %5886 = vmatmul.mubr.bf16.gmra.mrb[0].mxu0 %v5559
  %v5887 = vpop.f32.mrb[0].mxu0
  %v5888 = vadd.f32 0.0, %v5887
  %v5889 = vpop.f32.mrb[0].mxu0
  %v5890 = vadd.f32 0.0, %v5889
  %v5891 = vpop.f32.mrb[0].mxu0
  %v5892 = vadd.f32 0.0, %v5891
  %v5893 = vpop.f32.mrb[0].mxu0
  %v5894 = vadd.f32 0.0, %v5893
  %5895 = vmatprep.mubr.bf16.mxu0 0
  %5896 = vmatmul.mubr.bf16.gmra.mrb[0].mxu0 %v5560
  %v5897 = vpop.f32.mrb[0].mxu0
  %v5898 = vadd.f32 0.0, %v5897
  %v5899 = vpop.f32.mrb[0].mxu0
  %v5900 = vadd.f32 0.0, %v5899
  %v5901 = vpop.f32.mrb[0].mxu0
  %v5902 = vadd.f32 0.0, %v5901
  %v5903 = vpop.f32.mrb[0].mxu0
  %v5904 = vadd.f32 0.0, %v5903
  %5905 = vmatprep.mubr.bf16.mxu0 0
  %5906 = vmatmul.mubr.bf16.gmra.mrb[0].mxu0 %v5561
  %v5907 = vpop.f32.mrb[0].mxu0
  %v5908 = vadd.f32 0.0, %v5907
  %v5909 = vpop.f32.mrb[0].mxu0
  %v5910 = vadd.f32 0.0, %v5909
  %v5911 = vpop.f32.mrb[0].mxu0
  %v5912 = vadd.f32 0.0, %v5911
  %v5913 = vpop.f32.mrb[0].mxu0
  %v5914 = vadd.f32 0.0, %v5913
  %5915 = vmatprep.mubr.bf16.mxu0 0
  %5916 = vmatmul.mubr.bf16.gmra.mrb[0].mxu0 %v5562
  %v5917 = vpop.f32.mrb[0].mxu0
  %v5918 = vadd.f32 0.0, %v5917
  %v5919 = vpop.f32.mrb[0].mxu0
  %v5920 = vadd.f32 0.0, %v5919
  %v5921 = vpop.f32.mrb[0].mxu0
  %v5922 = vadd.f32 0.0, %v5921
  %v5923 = vpop.f32.mrb[0].mxu0
  %v5924 = vadd.f32 0.0, %v5923
  %5925 = vmatprep.mubr.bf16.mxu0 0
  %5926 = vmatmul.mubr.bf16.gmra.mrb[0].mxu0 %v5563
  %v5927 = vpop.f32.mrb[0].mxu0
  %v5928 = vadd.f32 0.0, %v5927
  %v5929 = vpop.f32.mrb[0].mxu0
  %v5930 = vadd.f32 0.0, %v5929
  %v5931 = vpop.f32.mrb[0].mxu0
  %v5932 = vadd.f32 0.0, %v5931
  %v5933 = vpop.f32.mrb[0].mxu0
  %v5934 = vadd.f32 0.0, %v5933
  %5935 = vmatprep.mubr.bf16.mxu0 0
  %5936 = vmatmul.mubr.bf16.gmra.mrb[0].mxu0 %v5564
  %v5937 = vpop.f32.mrb[0].mxu0
  %v5938 = vadd.f32 0.0, %v5937
  %v5939 = vpop.f32.mrb[0].mxu0
  %v5940 = vadd.f32 0.0, %v5939
  %v5941 = vpop.f32.mrb[0].mxu0
  %v5942 = vadd.f32 0.0, %v5941
  %v5943 = vpop.f32.mrb[0].mxu0
  %v5944 = vadd.f32 0.0, %v5943
  %5945 = vmatprep.mubr.bf16.mxu0 0
  %5946 = vmatmul.mubr.bf16.gmra.mrb[0].mxu0 %v5565
  %v5947 = vpop.f32.mrb[0].mxu0
  %v5948 = vadd.f32 0.0, %v5947
  %v5949 = vpop.f32.mrb[0].mxu0
  %v5950 = vadd.f32 0.0, %v5949
  %v5951 = vpop.f32.mrb[0].mxu0
  %v5952 = vadd.f32 0.0, %v5951
  %v5953 = vpop.f32.mrb[0].mxu0
  %v5954 = vadd.f32 0.0, %v5953
  %5955 = vmatprep.mubr.bf16.mxu0 0
  %5956 = vmatmul.mubr.bf16.gmra.mrb[0].mxu0 %v5566
  %v5957 = vpop.f32.mrb[0].mxu0
  %v5958 = vadd.f32 0.0, %v5957
  %v5959 = vpop.f32.mrb[0].mxu0
  %v5960 = vadd.f32 0.0, %v5959
  %v5961 = vpop.f32.mrb[0].mxu0
  %v5962 = vadd.f32 0.0, %v5961
  %v5963 = vpop.f32.mrb[0].mxu0
  %v5964 = vadd.f32 0.0, %v5963
  %5965 = vmatprep.mubr.bf16.mxu0 0
  %5966 = vmatmul.mubr.bf16.gmra.mrb[0].mxu0 %v5567
  %v5967 = vpop.f32.mrb[0].mxu0
  %v5968 = vadd.f32 0.0, %v5967
  %v5969 = vpop.f32.mrb[0].mxu0
  %v5970 = vadd.f32 0.0, %v5969
  %v5971 = vpop.f32.mrb[0].mxu0
  %v5972 = vadd.f32 0.0, %v5971
  %v5973 = vpop.f32.mrb[0].mxu0
  %v5974 = vadd.f32 0.0, %v5973
  %5975 = vmatprep.mubr.bf16.mxu0 0
  %5976 = vmatmul.mubr.bf16.gmra.mrb[0].mxu0 %v5568
  %v5977 = vpop.f32.mrb[0].mxu0
  %v5978 = vadd.f32 0.0, %v5977
  %v5979 = vpop.f32.mrb[0].mxu0
  %v5980 = vadd.f32 0.0, %v5979
  %v5981 = vpop.f32.mrb[0].mxu0
  %v5982 = vadd.f32 0.0, %v5981
  %v5983 = vpop.f32.mrb[0].mxu0
  %v5984 = vadd.f32 0.0, %v5983
  %5985 = vmatprep.mubr.bf16.mxu0 0
  %5986 = vmatmul.mubr.bf16.gmra.mrb[0].mxu0 %v5569
  %v5987 = vpop.f32.mrb[0].mxu0
  %v5988 = vadd.f32 0.0, %v5987
  %v5989 = vpop.f32.mrb[0].mxu0
  %v5990 = vadd.f32 0.0, %v5989
  %v5991 = vpop.f32.mrb[0].mxu0
  %v5992 = vadd.f32 0.0, %v5991
  %v5993 = vpop.f32.mrb[0].mxu0
  %v5994 = vadd.f32 0.0, %v5993
  %5995 = vmatprep.mubr.bf16.mxu0 0
  %5996 = vmatmul.mubr.bf16.gmra.mrb[0].mxu0 %v5570
  %v5997 = vpop.f32.mrb[0].mxu0
  %v5998 = vadd.f32 0.0, %v5997
  %v5999 = vpop.f32.mrb[0].mxu0
  %v6000 = vadd.f32 0.0, %v5999
  %v6001 = vpop.f32.mrb[0].mxu0
  %v6002 = vadd.f32 0.0, %v6001
  %v6003 = vpop.f32.mrb[0].mxu0
  %v6004 = vadd.f32 0.0, %v6003
  %6005 = vmatprep.mubr.bf16.mxu0 0
  %6006 = vmatmul.mubr.bf16.gmra.mrb[0].mxu0 %v5571
  %v6007 = vpop.f32.mrb[0].mxu0
  %v6008 = vadd.f32 0.0, %v6007
  %v6009 = vpop.f32.mrb[0].mxu0
  %v6010 = vadd.f32 0.0, %v6009
  %v6011 = vpop.f32.mrb[0].mxu0
  %v6012 = vadd.f32 0.0, %v6011
  %v6013 = vpop.f32.mrb[0].mxu0
  %v6014 = vadd.f32 0.0, %v6013
  %6015 = vmatprep.mubr.bf16.mxu0 0
  %6016 = vmatmul.mubr.bf16.gmra.mrb[0].mxu0 %v5572
  %v6017 = vpop.f32.mrb[0].mxu0
  %v6018 = vadd.f32 0.0, %v6017
  %v6019 = vpop.f32.mrb[0].mxu0
  %v6020 = vadd.f32 0.0, %v6019
  %v6021 = vpop.f32.mrb[0].mxu0
  %v6022 = vadd.f32 0.0, %v6021
  %v6023 = vpop.f32.mrb[0].mxu0
  %v6024 = vadd.f32 0.0, %v6023
  %6025 = vmatprep.mubr.bf16.mxu0 0
  %6026 = vmatmul.mubr.bf16.gmra.mrb[0].mxu0 %v5573
  %v6027 = vpop.f32.mrb[0].mxu0
  %v6028 = vadd.f32 0.0, %v6027
  %v6029 = vpop.f32.mrb[0].mxu0
  %v6030 = vadd.f32 0.0, %v6029
  %v6031 = vpop.f32.mrb[0].mxu0
  %v6032 = vadd.f32 0.0, %v6031
  %v6033 = vpop.f32.mrb[0].mxu0
  %v6034 = vadd.f32 0.0, %v6033
  %6035 = vmatprep.mubr.bf16.mxu0 0
  %6036 = vmatmul.mubr.bf16.gmra.mrb[0].mxu0 %v5574
  %v6037 = vpop.f32.mrb[0].mxu0
  %v6038 = vadd.f32 0.0, %v6037
  %v6039 = vpop.f32.mrb[0].mxu0
  %v6040 = vadd.f32 0.0, %v6039
  %v6041 = vpop.f32.mrb[0].mxu0
  %v6042 = vadd.f32 0.0, %v6041
  %v6043 = vpop.f32.mrb[0].mxu0
  %v6044 = vadd.f32 0.0, %v6043
  %6045 = vmatprep.mubr.bf16.mxu0 0
  %6046 = vmatmul.mubr.bf16.gmra.mrb[0].mxu0 %v5575
  %v6047 = vpop.f32.mrb[0].mxu0
  %v6048 = vadd.f32 0.0, %v6047
  %v6049 = vpop.f32.mrb[0].mxu0
  %v6050 = vadd.f32 0.0, %v6049
  %v6051 = vpop.f32.mrb[0].mxu0
  %v6052 = vadd.f32 0.0, %v6051
  %v6053 = vpop.f32.mrb[0].mxu0
  %v6054 = vadd.f32 0.0, %v6053
  %6055 = vmatprep.mubr.bf16.mxu0 0
  %6056 = vmatmul.mubr.bf16.gmra.mrb[0].mxu0 %v5576
  %v6057 = vpop.f32.mrb[0].mxu0
  %v6058 = vadd.f32 0.0, %v6057
  %v6059 = vpop.f32.mrb[0].mxu0
  %v6060 = vadd.f32 0.0, %v6059
  %v6061 = vpop.f32.mrb[0].mxu0
  %v6062 = vadd.f32 0.0, %v6061
  %v6063 = vpop.f32.mrb[0].mxu0
  %v6064 = vadd.f32 0.0, %v6063
  %6065 = vmatprep.mubr.bf16.mxu0 0
  %6066 = vmatmul.mubr.bf16.gmra.mrb[0].mxu0 %v5577
  %v6067 = vpop.f32.mrb[0].mxu0
  %v6068 = vadd.f32 0.0, %v6067
  %v6069 = vpop.f32.mrb[0].mxu0
  %v6070 = vadd.f32 0.0, %v6069
  %v6071 = vpop.f32.mrb[0].mxu0
  %v6072 = vadd.f32 0.0, %v6071
  %v6073 = vpop.f32.mrb[0].mxu0
  %v6074 = vadd.f32 0.0, %v6073
  %6075 = vmatprep.mubr.bf16.mxu0 0
  %6076 = vmatmul.mubr.bf16.gmra.mrb[0].mxu0 %v5578
  %v6077 = vpop.f32.mrb[0].mxu0
  %v6078 = vadd.f32 0.0, %v6077
  %v6079 = vpop.f32.mrb[0].mxu0
  %v6080 = vadd.f32 0.0, %v6079
  %v6081 = vpop.f32.mrb[0].mxu0
  %v6082 = vadd.f32 0.0, %v6081
  %v6083 = vpop.f32.mrb[0].mxu0
  %v6084 = vadd.f32 0.0, %v6083
  %6085 = vmatprep.mubr.bf16.mxu0 0
  %6086 = vmatmul.mubr.bf16.gmra.mrb[0].mxu0 %v5579
  %v6087 = vpop.f32.mrb[0].mxu0
  %v6088 = vadd.f32 0.0, %v6087
  %v6089 = vpop.f32.mrb[0].mxu0
  %v6090 = vadd.f32 0.0, %v6089
  %v6091 = vpop.f32.mrb[0].mxu0
  %v6092 = vadd.f32 0.0, %v6091
  %v6093 = vpop.f32.mrb[0].mxu0
  %v6094 = vadd.f32 0.0, %v6093
  %6095 = vmatprep.mubr.bf16.mxu0 0
  %6096 = vmatmul.mubr.bf16.gmra.mrb[0].mxu0 %v5580
  %v6097 = vpop.f32.mrb[0].mxu0
  %v6098 = vadd.f32 0.0, %v6097
  %v6099 = vpop.f32.mrb[0].mxu0
  %v6100 = vadd.f32 0.0, %v6099
  %v6101 = vpop.f32.mrb[0].mxu0
  %v6102 = vadd.f32 0.0, %v6101
  %v6103 = vpop.f32.mrb[0].mxu0
  %v6104 = vadd.f32 0.0, %v6103
  %6105 = vmatprep.mubr.bf16.mxu0 0
  %6106 = vmatmul.mubr.bf16.gmra.mrb[0].mxu0 %v5581
  %v6107 = vpop.f32.mrb[0].mxu0
  %v6108 = vadd.f32 0.0, %v6107
  %v6109 = vpop.f32.mrb[0].mxu0
  %v6110 = vadd.f32 0.0, %v6109
  %v6111 = vpop.f32.mrb[0].mxu0
  %v6112 = vadd.f32 0.0, %v6111
  %v6113 = vpop.f32.mrb[0].mxu0
  %v6114 = vadd.f32 0.0, %v6113
  %6115 = vmatprep.mubr.bf16.mxu0 0
  %6116 = vmatmul.mubr.bf16.gmra.mrb[0].mxu0 %v5582
  %v6117 = vpop.f32.mrb[0].mxu0
  %v6118 = vadd.f32 0.0, %v6117
  %v6119 = vpop.f32.mrb[0].mxu0
  %v6120 = vadd.f32 0.0, %v6119
  %v6121 = vpop.f32.mrb[0].mxu0
  %v6122 = vadd.f32 0.0, %v6121
  %v6123 = vpop.f32.mrb[0].mxu0
  %v6124 = vadd.f32 0.0, %v6123
  %6125 = vmatprep.mubr.bf16.mxu0 0
  %6126 = vmatmul.mubr.bf16.gmra.mrb[0].mxu0 %v5583
  %v6127 = vpop.f32.mrb[0].mxu0
  %v6128 = vadd.f32 0.0, %v6127
  %v6129 = vpop.f32.mrb[0].mxu0
  %v6130 = vadd.f32 0.0, %v6129
  %v6131 = vpop.f32.mrb[0].mxu0
  %v6132 = vadd.f32 0.0, %v6131
  %v6133 = vpop.f32.mrb[0].mxu0
  %v6134 = vadd.f32 0.0, %v6133
  %6135 = vmatprep.mubr.bf16.mxu0 0
  %6136 = vmatmul.mubr.bf16.gmra.mrb[0].mxu0 %v5584
  %v6137 = vpop.f32.mrb[0].mxu0
  %v6138 = vadd.f32 0.0, %v6137
  %v6139 = vpop.f32.mrb[0].mxu0
  %v6140 = vadd.f32 0.0, %v6139
  %v6141 = vpop.f32.mrb[0].mxu0
  %v6142 = vadd.f32 0.0, %v6141
  %v6143 = vpop.f32.mrb[0].mxu0
  %v6144 = vadd.f32 0.0, %v6143
  %6145 = vmatprep.mubr.bf16.mxu0 0
  %6146 = vmatmul.mubr.bf16.gmra.mrb[0].mxu0 %v5585
  %v6147 = vpop.f32.mrb[0].mxu0
  %v6148 = vadd.f32 0.0, %v6147
  %v6149 = vpop.f32.mrb[0].mxu0
  %v6150 = vadd.f32 0.0, %v6149
  %v6151 = vpop.f32.mrb[0].mxu0
  %v6152 = vadd.f32 0.0, %v6151
  %v6153 = vpop.f32.mrb[0].mxu0
  %v6154 = vadd.f32 0.0, %v6153
  %6155 = vmatprep.mubr.bf16.mxu0 0
  %6156 = vmatmul.mubr.bf16.gmra.mrb[0].mxu0 %v5586
  %v6157 = vpop.f32.mrb[0].mxu0
  %v6158 = vadd.f32 0.0, %v6157
  %v6159 = vpop.f32.mrb[0].mxu0
  %v6160 = vadd.f32 0.0, %v6159
  %v6161 = vpop.f32.mrb[0].mxu0
  %v6162 = vadd.f32 0.0, %v6161
  %v6163 = vpop.f32.mrb[0].mxu0
  %v6164 = vadd.f32 0.0, %v6163
  %6165 = vmatprep.mubr.bf16.mxu0 0
  %6166 = vmatmul.mubr.bf16.gmra.mrb[0].mxu0 %v5587
  %v6167 = vpop.f32.mrb[0].mxu0
  %v6168 = vadd.f32 0.0, %v6167
  %v6169 = vpop.f32.mrb[0].mxu0
  %v6170 = vadd.f32 0.0, %v6169
  %v6171 = vpop.f32.mrb[0].mxu0
  %v6172 = vadd.f32 0.0, %v6171
  %v6173 = vpop.f32.mrb[0].mxu0
  %v6174 = vadd.f32 0.0, %v6173
  %6175 = vmatprep.mubr.bf16.mxu0 0
  %6176 = vmatmul.mubr.bf16.gmra.mrb[0].mxu0 %v5588
  %v6177 = vpop.f32.mrb[0].mxu0
  %v6178 = vadd.f32 0.0, %v6177
  %v6179 = vpop.f32.mrb[0].mxu0
  %v6180 = vadd.f32 0.0, %v6179
  %v6181 = vpop.f32.mrb[0].mxu0
  %v6182 = vadd.f32 0.0, %v6181
  %v6183 = vpop.f32.mrb[0].mxu0
  %v6184 = vadd.f32 0.0, %v6183
  %6185 = vmatprep.mubr.bf16.mxu0 0
  %6186 = vmatmul.mubr.bf16.gmra.mrb[0].mxu0 %v5589
  %v6187 = vpop.f32.mrb[0].mxu0
  %v6188 = vadd.f32 0.0, %v6187
  %v6189 = vpop.f32.mrb[0].mxu0
  %v6190 = vadd.f32 0.0, %v6189
  %v6191 = vpop.f32.mrb[0].mxu0
  %v6192 = vadd.f32 0.0, %v6191
  %v6193 = vpop.f32.mrb[0].mxu0
  %v6194 = vadd.f32 0.0, %v6193
  %6195 = vmatprep.mubr.bf16.mxu0 0
  %6196 = vmatmul.mubr.bf16.gmra.mrb[0].mxu0 %v5590
  %v6197 = vpop.f32.mrb[0].mxu0
  %v6198 = vadd.f32 0.0, %v6197
  %v6199 = vpop.f32.mrb[0].mxu0
  %v6200 = vadd.f32 0.0, %v6199
  %v6201 = vpop.f32.mrb[0].mxu0
  %v6202 = vadd.f32 0.0, %v6201
  %v6203 = vpop.f32.mrb[0].mxu0
  %v6204 = vadd.f32 0.0, %v6203
  %6205 = vmatprep.mubr.bf16.mxu0 0
  %6206 = vmatmul.mubr.bf16.gmra.mrb[0].mxu0 %v5591
  %v6207 = vpop.f32.mrb[0].mxu0
  %v6208 = vadd.f32 0.0, %v6207
  %v6209 = vpop.f32.mrb[0].mxu0
  %v6210 = vadd.f32 0.0, %v6209
  %v6211 = vpop.f32.mrb[0].mxu0
  %v6212 = vadd.f32 0.0, %v6211
  %v6213 = vpop.f32.mrb[0].mxu0
  %v6214 = vadd.f32 0.0, %v6213
  %6215 = vmatprep.mubr.bf16.mxu0 0
  %6216 = vmatmul.mubr.bf16.gmra.mrb[0].mxu0 %v5592
  %v6217 = vpop.f32.mrb[0].mxu0
  %v6218 = vadd.f32 0.0, %v6217
  %v6219 = vpop.f32.mrb[0].mxu0
  %v6220 = vadd.f32 0.0, %v6219
  %v6221 = vpop.f32.mrb[0].mxu0
  %v6222 = vadd.f32 0.0, %v6221
  %v6223 = vpop.f32.mrb[0].mxu0
  %v6224 = vadd.f32 0.0, %v6223
  %6225 = vmatprep.mubr.bf16.mxu0 0
  %6226 = vmatmul.mubr.bf16.gmra.mrb[0].mxu0 %v5593
  %v6227 = vpop.f32.mrb[0].mxu0
  %v6228 = vadd.f32 0.0, %v6227
  %v6229 = vpop.f32.mrb[0].mxu0
  %v6230 = vadd.f32 0.0, %v6229
  %v6231 = vpop.f32.mrb[0].mxu0
  %v6232 = vadd.f32 0.0, %v6231
  %v6233 = vpop.f32.mrb[0].mxu0
  %v6234 = vadd.f32 0.0, %v6233
  %6235 = vmatprep.mubr.bf16.mxu0 0
  %6236 = vmatmul.mubr.bf16.gmra.mrb[0].mxu0 %v5594
  %v6237 = vpop.f32.mrb[0].mxu0
  %v6238 = vadd.f32 0.0, %v6237
  %v6239 = vpop.f32.mrb[0].mxu0
  %v6240 = vadd.f32 0.0, %v6239
  %v6241 = vpop.f32.mrb[0].mxu0
  %v6242 = vadd.f32 0.0, %v6241
  %v6243 = vpop.f32.mrb[0].mxu0
  %v6244 = vadd.f32 0.0, %v6243
  %6245 = vmatprep.mubr.bf16.mxu0 0
  %6246 = vmatmul.mubr.bf16.gmra.mrb[0].mxu0 %v5595
  %v6247 = vpop.f32.mrb[0].mxu0
  %v6248 = vadd.f32 0.0, %v6247
  %v6249 = vpop.f32.mrb[0].mxu0
  %v6250 = vadd.f32 0.0, %v6249
  %v6251 = vpop.f32.mrb[0].mxu0
  %v6252 = vadd.f32 0.0, %v6251
  %v6253 = vpop.f32.mrb[0].mxu0
  %v6254 = vadd.f32 0.0, %v6253
  %6255 = vmatprep.mubr.bf16.mxu0 0
  %6256 = vmatmul.mubr.bf16.gmra.mrb[0].mxu0 %v5596
  %v6257 = vpop.f32.mrb[0].mxu0
  %v6258 = vadd.f32 0.0, %v6257
  %v6259 = vpop.f32.mrb[0].mxu0
  %v6260 = vadd.f32 0.0, %v6259
  %v6261 = vpop.f32.mrb[0].mxu0
  %v6262 = vadd.f32 0.0, %v6261
  %v6263 = vpop.f32.mrb[0].mxu0
  %v6264 = vadd.f32 0.0, %v6263
  %6265 = vmatprep.mubr.bf16.mxu0 0
  %6266 = vmatmul.mubr.bf16.gmra.mrb[0].mxu0 %v5597
  %v6267 = vpop.f32.mrb[0].mxu0
  %v6268 = vadd.f32 0.0, %v6267
  %v6269 = vpop.f32.mrb[0].mxu0
  %v6270 = vadd.f32 0.0, %v6269
  %v6271 = vpop.f32.mrb[0].mxu0
  %v6272 = vadd.f32 0.0, %v6271
  %v6273 = vpop.f32.mrb[0].mxu0
  %v6274 = vadd.f32 0.0, %v6273
  %6275 = vmatprep.mubr.bf16.mxu0 0
  %6276 = vmatmul.mubr.bf16.gmra.mrb[0].mxu0 %v5598
  %v6277 = vpop.f32.mrb[0].mxu0
  %v6278 = vadd.f32 0.0, %v6277
  %v6279 = vpop.f32.mrb[0].mxu0
  %v6280 = vadd.f32 0.0, %v6279
  %v6281 = vpop.f32.mrb[0].mxu0
  %v6282 = vadd.f32 0.0, %v6281
  %v6283 = vpop.f32.mrb[0].mxu0
  %v6284 = vadd.f32 0.0, %v6283
  %6285 = vmatprep.mubr.bf16.mxu0 0
  %6286 = vmatmul.mubr.bf16.gmra.mrb[0].mxu0 %v5599
  %v6287 = vpop.f32.mrb[0].mxu0
  %v6288 = vadd.f32 0.0, %v6287
  %v6289 = vpop.f32.mrb[0].mxu0
  %v6290 = vadd.f32 0.0, %v6289
  %v6291 = vpop.f32.mrb[0].mxu0
  %v6292 = vadd.f32 0.0, %v6291
  %v6293 = vpop.f32.mrb[0].mxu0
  %v6294 = vadd.f32 0.0, %v6293
  %6295 = vmatprep.mubr.bf16.mxu0 0
  %6296 = vmatmul.mubr.bf16.gmra.mrb[0].mxu0 %v5600
  %v6297 = vpop.f32.mrb[0].mxu0
  %v6298 = vadd.f32 0.0, %v6297
  %v6299 = vpop.f32.mrb[0].mxu0
  %v6300 = vadd.f32 0.0, %v6299
  %v6301 = vpop.f32.mrb[0].mxu0
  %v6302 = vadd.f32 0.0, %v6301
  %v6303 = vpop.f32.mrb[0].mxu0
  %v6304 = vadd.f32 0.0, %v6303
  %6305 = vmatprep.mubr.bf16.mxu0 0
  %6306 = vmatmul.mubr.bf16.gmra.mrb[0].mxu0 %v5601
  %v6307 = vpop.f32.mrb[0].mxu0
  %v6308 = vadd.f32 0.0, %v6307
  %v6309 = vpop.f32.mrb[0].mxu0
  %v6310 = vadd.f32 0.0, %v6309
  %v6311 = vpop.f32.mrb[0].mxu0
  %v6312 = vadd.f32 0.0, %v6311
  %v6313 = vpop.f32.mrb[0].mxu0
  %v6314 = vadd.f32 0.0, %v6313
  %6315 = vmatprep.mubr.bf16.mxu0 0
  %6316 = vmatmul.mubr.bf16.gmra.mrb[0].mxu0 %v5602
  %v6317 = vpop.f32.mrb[0].mxu0
  %v6318 = vadd.f32 0.0, %v6317
  %v6319 = vpop.f32.mrb[0].mxu0
  %v6320 = vadd.f32 0.0, %v6319
  %v6321 = vpop.f32.mrb[0].mxu0
  %v6322 = vadd.f32 0.0, %v6321
  %v6323 = vpop.f32.mrb[0].mxu0
  %v6324 = vadd.f32 0.0, %v6323
  %6325 = vmatprep.mubr.bf16.mxu0 0
  %6326 = vmatmul.mubr.bf16.gmra.mrb[0].mxu0 %v5603
  %v6327 = vpop.f32.mrb[0].mxu0
  %v6328 = vadd.f32 0.0, %v6327
  %v6329 = vpop.f32.mrb[0].mxu0
  %v6330 = vadd.f32 0.0, %v6329
  %v6331 = vpop.f32.mrb[0].mxu0
  %v6332 = vadd.f32 0.0, %v6331
  %v6333 = vpop.f32.mrb[0].mxu0
  %v6334 = vadd.f32 0.0, %v6333
  %6335 = vmatprep.mubr.bf16.mxu0 0
  %6336 = vmatmul.mubr.bf16.gmra.mrb[0].mxu0 %v5604
  %v6337 = vpop.f32.mrb[0].mxu0
  %v6338 = vadd.f32 0.0, %v6337
  %v6339 = vpop.f32.mrb[0].mxu0
  %v6340 = vadd.f32 0.0, %v6339
  %v6341 = vpop.f32.mrb[0].mxu0
  %v6342 = vadd.f32 0.0, %v6341
  %v6343 = vpop.f32.mrb[0].mxu0
  %v6344 = vadd.f32 0.0, %v6343
  %6345 = vmatprep.mubr.bf16.mxu0 0
  %6346 = vmatmul.mubr.bf16.gmra.mrb[0].mxu0 %v5605
  %v6347 = vpop.f32.mrb[0].mxu0
  %v6348 = vadd.f32 0.0, %v6347
  %v6349 = vpop.f32.mrb[0].mxu0
  %v6350 = vadd.f32 0.0, %v6349
  %v6351 = vpop.f32.mrb[0].mxu0
  %v6352 = vadd.f32 0.0, %v6351
  %v6353 = vpop.f32.mrb[0].mxu0
  %v6354 = vadd.f32 0.0, %v6353
  %6355 = vmatprep.mubr.bf16.mxu0 0
  %6356 = vmatmul.mubr.bf16.gmra.mrb[0].mxu0 %v5606
  %v6357 = vpop.f32.mrb[0].mxu0
  %v6358 = vadd.f32 0.0, %v6357
  %v6359 = vpop.f32.mrb[0].mxu0
  %v6360 = vadd.f32 0.0, %v6359
  %v6361 = vpop.f32.mrb[0].mxu0
  %v6362 = vadd.f32 0.0, %v6361
  %v6363 = vpop.f32.mrb[0].mxu0
  %v6364 = vadd.f32 0.0, %v6363
  %6365 = vmatprep.mubr.bf16.mxu0 0
  %6366 = vmatmul.mubr.bf16.gmra.mrb[0].mxu0 %v5607
  %v6367 = vpop.f32.mrb[0].mxu0
  %v6368 = vadd.f32 0.0, %v6367
  %v6369 = vpop.f32.mrb[0].mxu0
  %v6370 = vadd.f32 0.0, %v6369
  %v6371 = vpop.f32.mrb[0].mxu0
  %v6372 = vadd.f32 0.0, %v6371
  %v6373 = vpop.f32.mrb[0].mxu0
  %v6374 = vadd.f32 0.0, %v6373
  %6375 = vmatprep.mubr.bf16.mxu0 0
  %6376 = vmatmul.mubr.bf16.gmra.mrb[0].mxu0 %v5608
  %v6377 = vpop.f32.mrb[0].mxu0
  %v6378 = vadd.f32 0.0, %v6377
  %v6379 = vpop.f32.mrb[0].mxu0
  %v6380 = vadd.f32 0.0, %v6379
  %v6381 = vpop.f32.mrb[0].mxu0
  %v6382 = vadd.f32 0.0, %v6381
  %v6383 = vpop.f32.mrb[0].mxu0
  %v6384 = vadd.f32 0.0, %v6383
  %6385 = vdwg.mxu0
  %6386 = vmatprep.subr.bf16.mxu0 0
  %6387 = vmatpush1.bf16.msra.mxu0 %v5747
  %6388 = vmatprep.subr.bf16.mxu0 0
  %6389 = vmatpush1.bf16.msra.mxu0 %v5750
  %6390 = vmatprep.subr.bf16.mxu0 0
  %6391 = vmatpush1.bf16.msra.mxu0 %v5753
  %6392 = vmatprep.subr.bf16.mxu0 0
  %6393 = vmatpush1.bf16.msra.mxu0 %v5756
  %6394 = vmatprep.subr.bf16.mxu0 0
  %6395 = vmatpush1.bf16.msra.mxu0 %v5759
  %6396 = vmatprep.subr.bf16.mxu0 0
  %6397 = vmatpush1.bf16.msra.mxu0 %v5762
  %6398 = vmatprep.subr.bf16.mxu0 0
  %6399 = vmatpush1.bf16.msra.mxu0 %v5765
  %6400 = vmatprep.subr.bf16.mxu0 0
  %6401 = vmatpush1.bf16.msra.mxu0 %v5768
  %6402 = vmatprep.subr.bf16.mxu0 0
  %6403 = vmatpush1.bf16.msra.mxu0 0
  %6404 = vmatprep.subr.bf16.mxu0 0
  %6405 = vmatpush1.bf16.msra.mxu0 0
  %6406 = vmatprep.subr.bf16.mxu0 0
  %6407 = vmatpush1.bf16.msra.mxu0 0
  %6408 = vmatprep.subr.bf16.mxu0 0
  %6409 = vmatpush1.bf16.msra.mxu0 0
  %6410 = vmatprep.subr.bf16.mxu0 0
  %6411 = vmatpush1.bf16.msra.mxu0 0
  %6412 = vmatprep.subr.bf16.mxu0 0
  %6413 = vmatpush1.bf16.msra.mxu0 0
  %6414 = vmatprep.subr.bf16.mxu0 0
  %6415 = vmatpush1.bf16.msra.mxu0 0
  %6416 = vmatprep.subr.bf16.mxu0 0
  %6417 = vmatpush1.bf16.msra.mxu0 0
  %6418 = vmatprep.mubr.bf16.mxu0 0
  %6419 = vmatmul.mubr.bf16.gmra.mrb[0].mxu0 %v5553
  %v6420 = vpop.f32.mrb[0].mxu0
  %v6421 = vadd.f32 0.0, %v6420
  %v6422 = vpop.f32.mrb[0].mxu0
  %v6423 = vpop.f32.mrb[0].mxu0
  %v6424 = vadd.f32 0.0, %v6423
  %v6425 = vpop.f32.mrb[0].mxu0
  %6426 = vmatprep.mubr.bf16.mxu0 0
  %6427 = vmatmul.mubr.bf16.gmra.mrb[0].mxu0 %v5554
  %v6428 = vpop.f32.mrb[0].mxu0
  %v6429 = vadd.f32 0.0, %v6428
  %v6430 = vpop.f32.mrb[0].mxu0
  %v6431 = vpop.f32.mrb[0].mxu0
  %v6432 = vadd.f32 0.0, %v6431
  %v6433 = vpop.f32.mrb[0].mxu0
  %6434 = vmatprep.mubr.bf16.mxu0 0
  %6435 = vmatmul.mubr.bf16.gmra.mrb[0].mxu0 %v5555
  %v6436 = vpop.f32.mrb[0].mxu0
  %v6437 = vadd.f32 0.0, %v6436
  %v6438 = vpop.f32.mrb[0].mxu0
  %v6439 = vpop.f32.mrb[0].mxu0
  %v6440 = vadd.f32 0.0, %v6439
  %v6441 = vpop.f32.mrb[0].mxu0
  %6442 = vmatprep.mubr.bf16.mxu0 0
  %6443 = vmatmul.mubr.bf16.gmra.mrb[0].mxu0 %v5556
  %v6444 = vpop.f32.mrb[0].mxu0
  %v6445 = vadd.f32 0.0, %v6444
  %v6446 = vpop.f32.mrb[0].mxu0
  %v6447 = vpop.f32.mrb[0].mxu0
  %v6448 = vadd.f32 0.0, %v6447
  %v6449 = vpop.f32.mrb[0].mxu0
  %6450 = vmatprep.mubr.bf16.mxu0 0
  %6451 = vmatmul.mubr.bf16.gmra.mrb[0].mxu0 %v5557
  %v6452 = vpop.f32.mrb[0].mxu0
  %v6453 = vadd.f32 0.0, %v6452
  %v6454 = vpop.f32.mrb[0].mxu0
  %v6455 = vpop.f32.mrb[0].mxu0
  %v6456 = vadd.f32 0.0, %v6455
  %v6457 = vpop.f32.mrb[0].mxu0
  %6458 = vmatprep.mubr.bf16.mxu0 0
  %6459 = vmatmul.mubr.bf16.gmra.mrb[0].mxu0 %v5558
  %v6460 = vpop.f32.mrb[0].mxu0
  %v6461 = vadd.f32 0.0, %v6460
  %v6462 = vpop.f32.mrb[0].mxu0
  %v6463 = vpop.f32.mrb[0].mxu0
  %v6464 = vadd.f32 0.0, %v6463
  %v6465 = vpop.f32.mrb[0].mxu0
  %6466 = vmatprep.mubr.bf16.mxu0 0
  %6467 = vmatmul.mubr.bf16.gmra.mrb[0].mxu0 %v5559
  %v6468 = vpop.f32.mrb[0].mxu0
  %v6469 = vadd.f32 0.0, %v6468
  %v6470 = vpop.f32.mrb[0].mxu0
  %v6471 = vpop.f32.mrb[0].mxu0
  %v6472 = vadd.f32 0.0, %v6471
  %v6473 = vpop.f32.mrb[0].mxu0
  %6474 = vmatprep.mubr.bf16.mxu0 0
  %6475 = vmatmul.mubr.bf16.gmra.mrb[0].mxu0 %v5560
  %v6476 = vpop.f32.mrb[0].mxu0
  %v6477 = vadd.f32 0.0, %v6476
  %v6478 = vpop.f32.mrb[0].mxu0
  %v6479 = vpop.f32.mrb[0].mxu0
  %v6480 = vadd.f32 0.0, %v6479
  %v6481 = vpop.f32.mrb[0].mxu0
  %6482 = vmatprep.mubr.bf16.mxu0 0
  %6483 = vmatmul.mubr.bf16.gmra.mrb[0].mxu0 %v5561
  %v6484 = vpop.f32.mrb[0].mxu0
  %v6485 = vadd.f32 0.0, %v6484
  %v6486 = vpop.f32.mrb[0].mxu0
  %v6487 = vpop.f32.mrb[0].mxu0
  %v6488 = vadd.f32 0.0, %v6487
  %v6489 = vpop.f32.mrb[0].mxu0
  %6490 = vmatprep.mubr.bf16.mxu0 0
  %6491 = vmatmul.mubr.bf16.gmra.mrb[0].mxu0 %v5562
  %v6492 = vpop.f32.mrb[0].mxu0
  %v6493 = vadd.f32 0.0, %v6492
  %v6494 = vpop.f32.mrb[0].mxu0
  %v6495 = vpop.f32.mrb[0].mxu0
  %v6496 = vadd.f32 0.0, %v6495
  %v6497 = vpop.f32.mrb[0].mxu0
  %6498 = vmatprep.mubr.bf16.mxu0 0
  %6499 = vmatmul.mubr.bf16.gmra.mrb[0].mxu0 %v5563
  %v6500 = vpop.f32.mrb[0].mxu0
  %v6501 = vadd.f32 0.0, %v6500
  %v6502 = vpop.f32.mrb[0].mxu0
  %v6503 = vpop.f32.mrb[0].mxu0
  %v6504 = vadd.f32 0.0, %v6503
  %v6505 = vpop.f32.mrb[0].mxu0
  %6506 = vmatprep.mubr.bf16.mxu0 0
  %6507 = vmatmul.mubr.bf16.gmra.mrb[0].mxu0 %v5564
  %v6508 = vpop.f32.mrb[0].mxu0
  %v6509 = vadd.f32 0.0, %v6508
  %v6510 = vpop.f32.mrb[0].mxu0
  %v6511 = vpop.f32.mrb[0].mxu0
  %v6512 = vadd.f32 0.0, %v6511
  %v6513 = vpop.f32.mrb[0].mxu0
  %6514 = vmatprep.mubr.bf16.mxu0 0
  %6515 = vmatmul.mubr.bf16.gmra.mrb[0].mxu0 %v5565
  %v6516 = vpop.f32.mrb[0].mxu0
  %v6517 = vadd.f32 0.0, %v6516
  %v6518 = vpop.f32.mrb[0].mxu0
  %v6519 = vpop.f32.mrb[0].mxu0
  %v6520 = vadd.f32 0.0, %v6519
  %v6521 = vpop.f32.mrb[0].mxu0
  %6522 = vmatprep.mubr.bf16.mxu0 0
  %6523 = vmatmul.mubr.bf16.gmra.mrb[0].mxu0 %v5566
  %v6524 = vpop.f32.mrb[0].mxu0
  %v6525 = vadd.f32 0.0, %v6524
  %v6526 = vpop.f32.mrb[0].mxu0
  %v6527 = vpop.f32.mrb[0].mxu0
  %v6528 = vadd.f32 0.0, %v6527
  %v6529 = vpop.f32.mrb[0].mxu0
  %6530 = vmatprep.mubr.bf16.mxu0 0
  %6531 = vmatmul.mubr.bf16.gmra.mrb[0].mxu0 %v5567
  %v6532 = vpop.f32.mrb[0].mxu0
  %v6533 = vadd.f32 0.0, %v6532
  %v6534 = vpop.f32.mrb[0].mxu0
  %v6535 = vpop.f32.mrb[0].mxu0
  %v6536 = vadd.f32 0.0, %v6535
  %v6537 = vpop.f32.mrb[0].mxu0
  %6538 = vmatprep.mubr.bf16.mxu0 0
  %6539 = vmatmul.mubr.bf16.gmra.mrb[0].mxu0 %v5568
  %v6540 = vpop.f32.mrb[0].mxu0
  %v6541 = vadd.f32 0.0, %v6540
  %v6542 = vpop.f32.mrb[0].mxu0
  %v6543 = vpop.f32.mrb[0].mxu0
  %v6544 = vadd.f32 0.0, %v6543
  %v6545 = vpop.f32.mrb[0].mxu0
  %6546 = vmatprep.mubr.bf16.mxu0 0
  %6547 = vmatmul.mubr.bf16.gmra.mrb[0].mxu0 %v5569
  %v6548 = vpop.f32.mrb[0].mxu0
  %v6549 = vadd.f32 0.0, %v6548
  %v6550 = vpop.f32.mrb[0].mxu0
  %v6551 = vpop.f32.mrb[0].mxu0
  %v6552 = vadd.f32 0.0, %v6551
  %v6553 = vpop.f32.mrb[0].mxu0
  %6554 = vmatprep.mubr.bf16.mxu0 0
  %6555 = vmatmul.mubr.bf16.gmra.mrb[0].mxu0 %v5570
  %v6556 = vpop.f32.mrb[0].mxu0
  %v6557 = vadd.f32 0.0, %v6556
  %v6558 = vpop.f32.mrb[0].mxu0
  %v6559 = vpop.f32.mrb[0].mxu0
  %v6560 = vadd.f32 0.0, %v6559
  %v6561 = vpop.f32.mrb[0].mxu0
  %6562 = vmatprep.mubr.bf16.mxu0 0
  %6563 = vmatmul.mubr.bf16.gmra.mrb[0].mxu0 %v5571
  %v6564 = vpop.f32.mrb[0].mxu0
  %v6565 = vadd.f32 0.0, %v6564
  %v6566 = vpop.f32.mrb[0].mxu0
  %v6567 = vpop.f32.mrb[0].mxu0
  %v6568 = vadd.f32 0.0, %v6567
  %v6569 = vpop.f32.mrb[0].mxu0
  %6570 = vmatprep.mubr.bf16.mxu0 0
  %6571 = vmatmul.mubr.bf16.gmra.mrb[0].mxu0 %v5572
  %v6572 = vpop.f32.mrb[0].mxu0
  %v6573 = vadd.f32 0.0, %v6572
  %v6574 = vpop.f32.mrb[0].mxu0
  %v6575 = vpop.f32.mrb[0].mxu0
  %v6576 = vadd.f32 0.0, %v6575
  %v6577 = vpop.f32.mrb[0].mxu0
  %6578 = vmatprep.mubr.bf16.mxu0 0
  %6579 = vmatmul.mubr.bf16.gmra.mrb[0].mxu0 %v5573
  %v6580 = vpop.f32.mrb[0].mxu0
  %v6581 = vadd.f32 0.0, %v6580
  %v6582 = vpop.f32.mrb[0].mxu0
  %v6583 = vpop.f32.mrb[0].mxu0
  %v6584 = vadd.f32 0.0, %v6583
  %v6585 = vpop.f32.mrb[0].mxu0
  %6586 = vmatprep.mubr.bf16.mxu0 0
  %6587 = vmatmul.mubr.bf16.gmra.mrb[0].mxu0 %v5574
  %v6588 = vpop.f32.mrb[0].mxu0
  %v6589 = vadd.f32 0.0, %v6588
  %v6590 = vpop.f32.mrb[0].mxu0
  %v6591 = vpop.f32.mrb[0].mxu0
  %v6592 = vadd.f32 0.0, %v6591
  %v6593 = vpop.f32.mrb[0].mxu0
  %6594 = vmatprep.mubr.bf16.mxu0 0
  %6595 = vmatmul.mubr.bf16.gmra.mrb[0].mxu0 %v5575
  %v6596 = vpop.f32.mrb[0].mxu0
  %v6597 = vadd.f32 0.0, %v6596
  %v6598 = vpop.f32.mrb[0].mxu0
  %v6599 = vpop.f32.mrb[0].mxu0
  %v6600 = vadd.f32 0.0, %v6599
  %v6601 = vpop.f32.mrb[0].mxu0
  %6602 = vmatprep.mubr.bf16.mxu0 0
  %6603 = vmatmul.mubr.bf16.gmra.mrb[0].mxu0 %v5576
  %v6604 = vpop.f32.mrb[0].mxu0
  %v6605 = vadd.f32 0.0, %v6604
  %v6606 = vpop.f32.mrb[0].mxu0
  %v6607 = vpop.f32.mrb[0].mxu0
  %v6608 = vadd.f32 0.0, %v6607
  %v6609 = vpop.f32.mrb[0].mxu0
  %6610 = vmatprep.mubr.bf16.mxu0 0
  %6611 = vmatmul.mubr.bf16.gmra.mrb[0].mxu0 %v5577
  %v6612 = vpop.f32.mrb[0].mxu0
  %v6613 = vadd.f32 0.0, %v6612
  %v6614 = vpop.f32.mrb[0].mxu0
  %v6615 = vpop.f32.mrb[0].mxu0
  %v6616 = vadd.f32 0.0, %v6615
  %v6617 = vpop.f32.mrb[0].mxu0
  %6618 = vmatprep.mubr.bf16.mxu0 0
  %6619 = vmatmul.mubr.bf16.gmra.mrb[0].mxu0 %v5578
  %v6620 = vpop.f32.mrb[0].mxu0
  %v6621 = vadd.f32 0.0, %v6620
  %v6622 = vpop.f32.mrb[0].mxu0
  %v6623 = vpop.f32.mrb[0].mxu0
  %v6624 = vadd.f32 0.0, %v6623
  %v6625 = vpop.f32.mrb[0].mxu0
  %6626 = vmatprep.mubr.bf16.mxu0 0
  %6627 = vmatmul.mubr.bf16.gmra.mrb[0].mxu0 %v5579
  %v6628 = vpop.f32.mrb[0].mxu0
  %v6629 = vadd.f32 0.0, %v6628
  %v6630 = vpop.f32.mrb[0].mxu0
  %v6631 = vpop.f32.mrb[0].mxu0
  %v6632 = vadd.f32 0.0, %v6631
  %v6633 = vpop.f32.mrb[0].mxu0
  %6634 = vmatprep.mubr.bf16.mxu0 0
  %6635 = vmatmul.mubr.bf16.gmra.mrb[0].mxu0 %v5580
  %v6636 = vpop.f32.mrb[0].mxu0
  %v6637 = vadd.f32 0.0, %v6636
  %v6638 = vpop.f32.mrb[0].mxu0
  %v6639 = vpop.f32.mrb[0].mxu0
  %v6640 = vadd.f32 0.0, %v6639
  %v6641 = vpop.f32.mrb[0].mxu0
  %6642 = vmatprep.mubr.bf16.mxu0 0
  %6643 = vmatmul.mubr.bf16.gmra.mrb[0].mxu0 %v5581
  %v6644 = vpop.f32.mrb[0].mxu0
  %v6645 = vadd.f32 0.0, %v6644
  %v6646 = vpop.f32.mrb[0].mxu0
  %v6647 = vpop.f32.mrb[0].mxu0
  %v6648 = vadd.f32 0.0, %v6647
  %v6649 = vpop.f32.mrb[0].mxu0
  %6650 = vmatprep.mubr.bf16.mxu0 0
  %6651 = vmatmul.mubr.bf16.gmra.mrb[0].mxu0 %v5582
  %v6652 = vpop.f32.mrb[0].mxu0
  %v6653 = vadd.f32 0.0, %v6652
  %v6654 = vpop.f32.mrb[0].mxu0
  %v6655 = vpop.f32.mrb[0].mxu0
  %v6656 = vadd.f32 0.0, %v6655
  %v6657 = vpop.f32.mrb[0].mxu0
  %6658 = vmatprep.mubr.bf16.mxu0 0
  %6659 = vmatmul.mubr.bf16.gmra.mrb[0].mxu0 %v5583
  %v6660 = vpop.f32.mrb[0].mxu0
  %v6661 = vadd.f32 0.0, %v6660
  %v6662 = vpop.f32.mrb[0].mxu0
  %v6663 = vpop.f32.mrb[0].mxu0
  %v6664 = vadd.f32 0.0, %v6663
  %v6665 = vpop.f32.mrb[0].mxu0
  %6666 = vmatprep.mubr.bf16.mxu0 0
  %6667 = vmatmul.mubr.bf16.gmra.mrb[0].mxu0 %v5584
  %v6668 = vpop.f32.mrb[0].mxu0
  %v6669 = vadd.f32 0.0, %v6668
  %v6670 = vpop.f32.mrb[0].mxu0
  %v6671 = vpop.f32.mrb[0].mxu0
  %v6672 = vadd.f32 0.0, %v6671
  %v6673 = vpop.f32.mrb[0].mxu0
  %6674 = vmatprep.mubr.bf16.mxu0 0
  %6675 = vmatmul.mubr.bf16.gmra.mrb[0].mxu0 %v5585
  %v6676 = vpop.f32.mrb[0].mxu0
  %v6677 = vadd.f32 0.0, %v6676
  %v6678 = vpop.f32.mrb[0].mxu0
  %v6679 = vpop.f32.mrb[0].mxu0
  %v6680 = vadd.f32 0.0, %v6679
  %v6681 = vpop.f32.mrb[0].mxu0
  %6682 = vmatprep.mubr.bf16.mxu0 0
  %6683 = vmatmul.mubr.bf16.gmra.mrb[0].mxu0 %v5586
  %v6684 = vpop.f32.mrb[0].mxu0
  %v6685 = vadd.f32 0.0, %v6684
  %v6686 = vpop.f32.mrb[0].mxu0
  %v6687 = vpop.f32.mrb[0].mxu0
  %v6688 = vadd.f32 0.0, %v6687
  %v6689 = vpop.f32.mrb[0].mxu0
  %6690 = vmatprep.mubr.bf16.mxu0 0
  %6691 = vmatmul.mubr.bf16.gmra.mrb[0].mxu0 %v5587
  %v6692 = vpop.f32.mrb[0].mxu0
  %v6693 = vadd.f32 0.0, %v6692
  %v6694 = vpop.f32.mrb[0].mxu0
  %v6695 = vpop.f32.mrb[0].mxu0
  %v6696 = vadd.f32 0.0, %v6695
  %v6697 = vpop.f32.mrb[0].mxu0
  %6698 = vmatprep.mubr.bf16.mxu0 0
  %6699 = vmatmul.mubr.bf16.gmra.mrb[0].mxu0 %v5588
  %v6700 = vpop.f32.mrb[0].mxu0
  %v6701 = vadd.f32 0.0, %v6700
  %v6702 = vpop.f32.mrb[0].mxu0
  %v6703 = vpop.f32.mrb[0].mxu0
  %v6704 = vadd.f32 0.0, %v6703
  %v6705 = vpop.f32.mrb[0].mxu0
  %6706 = vmatprep.mubr.bf16.mxu0 0
  %6707 = vmatmul.mubr.bf16.gmra.mrb[0].mxu0 %v5589
  %v6708 = vpop.f32.mrb[0].mxu0
  %v6709 = vadd.f32 0.0, %v6708
  %v6710 = vpop.f32.mrb[0].mxu0
  %v6711 = vpop.f32.mrb[0].mxu0
  %v6712 = vadd.f32 0.0, %v6711
  %v6713 = vpop.f32.mrb[0].mxu0
  %6714 = vmatprep.mubr.bf16.mxu0 0
  %6715 = vmatmul.mubr.bf16.gmra.mrb[0].mxu0 %v5590
  %v6716 = vpop.f32.mrb[0].mxu0
  %v6717 = vadd.f32 0.0, %v6716
  %v6718 = vpop.f32.mrb[0].mxu0
  %v6719 = vpop.f32.mrb[0].mxu0
  %v6720 = vadd.f32 0.0, %v6719
  %v6721 = vpop.f32.mrb[0].mxu0
  %6722 = vmatprep.mubr.bf16.mxu0 0
  %6723 = vmatmul.mubr.bf16.gmra.mrb[0].mxu0 %v5591
  %v6724 = vpop.f32.mrb[0].mxu0
  %v6725 = vadd.f32 0.0, %v6724
  %v6726 = vpop.f32.mrb[0].mxu0
  %v6727 = vpop.f32.mrb[0].mxu0
  %v6728 = vadd.f32 0.0, %v6727
  %v6729 = vpop.f32.mrb[0].mxu0
  %6730 = vmatprep.mubr.bf16.mxu0 0
  %6731 = vmatmul.mubr.bf16.gmra.mrb[0].mxu0 %v5592
  %v6732 = vpop.f32.mrb[0].mxu0
  %v6733 = vadd.f32 0.0, %v6732
  %v6734 = vpop.f32.mrb[0].mxu0
  %v6735 = vpop.f32.mrb[0].mxu0
  %v6736 = vadd.f32 0.0, %v6735
  %v6737 = vpop.f32.mrb[0].mxu0
  %6738 = vmatprep.mubr.bf16.mxu0 0
  %6739 = vmatmul.mubr.bf16.gmra.mrb[0].mxu0 %v5593
  %v6740 = vpop.f32.mrb[0].mxu0
  %v6741 = vadd.f32 0.0, %v6740
  %v6742 = vpop.f32.mrb[0].mxu0
  %v6743 = vpop.f32.mrb[0].mxu0
  %v6744 = vadd.f32 0.0, %v6743
  %v6745 = vpop.f32.mrb[0].mxu0
  %6746 = vmatprep.mubr.bf16.mxu0 0
  %6747 = vmatmul.mubr.bf16.gmra.mrb[0].mxu0 %v5594
  %v6748 = vpop.f32.mrb[0].mxu0
  %v6749 = vadd.f32 0.0, %v6748
  %v6750 = vpop.f32.mrb[0].mxu0
  %v6751 = vpop.f32.mrb[0].mxu0
  %v6752 = vadd.f32 0.0, %v6751
  %v6753 = vpop.f32.mrb[0].mxu0
  %6754 = vmatprep.mubr.bf16.mxu0 0
  %6755 = vmatmul.mubr.bf16.gmra.mrb[0].mxu0 %v5595
  %v6756 = vpop.f32.mrb[0].mxu0
  %v6757 = vadd.f32 0.0, %v6756
  %v6758 = vpop.f32.mrb[0].mxu0
  %v6759 = vpop.f32.mrb[0].mxu0
  %v6760 = vadd.f32 0.0, %v6759
  %v6761 = vpop.f32.mrb[0].mxu0
  %6762 = vmatprep.mubr.bf16.mxu0 0
  %6763 = vmatmul.mubr.bf16.gmra.mrb[0].mxu0 %v5596
  %v6764 = vpop.f32.mrb[0].mxu0
  %v6765 = vadd.f32 0.0, %v6764
  %v6766 = vpop.f32.mrb[0].mxu0
  %v6767 = vpop.f32.mrb[0].mxu0
  %v6768 = vadd.f32 0.0, %v6767
  %v6769 = vpop.f32.mrb[0].mxu0
  %6770 = vmatprep.mubr.bf16.mxu0 0
  %6771 = vmatmul.mubr.bf16.gmra.mrb[0].mxu0 %v5597
  %v6772 = vpop.f32.mrb[0].mxu0
  %v6773 = vadd.f32 0.0, %v6772
  %v6774 = vpop.f32.mrb[0].mxu0
  %v6775 = vpop.f32.mrb[0].mxu0
  %v6776 = vadd.f32 0.0, %v6775
  %v6777 = vpop.f32.mrb[0].mxu0
  %6778 = vmatprep.mubr.bf16.mxu0 0
  %6779 = vmatmul.mubr.bf16.gmra.mrb[0].mxu0 %v5598
  %v6780 = vpop.f32.mrb[0].mxu0
  %v6781 = vadd.f32 0.0, %v6780
  %v6782 = vpop.f32.mrb[0].mxu0
  %v6783 = vpop.f32.mrb[0].mxu0
  %v6784 = vadd.f32 0.0, %v6783
  %v6785 = vpop.f32.mrb[0].mxu0
  %6786 = vmatprep.mubr.bf16.mxu0 0
  %6787 = vmatmul.mubr.bf16.gmra.mrb[0].mxu0 %v5599
  %v6788 = vpop.f32.mrb[0].mxu0
  %v6789 = vadd.f32 0.0, %v6788
  %v6790 = vpop.f32.mrb[0].mxu0
  %v6791 = vpop.f32.mrb[0].mxu0
  %v6792 = vadd.f32 0.0, %v6791
  %v6793 = vpop.f32.mrb[0].mxu0
  %6794 = vmatprep.mubr.bf16.mxu0 0
  %6795 = vmatmul.mubr.bf16.gmra.mrb[0].mxu0 %v5600
  %v6796 = vpop.f32.mrb[0].mxu0
  %v6797 = vadd.f32 0.0, %v6796
  %v6798 = vpop.f32.mrb[0].mxu0
  %v6799 = vpop.f32.mrb[0].mxu0
  %v6800 = vadd.f32 0.0, %v6799
  %v6801 = vpop.f32.mrb[0].mxu0
  %6802 = vmatprep.mubr.bf16.mxu0 0
  %6803 = vmatmul.mubr.bf16.gmra.mrb[0].mxu0 %v5601
  %v6804 = vpop.f32.mrb[0].mxu0
  %v6805 = vadd.f32 0.0, %v6804
  %v6806 = vpop.f32.mrb[0].mxu0
  %v6807 = vpop.f32.mrb[0].mxu0
  %v6808 = vadd.f32 0.0, %v6807
  %v6809 = vpop.f32.mrb[0].mxu0
  %6810 = vmatprep.mubr.bf16.mxu0 0
  %6811 = vmatmul.mubr.bf16.gmra.mrb[0].mxu0 %v5602
  %v6812 = vpop.f32.mrb[0].mxu0
  %v6813 = vadd.f32 0.0, %v6812
  %v6814 = vpop.f32.mrb[0].mxu0
  %v6815 = vpop.f32.mrb[0].mxu0
  %v6816 = vadd.f32 0.0, %v6815
  %v6817 = vpop.f32.mrb[0].mxu0
  %6818 = vmatprep.mubr.bf16.mxu0 0
  %6819 = vmatmul.mubr.bf16.gmra.mrb[0].mxu0 %v5603
  %v6820 = vpop.f32.mrb[0].mxu0
  %v6821 = vadd.f32 0.0, %v6820
  %v6822 = vpop.f32.mrb[0].mxu0
  %v6823 = vpop.f32.mrb[0].mxu0
  %v6824 = vadd.f32 0.0, %v6823
  %v6825 = vpop.f32.mrb[0].mxu0
  %6826 = vmatprep.mubr.bf16.mxu0 0
  %6827 = vmatmul.mubr.bf16.gmra.mrb[0].mxu0 %v5604
  %v6828 = vpop.f32.mrb[0].mxu0
  %v6829 = vadd.f32 0.0, %v6828
  %v6830 = vpop.f32.mrb[0].mxu0
  %v6831 = vpop.f32.mrb[0].mxu0
  %v6832 = vadd.f32 0.0, %v6831
  %v6833 = vpop.f32.mrb[0].mxu0
  %6834 = vmatprep.mubr.bf16.mxu0 0
  %6835 = vmatmul.mubr.bf16.gmra.mrb[0].mxu0 %v5605
  %v6836 = vpop.f32.mrb[0].mxu0
  %v6837 = vadd.f32 0.0, %v6836
  %v6838 = vpop.f32.mrb[0].mxu0
  %v6839 = vpop.f32.mrb[0].mxu0
  %v6840 = vadd.f32 0.0, %v6839
  %v6841 = vpop.f32.mrb[0].mxu0
  %6842 = vmatprep.mubr.bf16.mxu0 0
  %6843 = vmatmul.mubr.bf16.gmra.mrb[0].mxu0 %v5606
  %v6844 = vpop.f32.mrb[0].mxu0
  %v6845 = vadd.f32 0.0, %v6844
  %v6846 = vpop.f32.mrb[0].mxu0
  %v6847 = vpop.f32.mrb[0].mxu0
  %v6848 = vadd.f32 0.0, %v6847
  %v6849 = vpop.f32.mrb[0].mxu0
  %6850 = vmatprep.mubr.bf16.mxu0 0
  %6851 = vmatmul.mubr.bf16.gmra.mrb[0].mxu0 %v5607
  %v6852 = vpop.f32.mrb[0].mxu0
  %v6853 = vadd.f32 0.0, %v6852
  %v6854 = vpop.f32.mrb[0].mxu0
  %v6855 = vpop.f32.mrb[0].mxu0
  %v6856 = vadd.f32 0.0, %v6855
  %v6857 = vpop.f32.mrb[0].mxu0
  %6858 = vmatprep.mubr.bf16.mxu0 0
  %6859 = vmatmul.mubr.bf16.gmra.mrb[0].mxu0 %v5608
  %v6860 = vpop.f32.mrb[0].mxu0
  %v6861 = vadd.f32 0.0, %v6860
  %v6862 = vpop.f32.mrb[0].mxu0
  %v6863 = vpop.f32.mrb[0].mxu0
  %v6864 = vadd.f32 0.0, %v6863
  %v6865 = vpop.f32.mrb[0].mxu0
  %6866 = vdwg.mxu0
  %v6867 = vrot.slane %v5830, 1
  %v6868 = vrot.slane %v5834, 1
  %v6869 = vrot.slane %v5840, 1
  %v6870 = vrot.slane %v5844, 1
  %v6871 = vrot.slane %v5850, 1
  %v6872 = vrot.slane %v5854, 1
  %v6873 = vrot.slane %v5860, 1
  %v6874 = vrot.slane %v5864, 1
  %v6875 = vrot.slane %v5870, 1
  %v6876 = vrot.slane %v5874, 1
  %v6877 = vrot.slane %v5880, 1
  %v6878 = vrot.slane %v5884, 1
  %v6879 = vrot.slane %v5890, 1
  %v6880 = vrot.slane %v5894, 1
  %v6881 = vrot.slane %v5900, 1
  %v6882 = vrot.slane %v5904, 1
  %v6883 = vrot.slane %v5910, 1
  %v6884 = vrot.slane %v5914, 1
  %v6885 = vrot.slane %v5920, 1
  %v6886 = vrot.slane %v5924, 1
  %v6887 = vrot.slane %v5930, 1
  %v6888 = vrot.slane %v5934, 1
  %v6889 = vrot.slane %v5940, 1
  %v6890 = vrot.slane %v5944, 1
  %v6891 = vrot.slane %v5950, 1
  %v6892 = vrot.slane %v5954, 1
  %v6893 = vrot.slane %v5960, 1
  %v6894 = vrot.slane %v5964, 1
  %v6895 = vrot.slane %v5970, 1
  %v6896 = vrot.slane %v5974, 1
  %v6897 = vrot.slane %v5980, 1
  %v6898 = vrot.slane %v5984, 1
  %v6899 = vrot.slane %v5990, 1
  %v6900 = vrot.slane %v5994, 1
  %v6901 = vrot.slane %v6000, 1
  %v6902 = vrot.slane %v6004, 1
  %v6903 = vrot.slane %v6010, 1
  %v6904 = vrot.slane %v6014, 1
  %v6905 = vrot.slane %v6020, 1
  %v6906 = vrot.slane %v6024, 1
  %v6907 = vrot.slane %v6030, 1
  %v6908 = vrot.slane %v6034, 1
  %v6909 = vrot.slane %v6040, 1
  %v6910 = vrot.slane %v6044, 1
  %v6911 = vrot.slane %v6050, 1
  %v6912 = vrot.slane %v6054, 1
  %v6913 = vrot.slane %v6060, 1
  %v6914 = vrot.slane %v6064, 1
  %v6915 = vrot.slane %v6070, 1
  %v6916 = vrot.slane %v6074, 1
  %v6917 = vrot.slane %v6080, 1
  %v6918 = vrot.slane %v6084, 1
  %v6919 = vrot.slane %v6090, 1
  %v6920 = vrot.slane %v6094, 1
  %v6921 = vrot.slane %v6100, 1
  %v6922 = vrot.slane %v6104, 1
  %v6923 = vrot.slane %v6110, 1
  %v6924 = vrot.slane %v6114, 1
  %v6925 = vrot.slane %v6120, 1
  %v6926 = vrot.slane %v6124, 1
  %v6927 = vrot.slane %v6130, 1
  %v6928 = vrot.slane %v6134, 1
  %v6929 = vrot.slane %v6140, 1
  %v6930 = vrot.slane %v6144, 1
  %v6931 = vrot.slane %v6150, 1
  %v6932 = vrot.slane %v6154, 1
  %v6933 = vrot.slane %v6160, 1
  %v6934 = vrot.slane %v6164, 1
  %v6935 = vrot.slane %v6170, 1
  %v6936 = vrot.slane %v6174, 1
  %v6937 = vrot.slane %v6180, 1
  %v6938 = vrot.slane %v6184, 1
  %v6939 = vrot.slane %v6190, 1
  %v6940 = vrot.slane %v6194, 1
  %v6941 = vrot.slane %v6200, 1
  %v6942 = vrot.slane %v6204, 1
  %v6943 = vrot.slane %v6210, 1
  %v6944 = vrot.slane %v6214, 1
  %v6945 = vrot.slane %v6220, 1
  %v6946 = vrot.slane %v6224, 1
  %v6947 = vrot.slane %v6230, 1
  %v6948 = vrot.slane %v6234, 1
  %v6949 = vrot.slane %v6240, 1
  %v6950 = vrot.slane %v6244, 1
  %v6951 = vrot.slane %v6250, 1
  %v6952 = vrot.slane %v6254, 1
  %v6953 = vrot.slane %v6260, 1
  %v6954 = vrot.slane %v6264, 1
  %v6955 = vrot.slane %v6270, 1
  %v6956 = vrot.slane %v6274, 1
  %v6957 = vrot.slane %v6280, 1
  %v6958 = vrot.slane %v6284, 1
  %v6959 = vrot.slane %v6290, 1
  %v6960 = vrot.slane %v6294, 1
  %v6961 = vrot.slane %v6300, 1
  %v6962 = vrot.slane %v6304, 1
  %v6963 = vrot.slane %v6310, 1
  %v6964 = vrot.slane %v6314, 1
  %v6965 = vrot.slane %v6320, 1
  %v6966 = vrot.slane %v6324, 1
  %v6967 = vrot.slane %v6330, 1
  %v6968 = vrot.slane %v6334, 1
  %v6969 = vrot.slane %v6340, 1
  %v6970 = vrot.slane %v6344, 1
  %v6971 = vrot.slane %v6350, 1
  %v6972 = vrot.slane %v6354, 1
  %v6973 = vrot.slane %v6360, 1
  %v6974 = vrot.slane %v6364, 1
  %v6975 = vrot.slane %v6370, 1
  %v6976 = vrot.slane %v6374, 1
  %v6977 = vrot.slane %v6380, 1
  %v6978 = vrot.slane %v6384, 1
  %v6979 = vsel %vm1817, %v6977, %v6978
  %v6980 = vsel %vm1817, %v6976, %v6977
  %v6981 = vsel %vm1817, %v6975, %v6976
  %v6982 = vsel %vm1817, %v6974, %v6975
  %v6983 = vsel %vm1817, %v6973, %v6974
  %v6984 = vsel %vm1817, %v6972, %v6973
  %v6985 = vsel %vm1817, %v6971, %v6972
  %v6986 = vsel %vm1817, %v6970, %v6971
  %v6987 = vsel %vm1817, %v6969, %v6970
  %v6988 = vsel %vm1817, %v6968, %v6969
  %v6989 = vsel %vm1817, %v6967, %v6968
  %v6990 = vsel %vm1817, %v6966, %v6967
  %v6991 = vsel %vm1817, %v6965, %v6966
  %v6992 = vsel %vm1817, %v6964, %v6965
  %v6993 = vsel %vm1817, %v6963, %v6964
  %v6994 = vsel %vm1817, %v6962, %v6963
  %v6995 = vsel %vm1817, %v6961, %v6962
  %v6996 = vsel %vm1817, %v6960, %v6961
  %v6997 = vsel %vm1817, %v6959, %v6960
  %v6998 = vsel %vm1817, %v6958, %v6959
  %v6999 = vsel %vm1817, %v6957, %v6958
  %v7000 = vsel %vm1817, %v6956, %v6957
  %v7001 = vsel %vm1817, %v6955, %v6956
  %v7002 = vsel %vm1817, %v6954, %v6955
  %v7003 = vsel %vm1817, %v6953, %v6954
  %v7004 = vsel %vm1817, %v6952, %v6953
  %v7005 = vsel %vm1817, %v6951, %v6952
  %v7006 = vsel %vm1817, %v6950, %v6951
  %v7007 = vsel %vm1817, %v6949, %v6950
  %v7008 = vsel %vm1817, %v6948, %v6949
  %v7009 = vsel %vm1817, %v6947, %v6948
  %v7010 = vsel %vm1817, %v6946, %v6947
  %v7011 = vsel %vm1817, %v6945, %v6946
  %v7012 = vsel %vm1817, %v6944, %v6945
  %v7013 = vsel %vm1817, %v6943, %v6944
  %v7014 = vsel %vm1817, %v6942, %v6943
  %v7015 = vsel %vm1817, %v6941, %v6942
  %v7016 = vsel %vm1817, %v6940, %v6941
  %v7017 = vsel %vm1817, %v6939, %v6940
  %v7018 = vsel %vm1817, %v6938, %v6939
  %v7019 = vsel %vm1817, %v6937, %v6938
  %v7020 = vsel %vm1817, %v6936, %v6937
  %v7021 = vsel %vm1817, %v6935, %v6936
  %v7022 = vsel %vm1817, %v6934, %v6935
  %v7023 = vsel %vm1817, %v6933, %v6934
  %v7024 = vsel %vm1817, %v6932, %v6933
  %v7025 = vsel %vm1817, %v6931, %v6932
  %v7026 = vsel %vm1817, %v6930, %v6931
  %v7027 = vsel %vm1817, %v6929, %v6930
  %v7028 = vsel %vm1817, %v6928, %v6929
  %v7029 = vsel %vm1817, %v6927, %v6928
  %v7030 = vsel %vm1817, %v6926, %v6927
  %v7031 = vsel %vm1817, %v6925, %v6926
  %v7032 = vsel %vm1817, %v6924, %v6925
  %v7033 = vsel %vm1817, %v6923, %v6924
  %v7034 = vsel %vm1817, %v6922, %v6923
  %v7035 = vsel %vm1817, %v6921, %v6922
  %v7036 = vsel %vm1817, %v6920, %v6921
  %v7037 = vsel %vm1817, %v6919, %v6920
  %v7038 = vsel %vm1817, %v6918, %v6919
  %v7039 = vsel %vm1817, %v6917, %v6918
  %v7040 = vsel %vm1817, %v6916, %v6917
  %v7041 = vsel %vm1817, %v6915, %v6916
  %v7042 = vsel %vm1817, %v6914, %v6915
  %v7043 = vsel %vm1817, %v6913, %v6914
  %v7044 = vsel %vm1817, %v6912, %v6913
  %v7045 = vsel %vm1817, %v6911, %v6912
  %v7046 = vsel %vm1817, %v6910, %v6911
  %v7047 = vsel %vm1817, %v6909, %v6910
  %v7048 = vsel %vm1817, %v6908, %v6909
  %v7049 = vsel %vm1817, %v6907, %v6908
  %v7050 = vsel %vm1817, %v6906, %v6907
  %v7051 = vsel %vm1817, %v6905, %v6906
  %v7052 = vsel %vm1817, %v6904, %v6905
  %v7053 = vsel %vm1817, %v6903, %v6904
  %v7054 = vsel %vm1817, %v6902, %v6903
  %v7055 = vsel %vm1817, %v6901, %v6902
  %v7056 = vsel %vm1817, %v6900, %v6901
  %v7057 = vsel %vm1817, %v6899, %v6900
  %v7058 = vsel %vm1817, %v6898, %v6899
  %v7059 = vsel %vm1817, %v6897, %v6898
  %v7060 = vsel %vm1817, %v6896, %v6897
  %v7061 = vsel %vm1817, %v6895, %v6896
  %v7062 = vsel %vm1817, %v6894, %v6895
  %v7063 = vsel %vm1817, %v6893, %v6894
  %v7064 = vsel %vm1817, %v6892, %v6893
  %v7065 = vsel %vm1817, %v6891, %v6892
  %v7066 = vsel %vm1817, %v6890, %v6891
  %v7067 = vsel %vm1817, %v6889, %v6890
  %v7068 = vsel %vm1817, %v6888, %v6889
  %v7069 = vsel %vm1817, %v6887, %v6888
  %v7070 = vsel %vm1817, %v6886, %v6887
  %v7071 = vsel %vm1817, %v6885, %v6886
  %v7072 = vsel %vm1817, %v6884, %v6885
  %v7073 = vsel %vm1817, %v6883, %v6884
  %v7074 = vsel %vm1817, %v6882, %v6883
  %v7075 = vsel %vm1817, %v6881, %v6882
  %v7076 = vsel %vm1817, %v6880, %v6881
  %v7077 = vsel %vm1817, %v6879, %v6880
  %v7078 = vsel %vm1817, %v6878, %v6879
  %v7079 = vsel %vm1817, %v6877, %v6878
  %v7080 = vsel %vm1817, %v6876, %v6877
  %v7081 = vsel %vm1817, %v6875, %v6876
  %v7082 = vsel %vm1817, %v6874, %v6875
  %v7083 = vsel %vm1817, %v6873, %v6874
  %v7084 = vsel %vm1817, %v6872, %v6873
  %v7085 = vsel %vm1817, %v6871, %v6872
  %v7086 = vsel %vm1817, %v6870, %v6871
  %v7087 = vsel %vm1817, %v6869, %v6870
  %v7088 = vsel %vm1817, %v6868, %v6869
  %v7089 = vsel %vm1817, %v6867, %v6868
  %v7090 = vsel %vm1817, %v6978, %v6867
  %v7091 = vadd.f32 %v5828, %v7089
  %v7092 = vadd.f32 %v5832, %v7088
  %v7093 = vadd.f32 %v5838, %v7087
  %v7094 = vadd.f32 %v5842, %v7086
  %v7095 = vadd.f32 %v5848, %v7085
  %v7096 = vadd.f32 %v5852, %v7084
  %v7097 = vadd.f32 %v5858, %v7083
  %v7098 = vadd.f32 %v5862, %v7082
  %v7099 = vadd.f32 %v5868, %v7081
  %v7100 = vadd.f32 %v5872, %v7080
  %v7101 = vadd.f32 %v5878, %v7079
  %v7102 = vadd.f32 %v5882, %v7078
  %v7103 = vadd.f32 %v5888, %v7077
  %v7104 = vadd.f32 %v5892, %v7076
  %v7105 = vadd.f32 %v5898, %v7075
  %v7106 = vadd.f32 %v5902, %v7074
  %v7107 = vadd.f32 %v5908, %v7073
  %v7108 = vadd.f32 %v5912, %v7072
  %v7109 = vadd.f32 %v5918, %v7071
  %v7110 = vadd.f32 %v5922, %v7070
  %v7111 = vadd.f32 %v5928, %v7069
  %v7112 = vadd.f32 %v5932, %v7068
  %v7113 = vadd.f32 %v5938, %v7067
  %v7114 = vadd.f32 %v5942, %v7066
  %v7115 = vadd.f32 %v5948, %v7065
  %v7116 = vadd.f32 %v5952, %v7064
  %v7117 = vadd.f32 %v5958, %v7063
  %v7118 = vadd.f32 %v5962, %v7062
  %v7119 = vadd.f32 %v5968, %v7061
  %v7120 = vadd.f32 %v5972, %v7060
  %v7121 = vadd.f32 %v5978, %v7059
  %v7122 = vadd.f32 %v5982, %v7058
  %v7123 = vadd.f32 %v5988, %v7057
  %v7124 = vadd.f32 %v5992, %v7056
  %v7125 = vadd.f32 %v5998, %v7055
  %v7126 = vadd.f32 %v6002, %v7054
  %v7127 = vadd.f32 %v6008, %v7053
  %v7128 = vadd.f32 %v6012, %v7052
  %v7129 = vadd.f32 %v6018, %v7051
  %v7130 = vadd.f32 %v6022, %v7050
  %v7131 = vadd.f32 %v6028, %v7049
  %v7132 = vadd.f32 %v6032, %v7048
  %v7133 = vadd.f32 %v6038, %v7047
  %v7134 = vadd.f32 %v6042, %v7046
  %v7135 = vadd.f32 %v6048, %v7045
  %v7136 = vadd.f32 %v6052, %v7044
  %v7137 = vadd.f32 %v6058, %v7043
  %v7138 = vadd.f32 %v6062, %v7042
  %v7139 = vadd.f32 %v6068, %v7041
  %v7140 = vadd.f32 %v6072, %v7040
  %v7141 = vadd.f32 %v6078, %v7039
  %v7142 = vadd.f32 %v6082, %v7038
  %v7143 = vadd.f32 %v6088, %v7037
  %v7144 = vadd.f32 %v6092, %v7036
  %v7145 = vadd.f32 %v6098, %v7035
  %v7146 = vadd.f32 %v6102, %v7034
  %v7147 = vadd.f32 %v6108, %v7033
  %v7148 = vadd.f32 %v6112, %v7032
  %v7149 = vadd.f32 %v6118, %v7031
  %v7150 = vadd.f32 %v6122, %v7030
  %v7151 = vadd.f32 %v6128, %v7029
  %v7152 = vadd.f32 %v6132, %v7028
  %v7153 = vadd.f32 %v6138, %v7027
  %v7154 = vadd.f32 %v6142, %v7026
  %v7155 = vadd.f32 %v6148, %v7025
  %v7156 = vadd.f32 %v6152, %v7024
  %v7157 = vadd.f32 %v6158, %v7023
  %v7158 = vadd.f32 %v6162, %v7022
  %v7159 = vadd.f32 %v6168, %v7021
  %v7160 = vadd.f32 %v6172, %v7020
  %v7161 = vadd.f32 %v6178, %v7019
  %v7162 = vadd.f32 %v6182, %v7018
  %v7163 = vadd.f32 %v6188, %v7017
  %v7164 = vadd.f32 %v6192, %v7016
  %v7165 = vadd.f32 %v6198, %v7015
  %v7166 = vadd.f32 %v6202, %v7014
  %v7167 = vadd.f32 %v6208, %v7013
  %v7168 = vadd.f32 %v6212, %v7012
  %v7169 = vadd.f32 %v6218, %v7011
  %v7170 = vadd.f32 %v6222, %v7010
  %v7171 = vadd.f32 %v6228, %v7009
  %v7172 = vadd.f32 %v6232, %v7008
  %v7173 = vadd.f32 %v6238, %v7007
  %v7174 = vadd.f32 %v6242, %v7006
  %v7175 = vadd.f32 %v6248, %v7005
  %v7176 = vadd.f32 %v6252, %v7004
  %v7177 = vadd.f32 %v6258, %v7003
  %v7178 = vadd.f32 %v6262, %v7002
  %v7179 = vadd.f32 %v6268, %v7001
  %v7180 = vadd.f32 %v6272, %v7000
  %v7181 = vadd.f32 %v6278, %v6999
  %v7182 = vadd.f32 %v6282, %v6998
  %v7183 = vadd.f32 %v6288, %v6997
  %v7184 = vadd.f32 %v6292, %v6996
  %v7185 = vadd.f32 %v6298, %v6995
  %v7186 = vadd.f32 %v6302, %v6994
  %v7187 = vadd.f32 %v6308, %v6993
  %v7188 = vadd.f32 %v6312, %v6992
  %v7189 = vadd.f32 %v6318, %v6991
  %v7190 = vadd.f32 %v6322, %v6990
  %v7191 = vadd.f32 %v6328, %v6989
  %v7192 = vadd.f32 %v6332, %v6988
  %v7193 = vadd.f32 %v6338, %v6987
  %v7194 = vadd.f32 %v6342, %v6986
  %v7195 = vadd.f32 %v6348, %v6985
  %v7196 = vadd.f32 %v6352, %v6984
  %v7197 = vadd.f32 %v6358, %v6983
  %v7198 = vadd.f32 %v6362, %v6982
  %v7199 = vadd.f32 %v6368, %v6981
  %v7200 = vadd.f32 %v6372, %v6980
  %v7201 = vadd.f32 %v6378, %v6979
  %v7202 = vadd.f32 %v6382, %v7090
  %v7203 = vrot.slane %v6421, 2
  %v7204 = vrot.slane %v6424, 2
  %v7205 = vrot.slane %v6429, 2
  %v7206 = vrot.slane %v6432, 2
  %v7207 = vrot.slane %v6437, 2
  %v7208 = vrot.slane %v6440, 2
  %v7209 = vrot.slane %v6445, 2
  %v7210 = vrot.slane %v6448, 2
  %v7211 = vrot.slane %v6453, 2
  %v7212 = vrot.slane %v6456, 2
  %v7213 = vrot.slane %v6461, 2
  %v7214 = vrot.slane %v6464, 2
  %v7215 = vrot.slane %v6469, 2
  %v7216 = vrot.slane %v6472, 2
  %v7217 = vrot.slane %v6477, 2
  %v7218 = vrot.slane %v6480, 2
  %v7219 = vrot.slane %v6485, 2
  %v7220 = vrot.slane %v6488, 2
  %v7221 = vrot.slane %v6493, 2
  %v7222 = vrot.slane %v6496, 2
  %v7223 = vrot.slane %v6501, 2
  %v7224 = vrot.slane %v6504, 2
  %v7225 = vrot.slane %v6509, 2
  %v7226 = vrot.slane %v6512, 2
  %v7227 = vrot.slane %v6517, 2
  %v7228 = vrot.slane %v6520, 2
  %v7229 = vrot.slane %v6525, 2
  %v7230 = vrot.slane %v6528, 2
  %v7231 = vrot.slane %v6533, 2
  %v7232 = vrot.slane %v6536, 2
  %v7233 = vrot.slane %v6541, 2
  %v7234 = vrot.slane %v6544, 2
  %v7235 = vrot.slane %v6549, 2
  %v7236 = vrot.slane %v6552, 2
  %v7237 = vrot.slane %v6557, 2
  %v7238 = vrot.slane %v6560, 2
  %v7239 = vrot.slane %v6565, 2
  %v7240 = vrot.slane %v6568, 2
  %v7241 = vrot.slane %v6573, 2
  %v7242 = vrot.slane %v6576, 2
  %v7243 = vrot.slane %v6581, 2
  %v7244 = vrot.slane %v6584, 2
  %v7245 = vrot.slane %v6589, 2
  %v7246 = vrot.slane %v6592, 2
  %v7247 = vrot.slane %v6597, 2
  %v7248 = vrot.slane %v6600, 2
  %v7249 = vrot.slane %v6605, 2
  %v7250 = vrot.slane %v6608, 2
  %v7251 = vrot.slane %v6613, 2
  %v7252 = vrot.slane %v6616, 2
  %v7253 = vrot.slane %v6621, 2
  %v7254 = vrot.slane %v6624, 2
  %v7255 = vrot.slane %v6629, 2
  %v7256 = vrot.slane %v6632, 2
  %v7257 = vrot.slane %v6637, 2
  %v7258 = vrot.slane %v6640, 2
  %v7259 = vrot.slane %v6645, 2
  %v7260 = vrot.slane %v6648, 2
  %v7261 = vrot.slane %v6653, 2
  %v7262 = vrot.slane %v6656, 2
  %v7263 = vrot.slane %v6661, 2
  %v7264 = vrot.slane %v6664, 2
  %v7265 = vrot.slane %v6669, 2
  %v7266 = vrot.slane %v6672, 2
  %v7267 = vrot.slane %v6677, 2
  %v7268 = vrot.slane %v6680, 2
  %v7269 = vrot.slane %v6685, 2
  %v7270 = vrot.slane %v6688, 2
  %v7271 = vrot.slane %v6693, 2
  %v7272 = vrot.slane %v6696, 2
  %v7273 = vrot.slane %v6701, 2
  %v7274 = vrot.slane %v6704, 2
  %v7275 = vrot.slane %v6709, 2
  %v7276 = vrot.slane %v6712, 2
  %v7277 = vrot.slane %v6717, 2
  %v7278 = vrot.slane %v6720, 2
  %v7279 = vrot.slane %v6725, 2
  %v7280 = vrot.slane %v6728, 2
  %v7281 = vrot.slane %v6733, 2
  %v7282 = vrot.slane %v6736, 2
  %v7283 = vrot.slane %v6741, 2
  %v7284 = vrot.slane %v6744, 2
  %v7285 = vrot.slane %v6749, 2
  %v7286 = vrot.slane %v6752, 2
  %v7287 = vrot.slane %v6757, 2
  %v7288 = vrot.slane %v6760, 2
  %v7289 = vrot.slane %v6765, 2
  %v7290 = vrot.slane %v6768, 2
  %v7291 = vrot.slane %v6773, 2
  %v7292 = vrot.slane %v6776, 2
  %v7293 = vrot.slane %v6781, 2
  %v7294 = vrot.slane %v6784, 2
  %v7295 = vrot.slane %v6789, 2
  %v7296 = vrot.slane %v6792, 2
  %v7297 = vrot.slane %v6797, 2
  %v7298 = vrot.slane %v6800, 2
  %v7299 = vrot.slane %v6805, 2
  %v7300 = vrot.slane %v6808, 2
  %v7301 = vrot.slane %v6813, 2
  %v7302 = vrot.slane %v6816, 2
  %v7303 = vrot.slane %v6821, 2
  %v7304 = vrot.slane %v6824, 2
  %v7305 = vrot.slane %v6829, 2
  %v7306 = vrot.slane %v6832, 2
  %v7307 = vrot.slane %v6837, 2
  %v7308 = vrot.slane %v6840, 2
  %v7309 = vrot.slane %v6845, 2
  %v7310 = vrot.slane %v6848, 2
  %v7311 = vrot.slane %v6853, 2
  %v7312 = vrot.slane %v6856, 2
  %v7313 = vrot.slane %v6861, 2
  %v7314 = vrot.slane %v6864, 2
  %v7315 = vsel %vm2154, %v7313, %v7314
  %v7316 = vsel %vm2154, %v7312, %v7313
  %v7317 = vsel %vm2154, %v7311, %v7312
  %v7318 = vsel %vm2154, %v7310, %v7311
  %v7319 = vsel %vm2154, %v7309, %v7310
  %v7320 = vsel %vm2154, %v7308, %v7309
  %v7321 = vsel %vm2154, %v7307, %v7308
  %v7322 = vsel %vm2154, %v7306, %v7307
  %v7323 = vsel %vm2154, %v7305, %v7306
  %v7324 = vsel %vm2154, %v7304, %v7305
  %v7325 = vsel %vm2154, %v7303, %v7304
  %v7326 = vsel %vm2154, %v7302, %v7303
  %v7327 = vsel %vm2154, %v7301, %v7302
  %v7328 = vsel %vm2154, %v7300, %v7301
  %v7329 = vsel %vm2154, %v7299, %v7300
  %v7330 = vsel %vm2154, %v7298, %v7299
  %v7331 = vsel %vm2154, %v7297, %v7298
  %v7332 = vsel %vm2154, %v7296, %v7297
  %v7333 = vsel %vm2154, %v7295, %v7296
  %v7334 = vsel %vm2154, %v7294, %v7295
  %v7335 = vsel %vm2154, %v7293, %v7294
  %v7336 = vsel %vm2154, %v7292, %v7293
  %v7337 = vsel %vm2154, %v7291, %v7292
  %v7338 = vsel %vm2154, %v7290, %v7291
  %v7339 = vsel %vm2154, %v7289, %v7290
  %v7340 = vsel %vm2154, %v7288, %v7289
  %v7341 = vsel %vm2154, %v7287, %v7288
  %v7342 = vsel %vm2154, %v7286, %v7287
  %v7343 = vsel %vm2154, %v7285, %v7286
  %v7344 = vsel %vm2154, %v7284, %v7285
  %v7345 = vsel %vm2154, %v7283, %v7284
  %v7346 = vsel %vm2154, %v7282, %v7283
  %v7347 = vsel %vm2154, %v7281, %v7282
  %v7348 = vsel %vm2154, %v7280, %v7281
  %v7349 = vsel %vm2154, %v7279, %v7280
  %v7350 = vsel %vm2154, %v7278, %v7279
  %v7351 = vsel %vm2154, %v7277, %v7278
  %v7352 = vsel %vm2154, %v7276, %v7277
  %v7353 = vsel %vm2154, %v7275, %v7276
  %v7354 = vsel %vm2154, %v7274, %v7275
  %v7355 = vsel %vm2154, %v7273, %v7274
  %v7356 = vsel %vm2154, %v7272, %v7273
  %v7357 = vsel %vm2154, %v7271, %v7272
  %v7358 = vsel %vm2154, %v7270, %v7271
  %v7359 = vsel %vm2154, %v7269, %v7270
  %v7360 = vsel %vm2154, %v7268, %v7269
  %v7361 = vsel %vm2154, %v7267, %v7268
  %v7362 = vsel %vm2154, %v7266, %v7267
  %v7363 = vsel %vm2154, %v7265, %v7266
  %v7364 = vsel %vm2154, %v7264, %v7265
  %v7365 = vsel %vm2154, %v7263, %v7264
  %v7366 = vsel %vm2154, %v7262, %v7263
  %v7367 = vsel %vm2154, %v7261, %v7262
  %v7368 = vsel %vm2154, %v7260, %v7261
  %v7369 = vsel %vm2154, %v7259, %v7260
  %v7370 = vsel %vm2154, %v7258, %v7259
  %v7371 = vsel %vm2154, %v7257, %v7258
  %v7372 = vsel %vm2154, %v7256, %v7257
  %v7373 = vsel %vm2154, %v7255, %v7256
  %v7374 = vsel %vm2154, %v7254, %v7255
  %v7375 = vsel %vm2154, %v7253, %v7254
  %v7376 = vsel %vm2154, %v7252, %v7253
  %v7377 = vsel %vm2154, %v7251, %v7252
  %v7378 = vsel %vm2154, %v7250, %v7251
  %v7379 = vsel %vm2154, %v7249, %v7250
  %v7380 = vsel %vm2154, %v7248, %v7249
  %v7381 = vsel %vm2154, %v7247, %v7248
  %v7382 = vsel %vm2154, %v7246, %v7247
  %v7383 = vsel %vm2154, %v7245, %v7246
  %v7384 = vsel %vm2154, %v7244, %v7245
  %v7385 = vsel %vm2154, %v7243, %v7244
  %v7386 = vsel %vm2154, %v7242, %v7243
  %v7387 = vsel %vm2154, %v7241, %v7242
  %v7388 = vsel %vm2154, %v7240, %v7241
  %v7389 = vsel %vm2154, %v7239, %v7240
  %v7390 = vsel %vm2154, %v7238, %v7239
  %v7391 = vsel %vm2154, %v7237, %v7238
  %v7392 = vsel %vm2154, %v7236, %v7237
  %v7393 = vsel %vm2154, %v7235, %v7236
  %v7394 = vsel %vm2154, %v7234, %v7235
  %v7395 = vsel %vm2154, %v7233, %v7234
  %v7396 = vsel %vm2154, %v7232, %v7233
  %v7397 = vsel %vm2154, %v7231, %v7232
  %v7398 = vsel %vm2154, %v7230, %v7231
  %v7399 = vsel %vm2154, %v7229, %v7230
  %v7400 = vsel %vm2154, %v7228, %v7229
  %v7401 = vsel %vm2154, %v7227, %v7228
  %v7402 = vsel %vm2154, %v7226, %v7227
  %v7403 = vsel %vm2154, %v7225, %v7226
  %v7404 = vsel %vm2154, %v7224, %v7225
  %v7405 = vsel %vm2154, %v7223, %v7224
  %v7406 = vsel %vm2154, %v7222, %v7223
  %v7407 = vsel %vm2154, %v7221, %v7222
  %v7408 = vsel %vm2154, %v7220, %v7221
  %v7409 = vsel %vm2154, %v7219, %v7220
  %v7410 = vsel %vm2154, %v7218, %v7219
  %v7411 = vsel %vm2154, %v7217, %v7218
  %v7412 = vsel %vm2154, %v7216, %v7217
  %v7413 = vsel %vm2154, %v7215, %v7216
  %v7414 = vsel %vm2154, %v7214, %v7215
  %v7415 = vsel %vm2154, %v7213, %v7214
  %v7416 = vsel %vm2154, %v7212, %v7213
  %v7417 = vsel %vm2154, %v7211, %v7212
  %v7418 = vsel %vm2154, %v7210, %v7211
  %v7419 = vsel %vm2154, %v7209, %v7210
  %v7420 = vsel %vm2154, %v7208, %v7209
  %v7421 = vsel %vm2154, %v7207, %v7208
  %v7422 = vsel %vm2154, %v7206, %v7207
  %v7423 = vsel %vm2154, %v7205, %v7206
  %v7424 = vsel %vm2154, %v7204, %v7205
  %v7425 = vsel %vm2154, %v7203, %v7204
  %v7426 = vsel %vm2154, %v7314, %v7203
  %v7427 = vadd.f32 %v7091, %v7425
  %v7428 = vadd.f32 %v7092, %v7424
  %v7429 = vadd.f32 %v7093, %v7423
  %v7430 = vadd.f32 %v7094, %v7422
  %v7431 = vadd.f32 %v7095, %v7421
  %v7432 = vadd.f32 %v7096, %v7420
  %v7433 = vadd.f32 %v7097, %v7419
  %v7434 = vadd.f32 %v7098, %v7418
  %v7435 = vadd.f32 %v7099, %v7417
  %v7436 = vadd.f32 %v7100, %v7416
  %v7437 = vadd.f32 %v7101, %v7415
  %v7438 = vadd.f32 %v7102, %v7414
  %v7439 = vadd.f32 %v7103, %v7413
  %v7440 = vadd.f32 %v7104, %v7412
  %v7441 = vadd.f32 %v7105, %v7411
  %v7442 = vadd.f32 %v7106, %v7410
  %v7443 = vadd.f32 %v7107, %v7409
  %v7444 = vadd.f32 %v7108, %v7408
  %v7445 = vadd.f32 %v7109, %v7407
  %v7446 = vadd.f32 %v7110, %v7406
  %v7447 = vadd.f32 %v7111, %v7405
  %v7448 = vadd.f32 %v7112, %v7404
  %v7449 = vadd.f32 %v7113, %v7403
  %v7450 = vadd.f32 %v7114, %v7402
  %v7451 = vadd.f32 %v7115, %v7401
  %v7452 = vadd.f32 %v7116, %v7400
  %v7453 = vadd.f32 %v7117, %v7399
  %v7454 = vadd.f32 %v7118, %v7398
  %v7455 = vadd.f32 %v7119, %v7397
  %v7456 = vadd.f32 %v7120, %v7396
  %v7457 = vadd.f32 %v7121, %v7395
  %v7458 = vadd.f32 %v7122, %v7394
  %v7459 = vadd.f32 %v7123, %v7393
  %v7460 = vadd.f32 %v7124, %v7392
  %v7461 = vadd.f32 %v7125, %v7391
  %v7462 = vadd.f32 %v7126, %v7390
  %v7463 = vadd.f32 %v7127, %v7389
  %v7464 = vadd.f32 %v7128, %v7388
  %v7465 = vadd.f32 %v7129, %v7387
  %v7466 = vadd.f32 %v7130, %v7386
  %v7467 = vadd.f32 %v7131, %v7385
  %v7468 = vadd.f32 %v7132, %v7384
  %v7469 = vadd.f32 %v7133, %v7383
  %v7470 = vadd.f32 %v7134, %v7382
  %v7471 = vadd.f32 %v7135, %v7381
  %v7472 = vadd.f32 %v7136, %v7380
  %v7473 = vadd.f32 %v7137, %v7379
  %v7474 = vadd.f32 %v7138, %v7378
  %v7475 = vadd.f32 %v7139, %v7377
  %v7476 = vadd.f32 %v7140, %v7376
  %v7477 = vadd.f32 %v7141, %v7375
  %v7478 = vadd.f32 %v7142, %v7374
  %v7479 = vadd.f32 %v7143, %v7373
  %v7480 = vadd.f32 %v7144, %v7372
  %v7481 = vadd.f32 %v7145, %v7371
  %v7482 = vadd.f32 %v7146, %v7370
  %v7483 = vadd.f32 %v7147, %v7369
  %v7484 = vadd.f32 %v7148, %v7368
  %v7485 = vadd.f32 %v7149, %v7367
  %v7486 = vadd.f32 %v7150, %v7366
  %v7487 = vadd.f32 %v7151, %v7365
  %v7488 = vadd.f32 %v7152, %v7364
  %v7489 = vadd.f32 %v7153, %v7363
  %v7490 = vadd.f32 %v7154, %v7362
  %v7491 = vadd.f32 %v7155, %v7361
  %v7492 = vadd.f32 %v7156, %v7360
  %v7493 = vadd.f32 %v7157, %v7359
  %v7494 = vadd.f32 %v7158, %v7358
  %v7495 = vadd.f32 %v7159, %v7357
  %v7496 = vadd.f32 %v7160, %v7356
  %v7497 = vadd.f32 %v7161, %v7355
  %v7498 = vadd.f32 %v7162, %v7354
  %v7499 = vadd.f32 %v7163, %v7353
  %v7500 = vadd.f32 %v7164, %v7352
  %v7501 = vadd.f32 %v7165, %v7351
  %v7502 = vadd.f32 %v7166, %v7350
  %v7503 = vadd.f32 %v7167, %v7349
  %v7504 = vadd.f32 %v7168, %v7348
  %v7505 = vadd.f32 %v7169, %v7347
  %v7506 = vadd.f32 %v7170, %v7346
  %v7507 = vadd.f32 %v7171, %v7345
  %v7508 = vadd.f32 %v7172, %v7344
  %v7509 = vadd.f32 %v7173, %v7343
  %v7510 = vadd.f32 %v7174, %v7342
  %v7511 = vadd.f32 %v7175, %v7341
  %v7512 = vadd.f32 %v7176, %v7340
  %v7513 = vadd.f32 %v7177, %v7339
  %v7514 = vadd.f32 %v7178, %v7338
  %v7515 = vadd.f32 %v7179, %v7337
  %v7516 = vadd.f32 %v7180, %v7336
  %v7517 = vadd.f32 %v7181, %v7335
  %v7518 = vadd.f32 %v7182, %v7334
  %v7519 = vadd.f32 %v7183, %v7333
  %v7520 = vadd.f32 %v7184, %v7332
  %v7521 = vadd.f32 %v7185, %v7331
  %v7522 = vadd.f32 %v7186, %v7330
  %v7523 = vadd.f32 %v7187, %v7329
  %v7524 = vadd.f32 %v7188, %v7328
  %v7525 = vadd.f32 %v7189, %v7327
  %v7526 = vadd.f32 %v7190, %v7326
  %v7527 = vadd.f32 %v7191, %v7325
  %v7528 = vadd.f32 %v7192, %v7324
  %v7529 = vadd.f32 %v7193, %v7323
  %v7530 = vadd.f32 %v7194, %v7322
  %v7531 = vadd.f32 %v7195, %v7321
  %v7532 = vadd.f32 %v7196, %v7320
  %v7533 = vadd.f32 %v7197, %v7319
  %v7534 = vadd.f32 %v7198, %v7318
  %v7535 = vadd.f32 %v7199, %v7317
  %v7536 = vadd.f32 %v7200, %v7316
  %v7537 = vadd.f32 %v7201, %v7315
  %v7538 = vadd.f32 %v7202, %v7426
  %v7539 = vld [vmem:[#allocation2] sm:$0xff]
  %v7540 = vld [vmem:[#allocation2 + $0x8] sm:$0xff]
  %v7541 = vld [vmem:[#allocation2 + $0x10] sm:$0xff]
  %v7542 = vld [vmem:[#allocation2 + $0x18] sm:$0xff]
  %v7543 = vld [vmem:[#allocation2 + $0x20] sm:$0xff]
  %v7544 = vld [vmem:[#allocation2 + $0x28] sm:$0xff]
  %v7545 = vld [vmem:[#allocation2 + $0x30] sm:$0xff]
  %v7546 = vld [vmem:[#allocation2 + $0x38] sm:$0xff]
  %v7547 = vld [vmem:[#allocation2 + $0x40] sm:$0xff]
  %v7548 = vld [vmem:[#allocation2 + $0x48] sm:$0xff]
  %v7549 = vld [vmem:[#allocation2 + $0x50] sm:$0xff]
  %v7550 = vld [vmem:[#allocation2 + $0x58] sm:$0xff]
  %v7551 = vld [vmem:[#allocation2 + $0x60] sm:$0xff]
  %v7552 = vld [vmem:[#allocation2 + $0x68] sm:$0xff]
  %v7553 = vld [vmem:[#allocation2 + $0x70] sm:$0xff]
  %v7554 = vld [vmem:[#allocation2 + $0x78] sm:$0xff]
  %v7555 = vld [vmem:[#allocation2 + $0x80] sm:$0xff]
  %v7556 = vld [vmem:[#allocation2 + $0x88] sm:$0xff]
  %v7557 = vld [vmem:[#allocation2 + $0x90] sm:$0xff]
  %v7558 = vld [vmem:[#allocation2 + $0x98] sm:$0xff]
  %v7559 = vld [vmem:[#allocation2 + $0xa0] sm:$0xff]
  %v7560 = vld [vmem:[#allocation2 + $0xa8] sm:$0xff]
  %v7561 = vld [vmem:[#allocation2 + $0xb0] sm:$0xff]
  %v7562 = vld [vmem:[#allocation2 + $0xb8] sm:$0xff]
  %v7563 = vld [vmem:[#allocation2 + $0xc0] sm:$0xff]
  %v7564 = vld [vmem:[#allocation2 + $0xc8] sm:$0xff]
  %v7565 = vld [vmem:[#allocation2 + $0xd0] sm:$0xff]
  %v7566 = vld [vmem:[#allocation2 + $0xd8] sm:$0xff]
  %v7567 = vld [vmem:[#allocation2 + $0xe0] sm:$0xff]
  %v7568 = vld [vmem:[#allocation2 + $0xe8] sm:$0xff]
  %v7569 = vld [vmem:[#allocation2 + $0xf0] sm:$0xff]
  %v7570 = vld [vmem:[#allocation2 + $0xf8] sm:$0xff]
  %v7571 = vld [vmem:[#allocation2 + $0x100] sm:$0xff]
  %v7572 = vld [vmem:[#allocation2 + $0x108] sm:$0xff]
  %v7573 = vld [vmem:[#allocation2 + $0x110] sm:$0xff]
  %v7574 = vld [vmem:[#allocation2 + $0x118] sm:$0xff]
  %v7575 = vld [vmem:[#allocation2 + $0x120] sm:$0xff]
  %v7576 = vld [vmem:[#allocation2 + $0x128] sm:$0xff]
  %v7577 = vld [vmem:[#allocation2 + $0x130] sm:$0xff]
  %v7578 = vld [vmem:[#allocation2 + $0x138] sm:$0xff]
  %v7579 = vld [vmem:[#allocation2 + $0x140] sm:$0xff]
  %v7580 = vld [vmem:[#allocation2 + $0x148] sm:$0xff]
  %v7581 = vld [vmem:[#allocation2 + $0x150] sm:$0xff]
  %v7582 = vld [vmem:[#allocation2 + $0x158] sm:$0xff]
  %v7583 = vld [vmem:[#allocation2 + $0x160] sm:$0xff]
  %v7584 = vld [vmem:[#allocation2 + $0x168] sm:$0xff]
  %v7585 = vld [vmem:[#allocation2 + $0x170] sm:$0xff]
  %v7586 = vld [vmem:[#allocation2 + $0x178] sm:$0xff]
  %v7587 = vld [vmem:[#allocation2 + $0x180] sm:$0xff]
  %v7588 = vld [vmem:[#allocation2 + $0x188] sm:$0xff]
  %v7589 = vld [vmem:[#allocation2 + $0x190] sm:$0xff]
  %v7590 = vld [vmem:[#allocation2 + $0x198] sm:$0xff]
  %v7591 = vld [vmem:[#allocation2 + $0x1a0] sm:$0xff]
  %v7592 = vld [vmem:[#allocation2 + $0x1a8] sm:$0xff]
  %v7593 = vld [vmem:[#allocation2 + $0x1b0] sm:$0xff]
  %v7594 = vld [vmem:[#allocation2 + $0x1b8] sm:$0xff]
  %v7595 = vld [vmem:[#allocation2 + $0x1c0] sm:$0xff]
  %v7596 = vld [vmem:[#allocation2 + $0x1c8] sm:$0xff]
  %v7597 = vld [vmem:[#allocation2 + $0x1d0] sm:$0xff]
  %v7598 = vld [vmem:[#allocation2 + $0x1d8] sm:$0xff]
  %v7599 = vld [vmem:[#allocation2 + $0x1e0] sm:$0xff]
  %v7600 = vld [vmem:[#allocation2 + $0x1e8] sm:$0xff]
  %v7601 = vld [vmem:[#allocation2 + $0x1f0] sm:$0xff]
  %v7602 = vld [vmem:[#allocation2 + $0x1f8] sm:$0xff]
  %v7603 = vld [vmem:[#allocation2 + $0x200] sm:$0xff]
  %v7604 = vld [vmem:[#allocation2 + $0x208] sm:$0xff]
  %v7605 = vld [vmem:[#allocation2 + $0x210] sm:$0xff]
  %v7606 = vld [vmem:[#allocation2 + $0x218] sm:$0xff]
  %v7607 = vld [vmem:[#allocation2 + $0x220] sm:$0xff]
  %v7608 = vld [vmem:[#allocation2 + $0x228] sm:$0xff]
  %v7609 = vld [vmem:[#allocation2 + $0x230] sm:$0xff]
  %v7610 = vld [vmem:[#allocation2 + $0x238] sm:$0xff]
  %v7611 = vld [vmem:[#allocation2 + $0x240] sm:$0xff]
  %v7612 = vld [vmem:[#allocation2 + $0x248] sm:$0xff]
  %v7613 = vld [vmem:[#allocation2 + $0x250] sm:$0xff]
  %v7614 = vld [vmem:[#allocation2 + $0x258] sm:$0xff]
  %v7615 = vld [vmem:[#allocation2 + $0x260] sm:$0xff]
  %v7616 = vld [vmem:[#allocation2 + $0x268] sm:$0xff]
  %v7617 = vld [vmem:[#allocation2 + $0x270] sm:$0xff]
  %v7618 = vld [vmem:[#allocation2 + $0x278] sm:$0xff]
  %v7619 = vld [vmem:[#allocation2 + $0x280] sm:$0xff]
  %v7620 = vld [vmem:[#allocation2 + $0x288] sm:$0xff]
  %v7621 = vld [vmem:[#allocation2 + $0x290] sm:$0xff]
  %v7622 = vld [vmem:[#allocation2 + $0x298] sm:$0xff]
  %v7623 = vld [vmem:[#allocation2 + $0x2a0] sm:$0xff]
  %v7624 = vld [vmem:[#allocation2 + $0x2a8] sm:$0xff]
  %v7625 = vld [vmem:[#allocation2 + $0x2b0] sm:$0xff]
  %v7626 = vld [vmem:[#allocation2 + $0x2b8] sm:$0xff]
  %v7627 = vld [vmem:[#allocation2 + $0x2c0] sm:$0xff]
  %v7628 = vld [vmem:[#allocation2 + $0x2c8] sm:$0xff]
  %v7629 = vld [vmem:[#allocation2 + $0x2d0] sm:$0xff]
  %v7630 = vld [vmem:[#allocation2 + $0x2d8] sm:$0xff]
  %v7631 = vld [vmem:[#allocation2 + $0x2e0] sm:$0xff]
  %v7632 = vld [vmem:[#allocation2 + $0x2e8] sm:$0xff]
  %v7633 = vld [vmem:[#allocation2 + $0x2f0] sm:$0xff]
  %v7634 = vld [vmem:[#allocation2 + $0x2f8] sm:$0xff]
  %v7635 = vld [vmem:[#allocation2 + $0x300] sm:$0xff]
  %v7636 = vld [vmem:[#allocation2 + $0x308] sm:$0xff]
  %v7637 = vld [vmem:[#allocation2 + $0x310] sm:$0xff]
  %v7638 = vld [vmem:[#allocation2 + $0x318] sm:$0xff]
  %v7639 = vld [vmem:[#allocation2 + $0x320] sm:$0xff]
  %v7640 = vld [vmem:[#allocation2 + $0x328] sm:$0xff]
  %v7641 = vld [vmem:[#allocation2 + $0x330] sm:$0xff]
  %v7642 = vld [vmem:[#allocation2 + $0x338] sm:$0xff]
  %v7643 = vld [vmem:[#allocation2 + $0x340] sm:$0xff]
  %v7644 = vld [vmem:[#allocation2 + $0x348] sm:$0xff]
  %v7645 = vld [vmem:[#allocation2 + $0x350] sm:$0xff]
  %v7646 = vld [vmem:[#allocation2 + $0x358] sm:$0xff]
  %v7647 = vld [vmem:[#allocation2 + $0x360] sm:$0xff]
  %v7648 = vld [vmem:[#allocation2 + $0x368] sm:$0xff]
  %v7649 = vld [vmem:[#allocation2 + $0x370] sm:$0xff]
  %v7650 = vld [vmem:[#allocation2 + $0x378] sm:$0xff]
  %v7651 = vadd.f32 %v7539, %v7427
  %v7652 = vadd.f32 %v7540, %v7428
  %v7653 = vadd.f32 %v7541, %v7429
  %v7654 = vadd.f32 %v7542, %v7430
  %v7655 = vadd.f32 %v7543, %v7431
  %v7656 = vadd.f32 %v7544, %v7432
  %v7657 = vadd.f32 %v7545, %v7433
  %v7658 = vadd.f32 %v7546, %v7434
  %v7659 = vadd.f32 %v7547, %v7435
  %v7660 = vadd.f32 %v7548, %v7436
  %v7661 = vadd.f32 %v7549, %v7437
  %v7662 = vadd.f32 %v7550, %v7438
  %v7663 = vadd.f32 %v7551, %v7439
  %v7664 = vadd.f32 %v7552, %v7440
  %v7665 = vadd.f32 %v7553, %v7441
  %v7666 = vadd.f32 %v7554, %v7442
  %v7667 = vadd.f32 %v7555, %v7443
  %v7668 = vadd.f32 %v7556, %v7444
  %v7669 = vadd.f32 %v7557, %v7445
  %v7670 = vadd.f32 %v7558, %v7446
  %v7671 = vadd.f32 %v7559, %v7447
  %v7672 = vadd.f32 %v7560, %v7448
  %v7673 = vadd.f32 %v7561, %v7449
  %v7674 = vadd.f32 %v7562, %v7450
  %v7675 = vadd.f32 %v7563, %v7451
  %v7676 = vadd.f32 %v7564, %v7452
  %v7677 = vadd.f32 %v7565, %v7453
  %v7678 = vadd.f32 %v7566, %v7454
  %v7679 = vadd.f32 %v7567, %v7455
  %v7680 = vadd.f32 %v7568, %v7456
  %v7681 = vadd.f32 %v7569, %v7457
  %v7682 = vadd.f32 %v7570, %v7458
  %v7683 = vadd.f32 %v7571, %v7459
  %v7684 = vadd.f32 %v7572, %v7460
  %v7685 = vadd.f32 %v7573, %v7461
  %v7686 = vadd.f32 %v7574, %v7462
  %v7687 = vadd.f32 %v7575, %v7463
  %v7688 = vadd.f32 %v7576, %v7464
  %v7689 = vadd.f32 %v7577, %v7465
  %v7690 = vadd.f32 %v7578, %v7466
  %v7691 = vadd.f32 %v7579, %v7467
  %v7692 = vadd.f32 %v7580, %v7468
  %v7693 = vadd.f32 %v7581, %v7469
  %v7694 = vadd.f32 %v7582, %v7470
  %v7695 = vadd.f32 %v7583, %v7471
  %v7696 = vadd.f32 %v7584, %v7472
  %v7697 = vadd.f32 %v7585, %v7473
  %v7698 = vadd.f32 %v7586, %v7474
  %v7699 = vadd.f32 %v7587, %v7475
  %v7700 = vadd.f32 %v7588, %v7476
  %v7701 = vadd.f32 %v7589, %v7477
  %v7702 = vadd.f32 %v7590, %v7478
  %v7703 = vadd.f32 %v7591, %v7479
  %v7704 = vadd.f32 %v7592, %v7480
  %v7705 = vadd.f32 %v7593, %v7481
  %v7706 = vadd.f32 %v7594, %v7482
  %v7707 = vadd.f32 %v7595, %v7483
  %v7708 = vadd.f32 %v7596, %v7484
  %v7709 = vadd.f32 %v7597, %v7485
  %v7710 = vadd.f32 %v7598, %v7486
  %v7711 = vadd.f32 %v7599, %v7487
  %v7712 = vadd.f32 %v7600, %v7488
  %v7713 = vadd.f32 %v7601, %v7489
  %v7714 = vadd.f32 %v7602, %v7490
  %v7715 = vadd.f32 %v7603, %v7491
  %v7716 = vadd.f32 %v7604, %v7492
  %v7717 = vadd.f32 %v7605, %v7493
  %v7718 = vadd.f32 %v7606, %v7494
  %v7719 = vadd.f32 %v7607, %v7495
  %v7720 = vadd.f32 %v7608, %v7496
  %v7721 = vadd.f32 %v7609, %v7497
  %v7722 = vadd.f32 %v7610, %v7498
  %v7723 = vadd.f32 %v7611, %v7499
  %v7724 = vadd.f32 %v7612, %v7500
  %v7725 = vadd.f32 %v7613, %v7501
  %v7726 = vadd.f32 %v7614, %v7502
  %v7727 = vadd.f32 %v7615, %v7503
  %v7728 = vadd.f32 %v7616, %v7504
  %v7729 = vadd.f32 %v7617, %v7505
  %v7730 = vadd.f32 %v7618, %v7506
  %v7731 = vadd.f32 %v7619, %v7507
  %v7732 = vadd.f32 %v7620, %v7508
  %v7733 = vadd.f32 %v7621, %v7509
  %v7734 = vadd.f32 %v7622, %v7510
  %v7735 = vadd.f32 %v7623, %v7511
  %v7736 = vadd.f32 %v7624, %v7512
  %v7737 = vadd.f32 %v7625, %v7513
  %v7738 = vadd.f32 %v7626, %v7514
  %v7739 = vadd.f32 %v7627, %v7515
  %v7740 = vadd.f32 %v7628, %v7516
  %v7741 = vadd.f32 %v7629, %v7517
  %v7742 = vadd.f32 %v7630, %v7518
  %v7743 = vadd.f32 %v7631, %v7519
  %v7744 = vadd.f32 %v7632, %v7520
  %v7745 = vadd.f32 %v7633, %v7521
  %v7746 = vadd.f32 %v7634, %v7522
  %v7747 = vadd.f32 %v7635, %v7523
  %v7748 = vadd.f32 %v7636, %v7524
  %v7749 = vadd.f32 %v7637, %v7525
  %v7750 = vadd.f32 %v7638, %v7526
  %v7751 = vadd.f32 %v7639, %v7527
  %v7752 = vadd.f32 %v7640, %v7528
  %v7753 = vadd.f32 %v7641, %v7529
  %v7754 = vadd.f32 %v7642, %v7530
  %v7755 = vadd.f32 %v7643, %v7531
  %v7756 = vadd.f32 %v7644, %v7532
  %v7757 = vadd.f32 %v7645, %v7533
  %v7758 = vadd.f32 %v7646, %v7534
  %v7759 = vadd.f32 %v7647, %v7535
  %v7760 = vadd.f32 %v7648, %v7536
  %v7761 = vadd.f32 %v7649, %v7537
  %v7762 = vadd.f32 %v7650, %v7538
  %7763 = vst [vmem:[#allocation2] sm:$0xff] %v7651
  %7764 = vst [vmem:[#allocation2 + $0x8] sm:$0xff] %v7652
  %7765 = vst [vmem:[#allocation2 + $0x10] sm:$0xff] %v7653
  %7766 = vst [vmem:[#allocation2 + $0x18] sm:$0xff] %v7654
  %7767 = vst [vmem:[#allocation2 + $0x20] sm:$0xff] %v7655
  %7768 = vst [vmem:[#allocation2 + $0x28] sm:$0xff] %v7656
  %7769 = vst [vmem:[#allocation2 + $0x30] sm:$0xff] %v7657
  %7770 = vst [vmem:[#allocation2 + $0x38] sm:$0xff] %v7658
  %7771 = vst [vmem:[#allocation2 + $0x40] sm:$0xff] %v7659
  %7772 = vst [vmem:[#allocation2 + $0x48] sm:$0xff] %v7660
  %7773 = vst [vmem:[#allocation2 + $0x50] sm:$0xff] %v7661
  %7774 = vst [vmem:[#allocation2 + $0x58] sm:$0xff] %v7662
  %7775 = vst [vmem:[#allocation2 + $0x60] sm:$0xff] %v7663
  %7776 = vst [vmem:[#allocation2 + $0x68] sm:$0xff] %v7664
  %7777 = vst [vmem:[#allocation2 + $0x70] sm:$0xff] %v7665
  %7778 = vst [vmem:[#allocation2 + $0x78] sm:$0xff] %v7666
  %7779 = vst [vmem:[#allocation2 + $0x80] sm:$0xff] %v7667
  %7780 = vst [vmem:[#allocation2 + $0x88] sm:$0xff] %v7668
  %7781 = vst [vmem:[#allocation2 + $0x90] sm:$0xff] %v7669
  %7782 = vst [vmem:[#allocation2 + $0x98] sm:$0xff] %v7670
  %7783 = vst [vmem:[#allocation2 + $0xa0] sm:$0xff] %v7671
  %7784 = vst [vmem:[#allocation2 + $0xa8] sm:$0xff] %v7672
  %7785 = vst [vmem:[#allocation2 + $0xb0] sm:$0xff] %v7673
  %7786 = vst [vmem:[#allocation2 + $0xb8] sm:$0xff] %v7674
  %7787 = vst [vmem:[#allocation2 + $0xc0] sm:$0xff] %v7675
  %7788 = vst [vmem:[#allocation2 + $0xc8] sm:$0xff] %v7676
  %7789 = vst [vmem:[#allocation2 + $0xd0] sm:$0xff] %v7677
  %7790 = vst [vmem:[#allocation2 + $0xd8] sm:$0xff] %v7678
  %7791 = vst [vmem:[#allocation2 + $0xe0] sm:$0xff] %v7679
  %7792 = vst [vmem:[#allocation2 + $0xe8] sm:$0xff] %v7680
  %7793 = vst [vmem:[#allocation2 + $0xf0] sm:$0xff] %v7681
  %7794 = vst [vmem:[#allocation2 + $0xf8] sm:$0xff] %v7682
  %7795 = vst [vmem:[#allocation2 + $0x100] sm:$0xff] %v7683
  %7796 = vst [vmem:[#allocation2 + $0x108] sm:$0xff] %v7684
  %7797 = vst [vmem:[#allocation2 + $0x110] sm:$0xff] %v7685
  %7798 = vst [vmem:[#allocation2 + $0x118] sm:$0xff] %v7686
  %7799 = vst [vmem:[#allocation2 + $0x120] sm:$0xff] %v7687
  %7800 = vst [vmem:[#allocation2 + $0x128] sm:$0xff] %v7688
  %7801 = vst [vmem:[#allocation2 + $0x130] sm:$0xff] %v7689
  %7802 = vst [vmem:[#allocation2 + $0x138] sm:$0xff] %v7690
  %7803 = vst [vmem:[#allocation2 + $0x140] sm:$0xff] %v7691
  %7804 = vst [vmem:[#allocation2 + $0x148] sm:$0xff] %v7692
  %7805 = vst [vmem:[#allocation2 + $0x150] sm:$0xff] %v7693
  %7806 = vst [vmem:[#allocation2 + $0x158] sm:$0xff] %v7694
  %7807 = vst [vmem:[#allocation2 + $0x160] sm:$0xff] %v7695
  %7808 = vst [vmem:[#allocation2 + $0x168] sm:$0xff] %v7696
  %7809 = vst [vmem:[#allocation2 + $0x170] sm:$0xff] %v7697
  %7810 = vst [vmem:[#allocation2 + $0x178] sm:$0xff] %v7698
  %7811 = vst [vmem:[#allocation2 + $0x180] sm:$0xff] %v7699
  %7812 = vst [vmem:[#allocation2 + $0x188] sm:$0xff] %v7700
  %7813 = vst [vmem:[#allocation2 + $0x190] sm:$0xff] %v7701
  %7814 = vst [vmem:[#allocation2 + $0x198] sm:$0xff] %v7702
  %7815 = vst [vmem:[#allocation2 + $0x1a0] sm:$0xff] %v7703
  %7816 = vst [vmem:[#allocation2 + $0x1a8] sm:$0xff] %v7704
  %7817 = vst [vmem:[#allocation2 + $0x1b0] sm:$0xff] %v7705
  %7818 = vst [vmem:[#allocation2 + $0x1b8] sm:$0xff] %v7706
  %7819 = vst [vmem:[#allocation2 + $0x1c0] sm:$0xff] %v7707
  %7820 = vst [vmem:[#allocation2 + $0x1c8] sm:$0xff] %v7708
  %7821 = vst [vmem:[#allocation2 + $0x1d0] sm:$0xff] %v7709
  %7822 = vst [vmem:[#allocation2 + $0x1d8] sm:$0xff] %v7710
  %7823 = vst [vmem:[#allocation2 + $0x1e0] sm:$0xff] %v7711
  %7824 = vst [vmem:[#allocation2 + $0x1e8] sm:$0xff] %v7712
  %7825 = vst [vmem:[#allocation2 + $0x1f0] sm:$0xff] %v7713
  %7826 = vst [vmem:[#allocation2 + $0x1f8] sm:$0xff] %v7714
  %7827 = vst [vmem:[#allocation2 + $0x200] sm:$0xff] %v7715
  %7828 = vst [vmem:[#allocation2 + $0x208] sm:$0xff] %v7716
  %7829 = vst [vmem:[#allocation2 + $0x210] sm:$0xff] %v7717
  %7830 = vst [vmem:[#allocation2 + $0x218] sm:$0xff] %v7718
  %7831 = vst [vmem:[#allocation2 + $0x220] sm:$0xff] %v7719
  %7832 = vst [vmem:[#allocation2 + $0x228] sm:$0xff] %v7720
  %7833 = vst [vmem:[#allocation2 + $0x230] sm:$0xff] %v7721
  %7834 = vst [vmem:[#allocation2 + $0x238] sm:$0xff] %v7722
  %7835 = vst [vmem:[#allocation2 + $0x240] sm:$0xff] %v7723
  %7836 = vst [vmem:[#allocation2 + $0x248] sm:$0xff] %v7724
  %7837 = vst [vmem:[#allocation2 + $0x250] sm:$0xff] %v7725
  %7838 = vst [vmem:[#allocation2 + $0x258] sm:$0xff] %v7726
  %7839 = vst [vmem:[#allocation2 + $0x260] sm:$0xff] %v7727
  %7840 = vst [vmem:[#allocation2 + $0x268] sm:$0xff] %v7728
  %7841 = vst [vmem:[#allocation2 + $0x270] sm:$0xff] %v7729
  %7842 = vst [vmem:[#allocation2 + $0x278] sm:$0xff] %v7730
  %7843 = vst [vmem:[#allocation2 + $0x280] sm:$0xff] %v7731
  %7844 = vst [vmem:[#allocation2 + $0x288] sm:$0xff] %v7732
  %7845 = vst [vmem:[#allocation2 + $0x290] sm:$0xff] %v7733
  %7846 = vst [vmem:[#allocation2 + $0x298] sm:$0xff] %v7734
  %7847 = vst [vmem:[#allocation2 + $0x2a0] sm:$0xff] %v7735
  %7848 = vst [vmem:[#allocation2 + $0x2a8] sm:$0xff] %v7736
  %7849 = vst [vmem:[#allocation2 + $0x2b0] sm:$0xff] %v7737
  %7850 = vst [vmem:[#allocation2 + $0x2b8] sm:$0xff] %v7738
  %7851 = vst [vmem:[#allocation2 + $0x2c0] sm:$0xff] %v7739
  %7852 = vst [vmem:[#allocation2 + $0x2c8] sm:$0xff] %v7740
  %7853 = vst [vmem:[#allocation2 + $0x2d0] sm:$0xff] %v7741
  %7854 = vst [vmem:[#allocation2 + $0x2d8] sm:$0xff] %v7742
  %7855 = vst [vmem:[#allocation2 + $0x2e0] sm:$0xff] %v7743
  %7856 = vst [vmem:[#allocation2 + $0x2e8] sm:$0xff] %v7744
  %7857 = vst [vmem:[#allocation2 + $0x2f0] sm:$0xff] %v7745
  %7858 = vst [vmem:[#allocation2 + $0x2f8] sm:$0xff] %v7746
  %7859 = vst [vmem:[#allocation2 + $0x300] sm:$0xff] %v7747
  %7860 = vst [vmem:[#allocation2 + $0x308] sm:$0xff] %v7748
  %7861 = vst [vmem:[#allocation2 + $0x310] sm:$0xff] %v7749
  %7862 = vst [vmem:[#allocation2 + $0x318] sm:$0xff] %v7750
  %7863 = vst [vmem:[#allocation2 + $0x320] sm:$0xff] %v7751
  %7864 = vst [vmem:[#allocation2 + $0x328] sm:$0xff] %v7752
  %7865 = vst [vmem:[#allocation2 + $0x330] sm:$0xff] %v7753
  %7866 = vst [vmem:[#allocation2 + $0x338] sm:$0xff] %v7754
  %7867 = vst [vmem:[#allocation2 + $0x340] sm:$0xff] %v7755
  %7868 = vst [vmem:[#allocation2 + $0x348] sm:$0xff] %v7756
  %7869 = vst [vmem:[#allocation2 + $0x350] sm:$0xff] %v7757
  %7870 = vst [vmem:[#allocation2 + $0x358] sm:$0xff] %v7758
  %7871 = vst [vmem:[#allocation2 + $0x360] sm:$0xff] %v7759
  %7872 = vst [vmem:[#allocation2 + $0x368] sm:$0xff] %v7760
  %7873 = vst [vmem:[#allocation2 + $0x370] sm:$0xff] %v7761
  %7874 = vst [vmem:[#allocation2 + $0x378] sm:$0xff] %v7762
  %v7875 = vld [vmem:[#allocation2] sm:$0xff]
  %v7876 = vld [vmem:[#allocation2 + $0x8] sm:$0xff]
  %v7877 = vld [vmem:[#allocation2 + $0x10] sm:$0xff]
  %v7878 = vld [vmem:[#allocation2 + $0x18] sm:$0xff]
  %v7879 = vld [vmem:[#allocation2 + $0x20] sm:$0xff]
  %v7880 = vld [vmem:[#allocation2 + $0x28] sm:$0xff]
  %v7881 = vld [vmem:[#allocation2 + $0x30] sm:$0xff]
  %v7882 = vld [vmem:[#allocation2 + $0x38] sm:$0xff]
  %v7883 = vld [vmem:[#allocation2 + $0x40] sm:$0xff]
  %v7884 = vld [vmem:[#allocation2 + $0x48] sm:$0xff]
  %v7885 = vld [vmem:[#allocation2 + $0x50] sm:$0xff]
  %v7886 = vld [vmem:[#allocation2 + $0x58] sm:$0xff]
  %v7887 = vld [vmem:[#allocation2 + $0x60] sm:$0xff]
  %v7888 = vld [vmem:[#allocation2 + $0x68] sm:$0xff]
  %v7889 = vld [vmem:[#allocation2 + $0x70] sm:$0xff]
  %v7890 = vld [vmem:[#allocation2 + $0x78] sm:$0xff]
  %v7891 = vld [vmem:[#allocation2 + $0x80] sm:$0xff]
  %v7892 = vld [vmem:[#allocation2 + $0x88] sm:$0xff]
  %v7893 = vld [vmem:[#allocation2 + $0x90] sm:$0xff]
  %v7894 = vld [vmem:[#allocation2 + $0x98] sm:$0xff]
  %v7895 = vld [vmem:[#allocation2 + $0xa0] sm:$0xff]
  %v7896 = vld [vmem:[#allocation2 + $0xa8] sm:$0xff]
  %v7897 = vld [vmem:[#allocation2 + $0xb0] sm:$0xff]
  %v7898 = vld [vmem:[#allocation2 + $0xb8] sm:$0xff]
  %v7899 = vld [vmem:[#allocation2 + $0xc0] sm:$0xff]
  %v7900 = vld [vmem:[#allocation2 + $0xc8] sm:$0xff]
  %v7901 = vld [vmem:[#allocation2 + $0xd0] sm:$0xff]
  %v7902 = vld [vmem:[#allocation2 + $0xd8] sm:$0xff]
  %v7903 = vld [vmem:[#allocation2 + $0xe0] sm:$0xff]
  %v7904 = vld [vmem:[#allocation2 + $0xe8] sm:$0xff]
  %v7905 = vld [vmem:[#allocation2 + $0xf0] sm:$0xff]
  %v7906 = vld [vmem:[#allocation2 + $0xf8] sm:$0xff]
  %v7907 = vld [vmem:[#allocation2 + $0x100] sm:$0xff]
  %v7908 = vld [vmem:[#allocation2 + $0x108] sm:$0xff]
  %v7909 = vld [vmem:[#allocation2 + $0x110] sm:$0xff]
  %v7910 = vld [vmem:[#allocation2 + $0x118] sm:$0xff]
  %v7911 = vld [vmem:[#allocation2 + $0x120] sm:$0xff]
  %v7912 = vld [vmem:[#allocation2 + $0x128] sm:$0xff]
  %v7913 = vld [vmem:[#allocation2 + $0x130] sm:$0xff]
  %v7914 = vld [vmem:[#allocation2 + $0x138] sm:$0xff]
  %v7915 = vld [vmem:[#allocation2 + $0x140] sm:$0xff]
  %v7916 = vld [vmem:[#allocation2 + $0x148] sm:$0xff]
  %v7917 = vld [vmem:[#allocation2 + $0x150] sm:$0xff]
  %v7918 = vld [vmem:[#allocation2 + $0x158] sm:$0xff]
  %v7919 = vld [vmem:[#allocation2 + $0x160] sm:$0xff]
  %v7920 = vld [vmem:[#allocation2 + $0x168] sm:$0xff]
  %v7921 = vld [vmem:[#allocation2 + $0x170] sm:$0xff]
  %v7922 = vld [vmem:[#allocation2 + $0x178] sm:$0xff]
  %v7923 = vld [vmem:[#allocation2 + $0x180] sm:$0xff]
  %v7924 = vld [vmem:[#allocation2 + $0x188] sm:$0xff]
  %v7925 = vld [vmem:[#allocation2 + $0x190] sm:$0xff]
  %v7926 = vld [vmem:[#allocation2 + $0x198] sm:$0xff]
  %v7927 = vld [vmem:[#allocation2 + $0x1a0] sm:$0xff]
  %v7928 = vld [vmem:[#allocation2 + $0x1a8] sm:$0xff]
  %v7929 = vld [vmem:[#allocation2 + $0x1b0] sm:$0xff]
  %v7930 = vld [vmem:[#allocation2 + $0x1b8] sm:$0xff]
  %v7931 = vld [vmem:[#allocation2 + $0x1c0] sm:$0xff]
  %v7932 = vld [vmem:[#allocation2 + $0x1c8] sm:$0xff]
  %v7933 = vld [vmem:[#allocation2 + $0x1d0] sm:$0xff]
  %v7934 = vld [vmem:[#allocation2 + $0x1d8] sm:$0xff]
  %v7935 = vld [vmem:[#allocation2 + $0x1e0] sm:$0xff]
  %v7936 = vld [vmem:[#allocation2 + $0x1e8] sm:$0xff]
  %v7937 = vld [vmem:[#allocation2 + $0x1f0] sm:$0xff]
  %v7938 = vld [vmem:[#allocation2 + $0x1f8] sm:$0xff]
  %v7939 = vld [vmem:[#allocation2 + $0x200] sm:$0xff]
  %v7940 = vld [vmem:[#allocation2 + $0x208] sm:$0xff]
  %v7941 = vld [vmem:[#allocation2 + $0x210] sm:$0xff]
  %v7942 = vld [vmem:[#allocation2 + $0x218] sm:$0xff]
  %v7943 = vld [vmem:[#allocation2 + $0x220] sm:$0xff]
  %v7944 = vld [vmem:[#allocation2 + $0x228] sm:$0xff]
  %v7945 = vld [vmem:[#allocation2 + $0x230] sm:$0xff]
  %v7946 = vld [vmem:[#allocation2 + $0x238] sm:$0xff]
  %v7947 = vld [vmem:[#allocation2 + $0x240] sm:$0xff]
  %v7948 = vld [vmem:[#allocation2 + $0x248] sm:$0xff]
  %v7949 = vld [vmem:[#allocation2 + $0x250] sm:$0xff]
  %v7950 = vld [vmem:[#allocation2 + $0x258] sm:$0xff]
  %v7951 = vld [vmem:[#allocation2 + $0x260] sm:$0xff]
  %v7952 = vld [vmem:[#allocation2 + $0x268] sm:$0xff]
  %v7953 = vld [vmem:[#allocation2 + $0x270] sm:$0xff]
  %v7954 = vld [vmem:[#allocation2 + $0x278] sm:$0xff]
  %v7955 = vld [vmem:[#allocation2 + $0x280] sm:$0xff]
  %v7956 = vld [vmem:[#allocation2 + $0x288] sm:$0xff]
  %v7957 = vld [vmem:[#allocation2 + $0x290] sm:$0xff]
  %v7958 = vld [vmem:[#allocation2 + $0x298] sm:$0xff]
  %v7959 = vld [vmem:[#allocation2 + $0x2a0] sm:$0xff]
  %v7960 = vld [vmem:[#allocation2 + $0x2a8] sm:$0xff]
  %v7961 = vld [vmem:[#allocation2 + $0x2b0] sm:$0xff]
  %v7962 = vld [vmem:[#allocation2 + $0x2b8] sm:$0xff]
  %v7963 = vld [vmem:[#allocation2 + $0x2c0] sm:$0xff]
  %v7964 = vld [vmem:[#allocation2 + $0x2c8] sm:$0xff]
  %v7965 = vld [vmem:[#allocation2 + $0x2d0] sm:$0xff]
  %v7966 = vld [vmem:[#allocation2 + $0x2d8] sm:$0xff]
  %v7967 = vld [vmem:[#allocation2 + $0x2e0] sm:$0xff]
  %v7968 = vld [vmem:[#allocation2 + $0x2e8] sm:$0xff]
  %v7969 = vld [vmem:[#allocation2 + $0x2f0] sm:$0xff]
  %v7970 = vld [vmem:[#allocation2 + $0x2f8] sm:$0xff]
  %v7971 = vld [vmem:[#allocation2 + $0x300] sm:$0xff]
  %v7972 = vld [vmem:[#allocation2 + $0x308] sm:$0xff]
  %v7973 = vld [vmem:[#allocation2 + $0x310] sm:$0xff]
  %v7974 = vld [vmem:[#allocation2 + $0x318] sm:$0xff]
  %v7975 = vld [vmem:[#allocation2 + $0x320] sm:$0xff]
  %v7976 = vld [vmem:[#allocation2 + $0x328] sm:$0xff]
  %v7977 = vld [vmem:[#allocation2 + $0x330] sm:$0xff]
  %v7978 = vld [vmem:[#allocation2 + $0x338] sm:$0xff]
  %v7979 = vld [vmem:[#allocation2 + $0x340] sm:$0xff]
  %v7980 = vld [vmem:[#allocation2 + $0x348] sm:$0xff]
  %v7981 = vld [vmem:[#allocation2 + $0x350] sm:$0xff]
  %v7982 = vld [vmem:[#allocation2 + $0x358] sm:$0xff]
  %v7983 = vld [vmem:[#allocation2 + $0x360] sm:$0xff]
  %v7984 = vld [vmem:[#allocation2 + $0x368] sm:$0xff]
  %v7985 = vld [vmem:[#allocation2 + $0x370] sm:$0xff]
  %v7986 = vld [vmem:[#allocation2 + $0x378] sm:$0xff]
  %v7987 = vadd.s32 %v1816, 8
  %v7988 = vadd.s32 %v1816, 16
  %v7989 = vadd.s32 %v1816, 24
  %vm7990 = vcmp.lt.s32.totalorder %v1816, 28
  %vm7991 = vcmp.lt.s32.totalorder %v7987, 28
  %vm7992 = vcmp.lt.s32.totalorder %v7988, 28
  %vm7993 = vcmp.lt.s32.totalorder %v7989, 28
  %v7994 = vsel %vm7990, %v7875, 0.0
  %v7995 = vsel %vm7991, %v7876, 0.0
  %v7996 = vsel %vm7992, %v7877, 0.0
  %v7997 = vsel %vm7993, %v7878, 0.0
  %v7998 = vsel %vm7990, %v7879, 0.0
  %v7999 = vsel %vm7991, %v7880, 0.0
  %v8000 = vsel %vm7992, %v7881, 0.0
  %v8001 = vsel %vm7993, %v7882, 0.0
  %v8002 = vsel %vm7990, %v7883, 0.0
  %v8003 = vsel %vm7991, %v7884, 0.0
  %v8004 = vsel %vm7992, %v7885, 0.0
  %v8005 = vsel %vm7993, %v7886, 0.0
  %v8006 = vsel %vm7990, %v7887, 0.0
  %v8007 = vsel %vm7991, %v7888, 0.0
  %v8008 = vsel %vm7992, %v7889, 0.0
  %v8009 = vsel %vm7993, %v7890, 0.0
  %v8010 = vsel %vm7990, %v7891, 0.0
  %v8011 = vsel %vm7991, %v7892, 0.0
  %v8012 = vsel %vm7992, %v7893, 0.0
  %v8013 = vsel %vm7993, %v7894, 0.0
  %v8014 = vsel %vm7990, %v7895, 0.0
  %v8015 = vsel %vm7991, %v7896, 0.0
  %v8016 = vsel %vm7992, %v7897, 0.0
  %v8017 = vsel %vm7993, %v7898, 0.0
  %v8018 = vsel %vm7990, %v7899, 0.0
  %v8019 = vsel %vm7991, %v7900, 0.0
  %v8020 = vsel %vm7992, %v7901, 0.0
  %v8021 = vsel %vm7993, %v7902, 0.0
  %v8022 = vsel %vm7990, %v7903, 0.0
  %v8023 = vsel %vm7991, %v7904, 0.0
  %v8024 = vsel %vm7992, %v7905, 0.0
  %v8025 = vsel %vm7993, %v7906, 0.0
  %v8026 = vsel %vm7990, %v7907, 0.0
  %v8027 = vsel %vm7991, %v7908, 0.0
  %v8028 = vsel %vm7992, %v7909, 0.0
  %v8029 = vsel %vm7993, %v7910, 0.0
  %v8030 = vsel %vm7990, %v7911, 0.0
  %v8031 = vsel %vm7991, %v7912, 0.0
  %v8032 = vsel %vm7992, %v7913, 0.0
  %v8033 = vsel %vm7993, %v7914, 0.0
  %v8034 = vsel %vm7990, %v7915, 0.0
  %v8035 = vsel %vm7991, %v7916, 0.0
  %v8036 = vsel %vm7992, %v7917, 0.0
  %v8037 = vsel %vm7993, %v7918, 0.0
  %v8038 = vsel %vm7990, %v7919, 0.0
  %v8039 = vsel %vm7991, %v7920, 0.0
  %v8040 = vsel %vm7992, %v7921, 0.0
  %v8041 = vsel %vm7993, %v7922, 0.0
  %v8042 = vsel %vm7990, %v7923, 0.0
  %v8043 = vsel %vm7991, %v7924, 0.0
  %v8044 = vsel %vm7992, %v7925, 0.0
  %v8045 = vsel %vm7993, %v7926, 0.0
  %v8046 = vsel %vm7990, %v7927, 0.0
  %v8047 = vsel %vm7991, %v7928, 0.0
  %v8048 = vsel %vm7992, %v7929, 0.0
  %v8049 = vsel %vm7993, %v7930, 0.0
  %v8050 = vsel %vm7990, %v7931, 0.0
  %v8051 = vsel %vm7991, %v7932, 0.0
  %v8052 = vsel %vm7992, %v7933, 0.0
  %v8053 = vsel %vm7993, %v7934, 0.0
  %v8054 = vsel %vm7990, %v7935, 0.0
  %v8055 = vsel %vm7991, %v7936, 0.0
  %v8056 = vsel %vm7992, %v7937, 0.0
  %v8057 = vsel %vm7993, %v7938, 0.0
  %v8058 = vsel %vm7990, %v7939, 0.0
  %v8059 = vsel %vm7991, %v7940, 0.0
  %v8060 = vsel %vm7992, %v7941, 0.0
  %v8061 = vsel %vm7993, %v7942, 0.0
  %v8062 = vsel %vm7990, %v7943, 0.0
  %v8063 = vsel %vm7991, %v7944, 0.0
  %v8064 = vsel %vm7992, %v7945, 0.0
  %v8065 = vsel %vm7993, %v7946, 0.0
  %v8066 = vsel %vm7990, %v7947, 0.0
  %v8067 = vsel %vm7991, %v7948, 0.0
  %v8068 = vsel %vm7992, %v7949, 0.0
  %v8069 = vsel %vm7993, %v7950, 0.0
  %v8070 = vsel %vm7990, %v7951, 0.0
  %v8071 = vsel %vm7991, %v7952, 0.0
  %v8072 = vsel %vm7992, %v7953, 0.0
  %v8073 = vsel %vm7993, %v7954, 0.0
  %v8074 = vsel %vm7990, %v7955, 0.0
  %v8075 = vsel %vm7991, %v7956, 0.0
  %v8076 = vsel %vm7992, %v7957, 0.0
  %v8077 = vsel %vm7993, %v7958, 0.0
  %v8078 = vsel %vm7990, %v7959, 0.0
  %v8079 = vsel %vm7991, %v7960, 0.0
  %v8080 = vsel %vm7992, %v7961, 0.0
  %v8081 = vsel %vm7993, %v7962, 0.0
  %v8082 = vsel %vm7990, %v7963, 0.0
  %v8083 = vsel %vm7991, %v7964, 0.0
  %v8084 = vsel %vm7992, %v7965, 0.0
  %v8085 = vsel %vm7993, %v7966, 0.0
  %v8086 = vsel %vm7990, %v7967, 0.0
  %v8087 = vsel %vm7991, %v7968, 0.0
  %v8088 = vsel %vm7992, %v7969, 0.0
  %v8089 = vsel %vm7993, %v7970, 0.0
  %v8090 = vsel %vm7990, %v7971, 0.0
  %v8091 = vsel %vm7991, %v7972, 0.0
  %v8092 = vsel %vm7992, %v7973, 0.0
  %v8093 = vsel %vm7993, %v7974, 0.0
  %v8094 = vsel %vm7990, %v7975, 0.0
  %v8095 = vsel %vm7991, %v7976, 0.0
  %v8096 = vsel %vm7992, %v7977, 0.0
  %v8097 = vsel %vm7993, %v7978, 0.0
  %v8098 = vsel %vm7990, %v7979, 0.0
  %v8099 = vsel %vm7991, %v7980, 0.0
  %v8100 = vsel %vm7992, %v7981, 0.0
  %v8101 = vsel %vm7993, %v7982, 0.0
  %v8102 = vsel %vm7990, %v7983, 0.0
  %v8103 = vsel %vm7991, %v7984, 0.0
  %v8104 = vsel %vm7992, %v7985, 0.0
  %v8105 = vsel %vm7993, %v7986, 0.0
  %v8106 = vadd.f32 %v7994, %v7995
  %v8107 = vadd.f32 %v8106, %v7996
  %v8108 = vadd.f32 %v8107, %v7997
  %v8109 = vadd.f32 %v8108, %v7998
  %v8110 = vadd.f32 %v8109, %v7999
  %v8111 = vadd.f32 %v8110, %v8000
  %v8112 = vadd.f32 %v8111, %v8001
  %v8113 = vadd.f32 %v8112, %v8002
  %v8114 = vadd.f32 %v8113, %v8003
  %v8115 = vadd.f32 %v8114, %v8004
  %v8116 = vadd.f32 %v8115, %v8005
  %v8117 = vadd.f32 %v8116, %v8006
  %v8118 = vadd.f32 %v8117, %v8007
  %v8119 = vadd.f32 %v8118, %v8008
  %v8120 = vadd.f32 %v8119, %v8009
  %v8121 = vadd.f32 %v8120, %v8010
  %v8122 = vadd.f32 %v8121, %v8011
  %v8123 = vadd.f32 %v8122, %v8012
  %v8124 = vadd.f32 %v8123, %v8013
  %v8125 = vadd.f32 %v8124, %v8014
  %v8126 = vadd.f32 %v8125, %v8015
  %v8127 = vadd.f32 %v8126, %v8016
  %v8128 = vadd.f32 %v8127, %v8017
  %v8129 = vadd.f32 %v8128, %v8018
  %v8130 = vadd.f32 %v8129, %v8019
  %v8131 = vadd.f32 %v8130, %v8020
  %v8132 = vadd.f32 %v8131, %v8021
  %v8133 = vadd.f32 %v8132, %v8022
  %v8134 = vadd.f32 %v8133, %v8023
  %v8135 = vadd.f32 %v8134, %v8024
  %v8136 = vadd.f32 %v8135, %v8025
  %v8137 = vadd.f32 %v8136, %v8026
  %v8138 = vadd.f32 %v8137, %v8027
  %v8139 = vadd.f32 %v8138, %v8028
  %v8140 = vadd.f32 %v8139, %v8029
  %v8141 = vadd.f32 %v8140, %v8030
  %v8142 = vadd.f32 %v8141, %v8031
  %v8143 = vadd.f32 %v8142, %v8032
  %v8144 = vadd.f32 %v8143, %v8033
  %v8145 = vadd.f32 %v8144, %v8034
  %v8146 = vadd.f32 %v8145, %v8035
  %v8147 = vadd.f32 %v8146, %v8036
  %v8148 = vadd.f32 %v8147, %v8037
  %v8149 = vadd.f32 %v8148, %v8038
  %v8150 = vadd.f32 %v8149, %v8039
  %v8151 = vadd.f32 %v8150, %v8040
  %v8152 = vadd.f32 %v8151, %v8041
  %v8153 = vadd.f32 %v8152, %v8042
  %v8154 = vadd.f32 %v8153, %v8043
  %v8155 = vadd.f32 %v8154, %v8044
  %v8156 = vadd.f32 %v8155, %v8045
  %v8157 = vadd.f32 %v8156, %v8046
  %v8158 = vadd.f32 %v8157, %v8047
  %v8159 = vadd.f32 %v8158, %v8048
  %v8160 = vadd.f32 %v8159, %v8049
  %v8161 = vadd.f32 %v8160, %v8050
  %v8162 = vadd.f32 %v8161, %v8051
  %v8163 = vadd.f32 %v8162, %v8052
  %v8164 = vadd.f32 %v8163, %v8053
  %v8165 = vadd.f32 %v8164, %v8054
  %v8166 = vadd.f32 %v8165, %v8055
  %v8167 = vadd.f32 %v8166, %v8056
  %v8168 = vadd.f32 %v8167, %v8057
  %v8169 = vadd.f32 %v8168, %v8058
  %v8170 = vadd.f32 %v8169, %v8059
  %v8171 = vadd.f32 %v8170, %v8060
  %v8172 = vadd.f32 %v8171, %v8061
  %v8173 = vadd.f32 %v8172, %v8062
  %v8174 = vadd.f32 %v8173, %v8063
  %v8175 = vadd.f32 %v8174, %v8064
  %v8176 = vadd.f32 %v8175, %v8065
  %v8177 = vadd.f32 %v8176, %v8066
  %v8178 = vadd.f32 %v8177, %v8067
  %v8179 = vadd.f32 %v8178, %v8068
  %v8180 = vadd.f32 %v8179, %v8069
  %v8181 = vadd.f32 %v8180, %v8070
  %v8182 = vadd.f32 %v8181, %v8071
  %v8183 = vadd.f32 %v8182, %v8072
  %v8184 = vadd.f32 %v8183, %v8073
  %v8185 = vadd.f32 %v8184, %v8074
  %v8186 = vadd.f32 %v8185, %v8075
  %v8187 = vadd.f32 %v8186, %v8076
  %v8188 = vadd.f32 %v8187, %v8077
  %v8189 = vadd.f32 %v8188, %v8078
  %v8190 = vadd.f32 %v8189, %v8079
  %v8191 = vadd.f32 %v8190, %v8080
  %v8192 = vadd.f32 %v8191, %v8081
  %v8193 = vadd.f32 %v8192, %v8082
  %v8194 = vadd.f32 %v8193, %v8083
  %v8195 = vadd.f32 %v8194, %v8084
  %v8196 = vadd.f32 %v8195, %v8085
  %v8197 = vadd.f32 %v8196, %v8086
  %v8198 = vadd.f32 %v8197, %v8087
  %v8199 = vadd.f32 %v8198, %v8088
  %v8200 = vadd.f32 %v8199, %v8089
  %v8201 = vadd.f32 %v8200, %v8090
  %v8202 = vadd.f32 %v8201, %v8091
  %v8203 = vadd.f32 %v8202, %v8092
  %v8204 = vadd.f32 %v8203, %v8093
  %v8205 = vadd.f32 %v8204, %v8094
  %v8206 = vadd.f32 %v8205, %v8095
  %v8207 = vadd.f32 %v8206, %v8096
  %v8208 = vadd.f32 %v8207, %v8097
  %v8209 = vadd.f32 %v8208, %v8098
  %v8210 = vadd.f32 %v8209, %v8099
  %v8211 = vadd.f32 %v8210, %v8100
  %v8212 = vadd.f32 %v8211, %v8101
  %v8213 = vadd.f32 %v8212, %v8102
  %v8214 = vadd.f32 %v8213, %v8103
  %v8215 = vadd.f32 %v8214, %v8104
  %v8216 = vadd.f32 %v8215, %v8105
  %v8217 = vrot.slane %v8216, 4
  %v8218 = vadd.f32 %v8216, %v8217
  %v8219 = vrot.slane %v8218, 2
  %v8220 = vadd.f32 %v8218, %v8219
  %v8221 = vrot.slane %v8220, 1
  %v8222 = vadd.f32 %v8220, %v8221
  %v8223 = vmul.f32 %v8222, 0.0012755102
  %v8224 = vsub.f32 %v7875, %v8223
  %v8225 = vsub.f32 %v7876, %v8223
  %v8226 = vsub.f32 %v7877, %v8223
  %v8227 = vsub.f32 %v7878, %v8223
  %v8228 = vsub.f32 %v7879, %v8223
  %v8229 = vsub.f32 %v7880, %v8223
  %v8230 = vsub.f32 %v7881, %v8223
  %v8231 = vsub.f32 %v7882, %v8223
  %v8232 = vsub.f32 %v7883, %v8223
  %v8233 = vsub.f32 %v7884, %v8223
  %v8234 = vsub.f32 %v7885, %v8223
  %v8235 = vsub.f32 %v7886, %v8223
  %v8236 = vsub.f32 %v7887, %v8223
  %v8237 = vsub.f32 %v7888, %v8223
  %v8238 = vsub.f32 %v7889, %v8223
  %v8239 = vsub.f32 %v7890, %v8223
  %v8240 = vsub.f32 %v7891, %v8223
  %v8241 = vsub.f32 %v7892, %v8223
  %v8242 = vsub.f32 %v7893, %v8223
  %v8243 = vsub.f32 %v7894, %v8223
  %v8244 = vsub.f32 %v7895, %v8223
  %v8245 = vsub.f32 %v7896, %v8223
  %v8246 = vsub.f32 %v7897, %v8223
  %v8247 = vsub.f32 %v7898, %v8223
  %v8248 = vsub.f32 %v7899, %v8223
  %v8249 = vsub.f32 %v7900, %v8223
  %v8250 = vsub.f32 %v7901, %v8223
  %v8251 = vsub.f32 %v7902, %v8223
  %v8252 = vsub.f32 %v7903, %v8223
  %v8253 = vsub.f32 %v7904, %v8223
  %v8254 = vsub.f32 %v7905, %v8223
  %v8255 = vsub.f32 %v7906, %v8223
  %v8256 = vsub.f32 %v7907, %v8223
  %v8257 = vsub.f32 %v7908, %v8223
  %v8258 = vsub.f32 %v7909, %v8223
  %v8259 = vsub.f32 %v7910, %v8223
  %v8260 = vsub.f32 %v7911, %v8223
  %v8261 = vsub.f32 %v7912, %v8223
  %v8262 = vsub.f32 %v7913, %v8223
  %v8263 = vsub.f32 %v7914, %v8223
  %v8264 = vsub.f32 %v7915, %v8223
  %v8265 = vsub.f32 %v7916, %v8223
  %v8266 = vsub.f32 %v7917, %v8223
  %v8267 = vsub.f32 %v7918, %v8223
  %v8268 = vsub.f32 %v7919, %v8223
  %v8269 = vsub.f32 %v7920, %v8223
  %v8270 = vsub.f32 %v7921, %v8223
  %v8271 = vsub.f32 %v7922, %v8223
  %v8272 = vsub.f32 %v7923, %v8223
  %v8273 = vsub.f32 %v7924, %v8223
  %v8274 = vsub.f32 %v7925, %v8223
  %v8275 = vsub.f32 %v7926, %v8223
  %v8276 = vsub.f32 %v7927, %v8223
  %v8277 = vsub.f32 %v7928, %v8223
  %v8278 = vsub.f32 %v7929, %v8223
  %v8279 = vsub.f32 %v7930, %v8223
  %v8280 = vsub.f32 %v7931, %v8223
  %v8281 = vsub.f32 %v7932, %v8223
  %v8282 = vsub.f32 %v7933, %v8223
  %v8283 = vsub.f32 %v7934, %v8223
  %v8284 = vsub.f32 %v7935, %v8223
  %v8285 = vsub.f32 %v7936, %v8223
  %v8286 = vsub.f32 %v7937, %v8223
  %v8287 = vsub.f32 %v7938, %v8223
  %v8288 = vsub.f32 %v7939, %v8223
  %v8289 = vsub.f32 %v7940, %v8223
  %v8290 = vsub.f32 %v7941, %v8223
  %v8291 = vsub.f32 %v7942, %v8223
  %v8292 = vsub.f32 %v7943, %v8223
  %v8293 = vsub.f32 %v7944, %v8223
  %v8294 = vsub.f32 %v7945, %v8223
  %v8295 = vsub.f32 %v7946, %v8223
  %v8296 = vsub.f32 %v7947, %v8223
  %v8297 = vsub.f32 %v7948, %v8223
  %v8298 = vsub.f32 %v7949, %v8223
  %v8299 = vsub.f32 %v7950, %v8223
  %v8300 = vsub.f32 %v7951, %v8223
  %v8301 = vsub.f32 %v7952, %v8223
  %v8302 = vsub.f32 %v7953, %v8223
  %v8303 = vsub.f32 %v7954, %v8223
  %v8304 = vsub.f32 %v7955, %v8223
  %v8305 = vsub.f32 %v7956, %v8223
  %v8306 = vsub.f32 %v7957, %v8223
  %v8307 = vsub.f32 %v7958, %v8223
  %v8308 = vsub.f32 %v7959, %v8223
  %v8309 = vsub.f32 %v7960, %v8223
  %v8310 = vsub.f32 %v7961, %v8223
  %v8311 = vsub.f32 %v7962, %v8223
  %v8312 = vsub.f32 %v7963, %v8223
  %v8313 = vsub.f32 %v7964, %v8223
  %v8314 = vsub.f32 %v7965, %v8223
  %v8315 = vsub.f32 %v7966, %v8223
  %v8316 = vsub.f32 %v7967, %v8223
  %v8317 = vsub.f32 %v7968, %v8223
  %v8318 = vsub.f32 %v7969, %v8223
  %v8319 = vsub.f32 %v7970, %v8223
  %v8320 = vsub.f32 %v7971, %v8223
  %v8321 = vsub.f32 %v7972, %v8223
  %v8322 = vsub.f32 %v7973, %v8223
  %v8323 = vsub.f32 %v7974, %v8223
  %v8324 = vsub.f32 %v7975, %v8223
  %v8325 = vsub.f32 %v7976, %v8223
  %v8326 = vsub.f32 %v7977, %v8223
  %v8327 = vsub.f32 %v7978, %v8223
  %v8328 = vsub.f32 %v7979, %v8223
  %v8329 = vsub.f32 %v7980, %v8223
  %v8330 = vsub.f32 %v7981, %v8223
  %v8331 = vsub.f32 %v7982, %v8223
  %v8332 = vsub.f32 %v7983, %v8223
  %v8333 = vsub.f32 %v7984, %v8223
  %v8334 = vsub.f32 %v7985, %v8223
  %v8335 = vsub.f32 %v7986, %v8223
  %v8336 = vsel %vm7990, %v8224, 0.0
  %v8337 = vsel %vm7991, %v8225, 0.0
  %v8338 = vsel %vm7992, %v8226, 0.0
  %v8339 = vsel %vm7993, %v8227, 0.0
  %v8340 = vsel %vm7990, %v8228, 0.0
  %v8341 = vsel %vm7991, %v8229, 0.0
  %v8342 = vsel %vm7992, %v8230, 0.0
  %v8343 = vsel %vm7993, %v8231, 0.0
  %v8344 = vsel %vm7990, %v8232, 0.0
  %v8345 = vsel %vm7991, %v8233, 0.0
  %v8346 = vsel %vm7992, %v8234, 0.0
  %v8347 = vsel %vm7993, %v8235, 0.0
  %v8348 = vsel %vm7990, %v8236, 0.0
  %v8349 = vsel %vm7991, %v8237, 0.0
  %v8350 = vsel %vm7992, %v8238, 0.0
  %v8351 = vsel %vm7993, %v8239, 0.0
  %v8352 = vsel %vm7990, %v8240, 0.0
  %v8353 = vsel %vm7991, %v8241, 0.0
  %v8354 = vsel %vm7992, %v8242, 0.0
  %v8355 = vsel %vm7993, %v8243, 0.0
  %v8356 = vsel %vm7990, %v8244, 0.0
  %v8357 = vsel %vm7991, %v8245, 0.0
  %v8358 = vsel %vm7992, %v8246, 0.0
  %v8359 = vsel %vm7993, %v8247, 0.0
  %v8360 = vsel %vm7990, %v8248, 0.0
  %v8361 = vsel %vm7991, %v8249, 0.0
  %v8362 = vsel %vm7992, %v8250, 0.0
  %v8363 = vsel %vm7993, %v8251, 0.0
  %v8364 = vsel %vm7990, %v8252, 0.0
  %v8365 = vsel %vm7991, %v8253, 0.0
  %v8366 = vsel %vm7992, %v8254, 0.0
  %v8367 = vsel %vm7993, %v8255, 0.0
  %v8368 = vsel %vm7990, %v8256, 0.0
  %v8369 = vsel %vm7991, %v8257, 0.0
  %v8370 = vsel %vm7992, %v8258, 0.0
  %v8371 = vsel %vm7993, %v8259, 0.0
  %v8372 = vsel %vm7990, %v8260, 0.0
  %v8373 = vsel %vm7991, %v8261, 0.0
  %v8374 = vsel %vm7992, %v8262, 0.0
  %v8375 = vsel %vm7993, %v8263, 0.0
  %v8376 = vsel %vm7990, %v8264, 0.0
  %v8377 = vsel %vm7991, %v8265, 0.0
  %v8378 = vsel %vm7992, %v8266, 0.0
  %v8379 = vsel %vm7993, %v8267, 0.0
  %v8380 = vsel %vm7990, %v8268, 0.0
  %v8381 = vsel %vm7991, %v8269, 0.0
  %v8382 = vsel %vm7992, %v8270, 0.0
  %v8383 = vsel %vm7993, %v8271, 0.0
  %v8384 = vsel %vm7990, %v8272, 0.0
  %v8385 = vsel %vm7991, %v8273, 0.0
  %v8386 = vsel %vm7992, %v8274, 0.0
  %v8387 = vsel %vm7993, %v8275, 0.0
  %v8388 = vsel %vm7990, %v8276, 0.0
  %v8389 = vsel %vm7991, %v8277, 0.0
  %v8390 = vsel %vm7992, %v8278, 0.0
  %v8391 = vsel %vm7993, %v8279, 0.0
  %v8392 = vsel %vm7990, %v8280, 0.0
  %v8393 = vsel %vm7991, %v8281, 0.0
  %v8394 = vsel %vm7992, %v8282, 0.0
  %v8395 = vsel %vm7993, %v8283, 0.0
  %v8396 = vsel %vm7990, %v8284, 0.0
  %v8397 = vsel %vm7991, %v8285, 0.0
  %v8398 = vsel %vm7992, %v8286, 0.0
  %v8399 = vsel %vm7993, %v8287, 0.0
  %v8400 = vsel %vm7990, %v8288, 0.0
  %v8401 = vsel %vm7991, %v8289, 0.0
  %v8402 = vsel %vm7992, %v8290, 0.0
  %v8403 = vsel %vm7993, %v8291, 0.0
  %v8404 = vsel %vm7990, %v8292, 0.0
  %v8405 = vsel %vm7991, %v8293, 0.0
  %v8406 = vsel %vm7992, %v8294, 0.0
  %v8407 = vsel %vm7993, %v8295, 0.0
  %v8408 = vsel %vm7990, %v8296, 0.0
  %v8409 = vsel %vm7991, %v8297, 0.0
  %v8410 = vsel %vm7992, %v8298, 0.0
  %v8411 = vsel %vm7993, %v8299, 0.0
  %v8412 = vsel %vm7990, %v8300, 0.0
  %v8413 = vsel %vm7991, %v8301, 0.0
  %v8414 = vsel %vm7992, %v8302, 0.0
  %v8415 = vsel %vm7993, %v8303, 0.0
  %v8416 = vsel %vm7990, %v8304, 0.0
  %v8417 = vsel %vm7991, %v8305, 0.0
  %v8418 = vsel %vm7992, %v8306, 0.0
  %v8419 = vsel %vm7993, %v8307, 0.0
  %v8420 = vsel %vm7990, %v8308, 0.0
  %v8421 = vsel %vm7991, %v8309, 0.0
  %v8422 = vsel %vm7992, %v8310, 0.0
  %v8423 = vsel %vm7993, %v8311, 0.0
  %v8424 = vsel %vm7990, %v8312, 0.0
  %v8425 = vsel %vm7991, %v8313, 0.0
  %v8426 = vsel %vm7992, %v8314, 0.0
  %v8427 = vsel %vm7993, %v8315, 0.0
  %v8428 = vsel %vm7990, %v8316, 0.0
  %v8429 = vsel %vm7991, %v8317, 0.0
  %v8430 = vsel %vm7992, %v8318, 0.0
  %v8431 = vsel %vm7993, %v8319, 0.0
  %v8432 = vsel %vm7990, %v8320, 0.0
  %v8433 = vsel %vm7991, %v8321, 0.0
  %v8434 = vsel %vm7992, %v8322, 0.0
  %v8435 = vsel %vm7993, %v8323, 0.0
  %v8436 = vsel %vm7990, %v8324, 0.0
  %v8437 = vsel %vm7991, %v8325, 0.0
  %v8438 = vsel %vm7992, %v8326, 0.0
  %v8439 = vsel %vm7993, %v8327, 0.0
  %v8440 = vsel %vm7990, %v8328, 0.0
  %v8441 = vsel %vm7991, %v8329, 0.0
  %v8442 = vsel %vm7992, %v8330, 0.0
  %v8443 = vsel %vm7993, %v8331, 0.0
  %v8444 = vsel %vm7990, %v8332, 0.0
  %v8445 = vsel %vm7991, %v8333, 0.0
  %v8446 = vsel %vm7992, %v8334, 0.0
  %v8447 = vsel %vm7993, %v8335, 0.0
  %v8448 = vmul.f32 %v8336, %v8336
  %v8449 = vmul.f32 %v8337, %v8337
  %v8450 = vmul.f32 %v8338, %v8338
  %v8451 = vmul.f32 %v8339, %v8339
  %v8452 = vmul.f32 %v8340, %v8340
  %v8453 = vmul.f32 %v8341, %v8341
  %v8454 = vmul.f32 %v8342, %v8342
  %v8455 = vmul.f32 %v8343, %v8343
  %v8456 = vmul.f32 %v8344, %v8344
  %v8457 = vmul.f32 %v8345, %v8345
  %v8458 = vmul.f32 %v8346, %v8346
  %v8459 = vmul.f32 %v8347, %v8347
  %v8460 = vmul.f32 %v8348, %v8348
  %v8461 = vmul.f32 %v8349, %v8349
  %v8462 = vmul.f32 %v8350, %v8350
  %v8463 = vmul.f32 %v8351, %v8351
  %v8464 = vmul.f32 %v8352, %v8352
  %v8465 = vmul.f32 %v8353, %v8353
  %v8466 = vmul.f32 %v8354, %v8354
  %v8467 = vmul.f32 %v8355, %v8355
  %v8468 = vmul.f32 %v8356, %v8356
  %v8469 = vmul.f32 %v8357, %v8357
  %v8470 = vmul.f32 %v8358, %v8358
  %v8471 = vmul.f32 %v8359, %v8359
  %v8472 = vmul.f32 %v8360, %v8360
  %v8473 = vmul.f32 %v8361, %v8361
  %v8474 = vmul.f32 %v8362, %v8362
  %v8475 = vmul.f32 %v8363, %v8363
  %v8476 = vmul.f32 %v8364, %v8364
  %v8477 = vmul.f32 %v8365, %v8365
  %v8478 = vmul.f32 %v8366, %v8366
  %v8479 = vmul.f32 %v8367, %v8367
  %v8480 = vmul.f32 %v8368, %v8368
  %v8481 = vmul.f32 %v8369, %v8369
  %v8482 = vmul.f32 %v8370, %v8370
  %v8483 = vmul.f32 %v8371, %v8371
  %v8484 = vmul.f32 %v8372, %v8372
  %v8485 = vmul.f32 %v8373, %v8373
  %v8486 = vmul.f32 %v8374, %v8374
  %v8487 = vmul.f32 %v8375, %v8375
  %v8488 = vmul.f32 %v8376, %v8376
  %v8489 = vmul.f32 %v8377, %v8377
  %v8490 = vmul.f32 %v8378, %v8378
  %v8491 = vmul.f32 %v8379, %v8379
  %v8492 = vmul.f32 %v8380, %v8380
  %v8493 = vmul.f32 %v8381, %v8381
  %v8494 = vmul.f32 %v8382, %v8382
  %v8495 = vmul.f32 %v8383, %v8383
  %v8496 = vmul.f32 %v8384, %v8384
  %v8497 = vmul.f32 %v8385, %v8385
  %v8498 = vmul.f32 %v8386, %v8386
  %v8499 = vmul.f32 %v8387, %v8387
  %v8500 = vmul.f32 %v8388, %v8388
  %v8501 = vmul.f32 %v8389, %v8389
  %v8502 = vmul.f32 %v8390, %v8390
  %v8503 = vmul.f32 %v8391, %v8391
  %v8504 = vmul.f32 %v8392, %v8392
  %v8505 = vmul.f32 %v8393, %v8393
  %v8506 = vmul.f32 %v8394, %v8394
  %v8507 = vmul.f32 %v8395, %v8395
  %v8508 = vmul.f32 %v8396, %v8396
  %v8509 = vmul.f32 %v8397, %v8397
  %v8510 = vmul.f32 %v8398, %v8398
  %v8511 = vmul.f32 %v8399, %v8399
  %v8512 = vmul.f32 %v8400, %v8400
  %v8513 = vmul.f32 %v8401, %v8401
  %v8514 = vmul.f32 %v8402, %v8402
  %v8515 = vmul.f32 %v8403, %v8403
  %v8516 = vmul.f32 %v8404, %v8404
  %v8517 = vmul.f32 %v8405, %v8405
  %v8518 = vmul.f32 %v8406, %v8406
  %v8519 = vmul.f32 %v8407, %v8407
  %v8520 = vmul.f32 %v8408, %v8408
  %v8521 = vmul.f32 %v8409, %v8409
  %v8522 = vmul.f32 %v8410, %v8410
  %v8523 = vmul.f32 %v8411, %v8411
  %v8524 = vmul.f32 %v8412, %v8412
  %v8525 = vmul.f32 %v8413, %v8413
  %v8526 = vmul.f32 %v8414, %v8414
  %v8527 = vmul.f32 %v8415, %v8415
  %v8528 = vmul.f32 %v8416, %v8416
  %v8529 = vmul.f32 %v8417, %v8417
  %v8530 = vmul.f32 %v8418, %v8418
  %v8531 = vmul.f32 %v8419, %v8419
  %v8532 = vmul.f32 %v8420, %v8420
  %v8533 = vmul.f32 %v8421, %v8421
  %v8534 = vmul.f32 %v8422, %v8422
  %v8535 = vmul.f32 %v8423, %v8423
  %v8536 = vmul.f32 %v8424, %v8424
  %v8537 = vmul.f32 %v8425, %v8425
  %v8538 = vmul.f32 %v8426, %v8426
  %v8539 = vmul.f32 %v8427, %v8427
  %v8540 = vmul.f32 %v8428, %v8428
  %v8541 = vmul.f32 %v8429, %v8429
  %v8542 = vmul.f32 %v8430, %v8430
  %v8543 = vmul.f32 %v8431, %v8431
  %v8544 = vmul.f32 %v8432, %v8432
  %v8545 = vmul.f32 %v8433, %v8433
  %v8546 = vmul.f32 %v8434, %v8434
  %v8547 = vmul.f32 %v8435, %v8435
  %v8548 = vmul.f32 %v8436, %v8436
  %v8549 = vmul.f32 %v8437, %v8437
  %v8550 = vmul.f32 %v8438, %v8438
  %v8551 = vmul.f32 %v8439, %v8439
  %v8552 = vmul.f32 %v8440, %v8440
  %v8553 = vmul.f32 %v8441, %v8441
  %v8554 = vmul.f32 %v8442, %v8442
  %v8555 = vmul.f32 %v8443, %v8443
  %v8556 = vmul.f32 %v8444, %v8444
  %v8557 = vmul.f32 %v8445, %v8445
  %v8558 = vmul.f32 %v8446, %v8446
  %v8559 = vmul.f32 %v8447, %v8447
  %v8560 = vadd.f32 %v8448, %v8449
  %v8561 = vadd.f32 %v8560, %v8450
  %v8562 = vadd.f32 %v8561, %v8451
  %v8563 = vadd.f32 %v8562, %v8452
  %v8564 = vadd.f32 %v8563, %v8453
  %v8565 = vadd.f32 %v8564, %v8454
  %v8566 = vadd.f32 %v8565, %v8455
  %v8567 = vadd.f32 %v8566, %v8456
  %v8568 = vadd.f32 %v8567, %v8457
  %v8569 = vadd.f32 %v8568, %v8458
  %v8570 = vadd.f32 %v8569, %v8459
  %v8571 = vadd.f32 %v8570, %v8460
  %v8572 = vadd.f32 %v8571, %v8461
  %v8573 = vadd.f32 %v8572, %v8462
  %v8574 = vadd.f32 %v8573, %v8463
  %v8575 = vadd.f32 %v8574, %v8464
  %v8576 = vadd.f32 %v8575, %v8465
  %v8577 = vadd.f32 %v8576, %v8466
  %v8578 = vadd.f32 %v8577, %v8467
  %v8579 = vadd.f32 %v8578, %v8468
  %v8580 = vadd.f32 %v8579, %v8469
  %v8581 = vadd.f32 %v8580, %v8470
  %v8582 = vadd.f32 %v8581, %v8471
  %v8583 = vadd.f32 %v8582, %v8472
  %v8584 = vadd.f32 %v8583, %v8473
  %v8585 = vadd.f32 %v8584, %v8474
  %v8586 = vadd.f32 %v8585, %v8475
  %v8587 = vadd.f32 %v8586, %v8476
  %v8588 = vadd.f32 %v8587, %v8477
  %v8589 = vadd.f32 %v8588, %v8478
  %v8590 = vadd.f32 %v8589, %v8479
  %v8591 = vadd.f32 %v8590, %v8480
  %v8592 = vadd.f32 %v8591, %v8481
  %v8593 = vadd.f32 %v8592, %v8482
  %v8594 = vadd.f32 %v8593, %v8483
  %v8595 = vadd.f32 %v8594, %v8484
  %v8596 = vadd.f32 %v8595, %v8485
  %v8597 = vadd.f32 %v8596, %v8486
  %v8598 = vadd.f32 %v8597, %v8487
  %v8599 = vadd.f32 %v8598, %v8488
  %v8600 = vadd.f32 %v8599, %v8489
  %v8601 = vadd.f32 %v8600, %v8490
  %v8602 = vadd.f32 %v8601, %v8491
  %v8603 = vadd.f32 %v8602, %v8492
  %v8604 = vadd.f32 %v8603, %v8493
  %v8605 = vadd.f32 %v8604, %v8494
  %v8606 = vadd.f32 %v8605, %v8495
  %v8607 = vadd.f32 %v8606, %v8496
  %v8608 = vadd.f32 %v8607, %v8497
  %v8609 = vadd.f32 %v8608, %v8498
  %v8610 = vadd.f32 %v8609, %v8499
  %v8611 = vadd.f32 %v8610, %v8500
  %v8612 = vadd.f32 %v8611, %v8501
  %v8613 = vadd.f32 %v8612, %v8502
  %v8614 = vadd.f32 %v8613, %v8503
  %v8615 = vadd.f32 %v8614, %v8504
  %v8616 = vadd.f32 %v8615, %v8505
  %v8617 = vadd.f32 %v8616, %v8506
  %v8618 = vadd.f32 %v8617, %v8507
  %v8619 = vadd.f32 %v8618, %v8508
  %v8620 = vadd.f32 %v8619, %v8509
  %v8621 = vadd.f32 %v8620, %v8510
  %v8622 = vadd.f32 %v8621, %v8511
  %v8623 = vadd.f32 %v8622, %v8512
  %v8624 = vadd.f32 %v8623, %v8513
  %v8625 = vadd.f32 %v8624, %v8514
  %v8626 = vadd.f32 %v8625, %v8515
  %v8627 = vadd.f32 %v8626, %v8516
  %v8628 = vadd.f32 %v8627, %v8517
  %v8629 = vadd.f32 %v8628, %v8518
  %v8630 = vadd.f32 %v8629, %v8519
  %v8631 = vadd.f32 %v8630, %v8520
  %v8632 = vadd.f32 %v8631, %v8521
  %v8633 = vadd.f32 %v8632, %v8522
  %v8634 = vadd.f32 %v8633, %v8523
  %v8635 = vadd.f32 %v8634, %v8524
  %v8636 = vadd.f32 %v8635, %v8525
  %v8637 = vadd.f32 %v8636, %v8526
  %v8638 = vadd.f32 %v8637, %v8527
  %v8639 = vadd.f32 %v8638, %v8528
  %v8640 = vadd.f32 %v8639, %v8529
  %v8641 = vadd.f32 %v8640, %v8530
  %v8642 = vadd.f32 %v8641, %v8531
  %v8643 = vadd.f32 %v8642, %v8532
  %v8644 = vadd.f32 %v8643, %v8533
  %v8645 = vadd.f32 %v8644, %v8534
  %v8646 = vadd.f32 %v8645, %v8535
  %v8647 = vadd.f32 %v8646, %v8536
  %v8648 = vadd.f32 %v8647, %v8537
  %v8649 = vadd.f32 %v8648, %v8538
  %v8650 = vadd.f32 %v8649, %v8539
  %v8651 = vadd.f32 %v8650, %v8540
  %v8652 = vadd.f32 %v8651, %v8541
  %v8653 = vadd.f32 %v8652, %v8542
  %v8654 = vadd.f32 %v8653, %v8543
  %v8655 = vadd.f32 %v8654, %v8544
  %v8656 = vadd.f32 %v8655, %v8545
  %v8657 = vadd.f32 %v8656, %v8546
  %v8658 = vadd.f32 %v8657, %v8547
  %v8659 = vadd.f32 %v8658, %v8548
  %v8660 = vadd.f32 %v8659, %v8549
  %v8661 = vadd.f32 %v8660, %v8550
  %v8662 = vadd.f32 %v8661, %v8551
  %v8663 = vadd.f32 %v8662, %v8552
  %v8664 = vadd.f32 %v8663, %v8553
  %v8665 = vadd.f32 %v8664, %v8554
  %v8666 = vadd.f32 %v8665, %v8555
  %v8667 = vadd.f32 %v8666, %v8556
  %v8668 = vadd.f32 %v8667, %v8557
  %v8669 = vadd.f32 %v8668, %v8558
  %v8670 = vadd.f32 %v8669, %v8559
  %v8671 = vrot.slane %v8670, 4
  %v8672 = vadd.f32 %v8670, %v8671
  %v8673 = vrot.slane %v8672, 2
  %v8674 = vadd.f32 %v8672, %v8673
  %v8675 = vrot.slane %v8674, 1
  %v8676 = vadd.f32 %v8674, %v8675
  %v8677 = vmul.f32 %v8676, 0.0012755102
  %v8678 = vadd.f32 %v8677, 1e-05
  %v8679 = vrsqrt.pop %v8678
  %v8680 = vld [vmem:[%s3] sm:$0x1]
  %v8681 = vmul.f32 %v8680, %v8679
  %v8682 = vld [vmem:[%s4] sm:$0x1]
  %v8683 = vmul.f32 %v8223, %v8681
  %v8684 = vsub.f32 %v8682, %v8683
  %v8686 = vlaneseq
  %v8687 = vshrl.u32 %v8686, 7
  %v8688 = vsub.s32 0, %v8687
  %v8689 = vrot.slane %v8681, %v8688
  %v8691 = vmul.f32 %v7875, %v8689
  %v8692 = vmul.f32 %v7876, %v8689
  %v8693 = vmul.f32 %v7877, %v8689
  %v8694 = vmul.f32 %v7878, %v8689
  %v8695 = vmul.f32 %v7879, %v8689
  %v8696 = vmul.f32 %v7880, %v8689
  %v8697 = vmul.f32 %v7881, %v8689
  %v8698 = vmul.f32 %v7882, %v8689
  %v8699 = vmul.f32 %v7883, %v8689
  %v8700 = vmul.f32 %v7884, %v8689
  %v8701 = vmul.f32 %v7885, %v8689
  %v8702 = vmul.f32 %v7886, %v8689
  %v8703 = vmul.f32 %v7887, %v8689
  %v8704 = vmul.f32 %v7888, %v8689
  %v8705 = vmul.f32 %v7889, %v8689
  %v8706 = vmul.f32 %v7890, %v8689
  %v8707 = vmul.f32 %v7891, %v8689
  %v8708 = vmul.f32 %v7892, %v8689
  %v8709 = vmul.f32 %v7893, %v8689
  %v8710 = vmul.f32 %v7894, %v8689
  %v8711 = vmul.f32 %v7895, %v8689
  %v8712 = vmul.f32 %v7896, %v8689
  %v8713 = vmul.f32 %v7897, %v8689
  %v8714 = vmul.f32 %v7898, %v8689
  %v8715 = vmul.f32 %v7899, %v8689
  %v8716 = vmul.f32 %v7900, %v8689
  %v8717 = vmul.f32 %v7901, %v8689
  %v8718 = vmul.f32 %v7902, %v8689
  %v8719 = vmul.f32 %v7903, %v8689
  %v8720 = vmul.f32 %v7904, %v8689
  %v8721 = vmul.f32 %v7905, %v8689
  %v8722 = vmul.f32 %v7906, %v8689
  %v8723 = vmul.f32 %v7907, %v8689
  %v8724 = vmul.f32 %v7908, %v8689
  %v8725 = vmul.f32 %v7909, %v8689
  %v8726 = vmul.f32 %v7910, %v8689
  %v8727 = vmul.f32 %v7911, %v8689
  %v8728 = vmul.f32 %v7912, %v8689
  %v8729 = vmul.f32 %v7913, %v8689
  %v8730 = vmul.f32 %v7914, %v8689
  %v8731 = vmul.f32 %v7915, %v8689
  %v8732 = vmul.f32 %v7916, %v8689
  %v8733 = vmul.f32 %v7917, %v8689
  %v8734 = vmul.f32 %v7918, %v8689
  %v8735 = vmul.f32 %v7919, %v8689
  %v8736 = vmul.f32 %v7920, %v8689
  %v8737 = vmul.f32 %v7921, %v8689
  %v8738 = vmul.f32 %v7922, %v8689
  %v8739 = vmul.f32 %v7923, %v8689
  %v8740 = vmul.f32 %v7924, %v8689
  %v8741 = vmul.f32 %v7925, %v8689
  %v8742 = vmul.f32 %v7926, %v8689
  %v8743 = vmul.f32 %v7927, %v8689
  %v8744 = vmul.f32 %v7928, %v8689
  %v8745 = vmul.f32 %v7929, %v8689
  %v8746 = vmul.f32 %v7930, %v8689
  %v8747 = vmul.f32 %v7931, %v8689
  %v8748 = vmul.f32 %v7932, %v8689
  %v8749 = vmul.f32 %v7933, %v8689
  %v8750 = vmul.f32 %v7934, %v8689
  %v8751 = vmul.f32 %v7935, %v8689
  %v8752 = vmul.f32 %v7936, %v8689
  %v8753 = vmul.f32 %v7937, %v8689
  %v8754 = vmul.f32 %v7938, %v8689
  %v8755 = vmul.f32 %v7939, %v8689
  %v8756 = vmul.f32 %v7940, %v8689
  %v8757 = vmul.f32 %v7941, %v8689
  %v8758 = vmul.f32 %v7942, %v8689
  %v8759 = vmul.f32 %v7943, %v8689
  %v8760 = vmul.f32 %v7944, %v8689
  %v8761 = vmul.f32 %v7945, %v8689
  %v8762 = vmul.f32 %v7946, %v8689
  %v8763 = vmul.f32 %v7947, %v8689
  %v8764 = vmul.f32 %v7948, %v8689
  %v8765 = vmul.f32 %v7949, %v8689
  %v8766 = vmul.f32 %v7950, %v8689
  %v8767 = vmul.f32 %v7951, %v8689
  %v8768 = vmul.f32 %v7952, %v8689
  %v8769 = vmul.f32 %v7953, %v8689
  %v8770 = vmul.f32 %v7954, %v8689
  %v8771 = vmul.f32 %v7955, %v8689
  %v8772 = vmul.f32 %v7956, %v8689
  %v8773 = vmul.f32 %v7957, %v8689
  %v8774 = vmul.f32 %v7958, %v8689
  %v8775 = vmul.f32 %v7959, %v8689
  %v8776 = vmul.f32 %v7960, %v8689
  %v8777 = vmul.f32 %v7961, %v8689
  %v8778 = vmul.f32 %v7962, %v8689
  %v8779 = vmul.f32 %v7963, %v8689
  %v8780 = vmul.f32 %v7964, %v8689
  %v8781 = vmul.f32 %v7965, %v8689
  %v8782 = vmul.f32 %v7966, %v8689
  %v8783 = vmul.f32 %v7967, %v8689
  %v8784 = vmul.f32 %v7968, %v8689
  %v8785 = vmul.f32 %v7969, %v8689
  %v8786 = vmul.f32 %v7970, %v8689
  %v8787 = vmul.f32 %v7971, %v8689
  %v8788 = vmul.f32 %v7972, %v8689
  %v8789 = vmul.f32 %v7973, %v8689
  %v8790 = vmul.f32 %v7974, %v8689
  %v8791 = vmul.f32 %v7975, %v8689
  %v8792 = vmul.f32 %v7976, %v8689
  %v8793 = vmul.f32 %v7977, %v8689
  %v8794 = vmul.f32 %v7978, %v8689
  %v8795 = vmul.f32 %v7979, %v8689
  %v8796 = vmul.f32 %v7980, %v8689
  %v8797 = vmul.f32 %v7981, %v8689
  %v8798 = vmul.f32 %v7982, %v8689
  %v8799 = vmul.f32 %v7983, %v8689
  %v8800 = vmul.f32 %v7984, %v8689
  %v8801 = vmul.f32 %v7985, %v8689
  %v8802 = vmul.f32 %v7986, %v8689
  %v8804 = vlaneseq
  %v8805 = vshrl.u32 %v8804, 7
  %v8806 = vsub.s32 0, %v8805
  %v8807 = vrot.slane %v8684, %v8806
  %v8809 = vadd.f32 %v8691, %v8807
  %v8810 = vadd.f32 %v8692, %v8807
  %v8811 = vadd.f32 %v8693, %v8807
  %v8812 = vadd.f32 %v8694, %v8807
  %v8813 = vadd.f32 %v8695, %v8807
  %v8814 = vadd.f32 %v8696, %v8807
  %v8815 = vadd.f32 %v8697, %v8807
  %v8816 = vadd.f32 %v8698, %v8807
  %v8817 = vadd.f32 %v8699, %v8807
  %v8818 = vadd.f32 %v8700, %v8807
  %v8819 = vadd.f32 %v8701, %v8807
  %v8820 = vadd.f32 %v8702, %v8807
  %v8821 = vadd.f32 %v8703, %v8807
  %v8822 = vadd.f32 %v8704, %v8807
  %v8823 = vadd.f32 %v8705, %v8807
  %v8824 = vadd.f32 %v8706, %v8807
  %v8825 = vadd.f32 %v8707, %v8807
  %v8826 = vadd.f32 %v8708, %v8807
  %v8827 = vadd.f32 %v8709, %v8807
  %v8828 = vadd.f32 %v8710, %v8807
  %v8829 = vadd.f32 %v8711, %v8807
  %v8830 = vadd.f32 %v8712, %v8807
  %v8831 = vadd.f32 %v8713, %v8807
  %v8832 = vadd.f32 %v8714, %v8807
  %v8833 = vadd.f32 %v8715, %v8807
  %v8834 = vadd.f32 %v8716, %v8807
  %v8835 = vadd.f32 %v8717, %v8807
  %v8836 = vadd.f32 %v8718, %v8807
  %v8837 = vadd.f32 %v8719, %v8807
  %v8838 = vadd.f32 %v8720, %v8807
  %v8839 = vadd.f32 %v8721, %v8807
  %v8840 = vadd.f32 %v8722, %v8807
  %v8841 = vadd.f32 %v8723, %v8807
  %v8842 = vadd.f32 %v8724, %v8807
  %v8843 = vadd.f32 %v8725, %v8807
  %v8844 = vadd.f32 %v8726, %v8807
  %v8845 = vadd.f32 %v8727, %v8807
  %v8846 = vadd.f32 %v8728, %v8807
  %v8847 = vadd.f32 %v8729, %v8807
  %v8848 = vadd.f32 %v8730, %v8807
  %v8849 = vadd.f32 %v8731, %v8807
  %v8850 = vadd.f32 %v8732, %v8807
  %v8851 = vadd.f32 %v8733, %v8807
  %v8852 = vadd.f32 %v8734, %v8807
  %v8853 = vadd.f32 %v8735, %v8807
  %v8854 = vadd.f32 %v8736, %v8807
  %v8855 = vadd.f32 %v8737, %v8807
  %v8856 = vadd.f32 %v8738, %v8807
  %v8857 = vadd.f32 %v8739, %v8807
  %v8858 = vadd.f32 %v8740, %v8807
  %v8859 = vadd.f32 %v8741, %v8807
  %v8860 = vadd.f32 %v8742, %v8807
  %v8861 = vadd.f32 %v8743, %v8807
  %v8862 = vadd.f32 %v8744, %v8807
  %v8863 = vadd.f32 %v8745, %v8807
  %v8864 = vadd.f32 %v8746, %v8807
  %v8865 = vadd.f32 %v8747, %v8807
  %v8866 = vadd.f32 %v8748, %v8807
  %v8867 = vadd.f32 %v8749, %v8807
  %v8868 = vadd.f32 %v8750, %v8807
  %v8869 = vadd.f32 %v8751, %v8807
  %v8870 = vadd.f32 %v8752, %v8807
  %v8871 = vadd.f32 %v8753, %v8807
  %v8872 = vadd.f32 %v8754, %v8807
  %v8873 = vadd.f32 %v8755, %v8807
  %v8874 = vadd.f32 %v8756, %v8807
  %v8875 = vadd.f32 %v8757, %v8807
  %v8876 = vadd.f32 %v8758, %v8807
  %v8877 = vadd.f32 %v8759, %v8807
  %v8878 = vadd.f32 %v8760, %v8807
  %v8879 = vadd.f32 %v8761, %v8807
  %v8880 = vadd.f32 %v8762, %v8807
  %v8881 = vadd.f32 %v8763, %v8807
  %v8882 = vadd.f32 %v8764, %v8807
  %v8883 = vadd.f32 %v8765, %v8807
  %v8884 = vadd.f32 %v8766, %v8807
  %v8885 = vadd.f32 %v8767, %v8807
  %v8886 = vadd.f32 %v8768, %v8807
  %v8887 = vadd.f32 %v8769, %v8807
  %v8888 = vadd.f32 %v8770, %v8807
  %v8889 = vadd.f32 %v8771, %v8807
  %v8890 = vadd.f32 %v8772, %v8807
  %v8891 = vadd.f32 %v8773, %v8807
  %v8892 = vadd.f32 %v8774, %v8807
  %v8893 = vadd.f32 %v8775, %v8807
  %v8894 = vadd.f32 %v8776, %v8807
  %v8895 = vadd.f32 %v8777, %v8807
  %v8896 = vadd.f32 %v8778, %v8807
  %v8897 = vadd.f32 %v8779, %v8807
  %v8898 = vadd.f32 %v8780, %v8807
  %v8899 = vadd.f32 %v8781, %v8807
  %v8900 = vadd.f32 %v8782, %v8807
  %v8901 = vadd.f32 %v8783, %v8807
  %v8902 = vadd.f32 %v8784, %v8807
  %v8903 = vadd.f32 %v8785, %v8807
  %v8904 = vadd.f32 %v8786, %v8807
  %v8905 = vadd.f32 %v8787, %v8807
  %v8906 = vadd.f32 %v8788, %v8807
  %v8907 = vadd.f32 %v8789, %v8807
  %v8908 = vadd.f32 %v8790, %v8807
  %v8909 = vadd.f32 %v8791, %v8807
  %v8910 = vadd.f32 %v8792, %v8807
  %v8911 = vadd.f32 %v8793, %v8807
  %v8912 = vadd.f32 %v8794, %v8807
  %v8913 = vadd.f32 %v8795, %v8807
  %v8914 = vadd.f32 %v8796, %v8807
  %v8915 = vadd.f32 %v8797, %v8807
  %v8916 = vadd.f32 %v8798, %v8807
  %v8917 = vadd.f32 %v8799, %v8807
  %v8918 = vadd.f32 %v8800, %v8807
  %v8919 = vadd.f32 %v8801, %v8807
  %v8920 = vadd.f32 %v8802, %v8807
  %v8921 = vld [vmem:[%s2] sm:$0xff]
  %v8922 = vld [vmem:[%s2 + $0x8] sm:$0xff]
  %v8923 = vld [vmem:[%s2 + $0x10] sm:$0xff]
  %v8924 = vld [vmem:[%s2 + $0x18] sm:$0xff]
  %v8925 = vld [vmem:[%s2 + $0x20] sm:$0xff]
  %v8926 = vld [vmem:[%s2 + $0x28] sm:$0xff]
  %v8927 = vld [vmem:[%s2 + $0x30] sm:$0xff]
  %v8928 = vld [vmem:[%s2 + $0x38] sm:$0xff]
  %v8929 = vld [vmem:[%s2 + $0x40] sm:$0xff]
  %v8930 = vld [vmem:[%s2 + $0x48] sm:$0xff]
  %v8931 = vld [vmem:[%s2 + $0x50] sm:$0xff]
  %v8932 = vld [vmem:[%s2 + $0x58] sm:$0xff]
  %v8933 = vld [vmem:[%s2 + $0x60] sm:$0xff]
  %v8934 = vld [vmem:[%s2 + $0x68] sm:$0xff]
  %v8935 = vld [vmem:[%s2 + $0x70] sm:$0xff]
  %v8936 = vld [vmem:[%s2 + $0x78] sm:$0xff]
  %v8937 = vld [vmem:[%s2 + $0x80] sm:$0xff]
  %v8938 = vld [vmem:[%s2 + $0x88] sm:$0xff]
  %v8939 = vld [vmem:[%s2 + $0x90] sm:$0xff]
  %v8940 = vld [vmem:[%s2 + $0x98] sm:$0xff]
  %v8941 = vld [vmem:[%s2 + $0xa0] sm:$0xff]
  %v8942 = vld [vmem:[%s2 + $0xa8] sm:$0xff]
  %v8943 = vld [vmem:[%s2 + $0xb0] sm:$0xff]
  %v8944 = vld [vmem:[%s2 + $0xb8] sm:$0xff]
  %v8945 = vld [vmem:[%s2 + $0xc0] sm:$0xff]
  %v8946 = vld [vmem:[%s2 + $0xc8] sm:$0xff]
  %v8947 = vld [vmem:[%s2 + $0xd0] sm:$0xff]
  %v8948 = vld [vmem:[%s2 + $0xd8] sm:$0xff]
  %v8949 = vld [vmem:[%s2 + $0xe0] sm:$0xff]
  %v8950 = vld [vmem:[%s2 + $0xe8] sm:$0xff]
  %v8951 = vld [vmem:[%s2 + $0xf0] sm:$0xff]
  %v8952 = vld [vmem:[%s2 + $0xf8] sm:$0xff]
  %v8953 = vld [vmem:[%s2 + $0x100] sm:$0xff]
  %v8954 = vld [vmem:[%s2 + $0x108] sm:$0xff]
  %v8955 = vld [vmem:[%s2 + $0x110] sm:$0xff]
  %v8956 = vld [vmem:[%s2 + $0x118] sm:$0xff]
  %v8957 = vld [vmem:[%s2 + $0x120] sm:$0xff]
  %v8958 = vld [vmem:[%s2 + $0x128] sm:$0xff]
  %v8959 = vld [vmem:[%s2 + $0x130] sm:$0xff]
  %v8960 = vld [vmem:[%s2 + $0x138] sm:$0xff]
  %v8961 = vld [vmem:[%s2 + $0x140] sm:$0xff]
  %v8962 = vld [vmem:[%s2 + $0x148] sm:$0xff]
  %v8963 = vld [vmem:[%s2 + $0x150] sm:$0xff]
  %v8964 = vld [vmem:[%s2 + $0x158] sm:$0xff]
  %v8965 = vld [vmem:[%s2 + $0x160] sm:$0xff]
  %v8966 = vld [vmem:[%s2 + $0x168] sm:$0xff]
  %v8967 = vld [vmem:[%s2 + $0x170] sm:$0xff]
  %v8968 = vld [vmem:[%s2 + $0x178] sm:$0xff]
  %v8969 = vld [vmem:[%s2 + $0x180] sm:$0xff]
  %v8970 = vld [vmem:[%s2 + $0x188] sm:$0xff]
  %v8971 = vld [vmem:[%s2 + $0x190] sm:$0xff]
  %v8972 = vld [vmem:[%s2 + $0x198] sm:$0xff]
  %v8973 = vld [vmem:[%s2 + $0x1a0] sm:$0xff]
  %v8974 = vld [vmem:[%s2 + $0x1a8] sm:$0xff]
  %v8975 = vld [vmem:[%s2 + $0x1b0] sm:$0xff]
  %v8976 = vld [vmem:[%s2 + $0x1b8] sm:$0xff]
  %v8977 = vld [vmem:[%s2 + $0x1c0] sm:$0xff]
  %v8978 = vld [vmem:[%s2 + $0x1c8] sm:$0xff]
  %v8979 = vld [vmem:[%s2 + $0x1d0] sm:$0xff]
  %v8980 = vld [vmem:[%s2 + $0x1d8] sm:$0xff]
  %v8981 = vld [vmem:[%s2 + $0x1e0] sm:$0xff]
  %v8982 = vld [vmem:[%s2 + $0x1e8] sm:$0xff]
  %v8983 = vld [vmem:[%s2 + $0x1f0] sm:$0xff]
  %v8984 = vld [vmem:[%s2 + $0x1f8] sm:$0xff]
  %v8985 = vld [vmem:[%s2 + $0x200] sm:$0xff]
  %v8986 = vld [vmem:[%s2 + $0x208] sm:$0xff]
  %v8987 = vld [vmem:[%s2 + $0x210] sm:$0xff]
  %v8988 = vld [vmem:[%s2 + $0x218] sm:$0xff]
  %v8989 = vld [vmem:[%s2 + $0x220] sm:$0xff]
  %v8990 = vld [vmem:[%s2 + $0x228] sm:$0xff]
  %v8991 = vld [vmem:[%s2 + $0x230] sm:$0xff]
  %v8992 = vld [vmem:[%s2 + $0x238] sm:$0xff]
  %v8993 = vld [vmem:[%s2 + $0x240] sm:$0xff]
  %v8994 = vld [vmem:[%s2 + $0x248] sm:$0xff]
  %v8995 = vld [vmem:[%s2 + $0x250] sm:$0xff]
  %v8996 = vld [vmem:[%s2 + $0x258] sm:$0xff]
  %v8997 = vld [vmem:[%s2 + $0x260] sm:$0xff]
  %v8998 = vld [vmem:[%s2 + $0x268] sm:$0xff]
  %v8999 = vld [vmem:[%s2 + $0x270] sm:$0xff]
  %v9000 = vld [vmem:[%s2 + $0x278] sm:$0xff]
  %v9001 = vld [vmem:[%s2 + $0x280] sm:$0xff]
  %v9002 = vld [vmem:[%s2 + $0x288] sm:$0xff]
  %v9003 = vld [vmem:[%s2 + $0x290] sm:$0xff]
  %v9004 = vld [vmem:[%s2 + $0x298] sm:$0xff]
  %v9005 = vld [vmem:[%s2 + $0x2a0] sm:$0xff]
  %v9006 = vld [vmem:[%s2 + $0x2a8] sm:$0xff]
  %v9007 = vld [vmem:[%s2 + $0x2b0] sm:$0xff]
  %v9008 = vld [vmem:[%s2 + $0x2b8] sm:$0xff]
  %v9009 = vld [vmem:[%s2 + $0x2c0] sm:$0xff]
  %v9010 = vld [vmem:[%s2 + $0x2c8] sm:$0xff]
  %v9011 = vld [vmem:[%s2 + $0x2d0] sm:$0xff]
  %v9012 = vld [vmem:[%s2 + $0x2d8] sm:$0xff]
  %v9013 = vld [vmem:[%s2 + $0x2e0] sm:$0xff]
  %v9014 = vld [vmem:[%s2 + $0x2e8] sm:$0xff]
  %v9015 = vld [vmem:[%s2 + $0x2f0] sm:$0xff]
  %v9016 = vld [vmem:[%s2 + $0x2f8] sm:$0xff]
  %v9017 = vld [vmem:[%s2 + $0x300] sm:$0xff]
  %v9018 = vld [vmem:[%s2 + $0x308] sm:$0xff]
  %v9019 = vld [vmem:[%s2 + $0x310] sm:$0xff]
  %v9020 = vld [vmem:[%s2 + $0x318] sm:$0xff]
  %v9021 = vld [vmem:[%s2 + $0x320] sm:$0xff]
  %v9022 = vld [vmem:[%s2 + $0x328] sm:$0xff]
  %v9023 = vld [vmem:[%s2 + $0x330] sm:$0xff]
  %v9024 = vld [vmem:[%s2 + $0x338] sm:$0xff]
  %v9025 = vld [vmem:[%s2 + $0x340] sm:$0xff]
  %v9026 = vld [vmem:[%s2 + $0x348] sm:$0xff]
  %v9027 = vld [vmem:[%s2 + $0x350] sm:$0xff]
  %v9028 = vld [vmem:[%s2 + $0x358] sm:$0xff]
  %v9029 = vld [vmem:[%s2 + $0x360] sm:$0xff]
  %v9030 = vld [vmem:[%s2 + $0x368] sm:$0xff]
  %v9031 = vld [vmem:[%s2 + $0x370] sm:$0xff]
  %v9032 = vld [vmem:[%s2 + $0x378] sm:$0xff]
  %v9033 = vadd.f32 %v8809, %v8921
  %v9034 = vadd.f32 %v8810, %v8922
  %v9035 = vadd.f32 %v8811, %v8923
  %v9036 = vadd.f32 %v8812, %v8924
  %v9037 = vadd.f32 %v8813, %v8925
  %v9038 = vadd.f32 %v8814, %v8926
  %v9039 = vadd.f32 %v8815, %v8927
  %v9040 = vadd.f32 %v8816, %v8928
  %v9041 = vadd.f32 %v8817, %v8929
  %v9042 = vadd.f32 %v8818, %v8930
  %v9043 = vadd.f32 %v8819, %v8931
  %v9044 = vadd.f32 %v8820, %v8932
  %v9045 = vadd.f32 %v8821, %v8933
  %v9046 = vadd.f32 %v8822, %v8934
  %v9047 = vadd.f32 %v8823, %v8935
  %v9048 = vadd.f32 %v8824, %v8936
  %v9049 = vadd.f32 %v8825, %v8937
  %v9050 = vadd.f32 %v8826, %v8938
  %v9051 = vadd.f32 %v8827, %v8939
  %v9052 = vadd.f32 %v8828, %v8940
  %v9053 = vadd.f32 %v8829, %v8941
  %v9054 = vadd.f32 %v8830, %v8942
  %v9055 = vadd.f32 %v8831, %v8943
  %v9056 = vadd.f32 %v8832, %v8944
  %v9057 = vadd.f32 %v8833, %v8945
  %v9058 = vadd.f32 %v8834, %v8946
  %v9059 = vadd.f32 %v8835, %v8947
  %v9060 = vadd.f32 %v8836, %v8948
  %v9061 = vadd.f32 %v8837, %v8949
  %v9062 = vadd.f32 %v8838, %v8950
  %v9063 = vadd.f32 %v8839, %v8951
  %v9064 = vadd.f32 %v8840, %v8952
  %v9065 = vadd.f32 %v8841, %v8953
  %v9066 = vadd.f32 %v8842, %v8954
  %v9067 = vadd.f32 %v8843, %v8955
  %v9068 = vadd.f32 %v8844, %v8956
  %v9069 = vadd.f32 %v8845, %v8957
  %v9070 = vadd.f32 %v8846, %v8958
  %v9071 = vadd.f32 %v8847, %v8959
  %v9072 = vadd.f32 %v8848, %v8960
  %v9073 = vadd.f32 %v8849, %v8961
  %v9074 = vadd.f32 %v8850, %v8962
  %v9075 = vadd.f32 %v8851, %v8963
  %v9076 = vadd.f32 %v8852, %v8964
  %v9077 = vadd.f32 %v8853, %v8965
  %v9078 = vadd.f32 %v8854, %v8966
  %v9079 = vadd.f32 %v8855, %v8967
  %v9080 = vadd.f32 %v8856, %v8968
  %v9081 = vadd.f32 %v8857, %v8969
  %v9082 = vadd.f32 %v8858, %v8970
  %v9083 = vadd.f32 %v8859, %v8971
  %v9084 = vadd.f32 %v8860, %v8972
  %v9085 = vadd.f32 %v8861, %v8973
  %v9086 = vadd.f32 %v8862, %v8974
  %v9087 = vadd.f32 %v8863, %v8975
  %v9088 = vadd.f32 %v8864, %v8976
  %v9089 = vadd.f32 %v8865, %v8977
  %v9090 = vadd.f32 %v8866, %v8978
  %v9091 = vadd.f32 %v8867, %v8979
  %v9092 = vadd.f32 %v8868, %v8980
  %v9093 = vadd.f32 %v8869, %v8981
  %v9094 = vadd.f32 %v8870, %v8982
  %v9095 = vadd.f32 %v8871, %v8983
  %v9096 = vadd.f32 %v8872, %v8984
  %v9097 = vadd.f32 %v8873, %v8985
  %v9098 = vadd.f32 %v8874, %v8986
  %v9099 = vadd.f32 %v8875, %v8987
  %v9100 = vadd.f32 %v8876, %v8988
  %v9101 = vadd.f32 %v8877, %v8989
  %v9102 = vadd.f32 %v8878, %v8990
  %v9103 = vadd.f32 %v8879, %v8991
  %v9104 = vadd.f32 %v8880, %v8992
  %v9105 = vadd.f32 %v8881, %v8993
  %v9106 = vadd.f32 %v8882, %v8994
  %v9107 = vadd.f32 %v8883, %v8995
  %v9108 = vadd.f32 %v8884, %v8996
  %v9109 = vadd.f32 %v8885, %v8997
  %v9110 = vadd.f32 %v8886, %v8998
  %v9111 = vadd.f32 %v8887, %v8999
  %v9112 = vadd.f32 %v8888, %v9000
  %v9113 = vadd.f32 %v8889, %v9001
  %v9114 = vadd.f32 %v8890, %v9002
  %v9115 = vadd.f32 %v8891, %v9003
  %v9116 = vadd.f32 %v8892, %v9004
  %v9117 = vadd.f32 %v8893, %v9005
  %v9118 = vadd.f32 %v8894, %v9006
  %v9119 = vadd.f32 %v8895, %v9007
  %v9120 = vadd.f32 %v8896, %v9008
  %v9121 = vadd.f32 %v8897, %v9009
  %v9122 = vadd.f32 %v8898, %v9010
  %v9123 = vadd.f32 %v8899, %v9011
  %v9124 = vadd.f32 %v8900, %v9012
  %v9125 = vadd.f32 %v8901, %v9013
  %v9126 = vadd.f32 %v8902, %v9014
  %v9127 = vadd.f32 %v8903, %v9015
  %v9128 = vadd.f32 %v8904, %v9016
  %v9129 = vadd.f32 %v8905, %v9017
  %v9130 = vadd.f32 %v8906, %v9018
  %v9131 = vadd.f32 %v8907, %v9019
  %v9132 = vadd.f32 %v8908, %v9020
  %v9133 = vadd.f32 %v8909, %v9021
  %v9134 = vadd.f32 %v8910, %v9022
  %v9135 = vadd.f32 %v8911, %v9023
  %v9136 = vadd.f32 %v8912, %v9024
  %v9137 = vadd.f32 %v8913, %v9025
  %v9138 = vadd.f32 %v8914, %v9026
  %v9139 = vadd.f32 %v8915, %v9027
  %v9140 = vadd.f32 %v8916, %v9028
  %v9141 = vadd.f32 %v8917, %v9029
  %v9142 = vadd.f32 %v8918, %v9030
  %v9143 = vadd.f32 %v8919, %v9031
  %v9144 = vadd.f32 %v8920, %v9032
  %9145 = vst [vmem:[%s5] sm:$0xff] %v9033
  %9146 = vst [vmem:[%s5 + $0x8] sm:$0xff] %v9034
  %9147 = vst [vmem:[%s5 + $0x10] sm:$0xff] %v9035
  %9148 = vst [vmem:[%s5 + $0x18] sm:$0xff] %v9036
  %9149 = vst [vmem:[%s5 + $0x20] sm:$0xff] %v9037
  %9150 = vst [vmem:[%s5 + $0x28] sm:$0xff] %v9038
  %9151 = vst [vmem:[%s5 + $0x30] sm:$0xff] %v9039
  %9152 = vst [vmem:[%s5 + $0x38] sm:$0xff] %v9040
  %9153 = vst [vmem:[%s5 + $0x40] sm:$0xff] %v9041
  %9154 = vst [vmem:[%s5 + $0x48] sm:$0xff] %v9042
  %9155 = vst [vmem:[%s5 + $0x50] sm:$0xff] %v9043
  %9156 = vst [vmem:[%s5 + $0x58] sm:$0xff] %v9044
  %9157 = vst [vmem:[%s5 + $0x60] sm:$0xff] %v9045
  %9158 = vst [vmem:[%s5 + $0x68] sm:$0xff] %v9046
  %9159 = vst [vmem:[%s5 + $0x70] sm:$0xff] %v9047
  %9160 = vst [vmem:[%s5 + $0x78] sm:$0xff] %v9048
  %9161 = vst [vmem:[%s5 + $0x80] sm:$0xff] %v9049
  %9162 = vst [vmem:[%s5 + $0x88] sm:$0xff] %v9050
  %9163 = vst [vmem:[%s5 + $0x90] sm:$0xff] %v9051
  %9164 = vst [vmem:[%s5 + $0x98] sm:$0xff] %v9052
  %9165 = vst [vmem:[%s5 + $0xa0] sm:$0xff] %v9053
  %9166 = vst [vmem:[%s5 + $0xa8] sm:$0xff] %v9054
  %9167 = vst [vmem:[%s5 + $0xb0] sm:$0xff] %v9055
  %9168 = vst [vmem:[%s5 + $0xb8] sm:$0xff] %v9056
  %9169 = vst [vmem:[%s5 + $0xc0] sm:$0xff] %v9057
  %9170 = vst [vmem:[%s5 + $0xc8] sm:$0xff] %v9058
  %9171 = vst [vmem:[%s5 + $0xd0] sm:$0xff] %v9059
  %9172 = vst [vmem:[%s5 + $0xd8] sm:$0xff] %v9060
  %9173 = vst [vmem:[%s5 + $0xe0] sm:$0xff] %v9061
  %9174 = vst [vmem:[%s5 + $0xe8] sm:$0xff] %v9062
  %9175 = vst [vmem:[%s5 + $0xf0] sm:$0xff] %v9063
  %9176 = vst [vmem:[%s5 + $0xf8] sm:$0xff] %v9064
  %9177 = vst [vmem:[%s5 + $0x100] sm:$0xff] %v9065
  %9178 = vst [vmem:[%s5 + $0x108] sm:$0xff] %v9066
  %9179 = vst [vmem:[%s5 + $0x110] sm:$0xff] %v9067
  %9180 = vst [vmem:[%s5 + $0x118] sm:$0xff] %v9068
  %9181 = vst [vmem:[%s5 + $0x120] sm:$0xff] %v9069
  %9182 = vst [vmem:[%s5 + $0x128] sm:$0xff] %v9070
  %9183 = vst [vmem:[%s5 + $0x130] sm:$0xff] %v9071
  %9184 = vst [vmem:[%s5 + $0x138] sm:$0xff] %v9072
  %9185 = vst [vmem:[%s5 + $0x140] sm:$0xff] %v9073
  %9186 = vst [vmem:[%s5 + $0x148] sm:$0xff] %v9074
  %9187 = vst [vmem:[%s5 + $0x150] sm:$0xff] %v9075
  %9188 = vst [vmem:[%s5 + $0x158] sm:$0xff] %v9076
  %9189 = vst [vmem:[%s5 + $0x160] sm:$0xff] %v9077
  %9190 = vst [vmem:[%s5 + $0x168] sm:$0xff] %v9078
  %9191 = vst [vmem:[%s5 + $0x170] sm:$0xff] %v9079
  %9192 = vst [vmem:[%s5 + $0x178] sm:$0xff] %v9080
  %9193 = vst [vmem:[%s5 + $0x180] sm:$0xff] %v9081
  %9194 = vst [vmem:[%s5 + $0x188] sm:$0xff] %v9082
  %9195 = vst [vmem:[%s5 + $0x190] sm:$0xff] %v9083
  %9196 = vst [vmem:[%s5 + $0x198] sm:$0xff] %v9084
  %9197 = vst [vmem:[%s5 + $0x1a0] sm:$0xff] %v9085
  %9198 = vst [vmem:[%s5 + $0x1a8] sm:$0xff] %v9086
  %9199 = vst [vmem:[%s5 + $0x1b0] sm:$0xff] %v9087
  %9200 = vst [vmem:[%s5 + $0x1b8] sm:$0xff] %v9088
  %9201 = vst [vmem:[%s5 + $0x1c0] sm:$0xff] %v9089
  %9202 = vst [vmem:[%s5 + $0x1c8] sm:$0xff] %v9090
  %9203 = vst [vmem:[%s5 + $0x1d0] sm:$0xff] %v9091
  %9204 = vst [vmem:[%s5 + $0x1d8] sm:$0xff] %v9092
  %9205 = vst [vmem:[%s5 + $0x1e0] sm:$0xff] %v9093
  %9206 = vst [vmem:[%s5 + $0x1e8] sm:$0xff] %v9094
  %9207 = vst [vmem:[%s5 + $0x1f0] sm:$0xff] %v9095
  %9208 = vst [vmem:[%s5 + $0x1f8] sm:$0xff] %v9096
  %9209 = vst [vmem:[%s5 + $0x200] sm:$0xff] %v9097
  %9210 = vst [vmem:[%s5 + $0x208] sm:$0xff] %v9098
  %9211 = vst [vmem:[%s5 + $0x210] sm:$0xff] %v9099
  %9212 = vst [vmem:[%s5 + $0x218] sm:$0xff] %v9100
  %9213 = vst [vmem:[%s5 + $0x220] sm:$0xff] %v9101
  %9214 = vst [vmem:[%s5 + $0x228] sm:$0xff] %v9102
  %9215 = vst [vmem:[%s5 + $0x230] sm:$0xff] %v9103
  %9216 = vst [vmem:[%s5 + $0x238] sm:$0xff] %v9104
  %9217 = vst [vmem:[%s5 + $0x240] sm:$0xff] %v9105
  %9218 = vst [vmem:[%s5 + $0x248] sm:$0xff] %v9106
  %9219 = vst [vmem:[%s5 + $0x250] sm:$0xff] %v9107
  %9220 = vst [vmem:[%s5 + $0x258] sm:$0xff] %v9108
  %9221 = vst [vmem:[%s5 + $0x260] sm:$0xff] %v9109
  %9222 = vst [vmem:[%s5 + $0x268] sm:$0xff] %v9110
  %9223 = vst [vmem:[%s5 + $0x270] sm:$0xff] %v9111
  %9224 = vst [vmem:[%s5 + $0x278] sm:$0xff] %v9112
  %9225 = vst [vmem:[%s5 + $0x280] sm:$0xff] %v9113
  %9226 = vst [vmem:[%s5 + $0x288] sm:$0xff] %v9114
  %9227 = vst [vmem:[%s5 + $0x290] sm:$0xff] %v9115
  %9228 = vst [vmem:[%s5 + $0x298] sm:$0xff] %v9116
  %9229 = vst [vmem:[%s5 + $0x2a0] sm:$0xff] %v9117
  %9230 = vst [vmem:[%s5 + $0x2a8] sm:$0xff] %v9118
  %9231 = vst [vmem:[%s5 + $0x2b0] sm:$0xff] %v9119
  %9232 = vst [vmem:[%s5 + $0x2b8] sm:$0xff] %v9120
  %9233 = vst [vmem:[%s5 + $0x2c0] sm:$0xff] %v9121
  %9234 = vst [vmem:[%s5 + $0x2c8] sm:$0xff] %v9122
  %9235 = vst [vmem:[%s5 + $0x2d0] sm:$0xff] %v9123
  %9236 = vst [vmem:[%s5 + $0x2d8] sm:$0xff] %v9124
  %9237 = vst [vmem:[%s5 + $0x2e0] sm:$0xff] %v9125
  %9238 = vst [vmem:[%s5 + $0x2e8] sm:$0xff] %v9126
  %9239 = vst [vmem:[%s5 + $0x2f0] sm:$0xff] %v9127
  %9240 = vst [vmem:[%s5 + $0x2f8] sm:$0xff] %v9128
  %9241 = vst [vmem:[%s5 + $0x300] sm:$0xff] %v9129
  %9242 = vst [vmem:[%s5 + $0x308] sm:$0xff] %v9130
  %9243 = vst [vmem:[%s5 + $0x310] sm:$0xff] %v9131
  %9244 = vst [vmem:[%s5 + $0x318] sm:$0xff] %v9132
  %9245 = vst [vmem:[%s5 + $0x320] sm:$0xff] %v9133
  %9246 = vst [vmem:[%s5 + $0x328] sm:$0xff] %v9134
  %9247 = vst [vmem:[%s5 + $0x330] sm:$0xff] %v9135
  %9248 = vst [vmem:[%s5 + $0x338] sm:$0xff] %v9136
  %9249 = vst [vmem:[%s5 + $0x340] sm:$0xff] %v9137
  %9250 = vst [vmem:[%s5 + $0x348] sm:$0xff] %v9138
  %9251 = vst [vmem:[%s5 + $0x350] sm:$0xff] %v9139
  %9252 = vst [vmem:[%s5 + $0x358] sm:$0xff] %v9140
  %9253 = vst [vmem:[%s5 + $0x360] sm:$0xff] %v9141
  %9254 = vst [vmem:[%s5 + $0x368] sm:$0xff] %v9142
  %9255 = vst [vmem:[%s5 + $0x370] sm:$0xff] %v9143
  %9256 = vst [vmem:[%s5 + $0x378] sm:$0xff] %v9144
  // Predicated region
  $region22: #{conv_bn_add.1} parent=0 // pred_check
    _
  $region23: #{conv_bn_add.1} parent=0 // pred_check_branch
    %9258 = sbr.rel (0) target = $region25
  $region24: #{conv_bn_add.1} parent=0 // pred_region
    _
  $region25: #{conv_bn_add.1} parent=0 // pred_fallthru
    _
  // Predicated region
  $region26: #{conv_bn_add.1} parent=0 // pred_check
    _
  $region27: #{conv_bn_add.1} parent=0 // pred_check_branch
    %9260 = sbr.rel (0) target = $region29
  $region28: #{conv_bn_add.1} parent=0 // pred_region
    _
  $region29: #{conv_bn_add.1} parent=0 // pred_fallthru
    _

</llo_original>
